<compile_context>
chip_gen: v6e
topology: v6e:2x2x1
jax: 0.10.0
libtpu: 0.0.40
codegen_flags: <defaults>
</compile_context>

<pallas_src>
import numpy as np
import jax
import jax.numpy as jnp
from jax.experimental import pallas as pl
from jax.experimental.pallas import tpu as pltpu


def _centered_dft_mat(n):
    """Matrix C with C @ v == fftshift(fft(ifftshift(v), norm='ortho')).

    For the ortho DFT the centered inverse matrix is conj(C), so no separate
    inverse matrices are needed.
    """
    eye = np.eye(n, dtype=np.complex64)
    f = np.fft.fft(np.fft.ifftshift(eye, axes=0), axis=0, norm="ortho")
    mat = np.fft.fftshift(f, axes=0).astype(np.complex64)
    return jnp.asarray(mat.real, jnp.float32), jnp.asarray(mat.imag, jnp.float32)


# Per-grid-step VMEM budget used to choose how many coils to block per step.
# Conservative so blocked tiles fit v7x's 64 MiB physical VMEM with headroom;
# v5e / v6e (128 MiB) are then always safe too.
_VMEM_BUDGET_BYTES = 40 * 1024 * 1024


def _coil_block_vmem_bytes(cblk, h, w):
    slab = cblk * h * w * 4  # one f32 (cblk*H, W) buffer
    # 5 coil-resident input streams + 2 outputs (double-buffered by the
    # pipeline) plus ~14 slab-sized temporaries (complex intermediates and
    # bf16 hi/lo splits).
    return slab * (5 * 2 + 2 * 2 + 14)


def _pick_coil_block(n_coils, h, w, budget=_VMEM_BUDGET_BYTES):
    if h % 8 != 0:  # keep per-coil row slices sublane-tile aligned
        return 1
    best = 1
    for cb in range(1, n_coils + 1):
        if n_coils % cb == 0 and _coil_block_vmem_bytes(cb, h, w) <= budget:
            best = cb
    return best


def recon_original_layer(k_acq, csm, mask, img, rho, *,
                         mxu_passes=3, coil_block=None):
    """Pallas implementation of ReconstructionOriginalLayer.forward.

    k_acq, csm: (re, im) float32 arrays of shape [B, C, H, W];
    mask: [B, C, H, W] (any real dtype; bf16/int8 recommended);
    img: (re, im) float32 arrays of shape [B, H, W].
    Returns (re, im) float32 arrays of shape [B, C, H, W].

    mxu_passes: 3 -> explicit bf16 hi/lo split (~f32 accuracy, HIGH-equivalent)
                1 -> single-pass bf16 operands (max MXU throughput).
    """
    (kr, ki), (cr, ci), (xr, xi) = k_acq, csm, img
    B, C, H, W = kr.shape
    rho = float(rho)
    inv_rho1 = 1.0 / (1.0 + rho)
    one_pass = (int(mxu_passes) == 1)

    cblk = _pick_coil_block(C, H, W) if coil_block is None else int(coil_block)
    assert C % cblk == 0, "coil_block must divide the coil count"
    G = C // cblk
    CHW = cblk * H

    # Forward centered DFT matrices only; the W matrix is passed pre-transposed
    # since it is always used as a right-multiplication.  The inverse transform
    # uses their conjugates (sign flips inside cmm), so 4 matrices total.
    fhr, fhi = _centered_dft_mat(H)
    cw_r, cw_i = _centered_dft_mat(W)
    fwtr, fwti = cw_r.T, cw_i.T

    # Free, contiguous metadata reshape: block `cblk` coils per grid step and
    # flatten them into the row (sublane) axis so the kernel sees 2D slabs.
    def rs(a):
        return a.reshape(B, G, CHW, W)

    kr4, ki4, cr4, ci4, m4 = rs(kr), rs(ki), rs(cr), rs(ci), rs(mask)

    def kernel(kr_ref, ki_ref, m_ref, cr_ref, ci_ref, xr_ref, xi_ref,
               fhr_ref, fhi_ref, fwtr_ref, fwti_ref, or_ref, oi_ref):
        f32, bf16 = jnp.float32, jnp.bfloat16

        def split(a):
            # f32 -> bf16 hi (+ bf16 lo residual for the 3-pass path)
            hi = a.astype(bf16)
            if one_pass:
                return hi, None
            return hi, (a - hi.astype(f32)).astype(bf16)

        def rmm(a, b):
            # real f32 matmul via bf16 MXU passes with f32 accumulation
            ah, al = split(a)
            bh, bl = split(b)
            out = jnp.dot(ah, bh, preferred_element_type=f32)
            if not one_pass:
                out = out + jnp.dot(ah, bl, preferred_element_type=f32)
                out = out + jnp.dot(al, bh, preferred_element_type=f32)
            return out

        def cmm(ar, ai, br, bi, conj_a=False, conj_b=False):
            # Complex matmul, Gauss 3-multiply form (3 real matmuls, not 4).
            # At most one conj flag is ever set (used for the inverse FFT).
            p1 = rmm(ar, br)
            p2 = rmm(ai, bi)
            a3 = ar - ai if conj_a else ar + ai
            b3 = br - bi if conj_b else br + bi
            p3 = rmm(a3, b3)
            if conj_a or conj_b:
                return p1 + p2, p3 - p1 + p2
            return p1 - p2, p3 - p1 - p2

        fh_r, fh_i = fhr_ref[...], fhi_ref[...]      # left (H) transform
        fwt_r, fwt_i = fwtr_ref[...], fwti_ref[...]  # right (W) transform

        # coil-weighted images  y = csm * I  (elementwise complex, f32)
        imr = jnp.concatenate([xr_ref[...]] * cblk, axis=0)  # (cblk*H, W)
        imi = jnp.concatenate([xi_ref[...]] * cblk, axis=0)
        csr, csi = cr_ref[...], ci_ref[...]
        yr = csr * imr - csi * imi
        yi = csr * imi + csi * imr

        # K_est = fft2c(y) = Fh @ y_c @ Fw^T
        #  - H transform per coil (static, tile-aligned row slices)
        #  - W transform once on the coil-flattened [cblk*H, W] slab (big M)
        tr_parts, ti_parts = [], []
        for c in range(cblk):
            rows = slice(c * H, (c + 1) * H)
            tr_c, ti_c = cmm(fh_r, fh_i, yr[rows, :], yi[rows, :])
            tr_parts.append(tr_c)
            ti_parts.append(ti_c)
        tr = jnp.concatenate(tr_parts, axis=0)
        ti = jnp.concatenate(ti_parts, axis=0)
        er, ei = cmm(tr, ti, fwt_r, fwt_i)

        # data consistency (diagonal closed form), f32 elementwise:
        #   d = e + m * ((k + rho*e) * 1/(1+rho) - e)
        m = m_ref[...].astype(f32)
        kar, kai = kr_ref[...], ki_ref[...]
        dr = er + m * ((kar + rho * er) * inv_rho1 - er)
        di = ei + m * ((kai + rho * ei) * inv_rho1 - ei)

        # I_out = ifft2c(K) = conj(Fh) @ K_c @ conj(Fw)^T
        ur, ui = cmm(dr, di, fwt_r, fwt_i, conj_b=True)
        for c in range(cblk):
            rows = slice(c * H, (c + 1) * H)
            vr, vi = cmm(fh_r, fh_i, ur[rows, :], ui[rows, :], conj_a=True)
            or_ref[rows, :] = vr
            oi_ref[rows, :] = vi

    blk = pl.BlockSpec((None, None, CHW, W), lambda b, g: (b, g, 0, 0))
    img_blk = pl.BlockSpec((None, H, W), lambda b, g: (b, 0, 0))
    mat_h = pl.BlockSpec((H, H), lambda b, g: (0, 0))
    mat_w = pl.BlockSpec((W, W), lambda b, g: (0, 0))

    est = (_coil_block_vmem_bytes(cblk, H, W)
           + 4 * (H * H + W * W) * 4 * 2)  # + double-buffered DFT matrices
    vmem_limit = int(min(max(est + 8 * 1024 * 1024, 32 * 1024 * 1024),
                         56 * 1024 * 1024))

    out_r, out_i = pl.pallas_call(
        kernel,
        out_shape=(jax.ShapeDtypeStruct((B, G, CHW, W), jnp.float32),
                   jax.ShapeDtypeStruct((B, G, CHW, W), jnp.float32)),
        grid=(B, G),
        in_specs=[blk, blk, blk, blk, blk, img_blk, img_blk,
                  mat_h, mat_h, mat_w, mat_w],
        out_specs=(blk, blk),
        compiler_params=pltpu.CompilerParams(
            dimension_semantics=("parallel", "parallel"),
            vmem_limit_bytes=vmem_limit),
    )(kr4, ki4, m4, cr4, ci4, xr, xi, fhr, fhi, fwtr, fwti)

    return out_r.reshape(B, C, H, W), out_i.reshape(B, C, H, W)


# ----------------------- pure-JAX reference ---------------------------------
def _fft2c(x):
    return jnp.fft.fftshift(
        jnp.fft.fft2(jnp.fft.ifftshift(x, axes=(-2, -1)), norm="ortho"),
        axes=(-2, -1))


def _ifft2c(x):
    return jnp.fft.fftshift(
        jnp.fft.ifft2(jnp.fft.ifftshift(x, axes=(-2, -1)), norm="ortho"),
        axes=(-2, -1))


def _ref_forward(kacq, csm, mask, img, rho):
    k_est = _fft2c(csm * img[:, None, :, :])
    k_dc = mask * (kacq + rho * k_est) / (1.0 + rho) + (1.0 - mask) * k_est
    return _ifft2c(k_dc)


if __name__ == "__main__":
    B, C, H, W = 2, 4, 16, 16
    rho = 1.0

    key = jax.random.PRNGKey(0)
    k1, k2, k3, k4, k5, k6, k7 = jax.random.split(key, 7)

    kr = jax.random.normal(k1, (B, C, H, W), jnp.float32)
    ki = jax.random.normal(k2, (B, C, H, W), jnp.float32)
    cr = jax.random.normal(k3, (B, C, H, W), jnp.float32)
    ci = jax.random.normal(k4, (B, C, H, W), jnp.float32)
    xr = jax.random.normal(k5, (B, H, W), jnp.float32)
    xi = jax.random.normal(k6, (B, H, W), jnp.float32)
    # Binary sampling mask stored in bf16 (exact 0/1) to halve its DMA bytes.
    mask = (jax.random.uniform(k7, (B, C, H, W)) < 0.4).astype(jnp.bfloat16)

    out_r, out_i = recon_original_layer((kr, ki), (cr, ci), mask, (xr, xi), rho)
    out_r = jax.block_until_ready(out_r)
    out_i = jax.block_until_ready(out_i)

    ref = _ref_forward(kr + 1j * ki, cr + 1j * ci, mask.astype(jnp.float32),
                       xr + 1j * xi, rho)
    np.testing.assert_allclose(np.asarray(out_r), np.asarray(ref.real),
                               rtol=2e-3, atol=2e-3)
    np.testing.assert_allclose(np.asarray(out_i), np.asarray(ref.imag),
                               rtol=2e-3, atol=2e-3)
    print("KERNEL_OK")
</pallas_src>

<mosaic_0001>
module attributes {stable_mosaic.version = 11 : i64} {
  func.func @kernel(%arg0: i32, %arg1: i32, %arg2: memref<1x1x64x16xf32, #tpu.memory_space<vmem>>, %arg3: memref<1x1x64x16xf32, #tpu.memory_space<vmem>>, %arg4: memref<1x1x64x16xbf16, #tpu.memory_space<vmem>>, %arg5: memref<1x1x64x16xf32, #tpu.memory_space<vmem>>, %arg6: memref<1x1x64x16xf32, #tpu.memory_space<vmem>>, %arg7: memref<1x16x16xf32, #tpu.memory_space<vmem>>, %arg8: memref<1x16x16xf32, #tpu.memory_space<vmem>>, %arg9: memref<16x16xf32, #tpu.memory_space<vmem>>, %arg10: memref<16x16xf32, #tpu.memory_space<vmem>>, %arg11: memref<16x16xf32, #tpu.memory_space<vmem>>, %arg12: memref<16x16xf32, #tpu.memory_space<vmem>>, %arg13: memref<1x1x64x16xf32, #tpu.memory_space<vmem>>, %arg14: memref<1x1x64x16xf32, #tpu.memory_space<vmem>>) attributes {dimension_semantics = [#tpu.dimension_semantics<parallel>, #tpu.dimension_semantics<parallel>], iteration_bounds = array<i64: 2, 1>, scalar_prefetch = 0 : i64, scratch_operands = 0 : i64, tpu.core_type = #tpu.core_type<tc>, window_params = [{transform_indices = @transform_0, window_bounds = array<i64: 1, 1, 64, 16>}, {transform_indices = @transform_1, window_bounds = array<i64: 1, 1, 64, 16>}, {transform_indices = @transform_2, window_bounds = array<i64: 1, 1, 64, 16>}, {transform_indices = @transform_3, window_bounds = array<i64: 1, 1, 64, 16>}, {transform_indices = @transform_4, window_bounds = array<i64: 1, 1, 64, 16>}, {transform_indices = @transform_5, window_bounds = array<i64: 1, 16, 16>}, {transform_indices = @transform_6, window_bounds = array<i64: 1, 16, 16>}, {pipeline_mode = #tpu.pipeline_mode<synchronous>, transform_indices = @transform_7, window_bounds = array<i64: 16, 16>}, {pipeline_mode = #tpu.pipeline_mode<synchronous>, transform_indices = @transform_8, window_bounds = array<i64: 16, 16>}, {pipeline_mode = #tpu.pipeline_mode<synchronous>, transform_indices = @transform_9, window_bounds = array<i64: 16, 16>}, {pipeline_mode = #tpu.pipeline_mode<synchronous>, transform_indices = @transform_10, window_bounds = array<i64: 16, 16>}, {transform_indices = @transform_11, window_bounds = array<i64: 1, 1, 64, 16>}, {transform_indices = @transform_12, window_bounds = array<i64: 1, 1, 64, 16>}]} {
    %c0 = arith.constant 0 : index
    %c0_0 = arith.constant 0 : index
    %0 = vector.load %arg9[%c0, %c0_0] : memref<16x16xf32, #tpu.memory_space<vmem>>, vector<16x16xf32>
    %c0_1 = arith.constant 0 : index
    %c0_2 = arith.constant 0 : index
    %1 = vector.load %arg10[%c0_1, %c0_2] : memref<16x16xf32, #tpu.memory_space<vmem>>, vector<16x16xf32>
    %c0_3 = arith.constant 0 : index
    %c0_4 = arith.constant 0 : index
    %2 = vector.load %arg11[%c0_3, %c0_4] : memref<16x16xf32, #tpu.memory_space<vmem>>, vector<16x16xf32>
    %c0_5 = arith.constant 0 : index
    %c0_6 = arith.constant 0 : index
    %3 = vector.load %arg12[%c0_5, %c0_6] : memref<16x16xf32, #tpu.memory_space<vmem>>, vector<16x16xf32>
    %c0_7 = arith.constant 0 : index
    %c0_8 = arith.constant 0 : index
    %c0_9 = arith.constant 0 : index
    %4 = vector.load %arg7[%c0_7, %c0_8, %c0_9] : memref<1x16x16xf32, #tpu.memory_space<vmem>>, vector<1x16x16xf32>
    %5 = vector.shape_cast %4 : vector<1x16x16xf32> to vector<16x16xf32>
    %6 = tpu.concatenate %5, %5, %5, %5 in 0 : vector<16x16xf32>, vector<16x16xf32>, vector<16x16xf32>, vector<16x16xf32> -> vector<64x16xf32>
    %c0_10 = arith.constant 0 : index
    %c0_11 = arith.constant 0 : index
    %c0_12 = arith.constant 0 : index
    %7 = vector.load %arg8[%c0_10, %c0_11, %c0_12] : memref<1x16x16xf32, #tpu.memory_space<vmem>>, vector<1x16x16xf32>
    %8 = vector.shape_cast %7 : vector<1x16x16xf32> to vector<16x16xf32>
    %9 = tpu.concatenate %8, %8, %8, %8 in 0 : vector<16x16xf32>, vector<16x16xf32>, vector<16x16xf32>, vector<16x16xf32> -> vector<64x16xf32>
    %c0_13 = arith.constant 0 : index
    %c0_14 = arith.constant 0 : index
    %c0_15 = arith.constant 0 : index
    %c0_16 = arith.constant 0 : index
    %10 = vector.load %arg5[%c0_13, %c0_14, %c0_15, %c0_16] : memref<1x1x64x16xf32, #tpu.memory_space<vmem>>, vector<1x1x64x16xf32>
    %11 = vector.shape_cast %10 : vector<1x1x64x16xf32> to vector<64x16xf32>
    %c0_17 = arith.constant 0 : index
    %c0_18 = arith.constant 0 : index
    %c0_19 = arith.constant 0 : index
    %c0_20 = arith.constant 0 : index
    %12 = vector.load %arg6[%c0_17, %c0_18, %c0_19, %c0_20] : memref<1x1x64x16xf32, #tpu.memory_space<vmem>>, vector<1x1x64x16xf32>
    %13 = vector.shape_cast %12 : vector<1x1x64x16xf32> to vector<64x16xf32>
    %14 = arith.mulf %11, %6 : vector<64x16xf32>
    %15 = arith.mulf %13, %9 : vector<64x16xf32>
    %16 = arith.subf %14, %15 : vector<64x16xf32>
    %17 = arith.mulf %11, %9 : vector<64x16xf32>
    %18 = arith.mulf %13, %6 : vector<64x16xf32>
    %19 = arith.addf %17, %18 : vector<64x16xf32>
    %20 = vector.extract_strided_slice %16 {offsets = [0, 0], sizes = [16, 16], strides = [1, 1]} : vector<64x16xf32> to vector<16x16xf32>
    %21 = vector.extract_strided_slice %19 {offsets = [0, 0], sizes = [16, 16], strides = [1, 1]} : vector<64x16xf32> to vector<16x16xf32>
    %22 = arith.truncf %0 : vector<16x16xf32> to vector<16x16xbf16>
    %23 = arith.extf %22 : vector<16x16xbf16> to vector<16x16xf32>
    %24 = arith.subf %0, %23 : vector<16x16xf32>
    %25 = arith.truncf %24 : vector<16x16xf32> to vector<16x16xbf16>
    %26 = arith.truncf %20 : vector<16x16xf32> to vector<16x16xbf16>
    %27 = arith.extf %26 : vector<16x16xbf16> to vector<16x16xf32>
    %28 = arith.subf %20, %27 : vector<16x16xf32>
    %29 = arith.truncf %28 : vector<16x16xf32> to vector<16x16xbf16>
    %cst = arith.constant dense<0.000000e+00> : vector<16x16xf32>
    %30 = tpu.matmul %22, %26, %cst {dimension_numbers = #tpu.dot_dimension_numbers<[1], [0], [0], [1], [0, 0, 1, 1], [], []>} : vector<16x16xbf16>, vector<16x16xbf16>, vector<16x16xf32> -> vector<16x16xf32>
    %cst_21 = arith.constant dense<0.000000e+00> : vector<16x16xf32>
    %31 = tpu.matmul %22, %29, %cst_21 {dimension_numbers = #tpu.dot_dimension_numbers<[1], [0], [0], [1], [0, 0, 1, 1], [], []>} : vector<16x16xbf16>, vector<16x16xbf16>, vector<16x16xf32> -> vector<16x16xf32>
    %32 = arith.addf %30, %31 : vector<16x16xf32>
    %cst_22 = arith.constant dense<0.000000e+00> : vector<16x16xf32>
    %33 = tpu.matmul %25, %26, %cst_22 {dimension_numbers = #tpu.dot_dimension_numbers<[1], [0], [0], [1], [0, 0, 1, 1], [], []>} : vector<16x16xbf16>, vector<16x16xbf16>, vector<16x16xf32> -> vector<16x16xf32>
    %34 = arith.addf %32, %33 : vector<16x16xf32>
    %35 = arith.truncf %1 : vector<16x16xf32> to vector<16x16xbf16>
    %36 = arith.extf %35 : vector<16x16xbf16> to vector<16x16xf32>
    %37 = arith.subf %1, %36 : vector<16x16xf32>
    %38 = arith.truncf %37 : vector<16x16xf32> to vector<16x16xbf16>
    %39 = arith.truncf %21 : vector<16x16xf32> to vector<16x16xbf16>
    %40 = arith.extf %39 : vector<16x16xbf16> to vector<16x16xf32>
    %41 = arith.subf %21, %40 : vector<16x16xf32>
    %42 = arith.truncf %41 : vector<16x16xf32> to vector<16x16xbf16>
    %cst_23 = arith.constant dense<0.000000e+00> : vector<16x16xf32>
    %43 = tpu.matmul %35, %39, %cst_23 {dimension_numbers = #tpu.dot_dimension_numbers<[1], [0], [0], [1], [0, 0, 1, 1], [], []>} : vector<16x16xbf16>, vector<16x16xbf16>, vector<16x16xf32> -> vector<16x16xf32>
    %cst_24 = arith.constant dense<0.000000e+00> : vector<16x16xf32>
    %44 = tpu.matmul %35, %42, %cst_24 {dimension_numbers = #tpu.dot_dimension_numbers<[1], [0], [0], [1], [0, 0, 1, 1], [], []>} : vector<16x16xbf16>, vector<16x16xbf16>, vector<16x16xf32> -> vector<16x16xf32>
    %45 = arith.addf %43, %44 : vector<16x16xf32>
    %cst_25 = arith.constant dense<0.000000e+00> : vector<16x16xf32>
    %46 = tpu.matmul %38, %39, %cst_25 {dimension_numbers = #tpu.dot_dimension_numbers<[1], [0], [0], [1], [0, 0, 1, 1], [], []>} : vector<16x16xbf16>, vector<16x16xbf16>, vector<16x16xf32> -> vector<16x16xf32>
    %47 = arith.addf %45, %46 : vector<16x16xf32>
    %48 = arith.addf %0, %1 : vector<16x16xf32>
    %49 = arith.addf %20, %21 : vector<16x16xf32>
    %50 = arith.truncf %48 : vector<16x16xf32> to vector<16x16xbf16>
    %51 = arith.extf %50 : vector<16x16xbf16> to vector<16x16xf32>
    %52 = arith.subf %48, %51 : vector<16x16xf32>
    %53 = arith.truncf %52 : vector<16x16xf32> to vector<16x16xbf16>
    %54 = arith.truncf %49 : vector<16x16xf32> to vector<16x16xbf16>
    %55 = arith.extf %54 : vector<16x16xbf16> to vector<16x16xf32>
    %56 = arith.subf %49, %55 : vector<16x16xf32>
    %57 = arith.truncf %56 : vector<16x16xf32> to vector<16x16xbf16>
    %cst_26 = arith.constant dense<0.000000e+00> : vector<16x16xf32>
    %58 = tpu.matmul %50, %54, %cst_26 {dimension_numbers = #tpu.dot_dimension_numbers<[1], [0], [0], [1], [0, 0, 1, 1], [], []>} : vector<16x16xbf16>, vector<16x16xbf16>, vector<16x16xf32> -> vector<16x16xf32>
    %cst_27 = arith.constant dense<0.000000e+00> : vector<16x16xf32>
    %59 = tpu.matmul %50, %57, %cst_27 {dimension_numbers = #tpu.dot_dimension_numbers<[1], [0], [0], [1], [0, 0, 1, 1], [], []>} : vector<16x16xbf16>, vector<16x16xbf16>, vector<16x16xf32> -> vector<16x16xf32>
    %60 = arith.addf %58, %59 : vector<16x16xf32>
    %cst_28 = arith.constant dense<0.000000e+00> : vector<16x16xf32>
    %61 = tpu.matmul %53, %54, %cst_28 {dimension_numbers = #tpu.dot_dimension_numbers<[1], [0], [0], [1], [0, 0, 1, 1], [], []>} : vector<16x16xbf16>, vector<16x16xbf16>, vector<16x16xf32> -> vector<16x16xf32>
    %62 = arith.addf %60, %61 : vector<16x16xf32>
    %63 = arith.subf %34, %47 : vector<16x16xf32>
    %64 = arith.subf %62, %34 : vector<16x16xf32>
    %65 = arith.subf %64, %47 : vector<16x16xf32>
    %66 = vector.extract_strided_slice %16 {offsets = [16, 0], sizes = [16, 16], strides = [1, 1]} : vector<64x16xf32> to vector<16x16xf32>
    %67 = vector.extract_strided_slice %19 {offsets = [16, 0], sizes = [16, 16], strides = [1, 1]} : vector<64x16xf32> to vector<16x16xf32>
    %68 = arith.truncf %0 : vector<16x16xf32> to vector<16x16xbf16>
    %69 = arith.extf %68 : vector<16x16xbf16> to vector<16x16xf32>
    %70 = arith.subf %0, %69 : vector<16x16xf32>
    %71 = arith.truncf %70 : vector<16x16xf32> to vector<16x16xbf16>
    %72 = arith.truncf %66 : vector<16x16xf32> to vector<16x16xbf16>
    %73 = arith.extf %72 : vector<16x16xbf16> to vector<16x16xf32>
    %74 = arith.subf %66, %73 : vector<16x16xf32>
    %75 = arith.truncf %74 : vector<16x16xf32> to vector<16x16xbf16>
    %cst_29 = arith.constant dense<0.000000e+00> : vector<16x16xf32>
    %76 = tpu.matmul %68, %72, %cst_29 {dimension_numbers = #tpu.dot_dimension_numbers<[1], [0], [0], [1], [0, 0, 1, 1], [], []>} : vector<16x16xbf16>, vector<16x16xbf16>, vector<16x16xf32> -> vector<16x16xf32>
    %cst_30 = arith.constant dense<0.000000e+00> : vector<16x16xf32>
    %77 = tpu.matmul %68, %75, %cst_30 {dimension_numbers = #tpu.dot_dimension_numbers<[1], [0], [0], [1], [0, 0, 1, 1], [], []>} : vector<16x16xbf16>, vector<16x16xbf16>, vector<16x16xf32> -> vector<16x16xf32>
    %78 = arith.addf %76, %77 : vector<16x16xf32>
    %cst_31 = arith.constant dense<0.000000e+00> : vector<16x16xf32>
    %79 = tpu.matmul %71, %72, %cst_31 {dimension_numbers = #tpu.dot_dimension_numbers<[1], [0], [0], [1], [0, 0, 1, 1], [], []>} : vector<16x16xbf16>, vector<16x16xbf16>, vector<16x16xf32> -> vector<16x16xf32>
    %80 = arith.addf %78, %79 : vector<16x16xf32>
    %81 = arith.truncf %1 : vector<16x16xf32> to vector<16x16xbf16>
    %82 = arith.extf %81 : vector<16x16xbf16> to vector<16x16xf32>
    %83 = arith.subf %1, %82 : vector<16x16xf32>
    %84 = arith.truncf %83 : vector<16x16xf32> to vector<16x16xbf16>
    %85 = arith.truncf %67 : vector<16x16xf32> to vector<16x16xbf16>
    %86 = arith.extf %85 : vector<16x16xbf16> to vector<16x16xf32>
    %87 = arith.subf %67, %86 : vector<16x16xf32>
    %88 = arith.truncf %87 : vector<16x16xf32> to vector<16x16xbf16>
    %cst_32 = arith.constant dense<0.000000e+00> : vector<16x16xf32>
    %89 = tpu.matmul %81, %85, %cst_32 {dimension_numbers = #tpu.dot_dimension_numbers<[1], [0], [0], [1], [0, 0, 1, 1], [], []>} : vector<16x16xbf16>, vector<16x16xbf16>, vector<16x16xf32> -> vector<16x16xf32>
    %cst_33 = arith.constant dense<0.000000e+00> : vector<16x16xf32>
    %90 = tpu.matmul %81, %88, %cst_33 {dimension_numbers = #tpu.dot_dimension_numbers<[1], [0], [0], [1], [0, 0, 1, 1], [], []>} : vector<16x16xbf16>, vector<16x16xbf16>, vector<16x16xf32> -> vector<16x16xf32>
    %91 = arith.addf %89, %90 : vector<16x16xf32>
    %cst_34 = arith.constant dense<0.000000e+00> : vector<16x16xf32>
    %92 = tpu.matmul %84, %85, %cst_34 {dimension_numbers = #tpu.dot_dimension_numbers<[1], [0], [0], [1], [0, 0, 1, 1], [], []>} : vector<16x16xbf16>, vector<16x16xbf16>, vector<16x16xf32> -> vector<16x16xf32>
    %93 = arith.addf %91, %92 : vector<16x16xf32>
    %94 = arith.addf %0, %1 : vector<16x16xf32>
    %95 = arith.addf %66, %67 : vector<16x16xf32>
    %96 = arith.truncf %94 : vector<16x16xf32> to vector<16x16xbf16>
    %97 = arith.extf %96 : vector<16x16xbf16> to vector<16x16xf32>
    %98 = arith.subf %94, %97 : vector<16x16xf32>
    %99 = arith.truncf %98 : vector<16x16xf32> to vector<16x16xbf16>
    %100 = arith.truncf %95 : vector<16x16xf32> to vector<16x16xbf16>
    %101 = arith.extf %100 : vector<16x16xbf16> to vector<16x16xf32>
    %102 = arith.subf %95, %101 : vector<16x16xf32>
    %103 = arith.truncf %102 : vector<16x16xf32> to vector<16x16xbf16>
    %cst_35 = arith.constant dense<0.000000e+00> : vector<16x16xf32>
    %104 = tpu.matmul %96, %100, %cst_35 {dimension_numbers = #tpu.dot_dimension_numbers<[1], [0], [0], [1], [0, 0, 1, 1], [], []>} : vector<16x16xbf16>, vector<16x16xbf16>, vector<16x16xf32> -> vector<16x16xf32>
    %cst_36 = arith.constant dense<0.000000e+00> : vector<16x16xf32>
    %105 = tpu.matmul %96, %103, %cst_36 {dimension_numbers = #tpu.dot_dimension_numbers<[1], [0], [0], [1], [0, 0, 1, 1], [], []>} : vector<16x16xbf16>, vector<16x16xbf16>, vector<16x16xf32> -> vector<16x16xf32>
    %106 = arith.addf %104, %105 : vector<16x16xf32>
    %cst_37 = arith.constant dense<0.000000e+00> : vector<16x16xf32>
    %107 = tpu.matmul %99, %100, %cst_37 {dimension_numbers = #tpu.dot_dimension_numbers<[1], [0], [0], [1], [0, 0, 1, 1], [], []>} : vector<16x16xbf16>, vector<16x16xbf16>, vector<16x16xf32> -> vector<16x16xf32>
    %108 = arith.addf %106, %107 : vector<16x16xf32>
    %109 = arith.subf %80, %93 : vector<16x16xf32>
    %110 = arith.subf %108, %80 : vector<16x16xf32>
    %111 = arith.subf %110, %93 : vector<16x16xf32>
    %112 = vector.extract_strided_slice %16 {offsets = [32, 0], sizes = [16, 16], strides = [1, 1]} : vector<64x16xf32> to vector<16x16xf32>
    %113 = vector.extract_strided_slice %19 {offsets = [32, 0], sizes = [16, 16], strides = [1, 1]} : vector<64x16xf32> to vector<16x16xf32>
    %114 = arith.truncf %0 : vector<16x16xf32> to vector<16x16xbf16>
    %115 = arith.extf %114 : vector<16x16xbf16> to vector<16x16xf32>
    %116 = arith.subf %0, %115 : vector<16x16xf32>
    %117 = arith.truncf %116 : vector<16x16xf32> to vector<16x16xbf16>
    %118 = arith.truncf %112 : vector<16x16xf32> to vector<16x16xbf16>
    %119 = arith.extf %118 : vector<16x16xbf16> to vector<16x16xf32>
    %120 = arith.subf %112, %119 : vector<16x16xf32>
    %121 = arith.truncf %120 : vector<16x16xf32> to vector<16x16xbf16>
    %cst_38 = arith.constant dense<0.000000e+00> : vector<16x16xf32>
    %122 = tpu.matmul %114, %118, %cst_38 {dimension_numbers = #tpu.dot_dimension_numbers<[1], [0], [0], [1], [0, 0, 1, 1], [], []>} : vector<16x16xbf16>, vector<16x16xbf16>, vector<16x16xf32> -> vector<16x16xf32>
    %cst_39 = arith.constant dense<0.000000e+00> : vector<16x16xf32>
    %123 = tpu.matmul %114, %121, %cst_39 {dimension_numbers = #tpu.dot_dimension_numbers<[1], [0], [0], [1], [0, 0, 1, 1], [], []>} : vector<16x16xbf16>, vector<16x16xbf16>, vector<16x16xf32> -> vector<16x16xf32>
    %124 = arith.addf %122, %123 : vector<16x16xf32>
    %cst_40 = arith.constant dense<0.000000e+00> : vector<16x16xf32>
    %125 = tpu.matmul %117, %118, %cst_40 {dimension_numbers = #tpu.dot_dimension_numbers<[1], [0], [0], [1], [0, 0, 1, 1], [], []>} : vector<16x16xbf16>, vector<16x16xbf16>, vector<16x16xf32> -> vector<16x16xf32>
    %126 = arith.addf %124, %125 : vector<16x16xf32>
    %127 = arith.truncf %1 : vector<16x16xf32> to vector<16x16xbf16>
    %128 = arith.extf %127 : vector<16x16xbf16> to vector<16x16xf32>
    %129 = arith.subf %1, %128 : vector<16x16xf32>
    %130 = arith.truncf %129 : vector<16x16xf32> to vector<16x16xbf16>
    %131 = arith.truncf %113 : vector<16x16xf32> to vector<16x16xbf16>
    %132 = arith.extf %131 : vector<16x16xbf16> to vector<16x16xf32>
    %133 = arith.subf %113, %132 : vector<16x16xf32>
    %134 = arith.truncf %133 : vector<16x16xf32> to vector<16x16xbf16>
    %cst_41 = arith.constant dense<0.000000e+00> : vector<16x16xf32>
    %135 = tpu.matmul %127, %131, %cst_41 {dimension_numbers = #tpu.dot_dimension_numbers<[1], [0], [0], [1], [0, 0, 1, 1], [], []>} : vector<16x16xbf16>, vector<16x16xbf16>, vector<16x16xf32> -> vector<16x16xf32>
    %cst_42 = arith.constant dense<0.000000e+00> : vector<16x16xf32>
    %136 = tpu.matmul %127, %134, %cst_42 {dimension_numbers = #tpu.dot_dimension_numbers<[1], [0], [0], [1], [0, 0, 1, 1], [], []>} : vector<16x16xbf16>, vector<16x16xbf16>, vector<16x16xf32> -> vector<16x16xf32>
    %137 = arith.addf %135, %136 : vector<16x16xf32>
    %cst_43 = arith.constant dense<0.000000e+00> : vector<16x16xf32>
    %138 = tpu.matmul %130, %131, %cst_43 {dimension_numbers = #tpu.dot_dimension_numbers<[1], [0], [0], [1], [0, 0, 1, 1], [], []>} : vector<16x16xbf16>, vector<16x16xbf16>, vector<16x16xf32> -> vector<16x16xf32>
    %139 = arith.addf %137, %138 : vector<16x16xf32>
    %140 = arith.addf %0, %1 : vector<16x16xf32>
    %141 = arith.addf %112, %113 : vector<16x16xf32>
    %142 = arith.truncf %140 : vector<16x16xf32> to vector<16x16xbf16>
    %143 = arith.extf %142 : vector<16x16xbf16> to vector<16x16xf32>
    %144 = arith.subf %140, %143 : vector<16x16xf32>
    %145 = arith.truncf %144 : vector<16x16xf32> to vector<16x16xbf16>
    %146 = arith.truncf %141 : vector<16x16xf32> to vector<16x16xbf16>
    %147 = arith.extf %146 : vector<16x16xbf16> to vector<16x16xf32>
    %148 = arith.subf %141, %147 : vector<16x16xf32>
    %149 = arith.truncf %148 : vector<16x16xf32> to vector<16x16xbf16>
    %cst_44 = arith.constant dense<0.000000e+00> : vector<16x16xf32>
    %150 = tpu.matmul %142, %146, %cst_44 {dimension_numbers = #tpu.dot_dimension_numbers<[1], [0], [0], [1], [0, 0, 1, 1], [], []>} : vector<16x16xbf16>, vector<16x16xbf16>, vector<16x16xf32> -> vector<16x16xf32>
    %cst_45 = arith.constant dense<0.000000e+00> : vector<16x16xf32>
    %151 = tpu.matmul %142, %149, %cst_45 {dimension_numbers = #tpu.dot_dimension_numbers<[1], [0], [0], [1], [0, 0, 1, 1], [], []>} : vector<16x16xbf16>, vector<16x16xbf16>, vector<16x16xf32> -> vector<16x16xf32>
    %152 = arith.addf %150, %151 : vector<16x16xf32>
    %cst_46 = arith.constant dense<0.000000e+00> : vector<16x16xf32>
    %153 = tpu.matmul %145, %146, %cst_46 {dimension_numbers = #tpu.dot_dimension_numbers<[1], [0], [0], [1], [0, 0, 1, 1], [], []>} : vector<16x16xbf16>, vector<16x16xbf16>, vector<16x16xf32> -> vector<16x16xf32>
    %154 = arith.addf %152, %153 : vector<16x16xf32>
    %155 = arith.subf %126, %139 : vector<16x16xf32>
    %156 = arith.subf %154, %126 : vector<16x16xf32>
    %157 = arith.subf %156, %139 : vector<16x16xf32>
    %158 = vector.extract_strided_slice %16 {offsets = [48, 0], sizes = [16, 16], strides = [1, 1]} : vector<64x16xf32> to vector<16x16xf32>
    %159 = vector.extract_strided_slice %19 {offsets = [48, 0], sizes = [16, 16], strides = [1, 1]} : vector<64x16xf32> to vector<16x16xf32>
    %160 = arith.truncf %0 : vector<16x16xf32> to vector<16x16xbf16>
    %161 = arith.extf %160 : vector<16x16xbf16> to vector<16x16xf32>
    %162 = arith.subf %0, %161 : vector<16x16xf32>
    %163 = arith.truncf %162 : vector<16x16xf32> to vector<16x16xbf16>
    %164 = arith.truncf %158 : vector<16x16xf32> to vector<16x16xbf16>
    %165 = arith.extf %164 : vector<16x16xbf16> to vector<16x16xf32>
    %166 = arith.subf %158, %165 : vector<16x16xf32>
    %167 = arith.truncf %166 : vector<16x16xf32> to vector<16x16xbf16>
    %cst_47 = arith.constant dense<0.000000e+00> : vector<16x16xf32>
    %168 = tpu.matmul %160, %164, %cst_47 {dimension_numbers = #tpu.dot_dimension_numbers<[1], [0], [0], [1], [0, 0, 1, 1], [], []>} : vector<16x16xbf16>, vector<16x16xbf16>, vector<16x16xf32> -> vector<16x16xf32>
    %cst_48 = arith.constant dense<0.000000e+00> : vector<16x16xf32>
    %169 = tpu.matmul %160, %167, %cst_48 {dimension_numbers = #tpu.dot_dimension_numbers<[1], [0], [0], [1], [0, 0, 1, 1], [], []>} : vector<16x16xbf16>, vector<16x16xbf16>, vector<16x16xf32> -> vector<16x16xf32>
    %170 = arith.addf %168, %169 : vector<16x16xf32>
    %cst_49 = arith.constant dense<0.000000e+00> : vector<16x16xf32>
    %171 = tpu.matmul %163, %164, %cst_49 {dimension_numbers = #tpu.dot_dimension_numbers<[1], [0], [0], [1], [0, 0, 1, 1], [], []>} : vector<16x16xbf16>, vector<16x16xbf16>, vector<16x16xf32> -> vector<16x16xf32>
    %172 = arith.addf %170, %171 : vector<16x16xf32>
    %173 = arith.truncf %1 : vector<16x16xf32> to vector<16x16xbf16>
    %174 = arith.extf %173 : vector<16x16xbf16> to vector<16x16xf32>
    %175 = arith.subf %1, %174 : vector<16x16xf32>
    %176 = arith.truncf %175 : vector<16x16xf32> to vector<16x16xbf16>
    %177 = arith.truncf %159 : vector<16x16xf32> to vector<16x16xbf16>
    %178 = arith.extf %177 : vector<16x16xbf16> to vector<16x16xf32>
    %179 = arith.subf %159, %178 : vector<16x16xf32>
    %180 = arith.truncf %179 : vector<16x16xf32> to vector<16x16xbf16>
    %cst_50 = arith.constant dense<0.000000e+00> : vector<16x16xf32>
    %181 = tpu.matmul %173, %177, %cst_50 {dimension_numbers = #tpu.dot_dimension_numbers<[1], [0], [0], [1], [0, 0, 1, 1], [], []>} : vector<16x16xbf16>, vector<16x16xbf16>, vector<16x16xf32> -> vector<16x16xf32>
    %cst_51 = arith.constant dense<0.000000e+00> : vector<16x16xf32>
    %182 = tpu.matmul %173, %180, %cst_51 {dimension_numbers = #tpu.dot_dimension_numbers<[1], [0], [0], [1], [0, 0, 1, 1], [], []>} : vector<16x16xbf16>, vector<16x16xbf16>, vector<16x16xf32> -> vector<16x16xf32>
    %183 = arith.addf %181, %182 : vector<16x16xf32>
    %cst_52 = arith.constant dense<0.000000e+00> : vector<16x16xf32>
    %184 = tpu.matmul %176, %177, %cst_52 {dimension_numbers = #tpu.dot_dimension_numbers<[1], [0], [0], [1], [0, 0, 1, 1], [], []>} : vector<16x16xbf16>, vector<16x16xbf16>, vector<16x16xf32> -> vector<16x16xf32>
    %185 = arith.addf %183, %184 : vector<16x16xf32>
    %186 = arith.addf %0, %1 : vector<16x16xf32>
    %187 = arith.addf %158, %159 : vector<16x16xf32>
    %188 = arith.truncf %186 : vector<16x16xf32> to vector<16x16xbf16>
    %189 = arith.extf %188 : vector<16x16xbf16> to vector<16x16xf32>
    %190 = arith.subf %186, %189 : vector<16x16xf32>
    %191 = arith.truncf %190 : vector<16x16xf32> to vector<16x16xbf16>
    %192 = arith.truncf %187 : vector<16x16xf32> to vector<16x16xbf16>
    %193 = arith.extf %192 : vector<16x16xbf16> to vector<16x16xf32>
    %194 = arith.subf %187, %193 : vector<16x16xf32>
    %195 = arith.truncf %194 : vector<16x16xf32> to vector<16x16xbf16>
    %cst_53 = arith.constant dense<0.000000e+00> : vector<16x16xf32>
    %196 = tpu.matmul %188, %192, %cst_53 {dimension_numbers = #tpu.dot_dimension_numbers<[1], [0], [0], [1], [0, 0, 1, 1], [], []>} : vector<16x16xbf16>, vector<16x16xbf16>, vector<16x16xf32> -> vector<16x16xf32>
    %cst_54 = arith.constant dense<0.000000e+00> : vector<16x16xf32>
    %197 = tpu.matmul %188, %195, %cst_54 {dimension_numbers = #tpu.dot_dimension_numbers<[1], [0], [0], [1], [0, 0, 1, 1], [], []>} : vector<16x16xbf16>, vector<16x16xbf16>, vector<16x16xf32> -> vector<16x16xf32>
    %198 = arith.addf %196, %197 : vector<16x16xf32>
    %cst_55 = arith.constant dense<0.000000e+00> : vector<16x16xf32>
    %199 = tpu.matmul %191, %192, %cst_55 {dimension_numbers = #tpu.dot_dimension_numbers<[1], [0], [0], [1], [0, 0, 1, 1], [], []>} : vector<16x16xbf16>, vector<16x16xbf16>, vector<16x16xf32> -> vector<16x16xf32>
    %200 = arith.addf %198, %199 : vector<16x16xf32>
    %201 = arith.subf %172, %185 : vector<16x16xf32>
    %202 = arith.subf %200, %172 : vector<16x16xf32>
    %203 = arith.subf %202, %185 : vector<16x16xf32>
    %204 = tpu.concatenate %63, %109, %155, %201 in 0 : vector<16x16xf32>, vector<16x16xf32>, vector<16x16xf32>, vector<16x16xf32> -> vector<64x16xf32>
    %205 = tpu.concatenate %65, %111, %157, %203 in 0 : vector<16x16xf32>, vector<16x16xf32>, vector<16x16xf32>, vector<16x16xf32> -> vector<64x16xf32>
    %206 = arith.truncf %204 : vector<64x16xf32> to vector<64x16xbf16>
    %207 = arith.extf %206 : vector<64x16xbf16> to vector<64x16xf32>
    %208 = arith.subf %204, %207 : vector<64x16xf32>
    %209 = arith.truncf %208 : vector<64x16xf32> to vector<64x16xbf16>
    %210 = arith.truncf %2 : vector<16x16xf32> to vector<16x16xbf16>
    %211 = arith.extf %210 : vector<16x16xbf16> to vector<16x16xf32>
    %212 = arith.subf %2, %211 : vector<16x16xf32>
    %213 = arith.truncf %212 : vector<16x16xf32> to vector<16x16xbf16>
    %cst_56 = arith.constant dense<0.000000e+00> : vector<64x16xf32>
    %214 = tpu.matmul %206, %210, %cst_56 {dimension_numbers = #tpu.dot_dimension_numbers<[1], [0], [0], [1], [0, 0, 1, 1], [], []>} : vector<64x16xbf16>, vector<16x16xbf16>, vector<64x16xf32> -> vector<64x16xf32>
    %cst_57 = arith.constant dense<0.000000e+00> : vector<64x16xf32>
    %215 = tpu.matmul %206, %213, %cst_57 {dimension_numbers = #tpu.dot_dimension_numbers<[1], [0], [0], [1], [0, 0, 1, 1], [], []>} : vector<64x16xbf16>, vector<16x16xbf16>, vector<64x16xf32> -> vector<64x16xf32>
    %216 = arith.addf %214, %215 : vector<64x16xf32>
    %cst_58 = arith.constant dense<0.000000e+00> : vector<64x16xf32>
    %217 = tpu.matmul %209, %210, %cst_58 {dimension_numbers = #tpu.dot_dimension_numbers<[1], [0], [0], [1], [0, 0, 1, 1], [], []>} : vector<64x16xbf16>, vector<16x16xbf16>, vector<64x16xf32> -> vector<64x16xf32>
    %218 = arith.addf %216, %217 : vector<64x16xf32>
    %219 = arith.truncf %205 : vector<64x16xf32> to vector<64x16xbf16>
    %220 = arith.extf %219 : vector<64x16xbf16> to vector<64x16xf32>
    %221 = arith.subf %205, %220 : vector<64x16xf32>
    %222 = arith.truncf %221 : vector<64x16xf32> to vector<64x16xbf16>
    %223 = arith.truncf %3 : vector<16x16xf32> to vector<16x16xbf16>
    %224 = arith.extf %223 : vector<16x16xbf16> to vector<16x16xf32>
    %225 = arith.subf %3, %224 : vector<16x16xf32>
    %226 = arith.truncf %225 : vector<16x16xf32> to vector<16x16xbf16>
    %cst_59 = arith.constant dense<0.000000e+00> : vector<64x16xf32>
    %227 = tpu.matmul %219, %223, %cst_59 {dimension_numbers = #tpu.dot_dimension_numbers<[1], [0], [0], [1], [0, 0, 1, 1], [], []>} : vector<64x16xbf16>, vector<16x16xbf16>, vector<64x16xf32> -> vector<64x16xf32>
    %cst_60 = arith.constant dense<0.000000e+00> : vector<64x16xf32>
    %228 = tpu.matmul %219, %226, %cst_60 {dimension_numbers = #tpu.dot_dimension_numbers<[1], [0], [0], [1], [0, 0, 1, 1], [], []>} : vector<64x16xbf16>, vector<16x16xbf16>, vector<64x16xf32> -> vector<64x16xf32>
    %229 = arith.addf %227, %228 : vector<64x16xf32>
    %cst_61 = arith.constant dense<0.000000e+00> : vector<64x16xf32>
    %230 = tpu.matmul %222, %223, %cst_61 {dimension_numbers = #tpu.dot_dimension_numbers<[1], [0], [0], [1], [0, 0, 1, 1], [], []>} : vector<64x16xbf16>, vector<16x16xbf16>, vector<64x16xf32> -> vector<64x16xf32>
    %231 = arith.addf %229, %230 : vector<64x16xf32>
    %232 = arith.addf %204, %205 : vector<64x16xf32>
    %233 = arith.addf %2, %3 : vector<16x16xf32>
    %234 = arith.truncf %232 : vector<64x16xf32> to vector<64x16xbf16>
    %235 = arith.extf %234 : vector<64x16xbf16> to vector<64x16xf32>
    %236 = arith.subf %232, %235 : vector<64x16xf32>
    %237 = arith.truncf %236 : vector<64x16xf32> to vector<64x16xbf16>
    %238 = arith.truncf %233 : vector<16x16xf32> to vector<16x16xbf16>
    %239 = arith.extf %238 : vector<16x16xbf16> to vector<16x16xf32>
    %240 = arith.subf %233, %239 : vector<16x16xf32>
    %241 = arith.truncf %240 : vector<16x16xf32> to vector<16x16xbf16>
    %cst_62 = arith.constant dense<0.000000e+00> : vector<64x16xf32>
    %242 = tpu.matmul %234, %238, %cst_62 {dimension_numbers = #tpu.dot_dimension_numbers<[1], [0], [0], [1], [0, 0, 1, 1], [], []>} : vector<64x16xbf16>, vector<16x16xbf16>, vector<64x16xf32> -> vector<64x16xf32>
    %cst_63 = arith.constant dense<0.000000e+00> : vector<64x16xf32>
    %243 = tpu.matmul %234, %241, %cst_63 {dimension_numbers = #tpu.dot_dimension_numbers<[1], [0], [0], [1], [0, 0, 1, 1], [], []>} : vector<64x16xbf16>, vector<16x16xbf16>, vector<64x16xf32> -> vector<64x16xf32>
    %244 = arith.addf %242, %243 : vector<64x16xf32>
    %cst_64 = arith.constant dense<0.000000e+00> : vector<64x16xf32>
    %245 = tpu.matmul %237, %238, %cst_64 {dimension_numbers = #tpu.dot_dimension_numbers<[1], [0], [0], [1], [0, 0, 1, 1], [], []>} : vector<64x16xbf16>, vector<16x16xbf16>, vector<64x16xf32> -> vector<64x16xf32>
    %246 = arith.addf %244, %245 : vector<64x16xf32>
    %247 = arith.subf %218, %231 : vector<64x16xf32>
    %248 = arith.subf %246, %218 : vector<64x16xf32>
    %249 = arith.subf %248, %231 : vector<64x16xf32>
    %c0_65 = arith.constant 0 : index
    %c0_66 = arith.constant 0 : index
    %c0_67 = arith.constant 0 : index
    %c0_68 = arith.constant 0 : index
    %250 = vector.load %arg4[%c0_65, %c0_66, %c0_67, %c0_68] : memref<1x1x64x16xbf16, #tpu.memory_space<vmem>>, vector<1x1x64x16xbf16>
    %251 = vector.shape_cast %250 : vector<1x1x64x16xbf16> to vector<64x16xbf16>
    %252 = arith.extf %251 : vector<64x16xbf16> to vector<64x16xf32>
    %c0_69 = arith.constant 0 : index
    %c0_70 = arith.constant 0 : index
    %c0_71 = arith.constant 0 : index
    %c0_72 = arith.constant 0 : index
    %253 = vector.load %arg2[%c0_69, %c0_70, %c0_71, %c0_72] : memref<1x1x64x16xf32, #tpu.memory_space<vmem>>, vector<1x1x64x16xf32>
    %254 = vector.shape_cast %253 : vector<1x1x64x16xf32> to vector<64x16xf32>
    %c0_73 = arith.constant 0 : index
    %c0_74 = arith.constant 0 : index
    %c0_75 = arith.constant 0 : index
    %c0_76 = arith.constant 0 : index
    %255 = vector.load %arg3[%c0_73, %c0_74, %c0_75, %c0_76] : memref<1x1x64x16xf32, #tpu.memory_space<vmem>>, vector<1x1x64x16xf32>
    %256 = vector.shape_cast %255 : vector<1x1x64x16xf32> to vector<64x16xf32>
    %cst_77 = arith.constant 1.000000e+00 : f32
    %257 = vector.broadcast %cst_77 : f32 to vector<64x16xf32>
    %258 = arith.mulf %257, %247 : vector<64x16xf32>
    %259 = arith.addf %254, %258 : vector<64x16xf32>
    %cst_78 = arith.constant 5.000000e-01 : f32
    %260 = vector.broadcast %cst_78 : f32 to vector<64x16xf32>
    %261 = arith.mulf %259, %260 : vector<64x16xf32>
    %262 = arith.subf %261, %247 : vector<64x16xf32>
    %263 = arith.mulf %252, %262 : vector<64x16xf32>
    %264 = arith.addf %247, %263 : vector<64x16xf32>
    %cst_79 = arith.constant 1.000000e+00 : f32
    %265 = vector.broadcast %cst_79 : f32 to vector<64x16xf32>
    %266 = arith.mulf %265, %249 : vector<64x16xf32>
    %267 = arith.addf %256, %266 : vector<64x16xf32>
    %cst_80 = arith.constant 5.000000e-01 : f32
    %268 = vector.broadcast %cst_80 : f32 to vector<64x16xf32>
    %269 = arith.mulf %267, %268 : vector<64x16xf32>
    %270 = arith.subf %269, %249 : vector<64x16xf32>
    %271 = arith.mulf %252, %270 : vector<64x16xf32>
    %272 = arith.addf %249, %271 : vector<64x16xf32>
    %273 = arith.truncf %264 : vector<64x16xf32> to vector<64x16xbf16>
    %274 = arith.extf %273 : vector<64x16xbf16> to vector<64x16xf32>
    %275 = arith.subf %264, %274 : vector<64x16xf32>
    %276 = arith.truncf %275 : vector<64x16xf32> to vector<64x16xbf16>
    %277 = arith.truncf %2 : vector<16x16xf32> to vector<16x16xbf16>
    %278 = arith.extf %277 : vector<16x16xbf16> to vector<16x16xf32>
    %279 = arith.subf %2, %278 : vector<16x16xf32>
    %280 = arith.truncf %279 : vector<16x16xf32> to vector<16x16xbf16>
    %cst_81 = arith.constant dense<0.000000e+00> : vector<64x16xf32>
    %281 = tpu.matmul %273, %277, %cst_81 {dimension_numbers = #tpu.dot_dimension_numbers<[1], [0], [0], [1], [0, 0, 1, 1], [], []>} : vector<64x16xbf16>, vector<16x16xbf16>, vector<64x16xf32> -> vector<64x16xf32>
    %cst_82 = arith.constant dense<0.000000e+00> : vector<64x16xf32>
    %282 = tpu.matmul %273, %280, %cst_82 {dimension_numbers = #tpu.dot_dimension_numbers<[1], [0], [0], [1], [0, 0, 1, 1], [], []>} : vector<64x16xbf16>, vector<16x16xbf16>, vector<64x16xf32> -> vector<64x16xf32>
    %283 = arith.addf %281, %282 : vector<64x16xf32>
    %cst_83 = arith.constant dense<0.000000e+00> : vector<64x16xf32>
    %284 = tpu.matmul %276, %277, %cst_83 {dimension_numbers = #tpu.dot_dimension_numbers<[1], [0], [0], [1], [0, 0, 1, 1], [], []>} : vector<64x16xbf16>, vector<16x16xbf16>, vector<64x16xf32> -> vector<64x16xf32>
    %285 = arith.addf %283, %284 : vector<64x16xf32>
    %286 = arith.truncf %272 : vector<64x16xf32> to vector<64x16xbf16>
    %287 = arith.extf %286 : vector<64x16xbf16> to vector<64x16xf32>
    %288 = arith.subf %272, %287 : vector<64x16xf32>
    %289 = arith.truncf %288 : vector<64x16xf32> to vector<64x16xbf16>
    %290 = arith.truncf %3 : vector<16x16xf32> to vector<16x16xbf16>
    %291 = arith.extf %290 : vector<16x16xbf16> to vector<16x16xf32>
    %292 = arith.subf %3, %291 : vector<16x16xf32>
    %293 = arith.truncf %292 : vector<16x16xf32> to vector<16x16xbf16>
    %cst_84 = arith.constant dense<0.000000e+00> : vector<64x16xf32>
    %294 = tpu.matmul %286, %290, %cst_84 {dimension_numbers = #tpu.dot_dimension_numbers<[1], [0], [0], [1], [0, 0, 1, 1], [], []>} : vector<64x16xbf16>, vector<16x16xbf16>, vector<64x16xf32> -> vector<64x16xf32>
    %cst_85 = arith.constant dense<0.000000e+00> : vector<64x16xf32>
    %295 = tpu.matmul %286, %293, %cst_85 {dimension_numbers = #tpu.dot_dimension_numbers<[1], [0], [0], [1], [0, 0, 1, 1], [], []>} : vector<64x16xbf16>, vector<16x16xbf16>, vector<64x16xf32> -> vector<64x16xf32>
    %296 = arith.addf %294, %295 : vector<64x16xf32>
    %cst_86 = arith.constant dense<0.000000e+00> : vector<64x16xf32>
    %297 = tpu.matmul %289, %290, %cst_86 {dimension_numbers = #tpu.dot_dimension_numbers<[1], [0], [0], [1], [0, 0, 1, 1], [], []>} : vector<64x16xbf16>, vector<16x16xbf16>, vector<64x16xf32> -> vector<64x16xf32>
    %298 = arith.addf %296, %297 : vector<64x16xf32>
    %299 = arith.addf %264, %272 : vector<64x16xf32>
    %300 = arith.subf %2, %3 : vector<16x16xf32>
    %301 = arith.truncf %299 : vector<64x16xf32> to vector<64x16xbf16>
    %302 = arith.extf %301 : vector<64x16xbf16> to vector<64x16xf32>
    %303 = arith.subf %299, %302 : vector<64x16xf32>
    %304 = arith.truncf %303 : vector<64x16xf32> to vector<64x16xbf16>
    %305 = arith.truncf %300 : vector<16x16xf32> to vector<16x16xbf16>
    %306 = arith.extf %305 : vector<16x16xbf16> to vector<16x16xf32>
    %307 = arith.subf %300, %306 : vector<16x16xf32>
    %308 = arith.truncf %307 : vector<16x16xf32> to vector<16x16xbf16>
    %cst_87 = arith.constant dense<0.000000e+00> : vector<64x16xf32>
    %309 = tpu.matmul %301, %305, %cst_87 {dimension_numbers = #tpu.dot_dimension_numbers<[1], [0], [0], [1], [0, 0, 1, 1], [], []>} : vector<64x16xbf16>, vector<16x16xbf16>, vector<64x16xf32> -> vector<64x16xf32>
    %cst_88 = arith.constant dense<0.000000e+00> : vector<64x16xf32>
    %310 = tpu.matmul %301, %308, %cst_88 {dimension_numbers = #tpu.dot_dimension_numbers<[1], [0], [0], [1], [0, 0, 1, 1], [], []>} : vector<64x16xbf16>, vector<16x16xbf16>, vector<64x16xf32> -> vector<64x16xf32>
    %311 = arith.addf %309, %310 : vector<64x16xf32>
    %cst_89 = arith.constant dense<0.000000e+00> : vector<64x16xf32>
    %312 = tpu.matmul %304, %305, %cst_89 {dimension_numbers = #tpu.dot_dimension_numbers<[1], [0], [0], [1], [0, 0, 1, 1], [], []>} : vector<64x16xbf16>, vector<16x16xbf16>, vector<64x16xf32> -> vector<64x16xf32>
    %313 = arith.addf %311, %312 : vector<64x16xf32>
    %314 = arith.addf %285, %298 : vector<64x16xf32>
    %315 = arith.subf %313, %285 : vector<64x16xf32>
    %316 = arith.addf %315, %298 : vector<64x16xf32>
    %317 = vector.extract_strided_slice %314 {offsets = [0, 0], sizes = [16, 16], strides = [1, 1]} : vector<64x16xf32> to vector<16x16xf32>
    %318 = vector.extract_strided_slice %316 {offsets = [0, 0], sizes = [16, 16], strides = [1, 1]} : vector<64x16xf32> to vector<16x16xf32>
    %319 = arith.truncf %0 : vector<16x16xf32> to vector<16x16xbf16>
    %320 = arith.extf %319 : vector<16x16xbf16> to vector<16x16xf32>
    %321 = arith.subf %0, %320 : vector<16x16xf32>
    %322 = arith.truncf %321 : vector<16x16xf32> to vector<16x16xbf16>
    %323 = arith.truncf %317 : vector<16x16xf32> to vector<16x16xbf16>
    %324 = arith.extf %323 : vector<16x16xbf16> to vector<16x16xf32>
    %325 = arith.subf %317, %324 : vector<16x16xf32>
    %326 = arith.truncf %325 : vector<16x16xf32> to vector<16x16xbf16>
    %cst_90 = arith.constant dense<0.000000e+00> : vector<16x16xf32>
    %327 = tpu.matmul %319, %323, %cst_90 {dimension_numbers = #tpu.dot_dimension_numbers<[1], [0], [0], [1], [0, 0, 1, 1], [], []>} : vector<16x16xbf16>, vector<16x16xbf16>, vector<16x16xf32> -> vector<16x16xf32>
    %cst_91 = arith.constant dense<0.000000e+00> : vector<16x16xf32>
    %328 = tpu.matmul %319, %326, %cst_91 {dimension_numbers = #tpu.dot_dimension_numbers<[1], [0], [0], [1], [0, 0, 1, 1], [], []>} : vector<16x16xbf16>, vector<16x16xbf16>, vector<16x16xf32> -> vector<16x16xf32>
    %329 = arith.addf %327, %328 : vector<16x16xf32>
    %cst_92 = arith.constant dense<0.000000e+00> : vector<16x16xf32>
    %330 = tpu.matmul %322, %323, %cst_92 {dimension_numbers = #tpu.dot_dimension_numbers<[1], [0], [0], [1], [0, 0, 1, 1], [], []>} : vector<16x16xbf16>, vector<16x16xbf16>, vector<16x16xf32> -> vector<16x16xf32>
    %331 = arith.addf %329, %330 : vector<16x16xf32>
    %332 = arith.truncf %1 : vector<16x16xf32> to vector<16x16xbf16>
    %333 = arith.extf %332 : vector<16x16xbf16> to vector<16x16xf32>
    %334 = arith.subf %1, %333 : vector<16x16xf32>
    %335 = arith.truncf %334 : vector<16x16xf32> to vector<16x16xbf16>
    %336 = arith.truncf %318 : vector<16x16xf32> to vector<16x16xbf16>
    %337 = arith.extf %336 : vector<16x16xbf16> to vector<16x16xf32>
    %338 = arith.subf %318, %337 : vector<16x16xf32>
    %339 = arith.truncf %338 : vector<16x16xf32> to vector<16x16xbf16>
    %cst_93 = arith.constant dense<0.000000e+00> : vector<16x16xf32>
    %340 = tpu.matmul %332, %336, %cst_93 {dimension_numbers = #tpu.dot_dimension_numbers<[1], [0], [0], [1], [0, 0, 1, 1], [], []>} : vector<16x16xbf16>, vector<16x16xbf16>, vector<16x16xf32> -> vector<16x16xf32>
    %cst_94 = arith.constant dense<0.000000e+00> : vector<16x16xf32>
    %341 = tpu.matmul %332, %339, %cst_94 {dimension_numbers = #tpu.dot_dimension_numbers<[1], [0], [0], [1], [0, 0, 1, 1], [], []>} : vector<16x16xbf16>, vector<16x16xbf16>, vector<16x16xf32> -> vector<16x16xf32>
    %342 = arith.addf %340, %341 : vector<16x16xf32>
    %cst_95 = arith.constant dense<0.000000e+00> : vector<16x16xf32>
    %343 = tpu.matmul %335, %336, %cst_95 {dimension_numbers = #tpu.dot_dimension_numbers<[1], [0], [0], [1], [0, 0, 1, 1], [], []>} : vector<16x16xbf16>, vector<16x16xbf16>, vector<16x16xf32> -> vector<16x16xf32>
    %344 = arith.addf %342, %343 : vector<16x16xf32>
    %345 = arith.subf %0, %1 : vector<16x16xf32>
    %346 = arith.addf %317, %318 : vector<16x16xf32>
    %347 = arith.truncf %345 : vector<16x16xf32> to vector<16x16xbf16>
    %348 = arith.extf %347 : vector<16x16xbf16> to vector<16x16xf32>
    %349 = arith.subf %345, %348 : vector<16x16xf32>
    %350 = arith.truncf %349 : vector<16x16xf32> to vector<16x16xbf16>
    %351 = arith.truncf %346 : vector<16x16xf32> to vector<16x16xbf16>
    %352 = arith.extf %351 : vector<16x16xbf16> to vector<16x16xf32>
    %353 = arith.subf %346, %352 : vector<16x16xf32>
    %354 = arith.truncf %353 : vector<16x16xf32> to vector<16x16xbf16>
    %cst_96 = arith.constant dense<0.000000e+00> : vector<16x16xf32>
    %355 = tpu.matmul %347, %351, %cst_96 {dimension_numbers = #tpu.dot_dimension_numbers<[1], [0], [0], [1], [0, 0, 1, 1], [], []>} : vector<16x16xbf16>, vector<16x16xbf16>, vector<16x16xf32> -> vector<16x16xf32>
    %cst_97 = arith.constant dense<0.000000e+00> : vector<16x16xf32>
    %356 = tpu.matmul %347, %354, %cst_97 {dimension_numbers = #tpu.dot_dimension_numbers<[1], [0], [0], [1], [0, 0, 1, 1], [], []>} : vector<16x16xbf16>, vector<16x16xbf16>, vector<16x16xf32> -> vector<16x16xf32>
    %357 = arith.addf %355, %356 : vector<16x16xf32>
    %cst_98 = arith.constant dense<0.000000e+00> : vector<16x16xf32>
    %358 = tpu.matmul %350, %351, %cst_98 {dimension_numbers = #tpu.dot_dimension_numbers<[1], [0], [0], [1], [0, 0, 1, 1], [], []>} : vector<16x16xbf16>, vector<16x16xbf16>, vector<16x16xf32> -> vector<16x16xf32>
    %359 = arith.addf %357, %358 : vector<16x16xf32>
    %360 = arith.addf %331, %344 : vector<16x16xf32>
    %361 = arith.subf %359, %331 : vector<16x16xf32>
    %362 = arith.addf %361, %344 : vector<16x16xf32>
    %c0_99 = arith.constant 0 : index
    %c0_100 = arith.constant 0 : index
    %c0_101 = arith.constant 0 : index
    %c0_102 = arith.constant 0 : index
    %363 = vector.load %arg13[%c0_99, %c0_100, %c0_101, %c0_102] : memref<1x1x64x16xf32, #tpu.memory_space<vmem>>, vector<1x1x16x16xf32>
    %364 = vector.shape_cast %363 : vector<1x1x16x16xf32> to vector<16x16xf32>
    %365 = vector.shape_cast %360 : vector<16x16xf32> to vector<1x1x16x16xf32>
    tpu.vector_store %arg13[%c0_99, %c0_100, %c0_101, %c0_102], %365 {strides = array<i32>} : memref<1x1x64x16xf32, #tpu.memory_space<vmem>>, vector<1x1x16x16xf32>,
    %c0_103 = arith.constant 0 : index
    %c0_104 = arith.constant 0 : index
    %c0_105 = arith.constant 0 : index
    %c0_106 = arith.constant 0 : index
    %366 = vector.load %arg14[%c0_103, %c0_104, %c0_105, %c0_106] : memref<1x1x64x16xf32, #tpu.memory_space<vmem>>, vector<1x1x16x16xf32>
    %367 = vector.shape_cast %366 : vector<1x1x16x16xf32> to vector<16x16xf32>
    %368 = vector.shape_cast %362 : vector<16x16xf32> to vector<1x1x16x16xf32>
    tpu.vector_store %arg14[%c0_103, %c0_104, %c0_105, %c0_106], %368 {strides = array<i32>} : memref<1x1x64x16xf32, #tpu.memory_space<vmem>>, vector<1x1x16x16xf32>,
    %369 = vector.extract_strided_slice %314 {offsets = [16, 0], sizes = [16, 16], strides = [1, 1]} : vector<64x16xf32> to vector<16x16xf32>
    %370 = vector.extract_strided_slice %316 {offsets = [16, 0], sizes = [16, 16], strides = [1, 1]} : vector<64x16xf32> to vector<16x16xf32>
    %371 = arith.truncf %0 : vector<16x16xf32> to vector<16x16xbf16>
    %372 = arith.extf %371 : vector<16x16xbf16> to vector<16x16xf32>
    %373 = arith.subf %0, %372 : vector<16x16xf32>
    %374 = arith.truncf %373 : vector<16x16xf32> to vector<16x16xbf16>
    %375 = arith.truncf %369 : vector<16x16xf32> to vector<16x16xbf16>
    %376 = arith.extf %375 : vector<16x16xbf16> to vector<16x16xf32>
    %377 = arith.subf %369, %376 : vector<16x16xf32>
    %378 = arith.truncf %377 : vector<16x16xf32> to vector<16x16xbf16>
    %cst_107 = arith.constant dense<0.000000e+00> : vector<16x16xf32>
    %379 = tpu.matmul %371, %375, %cst_107 {dimension_numbers = #tpu.dot_dimension_numbers<[1], [0], [0], [1], [0, 0, 1, 1], [], []>} : vector<16x16xbf16>, vector<16x16xbf16>, vector<16x16xf32> -> vector<16x16xf32>
    %cst_108 = arith.constant dense<0.000000e+00> : vector<16x16xf32>
    %380 = tpu.matmul %371, %378, %cst_108 {dimension_numbers = #tpu.dot_dimension_numbers<[1], [0], [0], [1], [0, 0, 1, 1], [], []>} : vector<16x16xbf16>, vector<16x16xbf16>, vector<16x16xf32> -> vector<16x16xf32>
    %381 = arith.addf %379, %380 : vector<16x16xf32>
    %cst_109 = arith.constant dense<0.000000e+00> : vector<16x16xf32>
    %382 = tpu.matmul %374, %375, %cst_109 {dimension_numbers = #tpu.dot_dimension_numbers<[1], [0], [0], [1], [0, 0, 1, 1], [], []>} : vector<16x16xbf16>, vector<16x16xbf16>, vector<16x16xf32> -> vector<16x16xf32>
    %383 = arith.addf %381, %382 : vector<16x16xf32>
    %384 = arith.truncf %1 : vector<16x16xf32> to vector<16x16xbf16>
    %385 = arith.extf %384 : vector<16x16xbf16> to vector<16x16xf32>
    %386 = arith.subf %1, %385 : vector<16x16xf32>
    %387 = arith.truncf %386 : vector<16x16xf32> to vector<16x16xbf16>
    %388 = arith.truncf %370 : vector<16x16xf32> to vector<16x16xbf16>
    %389 = arith.extf %388 : vector<16x16xbf16> to vector<16x16xf32>
    %390 = arith.subf %370, %389 : vector<16x16xf32>
    %391 = arith.truncf %390 : vector<16x16xf32> to vector<16x16xbf16>
    %cst_110 = arith.constant dense<0.000000e+00> : vector<16x16xf32>
    %392 = tpu.matmul %384, %388, %cst_110 {dimension_numbers = #tpu.dot_dimension_numbers<[1], [0], [0], [1], [0, 0, 1, 1], [], []>} : vector<16x16xbf16>, vector<16x16xbf16>, vector<16x16xf32> -> vector<16x16xf32>
    %cst_111 = arith.constant dense<0.000000e+00> : vector<16x16xf32>
    %393 = tpu.matmul %384, %391, %cst_111 {dimension_numbers = #tpu.dot_dimension_numbers<[1], [0], [0], [1], [0, 0, 1, 1], [], []>} : vector<16x16xbf16>, vector<16x16xbf16>, vector<16x16xf32> -> vector<16x16xf32>
    %394 = arith.addf %392, %393 : vector<16x16xf32>
    %cst_112 = arith.constant dense<0.000000e+00> : vector<16x16xf32>
    %395 = tpu.matmul %387, %388, %cst_112 {dimension_numbers = #tpu.dot_dimension_numbers<[1], [0], [0], [1], [0, 0, 1, 1], [], []>} : vector<16x16xbf16>, vector<16x16xbf16>, vector<16x16xf32> -> vector<16x16xf32>
    %396 = arith.addf %394, %395 : vector<16x16xf32>
    %397 = arith.subf %0, %1 : vector<16x16xf32>
    %398 = arith.addf %369, %370 : vector<16x16xf32>
    %399 = arith.truncf %397 : vector<16x16xf32> to vector<16x16xbf16>
    %400 = arith.extf %399 : vector<16x16xbf16> to vector<16x16xf32>
    %401 = arith.subf %397, %400 : vector<16x16xf32>
    %402 = arith.truncf %401 : vector<16x16xf32> to vector<16x16xbf16>
    %403 = arith.truncf %398 : vector<16x16xf32> to vector<16x16xbf16>
    %404 = arith.extf %403 : vector<16x16xbf16> to vector<16x16xf32>
    %405 = arith.subf %398, %404 : vector<16x16xf32>
    %406 = arith.truncf %405 : vector<16x16xf32> to vector<16x16xbf16>
    %cst_113 = arith.constant dense<0.000000e+00> : vector<16x16xf32>
    %407 = tpu.matmul %399, %403, %cst_113 {dimension_numbers = #tpu.dot_dimension_numbers<[1], [0], [0], [1], [0, 0, 1, 1], [], []>} : vector<16x16xbf16>, vector<16x16xbf16>, vector<16x16xf32> -> vector<16x16xf32>
    %cst_114 = arith.constant dense<0.000000e+00> : vector<16x16xf32>
    %408 = tpu.matmul %399, %406, %cst_114 {dimension_numbers = #tpu.dot_dimension_numbers<[1], [0], [0], [1], [0, 0, 1, 1], [], []>} : vector<16x16xbf16>, vector<16x16xbf16>, vector<16x16xf32> -> vector<16x16xf32>
    %409 = arith.addf %407, %408 : vector<16x16xf32>
    %cst_115 = arith.constant dense<0.000000e+00> : vector<16x16xf32>
    %410 = tpu.matmul %402, %403, %cst_115 {dimension_numbers = #tpu.dot_dimension_numbers<[1], [0], [0], [1], [0, 0, 1, 1], [], []>} : vector<16x16xbf16>, vector<16x16xbf16>, vector<16x16xf32> -> vector<16x16xf32>
    %411 = arith.addf %409, %410 : vector<16x16xf32>
    %412 = arith.addf %383, %396 : vector<16x16xf32>
    %413 = arith.subf %411, %383 : vector<16x16xf32>
    %414 = arith.addf %413, %396 : vector<16x16xf32>
    %c0_116 = arith.constant 0 : index
    %c0_117 = arith.constant 0 : index
    %c16 = arith.constant 16 : index
    %c0_118 = arith.constant 0 : index
    %415 = vector.load %arg13[%c0_116, %c0_117, %c16, %c0_118] : memref<1x1x64x16xf32, #tpu.memory_space<vmem>>, vector<1x1x16x16xf32>
    %416 = vector.shape_cast %415 : vector<1x1x16x16xf32> to vector<16x16xf32>
    %417 = vector.shape_cast %412 : vector<16x16xf32> to vector<1x1x16x16xf32>
    tpu.vector_store %arg13[%c0_116, %c0_117, %c16, %c0_118], %417 {strides = array<i32>} : memref<1x1x64x16xf32, #tpu.memory_space<vmem>>, vector<1x1x16x16xf32>,
    %c0_119 = arith.constant 0 : index
    %c0_120 = arith.constant 0 : index
    %c16_121 = arith.constant 16 : index
    %c0_122 = arith.constant 0 : index
    %418 = vector.load %arg14[%c0_119, %c0_120, %c16_121, %c0_122] : memref<1x1x64x16xf32, #tpu.memory_space<vmem>>, vector<1x1x16x16xf32>
    %419 = vector.shape_cast %418 : vector<1x1x16x16xf32> to vector<16x16xf32>
    %420 = vector.shape_cast %414 : vector<16x16xf32> to vector<1x1x16x16xf32>
    tpu.vector_store %arg14[%c0_119, %c0_120, %c16_121, %c0_122], %420 {strides = array<i32>} : memref<1x1x64x16xf32, #tpu.memory_space<vmem>>, vector<1x1x16x16xf32>,
    %421 = vector.extract_strided_slice %314 {offsets = [32, 0], sizes = [16, 16], strides = [1, 1]} : vector<64x16xf32> to vector<16x16xf32>
    %422 = vector.extract_strided_slice %316 {offsets = [32, 0], sizes = [16, 16], strides = [1, 1]} : vector<64x16xf32> to vector<16x16xf32>
    %423 = arith.truncf %0 : vector<16x16xf32> to vector<16x16xbf16>
    %424 = arith.extf %423 : vector<16x16xbf16> to vector<16x16xf32>
    %425 = arith.subf %0, %424 : vector<16x16xf32>
    %426 = arith.truncf %425 : vector<16x16xf32> to vector<16x16xbf16>
    %427 = arith.truncf %421 : vector<16x16xf32> to vector<16x16xbf16>
    %428 = arith.extf %427 : vector<16x16xbf16> to vector<16x16xf32>
    %429 = arith.subf %421, %428 : vector<16x16xf32>
    %430 = arith.truncf %429 : vector<16x16xf32> to vector<16x16xbf16>
    %cst_123 = arith.constant dense<0.000000e+00> : vector<16x16xf32>
    %431 = tpu.matmul %423, %427, %cst_123 {dimension_numbers = #tpu.dot_dimension_numbers<[1], [0], [0], [1], [0, 0, 1, 1], [], []>} : vector<16x16xbf16>, vector<16x16xbf16>, vector<16x16xf32> -> vector<16x16xf32>
    %cst_124 = arith.constant dense<0.000000e+00> : vector<16x16xf32>
    %432 = tpu.matmul %423, %430, %cst_124 {dimension_numbers = #tpu.dot_dimension_numbers<[1], [0], [0], [1], [0, 0, 1, 1], [], []>} : vector<16x16xbf16>, vector<16x16xbf16>, vector<16x16xf32> -> vector<16x16xf32>
    %433 = arith.addf %431, %432 : vector<16x16xf32>
    %cst_125 = arith.constant dense<0.000000e+00> : vector<16x16xf32>
    %434 = tpu.matmul %426, %427, %cst_125 {dimension_numbers = #tpu.dot_dimension_numbers<[1], [0], [0], [1], [0, 0, 1, 1], [], []>} : vector<16x16xbf16>, vector<16x16xbf16>, vector<16x16xf32> -> vector<16x16xf32>
    %435 = arith.addf %433, %434 : vector<16x16xf32>
    %436 = arith.truncf %1 : vector<16x16xf32> to vector<16x16xbf16>
    %437 = arith.extf %436 : vector<16x16xbf16> to vector<16x16xf32>
    %438 = arith.subf %1, %437 : vector<16x16xf32>
    %439 = arith.truncf %438 : vector<16x16xf32> to vector<16x16xbf16>
    %440 = arith.truncf %422 : vector<16x16xf32> to vector<16x16xbf16>
    %441 = arith.extf %440 : vector<16x16xbf16> to vector<16x16xf32>
    %442 = arith.subf %422, %441 : vector<16x16xf32>
    %443 = arith.truncf %442 : vector<16x16xf32> to vector<16x16xbf16>
    %cst_126 = arith.constant dense<0.000000e+00> : vector<16x16xf32>
    %444 = tpu.matmul %436, %440, %cst_126 {dimension_numbers = #tpu.dot_dimension_numbers<[1], [0], [0], [1], [0, 0, 1, 1], [], []>} : vector<16x16xbf16>, vector<16x16xbf16>, vector<16x16xf32> -> vector<16x16xf32>
    %cst_127 = arith.constant dense<0.000000e+00> : vector<16x16xf32>
    %445 = tpu.matmul %436, %443, %cst_127 {dimension_numbers = #tpu.dot_dimension_numbers<[1], [0], [0], [1], [0, 0, 1, 1], [], []>} : vector<16x16xbf16>, vector<16x16xbf16>, vector<16x16xf32> -> vector<16x16xf32>
    %446 = arith.addf %444, %445 : vector<16x16xf32>
    %cst_128 = arith.constant dense<0.000000e+00> : vector<16x16xf32>
    %447 = tpu.matmul %439, %440, %cst_128 {dimension_numbers = #tpu.dot_dimension_numbers<[1], [0], [0], [1], [0, 0, 1, 1], [], []>} : vector<16x16xbf16>, vector<16x16xbf16>, vector<16x16xf32> -> vector<16x16xf32>
    %448 = arith.addf %446, %447 : vector<16x16xf32>
    %449 = arith.subf %0, %1 : vector<16x16xf32>
    %450 = arith.addf %421, %422 : vector<16x16xf32>
    %451 = arith.truncf %449 : vector<16x16xf32> to vector<16x16xbf16>
    %452 = arith.extf %451 : vector<16x16xbf16> to vector<16x16xf32>
    %453 = arith.subf %449, %452 : vector<16x16xf32>
    %454 = arith.truncf %453 : vector<16x16xf32> to vector<16x16xbf16>
    %455 = arith.truncf %450 : vector<16x16xf32> to vector<16x16xbf16>
    %456 = arith.extf %455 : vector<16x16xbf16> to vector<16x16xf32>
    %457 = arith.subf %450, %456 : vector<16x16xf32>
    %458 = arith.truncf %457 : vector<16x16xf32> to vector<16x16xbf16>
    %cst_129 = arith.constant dense<0.000000e+00> : vector<16x16xf32>
    %459 = tpu.matmul %451, %455, %cst_129 {dimension_numbers = #tpu.dot_dimension_numbers<[1], [0], [0], [1], [0, 0, 1, 1], [], []>} : vector<16x16xbf16>, vector<16x16xbf16>, vector<16x16xf32> -> vector<16x16xf32>
    %cst_130 = arith.constant dense<0.000000e+00> : vector<16x16xf32>
    %460 = tpu.matmul %451, %458, %cst_130 {dimension_numbers = #tpu.dot_dimension_numbers<[1], [0], [0], [1], [0, 0, 1, 1], [], []>} : vector<16x16xbf16>, vector<16x16xbf16>, vector<16x16xf32> -> vector<16x16xf32>
    %461 = arith.addf %459, %460 : vector<16x16xf32>
    %cst_131 = arith.constant dense<0.000000e+00> : vector<16x16xf32>
    %462 = tpu.matmul %454, %455, %cst_131 {dimension_numbers = #tpu.dot_dimension_numbers<[1], [0], [0], [1], [0, 0, 1, 1], [], []>} : vector<16x16xbf16>, vector<16x16xbf16>, vector<16x16xf32> -> vector<16x16xf32>
    %463 = arith.addf %461, %462 : vector<16x16xf32>
    %464 = arith.addf %435, %448 : vector<16x16xf32>
    %465 = arith.subf %463, %435 : vector<16x16xf32>
    %466 = arith.addf %465, %448 : vector<16x16xf32>
    %c0_132 = arith.constant 0 : index
    %c0_133 = arith.constant 0 : index
    %c32 = arith.constant 32 : index
    %c0_134 = arith.constant 0 : index
    %467 = vector.load %arg13[%c0_132, %c0_133, %c32, %c0_134] : memref<1x1x64x16xf32, #tpu.memory_space<vmem>>, vector<1x1x16x16xf32>
    %468 = vector.shape_cast %467 : vector<1x1x16x16xf32> to vector<16x16xf32>
    %469 = vector.shape_cast %464 : vector<16x16xf32> to vector<1x1x16x16xf32>
    tpu.vector_store %arg13[%c0_132, %c0_133, %c32, %c0_134], %469 {strides = array<i32>} : memref<1x1x64x16xf32, #tpu.memory_space<vmem>>, vector<1x1x16x16xf32>,
    %c0_135 = arith.constant 0 : index
    %c0_136 = arith.constant 0 : index
    %c32_137 = arith.constant 32 : index
    %c0_138 = arith.constant 0 : index
    %470 = vector.load %arg14[%c0_135, %c0_136, %c32_137, %c0_138] : memref<1x1x64x16xf32, #tpu.memory_space<vmem>>, vector<1x1x16x16xf32>
    %471 = vector.shape_cast %470 : vector<1x1x16x16xf32> to vector<16x16xf32>
    %472 = vector.shape_cast %466 : vector<16x16xf32> to vector<1x1x16x16xf32>
    tpu.vector_store %arg14[%c0_135, %c0_136, %c32_137, %c0_138], %472 {strides = array<i32>} : memref<1x1x64x16xf32, #tpu.memory_space<vmem>>, vector<1x1x16x16xf32>,
    %473 = vector.extract_strided_slice %314 {offsets = [48, 0], sizes = [16, 16], strides = [1, 1]} : vector<64x16xf32> to vector<16x16xf32>
    %474 = vector.extract_strided_slice %316 {offsets = [48, 0], sizes = [16, 16], strides = [1, 1]} : vector<64x16xf32> to vector<16x16xf32>
    %475 = arith.truncf %0 : vector<16x16xf32> to vector<16x16xbf16>
    %476 = arith.extf %475 : vector<16x16xbf16> to vector<16x16xf32>
    %477 = arith.subf %0, %476 : vector<16x16xf32>
    %478 = arith.truncf %477 : vector<16x16xf32> to vector<16x16xbf16>
    %479 = arith.truncf %473 : vector<16x16xf32> to vector<16x16xbf16>
    %480 = arith.extf %479 : vector<16x16xbf16> to vector<16x16xf32>
    %481 = arith.subf %473, %480 : vector<16x16xf32>
    %482 = arith.truncf %481 : vector<16x16xf32> to vector<16x16xbf16>
    %cst_139 = arith.constant dense<0.000000e+00> : vector<16x16xf32>
    %483 = tpu.matmul %475, %479, %cst_139 {dimension_numbers = #tpu.dot_dimension_numbers<[1], [0], [0], [1], [0, 0, 1, 1], [], []>} : vector<16x16xbf16>, vector<16x16xbf16>, vector<16x16xf32> -> vector<16x16xf32>
    %cst_140 = arith.constant dense<0.000000e+00> : vector<16x16xf32>
    %484 = tpu.matmul %475, %482, %cst_140 {dimension_numbers = #tpu.dot_dimension_numbers<[1], [0], [0], [1], [0, 0, 1, 1], [], []>} : vector<16x16xbf16>, vector<16x16xbf16>, vector<16x16xf32> -> vector<16x16xf32>
    %485 = arith.addf %483, %484 : vector<16x16xf32>
    %cst_141 = arith.constant dense<0.000000e+00> : vector<16x16xf32>
    %486 = tpu.matmul %478, %479, %cst_141 {dimension_numbers = #tpu.dot_dimension_numbers<[1], [0], [0], [1], [0, 0, 1, 1], [], []>} : vector<16x16xbf16>, vector<16x16xbf16>, vector<16x16xf32> -> vector<16x16xf32>
    %487 = arith.addf %485, %486 : vector<16x16xf32>
    %488 = arith.truncf %1 : vector<16x16xf32> to vector<16x16xbf16>
    %489 = arith.extf %488 : vector<16x16xbf16> to vector<16x16xf32>
    %490 = arith.subf %1, %489 : vector<16x16xf32>
    %491 = arith.truncf %490 : vector<16x16xf32> to vector<16x16xbf16>
    %492 = arith.truncf %474 : vector<16x16xf32> to vector<16x16xbf16>
    %493 = arith.extf %492 : vector<16x16xbf16> to vector<16x16xf32>
    %494 = arith.subf %474, %493 : vector<16x16xf32>
    %495 = arith.truncf %494 : vector<16x16xf32> to vector<16x16xbf16>
    %cst_142 = arith.constant dense<0.000000e+00> : vector<16x16xf32>
    %496 = tpu.matmul %488, %492, %cst_142 {dimension_numbers = #tpu.dot_dimension_numbers<[1], [0], [0], [1], [0, 0, 1, 1], [], []>} : vector<16x16xbf16>, vector<16x16xbf16>, vector<16x16xf32> -> vector<16x16xf32>
    %cst_143 = arith.constant dense<0.000000e+00> : vector<16x16xf32>
    %497 = tpu.matmul %488, %495, %cst_143 {dimension_numbers = #tpu.dot_dimension_numbers<[1], [0], [0], [1], [0, 0, 1, 1], [], []>} : vector<16x16xbf16>, vector<16x16xbf16>, vector<16x16xf32> -> vector<16x16xf32>
    %498 = arith.addf %496, %497 : vector<16x16xf32>
    %cst_144 = arith.constant dense<0.000000e+00> : vector<16x16xf32>
    %499 = tpu.matmul %491, %492, %cst_144 {dimension_numbers = #tpu.dot_dimension_numbers<[1], [0], [0], [1], [0, 0, 1, 1], [], []>} : vector<16x16xbf16>, vector<16x16xbf16>, vector<16x16xf32> -> vector<16x16xf32>
    %500 = arith.addf %498, %499 : vector<16x16xf32>
    %501 = arith.subf %0, %1 : vector<16x16xf32>
    %502 = arith.addf %473, %474 : vector<16x16xf32>
    %503 = arith.truncf %501 : vector<16x16xf32> to vector<16x16xbf16>
    %504 = arith.extf %503 : vector<16x16xbf16> to vector<16x16xf32>
    %505 = arith.subf %501, %504 : vector<16x16xf32>
    %506 = arith.truncf %505 : vector<16x16xf32> to vector<16x16xbf16>
    %507 = arith.truncf %502 : vector<16x16xf32> to vector<16x16xbf16>
    %508 = arith.extf %507 : vector<16x16xbf16> to vector<16x16xf32>
    %509 = arith.subf %502, %508 : vector<16x16xf32>
    %510 = arith.truncf %509 : vector<16x16xf32> to vector<16x16xbf16>
    %cst_145 = arith.constant dense<0.000000e+00> : vector<16x16xf32>
    %511 = tpu.matmul %503, %507, %cst_145 {dimension_numbers = #tpu.dot_dimension_numbers<[1], [0], [0], [1], [0, 0, 1, 1], [], []>} : vector<16x16xbf16>, vector<16x16xbf16>, vector<16x16xf32> -> vector<16x16xf32>
    %cst_146 = arith.constant dense<0.000000e+00> : vector<16x16xf32>
    %512 = tpu.matmul %503, %510, %cst_146 {dimension_numbers = #tpu.dot_dimension_numbers<[1], [0], [0], [1], [0, 0, 1, 1], [], []>} : vector<16x16xbf16>, vector<16x16xbf16>, vector<16x16xf32> -> vector<16x16xf32>
    %513 = arith.addf %511, %512 : vector<16x16xf32>
    %cst_147 = arith.constant dense<0.000000e+00> : vector<16x16xf32>
    %514 = tpu.matmul %506, %507, %cst_147 {dimension_numbers = #tpu.dot_dimension_numbers<[1], [0], [0], [1], [0, 0, 1, 1], [], []>} : vector<16x16xbf16>, vector<16x16xbf16>, vector<16x16xf32> -> vector<16x16xf32>
    %515 = arith.addf %513, %514 : vector<16x16xf32>
    %516 = arith.addf %487, %500 : vector<16x16xf32>
    %517 = arith.subf %515, %487 : vector<16x16xf32>
    %518 = arith.addf %517, %500 : vector<16x16xf32>
    %c0_148 = arith.constant 0 : index
    %c0_149 = arith.constant 0 : index
    %c48 = arith.constant 48 : index
    %c0_150 = arith.constant 0 : index
    %519 = vector.load %arg13[%c0_148, %c0_149, %c48, %c0_150] : memref<1x1x64x16xf32, #tpu.memory_space<vmem>>, vector<1x1x16x16xf32>
    %520 = vector.shape_cast %519 : vector<1x1x16x16xf32> to vector<16x16xf32>
    %521 = vector.shape_cast %516 : vector<16x16xf32> to vector<1x1x16x16xf32>
    tpu.vector_store %arg13[%c0_148, %c0_149, %c48, %c0_150], %521 {strides = array<i32>} : memref<1x1x64x16xf32, #tpu.memory_space<vmem>>, vector<1x1x16x16xf32>,
    %c0_151 = arith.constant 0 : index
    %c0_152 = arith.constant 0 : index
    %c48_153 = arith.constant 48 : index
    %c0_154 = arith.constant 0 : index
    %522 = vector.load %arg14[%c0_151, %c0_152, %c48_153, %c0_154] : memref<1x1x64x16xf32, #tpu.memory_space<vmem>>, vector<1x1x16x16xf32>
    %523 = vector.shape_cast %522 : vector<1x1x16x16xf32> to vector<16x16xf32>
    %524 = vector.shape_cast %518 : vector<16x16xf32> to vector<1x1x16x16xf32>
    tpu.vector_store %arg14[%c0_151, %c0_152, %c48_153, %c0_154], %524 {strides = array<i32>} : memref<1x1x64x16xf32, #tpu.memory_space<vmem>>, vector<1x1x16x16xf32>,
    return
  }
  func.func @transform_0(%arg0: i32, %arg1: i32) -> (i32, i32, i32, i32) {
    %c0_i32 = arith.constant 0 : i32
    %c0_i32_0 = arith.constant 0 : i32
    %c0_i32_1 = arith.constant 0 : i32
    return %arg0, %arg1, %c0_i32, %c0_i32_0 : i32, i32, i32, i32
  }
  func.func @transform_1(%arg0: i32, %arg1: i32) -> (i32, i32, i32, i32) {
    %c0_i32 = arith.constant 0 : i32
    %c0_i32_0 = arith.constant 0 : i32
    %c0_i32_1 = arith.constant 0 : i32
    return %arg0, %arg1, %c0_i32, %c0_i32_0 : i32, i32, i32, i32
  }
  func.func @transform_2(%arg0: i32, %arg1: i32) -> (i32, i32, i32, i32) {
    %c0_i32 = arith.constant 0 : i32
    %c0_i32_0 = arith.constant 0 : i32
    %c0_i32_1 = arith.constant 0 : i32
    return %arg0, %arg1, %c0_i32, %c0_i32_0 : i32, i32, i32, i32
  }
  func.func @transform_3(%arg0: i32, %arg1: i32) -> (i32, i32, i32, i32) {
    %c0_i32 = arith.constant 0 : i32
    %c0_i32_0 = arith.constant 0 : i32
    %c0_i32_1 = arith.constant 0 : i32
    return %arg0, %arg1, %c0_i32, %c0_i32_0 : i32, i32, i32, i32
  }
  func.func @transform_4(%arg0: i32, %arg1: i32) -> (i32, i32, i32, i32) {
    %c0_i32 = arith.constant 0 : i32
    %c0_i32_0 = arith.constant 0 : i32
    %c0_i32_1 = arith.constant 0 : i32
    return %arg0, %arg1, %c0_i32, %c0_i32_0 : i32, i32, i32, i32
  }
  func.func @transform_5(%arg0: i32, %arg1: i32) -> (i32, i32, i32) {
    %c0_i32 = arith.constant 0 : i32
    %c0_i32_0 = arith.constant 0 : i32
    %c0_i32_1 = arith.constant 0 : i32
    return %arg0, %c0_i32, %c0_i32_0 : i32, i32, i32
  }
  func.func @transform_6(%arg0: i32, %arg1: i32) -> (i32, i32, i32) {
    %c0_i32 = arith.constant 0 : i32
    %c0_i32_0 = arith.constant 0 : i32
    %c0_i32_1 = arith.constant 0 : i32
    return %arg0, %c0_i32, %c0_i32_0 : i32, i32, i32
  }
  func.func @transform_7(%arg0: i32, %arg1: i32) -> (i32, i32) {
    %c0_i32 = arith.constant 0 : i32
    %c0_i32_0 = arith.constant 0 : i32
    %c0_i32_1 = arith.constant 0 : i32
    return %c0_i32, %c0_i32_0 : i32, i32
  }
  func.func @transform_8(%arg0: i32, %arg1: i32) -> (i32, i32) {
    %c0_i32 = arith.constant 0 : i32
    %c0_i32_0 = arith.constant 0 : i32
    %c0_i32_1 = arith.constant 0 : i32
    return %c0_i32, %c0_i32_0 : i32, i32
  }
  func.func @transform_9(%arg0: i32, %arg1: i32) -> (i32, i32) {
    %c0_i32 = arith.constant 0 : i32
    %c0_i32_0 = arith.constant 0 : i32
    %c0_i32_1 = arith.constant 0 : i32
    return %c0_i32, %c0_i32_0 : i32, i32
  }
  func.func @transform_10(%arg0: i32, %arg1: i32) -> (i32, i32) {
    %c0_i32 = arith.constant 0 : i32
    %c0_i32_0 = arith.constant 0 : i32
    %c0_i32_1 = arith.constant 0 : i32
    return %c0_i32, %c0_i32_0 : i32, i32
  }
  func.func @transform_11(%arg0: i32, %arg1: i32) -> (i32, i32, i32, i32) {
    %c0_i32 = arith.constant 0 : i32
    %c0_i32_0 = arith.constant 0 : i32
    %c0_i32_1 = arith.constant 0 : i32
    return %arg0, %arg1, %c0_i32, %c0_i32_0 : i32, i32, i32, i32
  }
  func.func @transform_12(%arg0: i32, %arg1: i32) -> (i32, i32, i32, i32) {
    %c0_i32 = arith.constant 0 : i32
    %c0_i32_0 = arith.constant 0 : i32
    %c0_i32_1 = arith.constant 0 : i32
    return %arg0, %arg1, %c0_i32, %c0_i32_0 : i32, i32, i32, i32
  }
}

</mosaic_0001>

<llo_original>
// kernel: tpu_custom_call.1
$region0: #{tpu_custom_call.1}
  #allocation0 [shape = 'u32[]', space=smem, size = 0x4, offset = 0x4, fixed_abs, tag = 'smem constant byte address 0x4 - core index']
  #allocation1 [shape = 'u32[144,128]{1,0:T(1,128)}', space=vmem, size = 0x12000, scoped, tag = 'internal scratch']
  %s0 = inlined_call_operand.vmem [shape: f32[2,1,64,16], index: 0, kind: input, shape index: {}]
  %s1 = inlined_call_operand.vmem [shape: f32[2,1,64,16], index: 1, kind: input, shape index: {}]
  %s2 = inlined_call_operand.vmem [shape: bf16[2,1,64,16], index: 2, kind: input, shape index: {}]
  %s3 = inlined_call_operand.vmem [shape: f32[2,1,64,16], index: 3, kind: input, shape index: {}]
  %s4 = inlined_call_operand.vmem [shape: f32[2,1,64,16], index: 4, kind: input, shape index: {}]
  %s5 = inlined_call_operand.vmem [shape: f32[2,16,16], index: 5, kind: input, shape index: {}]
  %s6 = inlined_call_operand.vmem [shape: f32[2,16,16], index: 6, kind: input, shape index: {}]
  %s7 = inlined_call_operand.vmem [shape: f32[16,16], index: 7, kind: input, shape index: {}]
  %s8 = inlined_call_operand.vmem [shape: f32[16,16], index: 8, kind: input, shape index: {}]
  %s9 = inlined_call_operand.vmem [shape: f32[16,16], index: 9, kind: input, shape index: {}]
  %s10 = inlined_call_operand.vmem [shape: f32[16,16], index: 10, kind: input, shape index: {}]
  %s11 = inlined_call_operand.vmem [shape: f32[2,1,64,16], index: 11, kind: output, shape index: {0}]
  %s12 = inlined_call_operand.vmem [shape: f32[2,1,64,16], index: 12, kind: output, shape index: {1}]
  %13 = xla_tuple %s11, %s12
  %s14 = sld [smem:[#allocation0]]
  $region85: #{tpu_custom_call.1} parent=0
    _
  %s16 = ssub.s32 1, %s14
  %s17 = scalar_select 0, %s16, %s14
  loop: start=0, step=1, limit=4
  $region2: #{tpu_custom_call.1} parent=0 // loop_pre_header
    _
  $region3: #{tpu_custom_call.1} parent=0 // loop_header
    %s19 = sphi 0, %s23
    %p20 = scmp.ge.s32.totalorder %s19, 4
    %s26 = sphi 0, %s38
    %s27 = sphi 0, %s34
    %s28 = sphi 0, %s26
    %s29 = sphi 0, %s27
    %s30 = sphi 0, %s28
    %s31 = sphi 0, %s29
    %s43 = sphi 0, %s45
    %s46 = sphi 0, %s43
    %s47 = sphi 0, %s46
    %s63 = sphi 0, %s47
    %s71 = sphi 0, %s73
    %s74 = sphi 0, %s71
    %s75 = sphi 0, %s74
    %s91 = sphi 0, %s75
    %s99 = sphi 0, %s101
    %s102 = sphi 0, %s99
    %s103 = sphi 0, %s102
    %s119 = sphi 0, %s103
    %s127 = sphi 0, %s129
    %s130 = sphi 0, %s127
    %s131 = sphi 0, %s130
    %s147 = sphi 0, %s131
    %s155 = sphi 0, %s157
    %s158 = sphi 0, %s155
    %s159 = sphi 0, %s158
    %s175 = sphi 0, %s159
    %s181 = sphi 0, %s183
    %s184 = sphi 0, %s181
    %s185 = sphi 0, %s184
    %s201 = sphi 0, %s185
    %s207 = sphi 0, %s209
    %s210 = sphi 0, %s207
    %s211 = sphi 0, %s210
    %s227 = sphi 0, %s211
    %s231 = sphi 0, %s231
    %s233 = sphi 0, %s231
    %s234 = sphi 0, %s233
    %s248 = sphi 0, %s234
    %s252 = sphi 0, %s252
    %s254 = sphi 0, %s252
    %s255 = sphi 0, %s254
    %s269 = sphi 0, %s255
    %s273 = sphi 0, %s273
    %s275 = sphi 0, %s273
    %s276 = sphi 0, %s275
    %s290 = sphi 0, %s276
    %s294 = sphi 0, %s294
    %s296 = sphi 0, %s294
    %s297 = sphi 0, %s296
    %s311 = sphi 0, %s297
    %s319 = sphi 0, %s321
    %s322 = sphi 0, %s319
    %s323 = sphi 0, %s322
    %s339 = sphi 0, %s323
    %s347 = sphi 0, %s349
    %s350 = sphi 0, %s347
    %s351 = sphi 0, %s350
    %s367 = sphi 0, %s351
  $region4: #{tpu_custom_call.1} parent=0 // loop_header_branch
    %22 = sbr.rel (%p20) target = $region8
  $region5: #{tpu_custom_call.1} parent=0 // loop_body
    %s24 = ssub.s32 %s19, 1
    %s25 = ssub.s32 %s19, 2
    %s32 = sadd.s32 1, %s27
    %p33 = scmp.ge.s32.totalorder %s32, 1
    %s34 = scalar_select %p33, 0, %s32
    %s35 = sadd.s32 1, %s26
    %s36 = scalar_select %p33, %s35, %s26
    %p37 = scmp.ge.s32.totalorder %s36, 2
    %s38 = scalar_select %p37, 0, %s36
    %s39 = ssub.s32 %s26, %s38
    %s40 = ssub.s32 %s27, %s34
    %s41 = sor.u32 %s39, %s40
    %p42 = scmp.eq.s32.totalorder %s41, 0
    %s44 = sadd.s32 %s43, 1
    %s45 = scalar_select %p42, %s43, %s44
    %p48 = pneg %p42
    %p49 = scmp.eq.s32.totalorder %s19, 1
    %p50 = por %p48, %p49
    %p51 = scmp.ne.s32.totalorder %s43, %s46
    %p52 = scmp.eq.s32.totalorder %s19, 0
    %p53 = por %p51, %p52
    %p54 = scmp.ne.s32.totalorder %s43, %s46
    %p55 = scmp.eq.s32.totalorder %s24, 1
    %p56 = por %p54, %p55
    %p57 = scmp.ne.s32.totalorder %s46, %s47
    %p58 = scmp.eq.s32.totalorder %s24, 0
    %p59 = por %p57, %p58
    %p60 = scmp.ne.s32.totalorder %s46, %s47
    %p61 = scmp.eq.s32.totalorder %s25, 1
    %p62 = por %p60, %p61
    %p64 = scmp.ne.s32.totalorder %s47, %s63
    %p65 = scmp.eq.s32.totalorder %s25, 0
    %p66 = por %p64, %p65
    %s67 = ssub.s32 %s26, %s38
    %s68 = ssub.s32 %s27, %s34
    %s69 = sor.u32 %s67, %s68
    %p70 = scmp.eq.s32.totalorder %s69, 0
    %s72 = sadd.s32 %s71, 1
    %s73 = scalar_select %p70, %s71, %s72
    %p76 = pneg %p70
    %p77 = scmp.eq.s32.totalorder %s19, 1
    %p78 = por %p76, %p77
    %p79 = scmp.ne.s32.totalorder %s71, %s74
    %p80 = scmp.eq.s32.totalorder %s19, 0
    %p81 = por %p79, %p80
    %p82 = scmp.ne.s32.totalorder %s71, %s74
    %p83 = scmp.eq.s32.totalorder %s24, 1
    %p84 = por %p82, %p83
    %p85 = scmp.ne.s32.totalorder %s74, %s75
    %p86 = scmp.eq.s32.totalorder %s24, 0
    %p87 = por %p85, %p86
    %p88 = scmp.ne.s32.totalorder %s74, %s75
    %p89 = scmp.eq.s32.totalorder %s25, 1
    %p90 = por %p88, %p89
    %p92 = scmp.ne.s32.totalorder %s75, %s91
    %p93 = scmp.eq.s32.totalorder %s25, 0
    %p94 = por %p92, %p93
    %s95 = ssub.s32 %s26, %s38
    %s96 = ssub.s32 %s27, %s34
    %s97 = sor.u32 %s95, %s96
    %p98 = scmp.eq.s32.totalorder %s97, 0
    %s100 = sadd.s32 %s99, 1
    %s101 = scalar_select %p98, %s99, %s100
    %p104 = pneg %p98
    %p105 = scmp.eq.s32.totalorder %s19, 1
    %p106 = por %p104, %p105
    %p107 = scmp.ne.s32.totalorder %s99, %s102
    %p108 = scmp.eq.s32.totalorder %s19, 0
    %p109 = por %p107, %p108
    %p110 = scmp.ne.s32.totalorder %s99, %s102
    %p111 = scmp.eq.s32.totalorder %s24, 1
    %p112 = por %p110, %p111
    %p113 = scmp.ne.s32.totalorder %s102, %s103
    %p114 = scmp.eq.s32.totalorder %s24, 0
    %p115 = por %p113, %p114
    %p116 = scmp.ne.s32.totalorder %s102, %s103
    %p117 = scmp.eq.s32.totalorder %s25, 1
    %p118 = por %p116, %p117
    %p120 = scmp.ne.s32.totalorder %s103, %s119
    %p121 = scmp.eq.s32.totalorder %s25, 0
    %p122 = por %p120, %p121
    %s123 = ssub.s32 %s26, %s38
    %s124 = ssub.s32 %s27, %s34
    %s125 = sor.u32 %s123, %s124
    %p126 = scmp.eq.s32.totalorder %s125, 0
    %s128 = sadd.s32 %s127, 1
    %s129 = scalar_select %p126, %s127, %s128
    %p132 = pneg %p126
    %p133 = scmp.eq.s32.totalorder %s19, 1
    %p134 = por %p132, %p133
    %p135 = scmp.ne.s32.totalorder %s127, %s130
    %p136 = scmp.eq.s32.totalorder %s19, 0
    %p137 = por %p135, %p136
    %p138 = scmp.ne.s32.totalorder %s127, %s130
    %p139 = scmp.eq.s32.totalorder %s24, 1
    %p140 = por %p138, %p139
    %p141 = scmp.ne.s32.totalorder %s130, %s131
    %p142 = scmp.eq.s32.totalorder %s24, 0
    %p143 = por %p141, %p142
    %p144 = scmp.ne.s32.totalorder %s130, %s131
    %p145 = scmp.eq.s32.totalorder %s25, 1
    %p146 = por %p144, %p145
    %p148 = scmp.ne.s32.totalorder %s131, %s147
    %p149 = scmp.eq.s32.totalorder %s25, 0
    %p150 = por %p148, %p149
    %s151 = ssub.s32 %s26, %s38
    %s152 = ssub.s32 %s27, %s34
    %s153 = sor.u32 %s151, %s152
    %p154 = scmp.eq.s32.totalorder %s153, 0
    %s156 = sadd.s32 %s155, 1
    %s157 = scalar_select %p154, %s155, %s156
    %p160 = pneg %p154
    %p161 = scmp.eq.s32.totalorder %s19, 1
    %p162 = por %p160, %p161
    %p163 = scmp.ne.s32.totalorder %s155, %s158
    %p164 = scmp.eq.s32.totalorder %s19, 0
    %p165 = por %p163, %p164
    %p166 = scmp.ne.s32.totalorder %s155, %s158
    %p167 = scmp.eq.s32.totalorder %s24, 1
    %p168 = por %p166, %p167
    %p169 = scmp.ne.s32.totalorder %s158, %s159
    %p170 = scmp.eq.s32.totalorder %s24, 0
    %p171 = por %p169, %p170
    %p172 = scmp.ne.s32.totalorder %s158, %s159
    %p173 = scmp.eq.s32.totalorder %s25, 1
    %p174 = por %p172, %p173
    %p176 = scmp.ne.s32.totalorder %s159, %s175
    %p177 = scmp.eq.s32.totalorder %s25, 0
    %p178 = por %p176, %p177
    %s179 = ssub.s32 %s26, %s38
    %p180 = scmp.eq.s32.totalorder %s179, 0
    %s182 = sadd.s32 %s181, 1
    %s183 = scalar_select %p180, %s181, %s182
    %p186 = pneg %p180
    %p187 = scmp.eq.s32.totalorder %s19, 1
    %p188 = por %p186, %p187
    %p189 = scmp.ne.s32.totalorder %s181, %s184
    %p190 = scmp.eq.s32.totalorder %s19, 0
    %p191 = por %p189, %p190
    %p192 = scmp.ne.s32.totalorder %s181, %s184
    %p193 = scmp.eq.s32.totalorder %s24, 1
    %p194 = por %p192, %p193
    %p195 = scmp.ne.s32.totalorder %s184, %s185
    %p196 = scmp.eq.s32.totalorder %s24, 0
    %p197 = por %p195, %p196
    %p198 = scmp.ne.s32.totalorder %s184, %s185
    %p199 = scmp.eq.s32.totalorder %s25, 1
    %p200 = por %p198, %p199
    %p202 = scmp.ne.s32.totalorder %s185, %s201
    %p203 = scmp.eq.s32.totalorder %s25, 0
    %p204 = por %p202, %p203
    %s205 = ssub.s32 %s26, %s38
    %p206 = scmp.eq.s32.totalorder %s205, 0
    %s208 = sadd.s32 %s207, 1
    %s209 = scalar_select %p206, %s207, %s208
    %p212 = pneg %p206
    %p213 = scmp.eq.s32.totalorder %s19, 1
    %p214 = por %p212, %p213
    %p215 = scmp.ne.s32.totalorder %s207, %s210
    %p216 = scmp.eq.s32.totalorder %s19, 0
    %p217 = por %p215, %p216
    %p218 = scmp.ne.s32.totalorder %s207, %s210
    %p219 = scmp.eq.s32.totalorder %s24, 1
    %p220 = por %p218, %p219
    %p221 = scmp.ne.s32.totalorder %s210, %s211
    %p222 = scmp.eq.s32.totalorder %s24, 0
    %p223 = por %p221, %p222
    %p224 = scmp.ne.s32.totalorder %s210, %s211
    %p225 = scmp.eq.s32.totalorder %s25, 1
    %p226 = por %p224, %p225
    %p228 = scmp.ne.s32.totalorder %s211, %s227
    %p229 = scmp.eq.s32.totalorder %s25, 0
    %p230 = por %p228, %p229
    %s232 = sadd.s32 %s231, 1
    %p235 = scmp.eq.s32.totalorder %s19, 1
    %p236 = scmp.ne.s32.totalorder %s231, %s233
    %p237 = scmp.eq.s32.totalorder %s19, 0
    %p238 = por %p236, %p237
    %p239 = scmp.ne.s32.totalorder %s231, %s233
    %p240 = scmp.eq.s32.totalorder %s24, 1
    %p241 = por %p239, %p240
    %p242 = scmp.ne.s32.totalorder %s233, %s234
    %p243 = scmp.eq.s32.totalorder %s24, 0
    %p244 = por %p242, %p243
    %p245 = scmp.ne.s32.totalorder %s233, %s234
    %p246 = scmp.eq.s32.totalorder %s25, 1
    %p247 = por %p245, %p246
    %p249 = scmp.ne.s32.totalorder %s234, %s248
    %p250 = scmp.eq.s32.totalorder %s25, 0
    %p251 = por %p249, %p250
    %s253 = sadd.s32 %s252, 1
    %p256 = scmp.eq.s32.totalorder %s19, 1
    %p257 = scmp.ne.s32.totalorder %s252, %s254
    %p258 = scmp.eq.s32.totalorder %s19, 0
    %p259 = por %p257, %p258
    %p260 = scmp.ne.s32.totalorder %s252, %s254
    %p261 = scmp.eq.s32.totalorder %s24, 1
    %p262 = por %p260, %p261
    %p263 = scmp.ne.s32.totalorder %s254, %s255
    %p264 = scmp.eq.s32.totalorder %s24, 0
    %p265 = por %p263, %p264
    %p266 = scmp.ne.s32.totalorder %s254, %s255
    %p267 = scmp.eq.s32.totalorder %s25, 1
    %p268 = por %p266, %p267
    %p270 = scmp.ne.s32.totalorder %s255, %s269
    %p271 = scmp.eq.s32.totalorder %s25, 0
    %p272 = por %p270, %p271
    %s274 = sadd.s32 %s273, 1
    %p277 = scmp.eq.s32.totalorder %s19, 1
    %p278 = scmp.ne.s32.totalorder %s273, %s275
    %p279 = scmp.eq.s32.totalorder %s19, 0
    %p280 = por %p278, %p279
    %p281 = scmp.ne.s32.totalorder %s273, %s275
    %p282 = scmp.eq.s32.totalorder %s24, 1
    %p283 = por %p281, %p282
    %p284 = scmp.ne.s32.totalorder %s275, %s276
    %p285 = scmp.eq.s32.totalorder %s24, 0
    %p286 = por %p284, %p285
    %p287 = scmp.ne.s32.totalorder %s275, %s276
    %p288 = scmp.eq.s32.totalorder %s25, 1
    %p289 = por %p287, %p288
    %p291 = scmp.ne.s32.totalorder %s276, %s290
    %p292 = scmp.eq.s32.totalorder %s25, 0
    %p293 = por %p291, %p292
    %s295 = sadd.s32 %s294, 1
    %p298 = scmp.eq.s32.totalorder %s19, 1
    %p299 = scmp.ne.s32.totalorder %s294, %s296
    %p300 = scmp.eq.s32.totalorder %s19, 0
    %p301 = por %p299, %p300
    %p302 = scmp.ne.s32.totalorder %s294, %s296
    %p303 = scmp.eq.s32.totalorder %s24, 1
    %p304 = por %p302, %p303
    %p305 = scmp.ne.s32.totalorder %s296, %s297
    %p306 = scmp.eq.s32.totalorder %s24, 0
    %p307 = por %p305, %p306
    %p308 = scmp.ne.s32.totalorder %s296, %s297
    %p309 = scmp.eq.s32.totalorder %s25, 1
    %p310 = por %p308, %p309
    %p312 = scmp.ne.s32.totalorder %s297, %s311
    %p313 = scmp.eq.s32.totalorder %s25, 0
    %p314 = por %p312, %p313
    %s315 = ssub.s32 %s26, %s38
    %s316 = ssub.s32 %s27, %s34
    %s317 = sor.u32 %s315, %s316
    %p318 = scmp.eq.s32.totalorder %s317, 0
    %s320 = sadd.s32 %s319, 1
    %s321 = scalar_select %p318, %s319, %s320
    %p324 = pneg %p318
    %p325 = scmp.eq.s32.totalorder %s19, 1
    %p326 = por %p324, %p325
    %p327 = scmp.ne.s32.totalorder %s319, %s322
    %p328 = scmp.eq.s32.totalorder %s19, 0
    %p329 = por %p327, %p328
    %p330 = scmp.ne.s32.totalorder %s319, %s322
    %p331 = scmp.eq.s32.totalorder %s24, 1
    %p332 = por %p330, %p331
    %p333 = scmp.ne.s32.totalorder %s322, %s323
    %p334 = scmp.eq.s32.totalorder %s24, 0
    %p335 = por %p333, %p334
    %p336 = scmp.ne.s32.totalorder %s322, %s323
    %p337 = scmp.eq.s32.totalorder %s25, 1
    %p338 = por %p336, %p337
    %p340 = scmp.ne.s32.totalorder %s323, %s339
    %p341 = scmp.eq.s32.totalorder %s25, 0
    %p342 = por %p340, %p341
    %s343 = ssub.s32 %s26, %s38
    %s344 = ssub.s32 %s27, %s34
    %s345 = sor.u32 %s343, %s344
    %p346 = scmp.eq.s32.totalorder %s345, 0
    %s348 = sadd.s32 %s347, 1
    %s349 = scalar_select %p346, %s347, %s348
    %p352 = pneg %p346
    %p353 = scmp.eq.s32.totalorder %s19, 1
    %p354 = por %p352, %p353
    %p355 = scmp.ne.s32.totalorder %s347, %s350
    %p356 = scmp.eq.s32.totalorder %s19, 0
    %p357 = por %p355, %p356
    %p358 = scmp.ne.s32.totalorder %s347, %s350
    %p359 = scmp.eq.s32.totalorder %s24, 1
    %p360 = por %p358, %p359
    %p361 = scmp.ne.s32.totalorder %s350, %s351
    %p362 = scmp.eq.s32.totalorder %s24, 0
    %p363 = por %p361, %p362
    %p364 = scmp.ne.s32.totalorder %s350, %s351
    %p365 = scmp.eq.s32.totalorder %s25, 1
    %p366 = por %p364, %p365
    %p368 = scmp.ne.s32.totalorder %s351, %s367
    %p369 = scmp.eq.s32.totalorder %s25, 0
    %p370 = por %p368, %p369
    %p371 = scmp.le.s32.totalorder 1, %s19
    %p372 = scmp.lt.s32.totalorder %s19, 3
    %p373 = pnand %p371, %p372
    %p374 = pneg %p373
    // Predicated region
    $region9: #{tpu_custom_call.1} parent=5 // pred_check
      _
    $region10: #{tpu_custom_call.1} parent=5 // pred_check_branch
      %376 = sbr.rel (%p373) target = $region12
    $region11: #{tpu_custom_call.1} parent=5 // pred_region
      %s377 = ssub.s32 %s19, 1
      // Predicated region
      $region13: #{tpu_custom_call.1} parent=11 // pred_check
        %p378 = pneg %p244
      $region14: #{tpu_custom_call.1} parent=11 // pred_check_branch
        %380 = sbr.rel (%p378) target = $region16
      $region15: #{tpu_custom_call.1} parent=11 // pred_region
        _
      $region16: #{tpu_custom_call.1} parent=11 // pred_fallthru
        _
      // Predicated region
      $region17: #{tpu_custom_call.1} parent=11 // pred_check
        %p381 = pneg %p265
      $region18: #{tpu_custom_call.1} parent=11 // pred_check_branch
        %383 = sbr.rel (%p381) target = $region20
      $region19: #{tpu_custom_call.1} parent=11 // pred_region
        _
      $region20: #{tpu_custom_call.1} parent=11 // pred_fallthru
        _
      // Predicated region
      $region21: #{tpu_custom_call.1} parent=11 // pred_check
        %p384 = pneg %p286
      $region22: #{tpu_custom_call.1} parent=11 // pred_check_branch
        %386 = sbr.rel (%p384) target = $region24
      $region23: #{tpu_custom_call.1} parent=11 // pred_region
        _
      $region24: #{tpu_custom_call.1} parent=11 // pred_fallthru
        _
      // Predicated region
      $region25: #{tpu_custom_call.1} parent=11 // pred_check
        %p387 = pneg %p307
      $region26: #{tpu_custom_call.1} parent=11 // pred_check_branch
        %389 = sbr.rel (%p387) target = $region28
      $region27: #{tpu_custom_call.1} parent=11 // pred_region
        _
      $region28: #{tpu_custom_call.1} parent=11 // pred_fallthru
        _
    $region12: #{tpu_custom_call.1} parent=5 // pred_fallthru
      _
    %p390 = scmp.lt.s32.totalorder %s19, 2
    // Predicated region
    $region29: #{tpu_custom_call.1} parent=5 // pred_check
      %p391 = pneg %p390
    $region30: #{tpu_custom_call.1} parent=5 // pred_check_branch
      %393 = sbr.rel (%p391) target = $region32
    $region31: #{tpu_custom_call.1} parent=5 // pred_region
      // Predicated region
      $region33: #{tpu_custom_call.1} parent=31 // pred_check
        %p394 = pneg %p53
      $region34: #{tpu_custom_call.1} parent=31 // pred_check_branch
        %396 = sbr.rel (%p394) target = $region36
      $region35: #{tpu_custom_call.1} parent=31 // pred_region
        %p397 = scmp.lt.s32.totalorder %s26, 1
        %s398 = scalar_select %p397, %s26, 1
        %p399 = scmp.lt.s32.totalorder %s27, 0
        %s400 = scalar_select %p399, %s27, 0
        %s401 = smul.addr %s400, 8
        %s402 = smul.addr %s398, 8
        %s403 = sadd.s32 %s401, %s402
        %s404 = smul.addr %s403, 8
        %s405 = scalar_lea.vmem %s0, %s404
      $region36: #{tpu_custom_call.1} parent=31 // pred_fallthru
        _
      // Predicated region
      $region37: #{tpu_custom_call.1} parent=31 // pred_check
        %p406 = pneg %p81
      $region38: #{tpu_custom_call.1} parent=31 // pred_check_branch
        %408 = sbr.rel (%p406) target = $region40
      $region39: #{tpu_custom_call.1} parent=31 // pred_region
        %p409 = scmp.lt.s32.totalorder %s26, 1
        %s410 = scalar_select %p409, %s26, 1
        %p411 = scmp.lt.s32.totalorder %s27, 0
        %s412 = scalar_select %p411, %s27, 0
        %s413 = smul.addr %s412, 8
        %s414 = smul.addr %s410, 8
        %s415 = sadd.s32 %s413, %s414
        %s416 = smul.addr %s415, 8
        %s417 = scalar_lea.vmem %s1, %s416
      $region40: #{tpu_custom_call.1} parent=31 // pred_fallthru
        _
      // Predicated region
      $region41: #{tpu_custom_call.1} parent=31 // pred_check
        %p418 = pneg %p109
      $region42: #{tpu_custom_call.1} parent=31 // pred_check_branch
        %420 = sbr.rel (%p418) target = $region44
      $region43: #{tpu_custom_call.1} parent=31 // pred_region
        %p421 = scmp.lt.s32.totalorder %s26, 1
        %s422 = scalar_select %p421, %s26, 1
        %p423 = scmp.lt.s32.totalorder %s27, 0
        %s424 = scalar_select %p423, %s27, 0
        %s425 = smul.addr %s424, 8
        %s426 = smul.addr %s422, 8
        %s427 = sadd.s32 %s425, %s426
        %s428 = smul.addr %s427, 4
        %s429 = scalar_lea.vmem %s2, %s428
      $region44: #{tpu_custom_call.1} parent=31 // pred_fallthru
        _
      // Predicated region
      $region45: #{tpu_custom_call.1} parent=31 // pred_check
        %p430 = pneg %p137
      $region46: #{tpu_custom_call.1} parent=31 // pred_check_branch
        %432 = sbr.rel (%p430) target = $region48
      $region47: #{tpu_custom_call.1} parent=31 // pred_region
        %p433 = scmp.lt.s32.totalorder %s26, 1
        %s434 = scalar_select %p433, %s26, 1
        %p435 = scmp.lt.s32.totalorder %s27, 0
        %s436 = scalar_select %p435, %s27, 0
        %s437 = smul.addr %s436, 8
        %s438 = smul.addr %s434, 8
        %s439 = sadd.s32 %s437, %s438
        %s440 = smul.addr %s439, 8
        %s441 = scalar_lea.vmem %s3, %s440
      $region48: #{tpu_custom_call.1} parent=31 // pred_fallthru
        _
      // Predicated region
      $region49: #{tpu_custom_call.1} parent=31 // pred_check
        %p442 = pneg %p165
      $region50: #{tpu_custom_call.1} parent=31 // pred_check_branch
        %444 = sbr.rel (%p442) target = $region52
      $region51: #{tpu_custom_call.1} parent=31 // pred_region
        %p445 = scmp.lt.s32.totalorder %s26, 1
        %s446 = scalar_select %p445, %s26, 1
        %p447 = scmp.lt.s32.totalorder %s27, 0
        %s448 = scalar_select %p447, %s27, 0
        %s449 = smul.addr %s448, 8
        %s450 = smul.addr %s446, 8
        %s451 = sadd.s32 %s449, %s450
        %s452 = smul.addr %s451, 8
        %s453 = scalar_lea.vmem %s4, %s452
      $region52: #{tpu_custom_call.1} parent=31 // pred_fallthru
        _
      // Predicated region
      $region53: #{tpu_custom_call.1} parent=31 // pred_check
        %p454 = pneg %p191
      $region54: #{tpu_custom_call.1} parent=31 // pred_check_branch
        %456 = sbr.rel (%p454) target = $region56
      $region55: #{tpu_custom_call.1} parent=31 // pred_region
        %p457 = scmp.lt.s32.totalorder %s26, 1
        %s458 = scalar_select %p457, %s26, 1
        %s459 = smul.addr %s458, 2
        %s460 = smul.addr %s459, 8
        %s461 = scalar_lea.vmem %s5, %s460
      $region56: #{tpu_custom_call.1} parent=31 // pred_fallthru
        _
      // Predicated region
      $region57: #{tpu_custom_call.1} parent=31 // pred_check
        %p462 = pneg %p217
      $region58: #{tpu_custom_call.1} parent=31 // pred_check_branch
        %464 = sbr.rel (%p462) target = $region60
      $region59: #{tpu_custom_call.1} parent=31 // pred_region
        %p465 = scmp.lt.s32.totalorder %s26, 1
        %s466 = scalar_select %p465, %s26, 1
        %s467 = smul.addr %s466, 2
        %s468 = smul.addr %s467, 8
        %s469 = scalar_lea.vmem %s6, %s468
      $region60: #{tpu_custom_call.1} parent=31 // pred_fallthru
        _
    $region32: #{tpu_custom_call.1} parent=5 // pred_fallthru
      _
    %p470 = scmp.le.s32.totalorder 1, %s19
    %p471 = scmp.lt.s32.totalorder %s19, 3
    %p472 = pnand %p470, %p471
    %p473 = pneg %p472
    // Predicated region
    $region61: #{tpu_custom_call.1} parent=5 // pred_check
      _
    $region62: #{tpu_custom_call.1} parent=5 // pred_check_branch
      %475 = sbr.rel (%p472) target = $region64
    $region63: #{tpu_custom_call.1} parent=5 // pred_region
      %s476 = ssub.s32 %s19, 1
      %p477 = scmp.lt.s32.totalorder %s28, 1
      %s478 = scalar_select %p477, %s28, 1
      %p479 = scmp.lt.s32.totalorder %s29, 0
      %s480 = scalar_select %p479, %s29, 0
      %s481 = smul.addr %s480, 8
      %s482 = smul.addr %s478, 8
      %s483 = sadd.s32 %s481, %s482
      %s484 = smul.addr %s483, 8
      %s485 = scalar_lea.vmem %s0, %s484
      %p486 = pneg %p59
      %p487 = pneg %p56
      %p488 = scmp.lt.s32.totalorder %s28, 1
      %s489 = scalar_select %p488, %s28, 1
      %p490 = scmp.lt.s32.totalorder %s29, 0
      %s491 = scalar_select %p490, %s29, 0
      %s492 = smul.addr %s491, 8
      %s493 = smul.addr %s489, 8
      %s494 = sadd.s32 %s492, %s493
      %s495 = smul.addr %s494, 8
      %s496 = scalar_lea.vmem %s1, %s495
      %p497 = pneg %p87
      %p498 = pneg %p84
      %p499 = scmp.lt.s32.totalorder %s28, 1
      %s500 = scalar_select %p499, %s28, 1
      %p501 = scmp.lt.s32.totalorder %s29, 0
      %s502 = scalar_select %p501, %s29, 0
      %s503 = smul.addr %s502, 8
      %s504 = smul.addr %s500, 8
      %s505 = sadd.s32 %s503, %s504
      %s506 = smul.addr %s505, 4
      %s507 = scalar_lea.vmem %s2, %s506
      %p508 = pneg %p115
      %p509 = pneg %p112
      %p510 = scmp.lt.s32.totalorder %s28, 1
      %s511 = scalar_select %p510, %s28, 1
      %p512 = scmp.lt.s32.totalorder %s29, 0
      %s513 = scalar_select %p512, %s29, 0
      %s514 = smul.addr %s513, 8
      %s515 = smul.addr %s511, 8
      %s516 = sadd.s32 %s514, %s515
      %s517 = smul.addr %s516, 8
      %s518 = scalar_lea.vmem %s3, %s517
      %p519 = pneg %p143
      %p520 = pneg %p140
      %p521 = scmp.lt.s32.totalorder %s28, 1
      %s522 = scalar_select %p521, %s28, 1
      %p523 = scmp.lt.s32.totalorder %s29, 0
      %s524 = scalar_select %p523, %s29, 0
      %s525 = smul.addr %s524, 8
      %s526 = smul.addr %s522, 8
      %s527 = sadd.s32 %s525, %s526
      %s528 = smul.addr %s527, 8
      %s529 = scalar_lea.vmem %s4, %s528
      %p530 = pneg %p171
      %p531 = pneg %p168
      %p532 = scmp.lt.s32.totalorder %s28, 1
      %s533 = scalar_select %p532, %s28, 1
      %s534 = smul.addr %s533, 2
      %s535 = smul.addr %s534, 8
      %s536 = scalar_lea.vmem %s5, %s535
      %p537 = pneg %p197
      %p538 = pneg %p194
      %p539 = scmp.lt.s32.totalorder %s28, 1
      %s540 = scalar_select %p539, %s28, 1
      %s541 = smul.addr %s540, 2
      %s542 = smul.addr %s541, 8
      %s543 = scalar_lea.vmem %s6, %s542
      %p544 = pneg %p223
      %p545 = pneg %p220
      %p546 = pneg %p244
      %p547 = pneg %p241
      %p548 = pneg %p265
      %p549 = pneg %p262
      %p550 = pneg %p286
      %p551 = pneg %p283
      %p552 = pneg %p307
      %p553 = pneg %p304
      %p554 = pneg %p335
      %p555 = pneg %p332
      %p556 = scmp.lt.s32.totalorder %s28, 1
      %s557 = scalar_select %p556, %s28, 1
      %p558 = scmp.lt.s32.totalorder %s29, 0
      %s559 = scalar_select %p558, %s29, 0
      %s560 = smul.addr %s559, 8
      %s561 = smul.addr %s557, 8
      %s562 = sadd.s32 %s560, %s561
      %s563 = smul.addr %s562, 8
      %s564 = scalar_lea.vmem %s11, %s563
      %p565 = pneg %p363
      %p566 = pneg %p360
      %p567 = scmp.lt.s32.totalorder %s28, 1
      %s568 = scalar_select %p567, %s28, 1
      %p569 = scmp.lt.s32.totalorder %s29, 0
      %s570 = scalar_select %p569, %s29, 0
      %s571 = smul.addr %s570, 8
      %s572 = smul.addr %s568, 8
      %s573 = sadd.s32 %s571, %s572
      %s574 = smul.addr %s573, 8
      %s575 = scalar_lea.vmem %s12, %s574
      %p576 = scmp.lt.s32.totalorder %s28, 1
      %s577 = scalar_select %p576, %s28, 1
      %p578 = scmp.lt.s32.totalorder %s29, 0
      %s579 = scalar_select %p578, %s29, 0
      %s580 = smul.addr %s579, 8
      %s581 = smul.addr %s577, 8
      %s582 = sadd.s32 %s580, %s581
      %s583 = smul.addr %s582, 8
      %s584 = scalar_lea.vmem %s0, %s583
      %p585 = scmp.lt.s32.totalorder %s28, 1
      %s586 = scalar_select %p585, %s28, 1
      %p587 = scmp.lt.s32.totalorder %s29, 0
      %s588 = scalar_select %p587, %s29, 0
      %s589 = smul.addr %s588, 8
      %s590 = smul.addr %s586, 8
      %s591 = sadd.s32 %s589, %s590
      %s592 = smul.addr %s591, 8
      %s593 = scalar_lea.vmem %s1, %s592
      %p594 = scmp.lt.s32.totalorder %s28, 1
      %s595 = scalar_select %p594, %s28, 1
      %p596 = scmp.lt.s32.totalorder %s29, 0
      %s597 = scalar_select %p596, %s29, 0
      %s598 = smul.addr %s597, 8
      %s599 = smul.addr %s595, 8
      %s600 = sadd.s32 %s598, %s599
      %s601 = smul.addr %s600, 4
      %s602 = scalar_lea.vmem %s2, %s601
      %p603 = scmp.lt.s32.totalorder %s28, 1
      %s604 = scalar_select %p603, %s28, 1
      %p605 = scmp.lt.s32.totalorder %s29, 0
      %s606 = scalar_select %p605, %s29, 0
      %s607 = smul.addr %s606, 8
      %s608 = smul.addr %s604, 8
      %s609 = sadd.s32 %s607, %s608
      %s610 = smul.addr %s609, 8
      %s611 = scalar_lea.vmem %s3, %s610
      %p612 = scmp.lt.s32.totalorder %s28, 1
      %s613 = scalar_select %p612, %s28, 1
      %p614 = scmp.lt.s32.totalorder %s29, 0
      %s615 = scalar_select %p614, %s29, 0
      %s616 = smul.addr %s615, 8
      %s617 = smul.addr %s613, 8
      %s618 = sadd.s32 %s616, %s617
      %s619 = smul.addr %s618, 8
      %s620 = scalar_lea.vmem %s4, %s619
      %p621 = scmp.lt.s32.totalorder %s28, 1
      %s622 = scalar_select %p621, %s28, 1
      %s623 = smul.addr %s622, 2
      %s624 = smul.addr %s623, 8
      %s625 = scalar_lea.vmem %s5, %s624
      %p626 = scmp.lt.s32.totalorder %s28, 1
      %s627 = scalar_select %p626, %s28, 1
      %s628 = smul.addr %s627, 2
      %s629 = smul.addr %s628, 8
      %s630 = scalar_lea.vmem %s6, %s629
      %p631 = scmp.lt.s32.totalorder %s28, 1
      %s632 = scalar_select %p631, %s28, 1
      %p633 = scmp.lt.s32.totalorder %s29, 0
      %s634 = scalar_select %p633, %s29, 0
      %s635 = smul.addr %s634, 8
      %s636 = smul.addr %s632, 8
      %s637 = sadd.s32 %s635, %s636
      %s638 = smul.addr %s637, 8
      %s639 = scalar_lea.vmem %s11, %s638
      %p640 = scmp.lt.s32.totalorder %s28, 1
      %s641 = scalar_select %p640, %s28, 1
      %p642 = scmp.lt.s32.totalorder %s29, 0
      %s643 = scalar_select %p642, %s29, 0
      %s644 = smul.addr %s643, 8
      %s645 = smul.addr %s641, 8
      %s646 = sadd.s32 %s644, %s645
      %s647 = smul.addr %s646, 8
      %s648 = scalar_lea.vmem %s12, %s647
      %v650 = vld [vmem:[%s7] sm:$0xff]
      %v651 = vld [vmem:[%s7 + $0x8] sm:$0xff]
      %v652 = vld [vmem:[%s8] sm:$0xff]
      %v653 = vld [vmem:[%s8 + $0x8] sm:$0xff]
      %v654 = vld [vmem:[%s9] sm:$0xff]
      %v655 = vld [vmem:[%s9 + $0x8] sm:$0xff]
      %v656 = vld [vmem:[%s10] sm:$0xff]
      %v657 = vld [vmem:[%s10 + $0x8] sm:$0xff]
      %v658 = vld [vmem:[%s625] sm:$0xff]
      %v659 = vld [vmem:[%s625 + $0x8] sm:$0xff]
      %v660 = vld [vmem:[%s630] sm:$0xff]
      %v661 = vld [vmem:[%s630 + $0x8] sm:$0xff]
      %v662 = vld [vmem:[%s611] sm:$0xff]
      %v663 = vld [vmem:[%s611 + $0x8] sm:$0xff]
      %v664 = vld [vmem:[%s611 + $0x10] sm:$0xff]
      %v665 = vld [vmem:[%s611 + $0x18] sm:$0xff]
      %v666 = vld [vmem:[%s611 + $0x20] sm:$0xff]
      %v667 = vld [vmem:[%s611 + $0x28] sm:$0xff]
      %v668 = vld [vmem:[%s611 + $0x30] sm:$0xff]
      %v669 = vld [vmem:[%s611 + $0x38] sm:$0xff]
      %v670 = vld [vmem:[%s620] sm:$0xff]
      %v671 = vld [vmem:[%s620 + $0x8] sm:$0xff]
      %v672 = vld [vmem:[%s620 + $0x10] sm:$0xff]
      %v673 = vld [vmem:[%s620 + $0x18] sm:$0xff]
      %v674 = vld [vmem:[%s620 + $0x20] sm:$0xff]
      %v675 = vld [vmem:[%s620 + $0x28] sm:$0xff]
      %v676 = vld [vmem:[%s620 + $0x30] sm:$0xff]
      %v677 = vld [vmem:[%s620 + $0x38] sm:$0xff]
      %v678 = vmul.f32 %v662, %v658
      %v679 = vmul.f32 %v663, %v659
      %v680 = vmul.f32 %v664, %v658
      %v681 = vmul.f32 %v665, %v659
      %v682 = vmul.f32 %v666, %v658
      %v683 = vmul.f32 %v667, %v659
      %v684 = vmul.f32 %v668, %v658
      %v685 = vmul.f32 %v669, %v659
      %v686 = vmul.f32 %v670, %v660
      %v687 = vmul.f32 %v671, %v661
      %v688 = vmul.f32 %v672, %v660
      %v689 = vmul.f32 %v673, %v661
      %v690 = vmul.f32 %v674, %v660
      %v691 = vmul.f32 %v675, %v661
      %v692 = vmul.f32 %v676, %v660
      %v693 = vmul.f32 %v677, %v661
      %v694 = vsub.f32 %v678, %v686
      %v695 = vsub.f32 %v679, %v687
      %v696 = vsub.f32 %v680, %v688
      %v697 = vsub.f32 %v681, %v689
      %v698 = vsub.f32 %v682, %v690
      %v699 = vsub.f32 %v683, %v691
      %v700 = vsub.f32 %v684, %v692
      %v701 = vsub.f32 %v685, %v693
      %v702 = vmul.f32 %v662, %v660
      %v703 = vmul.f32 %v663, %v661
      %v704 = vmul.f32 %v664, %v660
      %v705 = vmul.f32 %v665, %v661
      %v706 = vmul.f32 %v666, %v660
      %v707 = vmul.f32 %v667, %v661
      %v708 = vmul.f32 %v668, %v660
      %v709 = vmul.f32 %v669, %v661
      %v710 = vmul.f32 %v670, %v658
      %v711 = vmul.f32 %v671, %v659
      %v712 = vmul.f32 %v672, %v658
      %v713 = vmul.f32 %v673, %v659
      %v714 = vmul.f32 %v674, %v658
      %v715 = vmul.f32 %v675, %v659
      %v716 = vmul.f32 %v676, %v658
      %v717 = vmul.f32 %v677, %v659
      %v718 = vadd.f32 %v702, %v710
      %v719 = vadd.f32 %v703, %v711
      %v720 = vadd.f32 %v704, %v712
      %v721 = vadd.f32 %v705, %v713
      %v722 = vadd.f32 %v706, %v714
      %v723 = vadd.f32 %v707, %v715
      %v724 = vadd.f32 %v708, %v716
      %v725 = vadd.f32 %v709, %v717
      %v726 = vpack.c.bf16 %v651, %v650
      %v727 = vunpack.c.l.bf16 %v726
      %v728 = vunpack.c.h.bf16 %v726
      %v729 = vsub.f32 %v650, %v727
      %v730 = vsub.f32 %v651, %v728
      %v731 = vpack.c.bf16 %v730, %v729
      %v732 = vpack.c.bf16 %v695, %v694
      %v733 = vunpack.c.l.bf16 %v732
      %v734 = vunpack.c.h.bf16 %v732
      %v735 = vsub.f32 %v694, %v733
      %v736 = vsub.f32 %v695, %v734
      %v737 = vpack.c.bf16 %v736, %v735
      %vm738 = vcmask 130048
      %v740 = vsel %vm738, %v726, 0
      %742 = vmatprep.subr.bf16.mxu0 0
      %743 = vmatpush1.bf16.msra.mxu0 0
      %744 = vmatprep.subr.bf16.mxu0 0
      %745 = vmatpush1.bf16.msra.mxu0 0
      %746 = vmatprep.subr.bf16.mxu0 0
      %747 = vmatpush1.bf16.msra.mxu0 0
      %748 = vmatprep.subr.bf16.mxu0 0
      %749 = vmatpush1.bf16.msra.mxu0 0
      %750 = vmatprep.subr.bf16.mxu0 0
      %751 = vmatpush1.bf16.msra.mxu0 0
      %752 = vmatprep.subr.bf16.mxu0 0
      %753 = vmatpush1.bf16.msra.mxu0 0
      %754 = vmatprep.subr.bf16.mxu0 0
      %755 = vmatpush1.bf16.msra.mxu0 0
      %756 = vmatprep.subr.bf16.mxu0 0
      %757 = vmatpush1.bf16.msra.mxu0 %v737
      %758 = vmatprep.subr.bf16.mxu0 0
      %759 = vmatpush2.bf16.msra.mxu0 0
      %760 = vmatprep.subr.bf16.mxu0 0
      %761 = vmatpush2.bf16.msra.mxu0 0
      %762 = vmatprep.subr.bf16.mxu0 0
      %763 = vmatpush2.bf16.msra.mxu0 0
      %764 = vmatprep.subr.bf16.mxu0 0
      %765 = vmatpush2.bf16.msra.mxu0 0
      %766 = vmatprep.subr.bf16.mxu0 0
      %767 = vmatpush2.bf16.msra.mxu0 0
      %768 = vmatprep.subr.bf16.mxu0 0
      %769 = vmatpush2.bf16.msra.mxu0 0
      %770 = vmatprep.subr.bf16.mxu0 0
      %771 = vmatpush2.bf16.msra.mxu0 0
      %772 = vmatprep.subr.bf16.mxu0 0
      %773 = vmatpush2.bf16.msra.mxu0 0
      %774 = vmatprep.mubr.bf16.mxu0 0
      %775 = vmatmul.mubr.bf16.gmra.mxu0 %v740
      %v776 = vpop.f32.mrf.mxu0
      %v777 = vadd.f32 0.0, %v776
      %v778 = vpop.f32.mrf.mxu0
      %v779 = vpop.f32.mrf.mxu0
      %v780 = vadd.f32 0.0, %v779
      %v781 = vpop.f32.mrf.mxu0
      %782 = vdwg.mxu0
      %783 = vmatprep.subr.bf16.mxu0 0
      %784 = vmatpush1.bf16.msra.mxu0 0
      %785 = vmatprep.subr.bf16.mxu0 0
      %786 = vmatpush1.bf16.msra.mxu0 0
      %787 = vmatprep.subr.bf16.mxu0 0
      %788 = vmatpush1.bf16.msra.mxu0 0
      %789 = vmatprep.subr.bf16.mxu0 0
      %790 = vmatpush1.bf16.msra.mxu0 0
      %791 = vmatprep.subr.bf16.mxu0 0
      %792 = vmatpush1.bf16.msra.mxu0 0
      %793 = vmatprep.subr.bf16.mxu0 0
      %794 = vmatpush1.bf16.msra.mxu0 0
      %795 = vmatprep.subr.bf16.mxu0 0
      %796 = vmatpush1.bf16.msra.mxu0 0
      %797 = vmatprep.subr.bf16.mxu0 0
      %798 = vmatpush1.bf16.msra.mxu0 %v732
      %799 = vmatprep.subr.bf16.mxu0 0
      %800 = vmatpush2.bf16.msra.mxu0 0
      %801 = vmatprep.subr.bf16.mxu0 0
      %802 = vmatpush2.bf16.msra.mxu0 0
      %803 = vmatprep.subr.bf16.mxu0 0
      %804 = vmatpush2.bf16.msra.mxu0 0
      %805 = vmatprep.subr.bf16.mxu0 0
      %806 = vmatpush2.bf16.msra.mxu0 0
      %807 = vmatprep.subr.bf16.mxu0 0
      %808 = vmatpush2.bf16.msra.mxu0 0
      %809 = vmatprep.subr.bf16.mxu0 0
      %810 = vmatpush2.bf16.msra.mxu0 0
      %811 = vmatprep.subr.bf16.mxu0 0
      %812 = vmatpush2.bf16.msra.mxu0 0
      %813 = vmatprep.subr.bf16.mxu0 0
      %814 = vmatpush2.bf16.msra.mxu0 0
      %815 = vmatprep.mubr.bf16.mxu0 0
      %816 = vmatmul.mubr.bf16.gmra.mxu0 %v740
      %v817 = vpop.f32.mrf.mxu0
      %v818 = vadd.f32 %v777, %v817
      %v819 = vpop.f32.mrf.mxu0
      %v820 = vpop.f32.mrf.mxu0
      %v821 = vadd.f32 %v780, %v820
      %v822 = vpop.f32.mrf.mxu0
      %823 = vdwg.mxu0
      %v825 = vsel %vm738, %v731, 0
      %827 = vmatprep.subr.bf16.mxu0 0
      %828 = vmatpush1.bf16.msra.mxu0 0
      %829 = vmatprep.subr.bf16.mxu0 0
      %830 = vmatpush1.bf16.msra.mxu0 0
      %831 = vmatprep.subr.bf16.mxu0 0
      %832 = vmatpush1.bf16.msra.mxu0 0
      %833 = vmatprep.subr.bf16.mxu0 0
      %834 = vmatpush1.bf16.msra.mxu0 0
      %835 = vmatprep.subr.bf16.mxu0 0
      %836 = vmatpush1.bf16.msra.mxu0 0
      %837 = vmatprep.subr.bf16.mxu0 0
      %838 = vmatpush1.bf16.msra.mxu0 0
      %839 = vmatprep.subr.bf16.mxu0 0
      %840 = vmatpush1.bf16.msra.mxu0 0
      %841 = vmatprep.subr.bf16.mxu0 0
      %842 = vmatpush1.bf16.msra.mxu0 %v732
      %843 = vmatprep.subr.bf16.mxu0 0
      %844 = vmatpush2.bf16.msra.mxu0 0
      %845 = vmatprep.subr.bf16.mxu0 0
      %846 = vmatpush2.bf16.msra.mxu0 0
      %847 = vmatprep.subr.bf16.mxu0 0
      %848 = vmatpush2.bf16.msra.mxu0 0
      %849 = vmatprep.subr.bf16.mxu0 0
      %850 = vmatpush2.bf16.msra.mxu0 0
      %851 = vmatprep.subr.bf16.mxu0 0
      %852 = vmatpush2.bf16.msra.mxu0 0
      %853 = vmatprep.subr.bf16.mxu0 0
      %854 = vmatpush2.bf16.msra.mxu0 0
      %855 = vmatprep.subr.bf16.mxu0 0
      %856 = vmatpush2.bf16.msra.mxu0 0
      %857 = vmatprep.subr.bf16.mxu0 0
      %858 = vmatpush2.bf16.msra.mxu0 0
      %859 = vmatprep.mubr.bf16.mxu0 0
      %860 = vmatmul.mubr.bf16.gmra.mxu0 %v825
      %v861 = vpop.f32.mrf.mxu0
      %v862 = vadd.f32 0.0, %v861
      %v863 = vpop.f32.mrf.mxu0
      %v864 = vpop.f32.mrf.mxu0
      %v865 = vadd.f32 0.0, %v864
      %v866 = vpop.f32.mrf.mxu0
      %867 = vdwg.mxu0
      %v868 = vadd.f32 %v818, %v862
      %v869 = vadd.f32 %v821, %v865
      %v870 = vpack.c.bf16 %v653, %v652
      %v871 = vunpack.c.l.bf16 %v870
      %v872 = vunpack.c.h.bf16 %v870
      %v873 = vsub.f32 %v652, %v871
      %v874 = vsub.f32 %v653, %v872
      %v875 = vpack.c.bf16 %v874, %v873
      %v876 = vpack.c.bf16 %v719, %v718
      %v877 = vunpack.c.l.bf16 %v876
      %v878 = vunpack.c.h.bf16 %v876
      %v879 = vsub.f32 %v718, %v877
      %v880 = vsub.f32 %v719, %v878
      %v881 = vpack.c.bf16 %v880, %v879
      %v883 = vsel %vm738, %v870, 0
      %885 = vmatprep.subr.bf16.mxu0 0
      %886 = vmatpush1.bf16.msra.mxu0 0
      %887 = vmatprep.subr.bf16.mxu0 0
      %888 = vmatpush1.bf16.msra.mxu0 0
      %889 = vmatprep.subr.bf16.mxu0 0
      %890 = vmatpush1.bf16.msra.mxu0 0
      %891 = vmatprep.subr.bf16.mxu0 0
      %892 = vmatpush1.bf16.msra.mxu0 0
      %893 = vmatprep.subr.bf16.mxu0 0
      %894 = vmatpush1.bf16.msra.mxu0 0
      %895 = vmatprep.subr.bf16.mxu0 0
      %896 = vmatpush1.bf16.msra.mxu0 0
      %897 = vmatprep.subr.bf16.mxu0 0
      %898 = vmatpush1.bf16.msra.mxu0 0
      %899 = vmatprep.subr.bf16.mxu0 0
      %900 = vmatpush1.bf16.msra.mxu0 %v881
      %901 = vmatprep.subr.bf16.mxu0 0
      %902 = vmatpush2.bf16.msra.mxu0 0
      %903 = vmatprep.subr.bf16.mxu0 0
      %904 = vmatpush2.bf16.msra.mxu0 0
      %905 = vmatprep.subr.bf16.mxu0 0
      %906 = vmatpush2.bf16.msra.mxu0 0
      %907 = vmatprep.subr.bf16.mxu0 0
      %908 = vmatpush2.bf16.msra.mxu0 0
      %909 = vmatprep.subr.bf16.mxu0 0
      %910 = vmatpush2.bf16.msra.mxu0 0
      %911 = vmatprep.subr.bf16.mxu0 0
      %912 = vmatpush2.bf16.msra.mxu0 0
      %913 = vmatprep.subr.bf16.mxu0 0
      %914 = vmatpush2.bf16.msra.mxu0 0
      %915 = vmatprep.subr.bf16.mxu0 0
      %916 = vmatpush2.bf16.msra.mxu0 0
      %917 = vmatprep.mubr.bf16.mxu0 0
      %918 = vmatmul.mubr.bf16.gmra.mxu0 %v883
      %v919 = vpop.f32.mrf.mxu0
      %v920 = vadd.f32 0.0, %v919
      %v921 = vpop.f32.mrf.mxu0
      %v922 = vpop.f32.mrf.mxu0
      %v923 = vadd.f32 0.0, %v922
      %v924 = vpop.f32.mrf.mxu0
      %925 = vdwg.mxu0
      %926 = vmatprep.subr.bf16.mxu0 0
      %927 = vmatpush1.bf16.msra.mxu0 0
      %928 = vmatprep.subr.bf16.mxu0 0
      %929 = vmatpush1.bf16.msra.mxu0 0
      %930 = vmatprep.subr.bf16.mxu0 0
      %931 = vmatpush1.bf16.msra.mxu0 0
      %932 = vmatprep.subr.bf16.mxu0 0
      %933 = vmatpush1.bf16.msra.mxu0 0
      %934 = vmatprep.subr.bf16.mxu0 0
      %935 = vmatpush1.bf16.msra.mxu0 0
      %936 = vmatprep.subr.bf16.mxu0 0
      %937 = vmatpush1.bf16.msra.mxu0 0
      %938 = vmatprep.subr.bf16.mxu0 0
      %939 = vmatpush1.bf16.msra.mxu0 0
      %940 = vmatprep.subr.bf16.mxu0 0
      %941 = vmatpush1.bf16.msra.mxu0 %v876
      %942 = vmatprep.subr.bf16.mxu0 0
      %943 = vmatpush2.bf16.msra.mxu0 0
      %944 = vmatprep.subr.bf16.mxu0 0
      %945 = vmatpush2.bf16.msra.mxu0 0
      %946 = vmatprep.subr.bf16.mxu0 0
      %947 = vmatpush2.bf16.msra.mxu0 0
      %948 = vmatprep.subr.bf16.mxu0 0
      %949 = vmatpush2.bf16.msra.mxu0 0
      %950 = vmatprep.subr.bf16.mxu0 0
      %951 = vmatpush2.bf16.msra.mxu0 0
      %952 = vmatprep.subr.bf16.mxu0 0
      %953 = vmatpush2.bf16.msra.mxu0 0
      %954 = vmatprep.subr.bf16.mxu0 0
      %955 = vmatpush2.bf16.msra.mxu0 0
      %956 = vmatprep.subr.bf16.mxu0 0
      %957 = vmatpush2.bf16.msra.mxu0 0
      %958 = vmatprep.mubr.bf16.mxu0 0
      %959 = vmatmul.mubr.bf16.gmra.mxu0 %v883
      %v960 = vpop.f32.mrf.mxu0
      %v961 = vadd.f32 %v920, %v960
      %v962 = vpop.f32.mrf.mxu0
      %v963 = vpop.f32.mrf.mxu0
      %v964 = vadd.f32 %v923, %v963
      %v965 = vpop.f32.mrf.mxu0
      %966 = vdwg.mxu0
      %v968 = vsel %vm738, %v875, 0
      %970 = vmatprep.subr.bf16.mxu0 0
      %971 = vmatpush1.bf16.msra.mxu0 0
      %972 = vmatprep.subr.bf16.mxu0 0
      %973 = vmatpush1.bf16.msra.mxu0 0
      %974 = vmatprep.subr.bf16.mxu0 0
      %975 = vmatpush1.bf16.msra.mxu0 0
      %976 = vmatprep.subr.bf16.mxu0 0
      %977 = vmatpush1.bf16.msra.mxu0 0
      %978 = vmatprep.subr.bf16.mxu0 0
      %979 = vmatpush1.bf16.msra.mxu0 0
      %980 = vmatprep.subr.bf16.mxu0 0
      %981 = vmatpush1.bf16.msra.mxu0 0
      %982 = vmatprep.subr.bf16.mxu0 0
      %983 = vmatpush1.bf16.msra.mxu0 0
      %984 = vmatprep.subr.bf16.mxu0 0
      %985 = vmatpush1.bf16.msra.mxu0 %v876
      %986 = vmatprep.subr.bf16.mxu0 0
      %987 = vmatpush2.bf16.msra.mxu0 0
      %988 = vmatprep.subr.bf16.mxu0 0
      %989 = vmatpush2.bf16.msra.mxu0 0
      %990 = vmatprep.subr.bf16.mxu0 0
      %991 = vmatpush2.bf16.msra.mxu0 0
      %992 = vmatprep.subr.bf16.mxu0 0
      %993 = vmatpush2.bf16.msra.mxu0 0
      %994 = vmatprep.subr.bf16.mxu0 0
      %995 = vmatpush2.bf16.msra.mxu0 0
      %996 = vmatprep.subr.bf16.mxu0 0
      %997 = vmatpush2.bf16.msra.mxu0 0
      %998 = vmatprep.subr.bf16.mxu0 0
      %999 = vmatpush2.bf16.msra.mxu0 0
      %1000 = vmatprep.subr.bf16.mxu0 0
      %1001 = vmatpush2.bf16.msra.mxu0 0
      %1002 = vmatprep.mubr.bf16.mxu0 0
      %1003 = vmatmul.mubr.bf16.gmra.mxu0 %v968
      %v1004 = vpop.f32.mrf.mxu0
      %v1005 = vadd.f32 0.0, %v1004
      %v1006 = vpop.f32.mrf.mxu0
      %v1007 = vpop.f32.mrf.mxu0
      %v1008 = vadd.f32 0.0, %v1007
      %v1009 = vpop.f32.mrf.mxu0
      %1010 = vdwg.mxu0
      %v1011 = vadd.f32 %v961, %v1005
      %v1012 = vadd.f32 %v964, %v1008
      %v1013 = vadd.f32 %v650, %v652
      %v1014 = vadd.f32 %v651, %v653
      %v1015 = vadd.f32 %v694, %v718
      %v1016 = vadd.f32 %v695, %v719
      %v1017 = vpack.c.bf16 %v1014, %v1013
      %v1018 = vunpack.c.l.bf16 %v1017
      %v1019 = vunpack.c.h.bf16 %v1017
      %v1020 = vsub.f32 %v1013, %v1018
      %v1021 = vsub.f32 %v1014, %v1019
      %v1022 = vpack.c.bf16 %v1021, %v1020
      %v1023 = vpack.c.bf16 %v1016, %v1015
      %v1024 = vunpack.c.l.bf16 %v1023
      %v1025 = vunpack.c.h.bf16 %v1023
      %v1026 = vsub.f32 %v1015, %v1024
      %v1027 = vsub.f32 %v1016, %v1025
      %v1028 = vpack.c.bf16 %v1027, %v1026
      %v1030 = vsel %vm738, %v1017, 0
      %1032 = vmatprep.subr.bf16.mxu0 0
      %1033 = vmatpush1.bf16.msra.mxu0 0
      %1034 = vmatprep.subr.bf16.mxu0 0
      %1035 = vmatpush1.bf16.msra.mxu0 0
      %1036 = vmatprep.subr.bf16.mxu0 0
      %1037 = vmatpush1.bf16.msra.mxu0 0
      %1038 = vmatprep.subr.bf16.mxu0 0
      %1039 = vmatpush1.bf16.msra.mxu0 0
      %1040 = vmatprep.subr.bf16.mxu0 0
      %1041 = vmatpush1.bf16.msra.mxu0 0
      %1042 = vmatprep.subr.bf16.mxu0 0
      %1043 = vmatpush1.bf16.msra.mxu0 0
      %1044 = vmatprep.subr.bf16.mxu0 0
      %1045 = vmatpush1.bf16.msra.mxu0 0
      %1046 = vmatprep.subr.bf16.mxu0 0
      %1047 = vmatpush1.bf16.msra.mxu0 %v1028
      %1048 = vmatprep.subr.bf16.mxu0 0
      %1049 = vmatpush2.bf16.msra.mxu0 0
      %1050 = vmatprep.subr.bf16.mxu0 0
      %1051 = vmatpush2.bf16.msra.mxu0 0
      %1052 = vmatprep.subr.bf16.mxu0 0
      %1053 = vmatpush2.bf16.msra.mxu0 0
      %1054 = vmatprep.subr.bf16.mxu0 0
      %1055 = vmatpush2.bf16.msra.mxu0 0
      %1056 = vmatprep.subr.bf16.mxu0 0
      %1057 = vmatpush2.bf16.msra.mxu0 0
      %1058 = vmatprep.subr.bf16.mxu0 0
      %1059 = vmatpush2.bf16.msra.mxu0 0
      %1060 = vmatprep.subr.bf16.mxu0 0
      %1061 = vmatpush2.bf16.msra.mxu0 0
      %1062 = vmatprep.subr.bf16.mxu0 0
      %1063 = vmatpush2.bf16.msra.mxu0 0
      %1064 = vmatprep.mubr.bf16.mxu0 0
      %1065 = vmatmul.mubr.bf16.gmra.mxu0 %v1030
      %v1066 = vpop.f32.mrf.mxu0
      %v1067 = vadd.f32 0.0, %v1066
      %v1068 = vpop.f32.mrf.mxu0
      %v1069 = vpop.f32.mrf.mxu0
      %v1070 = vadd.f32 0.0, %v1069
      %v1071 = vpop.f32.mrf.mxu0
      %1072 = vdwg.mxu0
      %1073 = vmatprep.subr.bf16.mxu0 0
      %1074 = vmatpush1.bf16.msra.mxu0 0
      %1075 = vmatprep.subr.bf16.mxu0 0
      %1076 = vmatpush1.bf16.msra.mxu0 0
      %1077 = vmatprep.subr.bf16.mxu0 0
      %1078 = vmatpush1.bf16.msra.mxu0 0
      %1079 = vmatprep.subr.bf16.mxu0 0
      %1080 = vmatpush1.bf16.msra.mxu0 0
      %1081 = vmatprep.subr.bf16.mxu0 0
      %1082 = vmatpush1.bf16.msra.mxu0 0
      %1083 = vmatprep.subr.bf16.mxu0 0
      %1084 = vmatpush1.bf16.msra.mxu0 0
      %1085 = vmatprep.subr.bf16.mxu0 0
      %1086 = vmatpush1.bf16.msra.mxu0 0
      %1087 = vmatprep.subr.bf16.mxu0 0
      %1088 = vmatpush1.bf16.msra.mxu0 %v1023
      %1089 = vmatprep.subr.bf16.mxu0 0
      %1090 = vmatpush2.bf16.msra.mxu0 0
      %1091 = vmatprep.subr.bf16.mxu0 0
      %1092 = vmatpush2.bf16.msra.mxu0 0
      %1093 = vmatprep.subr.bf16.mxu0 0
      %1094 = vmatpush2.bf16.msra.mxu0 0
      %1095 = vmatprep.subr.bf16.mxu0 0
      %1096 = vmatpush2.bf16.msra.mxu0 0
      %1097 = vmatprep.subr.bf16.mxu0 0
      %1098 = vmatpush2.bf16.msra.mxu0 0
      %1099 = vmatprep.subr.bf16.mxu0 0
      %1100 = vmatpush2.bf16.msra.mxu0 0
      %1101 = vmatprep.subr.bf16.mxu0 0
      %1102 = vmatpush2.bf16.msra.mxu0 0
      %1103 = vmatprep.subr.bf16.mxu0 0
      %1104 = vmatpush2.bf16.msra.mxu0 0
      %1105 = vmatprep.mubr.bf16.mxu0 0
      %1106 = vmatmul.mubr.bf16.gmra.mxu0 %v1030
      %v1107 = vpop.f32.mrf.mxu0
      %v1108 = vadd.f32 %v1067, %v1107
      %v1109 = vpop.f32.mrf.mxu0
      %v1110 = vpop.f32.mrf.mxu0
      %v1111 = vadd.f32 %v1070, %v1110
      %v1112 = vpop.f32.mrf.mxu0
      %1113 = vdwg.mxu0
      %v1115 = vsel %vm738, %v1022, 0
      %1117 = vmatprep.subr.bf16.mxu0 0
      %1118 = vmatpush1.bf16.msra.mxu0 0
      %1119 = vmatprep.subr.bf16.mxu0 0
      %1120 = vmatpush1.bf16.msra.mxu0 0
      %1121 = vmatprep.subr.bf16.mxu0 0
      %1122 = vmatpush1.bf16.msra.mxu0 0
      %1123 = vmatprep.subr.bf16.mxu0 0
      %1124 = vmatpush1.bf16.msra.mxu0 0
      %1125 = vmatprep.subr.bf16.mxu0 0
      %1126 = vmatpush1.bf16.msra.mxu0 0
      %1127 = vmatprep.subr.bf16.mxu0 0
      %1128 = vmatpush1.bf16.msra.mxu0 0
      %1129 = vmatprep.subr.bf16.mxu0 0
      %1130 = vmatpush1.bf16.msra.mxu0 0
      %1131 = vmatprep.subr.bf16.mxu0 0
      %1132 = vmatpush1.bf16.msra.mxu0 %v1023
      %1133 = vmatprep.subr.bf16.mxu0 0
      %1134 = vmatpush2.bf16.msra.mxu0 0
      %1135 = vmatprep.subr.bf16.mxu0 0
      %1136 = vmatpush2.bf16.msra.mxu0 0
      %1137 = vmatprep.subr.bf16.mxu0 0
      %1138 = vmatpush2.bf16.msra.mxu0 0
      %1139 = vmatprep.subr.bf16.mxu0 0
      %1140 = vmatpush2.bf16.msra.mxu0 0
      %1141 = vmatprep.subr.bf16.mxu0 0
      %1142 = vmatpush2.bf16.msra.mxu0 0
      %1143 = vmatprep.subr.bf16.mxu0 0
      %1144 = vmatpush2.bf16.msra.mxu0 0
      %1145 = vmatprep.subr.bf16.mxu0 0
      %1146 = vmatpush2.bf16.msra.mxu0 0
      %1147 = vmatprep.subr.bf16.mxu0 0
      %1148 = vmatpush2.bf16.msra.mxu0 0
      %1149 = vmatprep.mubr.bf16.mxu0 0
      %1150 = vmatmul.mubr.bf16.gmra.mxu0 %v1115
      %v1151 = vpop.f32.mrf.mxu0
      %v1152 = vadd.f32 0.0, %v1151
      %v1153 = vpop.f32.mrf.mxu0
      %v1154 = vpop.f32.mrf.mxu0
      %v1155 = vadd.f32 0.0, %v1154
      %v1156 = vpop.f32.mrf.mxu0
      %1157 = vdwg.mxu0
      %v1158 = vadd.f32 %v1108, %v1152
      %v1159 = vadd.f32 %v1111, %v1155
      %v1160 = vsub.f32 %v868, %v1011
      %v1161 = vsub.f32 %v869, %v1012
      %v1162 = vsub.f32 %v1158, %v868
      %v1163 = vsub.f32 %v1159, %v869
      %v1164 = vsub.f32 %v1162, %v1011
      %v1165 = vsub.f32 %v1163, %v1012
      %v1166 = vpack.c.bf16 %v697, %v696
      %v1167 = vunpack.c.l.bf16 %v1166
      %v1168 = vunpack.c.h.bf16 %v1166
      %v1169 = vsub.f32 %v696, %v1167
      %v1170 = vsub.f32 %v697, %v1168
      %v1171 = vpack.c.bf16 %v1170, %v1169
      %1172 = vmatprep.subr.bf16.mxu0 0
      %1173 = vmatpush1.bf16.msra.mxu0 0
      %1174 = vmatprep.subr.bf16.mxu0 0
      %1175 = vmatpush1.bf16.msra.mxu0 0
      %1176 = vmatprep.subr.bf16.mxu0 0
      %1177 = vmatpush1.bf16.msra.mxu0 0
      %1178 = vmatprep.subr.bf16.mxu0 0
      %1179 = vmatpush1.bf16.msra.mxu0 0
      %1180 = vmatprep.subr.bf16.mxu0 0
      %1181 = vmatpush1.bf16.msra.mxu0 0
      %1182 = vmatprep.subr.bf16.mxu0 0
      %1183 = vmatpush1.bf16.msra.mxu0 0
      %1184 = vmatprep.subr.bf16.mxu0 0
      %1185 = vmatpush1.bf16.msra.mxu0 0
      %1186 = vmatprep.subr.bf16.mxu0 0
      %1187 = vmatpush1.bf16.msra.mxu0 %v1171
      %1188 = vmatprep.subr.bf16.mxu0 0
      %1189 = vmatpush2.bf16.msra.mxu0 0
      %1190 = vmatprep.subr.bf16.mxu0 0
      %1191 = vmatpush2.bf16.msra.mxu0 0
      %1192 = vmatprep.subr.bf16.mxu0 0
      %1193 = vmatpush2.bf16.msra.mxu0 0
      %1194 = vmatprep.subr.bf16.mxu0 0
      %1195 = vmatpush2.bf16.msra.mxu0 0
      %1196 = vmatprep.subr.bf16.mxu0 0
      %1197 = vmatpush2.bf16.msra.mxu0 0
      %1198 = vmatprep.subr.bf16.mxu0 0
      %1199 = vmatpush2.bf16.msra.mxu0 0
      %1200 = vmatprep.subr.bf16.mxu0 0
      %1201 = vmatpush2.bf16.msra.mxu0 0
      %1202 = vmatprep.subr.bf16.mxu0 0
      %1203 = vmatpush2.bf16.msra.mxu0 0
      %1204 = vmatprep.mubr.bf16.mxu0 0
      %1205 = vmatmul.mubr.bf16.gmra.mxu0 %v740
      %v1206 = vpop.f32.mrf.mxu0
      %v1207 = vadd.f32 0.0, %v1206
      %v1208 = vpop.f32.mrf.mxu0
      %v1209 = vpop.f32.mrf.mxu0
      %v1210 = vadd.f32 0.0, %v1209
      %v1211 = vpop.f32.mrf.mxu0
      %1212 = vdwg.mxu0
      %1213 = vmatprep.subr.bf16.mxu0 0
      %1214 = vmatpush1.bf16.msra.mxu0 0
      %1215 = vmatprep.subr.bf16.mxu0 0
      %1216 = vmatpush1.bf16.msra.mxu0 0
      %1217 = vmatprep.subr.bf16.mxu0 0
      %1218 = vmatpush1.bf16.msra.mxu0 0
      %1219 = vmatprep.subr.bf16.mxu0 0
      %1220 = vmatpush1.bf16.msra.mxu0 0
      %1221 = vmatprep.subr.bf16.mxu0 0
      %1222 = vmatpush1.bf16.msra.mxu0 0
      %1223 = vmatprep.subr.bf16.mxu0 0
      %1224 = vmatpush1.bf16.msra.mxu0 0
      %1225 = vmatprep.subr.bf16.mxu0 0
      %1226 = vmatpush1.bf16.msra.mxu0 0
      %1227 = vmatprep.subr.bf16.mxu0 0
      %1228 = vmatpush1.bf16.msra.mxu0 %v1166
      %1229 = vmatprep.subr.bf16.mxu0 0
      %1230 = vmatpush2.bf16.msra.mxu0 0
      %1231 = vmatprep.subr.bf16.mxu0 0
      %1232 = vmatpush2.bf16.msra.mxu0 0
      %1233 = vmatprep.subr.bf16.mxu0 0
      %1234 = vmatpush2.bf16.msra.mxu0 0
      %1235 = vmatprep.subr.bf16.mxu0 0
      %1236 = vmatpush2.bf16.msra.mxu0 0
      %1237 = vmatprep.subr.bf16.mxu0 0
      %1238 = vmatpush2.bf16.msra.mxu0 0
      %1239 = vmatprep.subr.bf16.mxu0 0
      %1240 = vmatpush2.bf16.msra.mxu0 0
      %1241 = vmatprep.subr.bf16.mxu0 0
      %1242 = vmatpush2.bf16.msra.mxu0 0
      %1243 = vmatprep.subr.bf16.mxu0 0
      %1244 = vmatpush2.bf16.msra.mxu0 0
      %1245 = vmatprep.mubr.bf16.mxu0 0
      %1246 = vmatmul.mubr.bf16.gmra.mxu0 %v740
      %v1247 = vpop.f32.mrf.mxu0
      %v1248 = vadd.f32 %v1207, %v1247
      %v1249 = vpop.f32.mrf.mxu0
      %v1250 = vpop.f32.mrf.mxu0
      %v1251 = vadd.f32 %v1210, %v1250
      %v1252 = vpop.f32.mrf.mxu0
      %1253 = vdwg.mxu0
      %1254 = vmatprep.subr.bf16.mxu0 0
      %1255 = vmatpush1.bf16.msra.mxu0 0
      %1256 = vmatprep.subr.bf16.mxu0 0
      %1257 = vmatpush1.bf16.msra.mxu0 0
      %1258 = vmatprep.subr.bf16.mxu0 0
      %1259 = vmatpush1.bf16.msra.mxu0 0
      %1260 = vmatprep.subr.bf16.mxu0 0
      %1261 = vmatpush1.bf16.msra.mxu0 0
      %1262 = vmatprep.subr.bf16.mxu0 0
      %1263 = vmatpush1.bf16.msra.mxu0 0
      %1264 = vmatprep.subr.bf16.mxu0 0
      %1265 = vmatpush1.bf16.msra.mxu0 0
      %1266 = vmatprep.subr.bf16.mxu0 0
      %1267 = vmatpush1.bf16.msra.mxu0 0
      %1268 = vmatprep.subr.bf16.mxu0 0
      %1269 = vmatpush1.bf16.msra.mxu0 %v1166
      %1270 = vmatprep.subr.bf16.mxu0 0
      %1271 = vmatpush2.bf16.msra.mxu0 0
      %1272 = vmatprep.subr.bf16.mxu0 0
      %1273 = vmatpush2.bf16.msra.mxu0 0
      %1274 = vmatprep.subr.bf16.mxu0 0
      %1275 = vmatpush2.bf16.msra.mxu0 0
      %1276 = vmatprep.subr.bf16.mxu0 0
      %1277 = vmatpush2.bf16.msra.mxu0 0
      %1278 = vmatprep.subr.bf16.mxu0 0
      %1279 = vmatpush2.bf16.msra.mxu0 0
      %1280 = vmatprep.subr.bf16.mxu0 0
      %1281 = vmatpush2.bf16.msra.mxu0 0
      %1282 = vmatprep.subr.bf16.mxu0 0
      %1283 = vmatpush2.bf16.msra.mxu0 0
      %1284 = vmatprep.subr.bf16.mxu0 0
      %1285 = vmatpush2.bf16.msra.mxu0 0
      %1286 = vmatprep.mubr.bf16.mxu0 0
      %1287 = vmatmul.mubr.bf16.gmra.mxu0 %v825
      %v1288 = vpop.f32.mrf.mxu0
      %v1289 = vadd.f32 0.0, %v1288
      %v1290 = vpop.f32.mrf.mxu0
      %v1291 = vpop.f32.mrf.mxu0
      %v1292 = vadd.f32 0.0, %v1291
      %v1293 = vpop.f32.mrf.mxu0
      %1294 = vdwg.mxu0
      %v1295 = vadd.f32 %v1248, %v1289
      %v1296 = vadd.f32 %v1251, %v1292
      %v1297 = vpack.c.bf16 %v721, %v720
      %v1298 = vunpack.c.l.bf16 %v1297
      %v1299 = vunpack.c.h.bf16 %v1297
      %v1300 = vsub.f32 %v720, %v1298
      %v1301 = vsub.f32 %v721, %v1299
      %v1302 = vpack.c.bf16 %v1301, %v1300
      %1303 = vmatprep.subr.bf16.mxu0 0
      %1304 = vmatpush1.bf16.msra.mxu0 0
      %1305 = vmatprep.subr.bf16.mxu0 0
      %1306 = vmatpush1.bf16.msra.mxu0 0
      %1307 = vmatprep.subr.bf16.mxu0 0
      %1308 = vmatpush1.bf16.msra.mxu0 0
      %1309 = vmatprep.subr.bf16.mxu0 0
      %1310 = vmatpush1.bf16.msra.mxu0 0
      %1311 = vmatprep.subr.bf16.mxu0 0
      %1312 = vmatpush1.bf16.msra.mxu0 0
      %1313 = vmatprep.subr.bf16.mxu0 0
      %1314 = vmatpush1.bf16.msra.mxu0 0
      %1315 = vmatprep.subr.bf16.mxu0 0
      %1316 = vmatpush1.bf16.msra.mxu0 0
      %1317 = vmatprep.subr.bf16.mxu0 0
      %1318 = vmatpush1.bf16.msra.mxu0 %v1302
      %1319 = vmatprep.subr.bf16.mxu0 0
      %1320 = vmatpush2.bf16.msra.mxu0 0
      %1321 = vmatprep.subr.bf16.mxu0 0
      %1322 = vmatpush2.bf16.msra.mxu0 0
      %1323 = vmatprep.subr.bf16.mxu0 0
      %1324 = vmatpush2.bf16.msra.mxu0 0
      %1325 = vmatprep.subr.bf16.mxu0 0
      %1326 = vmatpush2.bf16.msra.mxu0 0
      %1327 = vmatprep.subr.bf16.mxu0 0
      %1328 = vmatpush2.bf16.msra.mxu0 0
      %1329 = vmatprep.subr.bf16.mxu0 0
      %1330 = vmatpush2.bf16.msra.mxu0 0
      %1331 = vmatprep.subr.bf16.mxu0 0
      %1332 = vmatpush2.bf16.msra.mxu0 0
      %1333 = vmatprep.subr.bf16.mxu0 0
      %1334 = vmatpush2.bf16.msra.mxu0 0
      %1335 = vmatprep.mubr.bf16.mxu0 0
      %1336 = vmatmul.mubr.bf16.gmra.mxu0 %v883
      %v1337 = vpop.f32.mrf.mxu0
      %v1338 = vadd.f32 0.0, %v1337
      %v1339 = vpop.f32.mrf.mxu0
      %v1340 = vpop.f32.mrf.mxu0
      %v1341 = vadd.f32 0.0, %v1340
      %v1342 = vpop.f32.mrf.mxu0
      %1343 = vdwg.mxu0
      %1344 = vmatprep.subr.bf16.mxu0 0
      %1345 = vmatpush1.bf16.msra.mxu0 0
      %1346 = vmatprep.subr.bf16.mxu0 0
      %1347 = vmatpush1.bf16.msra.mxu0 0
      %1348 = vmatprep.subr.bf16.mxu0 0
      %1349 = vmatpush1.bf16.msra.mxu0 0
      %1350 = vmatprep.subr.bf16.mxu0 0
      %1351 = vmatpush1.bf16.msra.mxu0 0
      %1352 = vmatprep.subr.bf16.mxu0 0
      %1353 = vmatpush1.bf16.msra.mxu0 0
      %1354 = vmatprep.subr.bf16.mxu0 0
      %1355 = vmatpush1.bf16.msra.mxu0 0
      %1356 = vmatprep.subr.bf16.mxu0 0
      %1357 = vmatpush1.bf16.msra.mxu0 0
      %1358 = vmatprep.subr.bf16.mxu0 0
      %1359 = vmatpush1.bf16.msra.mxu0 %v1297
      %1360 = vmatprep.subr.bf16.mxu0 0
      %1361 = vmatpush2.bf16.msra.mxu0 0
      %1362 = vmatprep.subr.bf16.mxu0 0
      %1363 = vmatpush2.bf16.msra.mxu0 0
      %1364 = vmatprep.subr.bf16.mxu0 0
      %1365 = vmatpush2.bf16.msra.mxu0 0
      %1366 = vmatprep.subr.bf16.mxu0 0
      %1367 = vmatpush2.bf16.msra.mxu0 0
      %1368 = vmatprep.subr.bf16.mxu0 0
      %1369 = vmatpush2.bf16.msra.mxu0 0
      %1370 = vmatprep.subr.bf16.mxu0 0
      %1371 = vmatpush2.bf16.msra.mxu0 0
      %1372 = vmatprep.subr.bf16.mxu0 0
      %1373 = vmatpush2.bf16.msra.mxu0 0
      %1374 = vmatprep.subr.bf16.mxu0 0
      %1375 = vmatpush2.bf16.msra.mxu0 0
      %1376 = vmatprep.mubr.bf16.mxu0 0
      %1377 = vmatmul.mubr.bf16.gmra.mxu0 %v883
      %v1378 = vpop.f32.mrf.mxu0
      %v1379 = vadd.f32 %v1338, %v1378
      %v1380 = vpop.f32.mrf.mxu0
      %v1381 = vpop.f32.mrf.mxu0
      %v1382 = vadd.f32 %v1341, %v1381
      %v1383 = vpop.f32.mrf.mxu0
      %1384 = vdwg.mxu0
      %1385 = vmatprep.subr.bf16.mxu0 0
      %1386 = vmatpush1.bf16.msra.mxu0 0
      %1387 = vmatprep.subr.bf16.mxu0 0
      %1388 = vmatpush1.bf16.msra.mxu0 0
      %1389 = vmatprep.subr.bf16.mxu0 0
      %1390 = vmatpush1.bf16.msra.mxu0 0
      %1391 = vmatprep.subr.bf16.mxu0 0
      %1392 = vmatpush1.bf16.msra.mxu0 0
      %1393 = vmatprep.subr.bf16.mxu0 0
      %1394 = vmatpush1.bf16.msra.mxu0 0
      %1395 = vmatprep.subr.bf16.mxu0 0
      %1396 = vmatpush1.bf16.msra.mxu0 0
      %1397 = vmatprep.subr.bf16.mxu0 0
      %1398 = vmatpush1.bf16.msra.mxu0 0
      %1399 = vmatprep.subr.bf16.mxu0 0
      %1400 = vmatpush1.bf16.msra.mxu0 %v1297
      %1401 = vmatprep.subr.bf16.mxu0 0
      %1402 = vmatpush2.bf16.msra.mxu0 0
      %1403 = vmatprep.subr.bf16.mxu0 0
      %1404 = vmatpush2.bf16.msra.mxu0 0
      %1405 = vmatprep.subr.bf16.mxu0 0
      %1406 = vmatpush2.bf16.msra.mxu0 0
      %1407 = vmatprep.subr.bf16.mxu0 0
      %1408 = vmatpush2.bf16.msra.mxu0 0
      %1409 = vmatprep.subr.bf16.mxu0 0
      %1410 = vmatpush2.bf16.msra.mxu0 0
      %1411 = vmatprep.subr.bf16.mxu0 0
      %1412 = vmatpush2.bf16.msra.mxu0 0
      %1413 = vmatprep.subr.bf16.mxu0 0
      %1414 = vmatpush2.bf16.msra.mxu0 0
      %1415 = vmatprep.subr.bf16.mxu0 0
      %1416 = vmatpush2.bf16.msra.mxu0 0
      %1417 = vmatprep.mubr.bf16.mxu0 0
      %1418 = vmatmul.mubr.bf16.gmra.mxu0 %v968
      %v1419 = vpop.f32.mrf.mxu0
      %v1420 = vadd.f32 0.0, %v1419
      %v1421 = vpop.f32.mrf.mxu0
      %v1422 = vpop.f32.mrf.mxu0
      %v1423 = vadd.f32 0.0, %v1422
      %v1424 = vpop.f32.mrf.mxu0
      %1425 = vdwg.mxu0
      %v1426 = vadd.f32 %v1379, %v1420
      %v1427 = vadd.f32 %v1382, %v1423
      %v1428 = vadd.f32 %v696, %v720
      %v1429 = vadd.f32 %v697, %v721
      %v1430 = vpack.c.bf16 %v1429, %v1428
      %v1431 = vunpack.c.l.bf16 %v1430
      %v1432 = vunpack.c.h.bf16 %v1430
      %v1433 = vsub.f32 %v1428, %v1431
      %v1434 = vsub.f32 %v1429, %v1432
      %v1435 = vpack.c.bf16 %v1434, %v1433
      %1436 = vmatprep.subr.bf16.mxu0 0
      %1437 = vmatpush1.bf16.msra.mxu0 0
      %1438 = vmatprep.subr.bf16.mxu0 0
      %1439 = vmatpush1.bf16.msra.mxu0 0
      %1440 = vmatprep.subr.bf16.mxu0 0
      %1441 = vmatpush1.bf16.msra.mxu0 0
      %1442 = vmatprep.subr.bf16.mxu0 0
      %1443 = vmatpush1.bf16.msra.mxu0 0
      %1444 = vmatprep.subr.bf16.mxu0 0
      %1445 = vmatpush1.bf16.msra.mxu0 0
      %1446 = vmatprep.subr.bf16.mxu0 0
      %1447 = vmatpush1.bf16.msra.mxu0 0
      %1448 = vmatprep.subr.bf16.mxu0 0
      %1449 = vmatpush1.bf16.msra.mxu0 0
      %1450 = vmatprep.subr.bf16.mxu0 0
      %1451 = vmatpush1.bf16.msra.mxu0 %v1435
      %1452 = vmatprep.subr.bf16.mxu0 0
      %1453 = vmatpush2.bf16.msra.mxu0 0
      %1454 = vmatprep.subr.bf16.mxu0 0
      %1455 = vmatpush2.bf16.msra.mxu0 0
      %1456 = vmatprep.subr.bf16.mxu0 0
      %1457 = vmatpush2.bf16.msra.mxu0 0
      %1458 = vmatprep.subr.bf16.mxu0 0
      %1459 = vmatpush2.bf16.msra.mxu0 0
      %1460 = vmatprep.subr.bf16.mxu0 0
      %1461 = vmatpush2.bf16.msra.mxu0 0
      %1462 = vmatprep.subr.bf16.mxu0 0
      %1463 = vmatpush2.bf16.msra.mxu0 0
      %1464 = vmatprep.subr.bf16.mxu0 0
      %1465 = vmatpush2.bf16.msra.mxu0 0
      %1466 = vmatprep.subr.bf16.mxu0 0
      %1467 = vmatpush2.bf16.msra.mxu0 0
      %1468 = vmatprep.mubr.bf16.mxu0 0
      %1469 = vmatmul.mubr.bf16.gmra.mxu0 %v1030
      %v1470 = vpop.f32.mrf.mxu0
      %v1471 = vadd.f32 0.0, %v1470
      %v1472 = vpop.f32.mrf.mxu0
      %v1473 = vpop.f32.mrf.mxu0
      %v1474 = vadd.f32 0.0, %v1473
      %v1475 = vpop.f32.mrf.mxu0
      %1476 = vdwg.mxu0
      %1477 = vmatprep.subr.bf16.mxu0 0
      %1478 = vmatpush1.bf16.msra.mxu0 0
      %1479 = vmatprep.subr.bf16.mxu0 0
      %1480 = vmatpush1.bf16.msra.mxu0 0
      %1481 = vmatprep.subr.bf16.mxu0 0
      %1482 = vmatpush1.bf16.msra.mxu0 0
      %1483 = vmatprep.subr.bf16.mxu0 0
      %1484 = vmatpush1.bf16.msra.mxu0 0
      %1485 = vmatprep.subr.bf16.mxu0 0
      %1486 = vmatpush1.bf16.msra.mxu0 0
      %1487 = vmatprep.subr.bf16.mxu0 0
      %1488 = vmatpush1.bf16.msra.mxu0 0
      %1489 = vmatprep.subr.bf16.mxu0 0
      %1490 = vmatpush1.bf16.msra.mxu0 0
      %1491 = vmatprep.subr.bf16.mxu0 0
      %1492 = vmatpush1.bf16.msra.mxu0 %v1430
      %1493 = vmatprep.subr.bf16.mxu0 0
      %1494 = vmatpush2.bf16.msra.mxu0 0
      %1495 = vmatprep.subr.bf16.mxu0 0
      %1496 = vmatpush2.bf16.msra.mxu0 0
      %1497 = vmatprep.subr.bf16.mxu0 0
      %1498 = vmatpush2.bf16.msra.mxu0 0
      %1499 = vmatprep.subr.bf16.mxu0 0
      %1500 = vmatpush2.bf16.msra.mxu0 0
      %1501 = vmatprep.subr.bf16.mxu0 0
      %1502 = vmatpush2.bf16.msra.mxu0 0
      %1503 = vmatprep.subr.bf16.mxu0 0
      %1504 = vmatpush2.bf16.msra.mxu0 0
      %1505 = vmatprep.subr.bf16.mxu0 0
      %1506 = vmatpush2.bf16.msra.mxu0 0
      %1507 = vmatprep.subr.bf16.mxu0 0
      %1508 = vmatpush2.bf16.msra.mxu0 0
      %1509 = vmatprep.mubr.bf16.mxu0 0
      %1510 = vmatmul.mubr.bf16.gmra.mxu0 %v1030
      %v1511 = vpop.f32.mrf.mxu0
      %v1512 = vadd.f32 %v1471, %v1511
      %v1513 = vpop.f32.mrf.mxu0
      %v1514 = vpop.f32.mrf.mxu0
      %v1515 = vadd.f32 %v1474, %v1514
      %v1516 = vpop.f32.mrf.mxu0
      %1517 = vdwg.mxu0
      %1518 = vmatprep.subr.bf16.mxu0 0
      %1519 = vmatpush1.bf16.msra.mxu0 0
      %1520 = vmatprep.subr.bf16.mxu0 0
      %1521 = vmatpush1.bf16.msra.mxu0 0
      %1522 = vmatprep.subr.bf16.mxu0 0
      %1523 = vmatpush1.bf16.msra.mxu0 0
      %1524 = vmatprep.subr.bf16.mxu0 0
      %1525 = vmatpush1.bf16.msra.mxu0 0
      %1526 = vmatprep.subr.bf16.mxu0 0
      %1527 = vmatpush1.bf16.msra.mxu0 0
      %1528 = vmatprep.subr.bf16.mxu0 0
      %1529 = vmatpush1.bf16.msra.mxu0 0
      %1530 = vmatprep.subr.bf16.mxu0 0
      %1531 = vmatpush1.bf16.msra.mxu0 0
      %1532 = vmatprep.subr.bf16.mxu0 0
      %1533 = vmatpush1.bf16.msra.mxu0 %v1430
      %1534 = vmatprep.subr.bf16.mxu0 0
      %1535 = vmatpush2.bf16.msra.mxu0 0
      %1536 = vmatprep.subr.bf16.mxu0 0
      %1537 = vmatpush2.bf16.msra.mxu0 0
      %1538 = vmatprep.subr.bf16.mxu0 0
      %1539 = vmatpush2.bf16.msra.mxu0 0
      %1540 = vmatprep.subr.bf16.mxu0 0
      %1541 = vmatpush2.bf16.msra.mxu0 0
      %1542 = vmatprep.subr.bf16.mxu0 0
      %1543 = vmatpush2.bf16.msra.mxu0 0
      %1544 = vmatprep.subr.bf16.mxu0 0
      %1545 = vmatpush2.bf16.msra.mxu0 0
      %1546 = vmatprep.subr.bf16.mxu0 0
      %1547 = vmatpush2.bf16.msra.mxu0 0
      %1548 = vmatprep.subr.bf16.mxu0 0
      %1549 = vmatpush2.bf16.msra.mxu0 0
      %1550 = vmatprep.mubr.bf16.mxu0 0
      %1551 = vmatmul.mubr.bf16.gmra.mxu0 %v1115
      %v1552 = vpop.f32.mrf.mxu0
      %v1553 = vadd.f32 0.0, %v1552
      %v1554 = vpop.f32.mrf.mxu0
      %v1555 = vpop.f32.mrf.mxu0
      %v1556 = vadd.f32 0.0, %v1555
      %v1557 = vpop.f32.mrf.mxu0
      %1558 = vdwg.mxu0
      %v1559 = vadd.f32 %v1512, %v1553
      %v1560 = vadd.f32 %v1515, %v1556
      %v1561 = vsub.f32 %v1295, %v1426
      %v1562 = vsub.f32 %v1296, %v1427
      %v1563 = vsub.f32 %v1559, %v1295
      %v1564 = vsub.f32 %v1560, %v1296
      %v1565 = vsub.f32 %v1563, %v1426
      %v1566 = vsub.f32 %v1564, %v1427
      %v1567 = vpack.c.bf16 %v699, %v698
      %v1568 = vunpack.c.l.bf16 %v1567
      %v1569 = vunpack.c.h.bf16 %v1567
      %v1570 = vsub.f32 %v698, %v1568
      %v1571 = vsub.f32 %v699, %v1569
      %v1572 = vpack.c.bf16 %v1571, %v1570
      %1573 = vmatprep.subr.bf16.mxu0 0
      %1574 = vmatpush1.bf16.msra.mxu0 0
      %1575 = vmatprep.subr.bf16.mxu0 0
      %1576 = vmatpush1.bf16.msra.mxu0 0
      %1577 = vmatprep.subr.bf16.mxu0 0
      %1578 = vmatpush1.bf16.msra.mxu0 0
      %1579 = vmatprep.subr.bf16.mxu0 0
      %1580 = vmatpush1.bf16.msra.mxu0 0
      %1581 = vmatprep.subr.bf16.mxu0 0
      %1582 = vmatpush1.bf16.msra.mxu0 0
      %1583 = vmatprep.subr.bf16.mxu0 0
      %1584 = vmatpush1.bf16.msra.mxu0 0
      %1585 = vmatprep.subr.bf16.mxu0 0
      %1586 = vmatpush1.bf16.msra.mxu0 0
      %1587 = vmatprep.subr.bf16.mxu0 0
      %1588 = vmatpush1.bf16.msra.mxu0 %v1572
      %1589 = vmatprep.subr.bf16.mxu0 0
      %1590 = vmatpush2.bf16.msra.mxu0 0
      %1591 = vmatprep.subr.bf16.mxu0 0
      %1592 = vmatpush2.bf16.msra.mxu0 0
      %1593 = vmatprep.subr.bf16.mxu0 0
      %1594 = vmatpush2.bf16.msra.mxu0 0
      %1595 = vmatprep.subr.bf16.mxu0 0
      %1596 = vmatpush2.bf16.msra.mxu0 0
      %1597 = vmatprep.subr.bf16.mxu0 0
      %1598 = vmatpush2.bf16.msra.mxu0 0
      %1599 = vmatprep.subr.bf16.mxu0 0
      %1600 = vmatpush2.bf16.msra.mxu0 0
      %1601 = vmatprep.subr.bf16.mxu0 0
      %1602 = vmatpush2.bf16.msra.mxu0 0
      %1603 = vmatprep.subr.bf16.mxu0 0
      %1604 = vmatpush2.bf16.msra.mxu0 0
      %1605 = vmatprep.mubr.bf16.mxu0 0
      %1606 = vmatmul.mubr.bf16.gmra.mxu0 %v740
      %v1607 = vpop.f32.mrf.mxu0
      %v1608 = vadd.f32 0.0, %v1607
      %v1609 = vpop.f32.mrf.mxu0
      %v1610 = vpop.f32.mrf.mxu0
      %v1611 = vadd.f32 0.0, %v1610
      %v1612 = vpop.f32.mrf.mxu0
      %1613 = vdwg.mxu0
      %1614 = vmatprep.subr.bf16.mxu0 0
      %1615 = vmatpush1.bf16.msra.mxu0 0
      %1616 = vmatprep.subr.bf16.mxu0 0
      %1617 = vmatpush1.bf16.msra.mxu0 0
      %1618 = vmatprep.subr.bf16.mxu0 0
      %1619 = vmatpush1.bf16.msra.mxu0 0
      %1620 = vmatprep.subr.bf16.mxu0 0
      %1621 = vmatpush1.bf16.msra.mxu0 0
      %1622 = vmatprep.subr.bf16.mxu0 0
      %1623 = vmatpush1.bf16.msra.mxu0 0
      %1624 = vmatprep.subr.bf16.mxu0 0
      %1625 = vmatpush1.bf16.msra.mxu0 0
      %1626 = vmatprep.subr.bf16.mxu0 0
      %1627 = vmatpush1.bf16.msra.mxu0 0
      %1628 = vmatprep.subr.bf16.mxu0 0
      %1629 = vmatpush1.bf16.msra.mxu0 %v1567
      %1630 = vmatprep.subr.bf16.mxu0 0
      %1631 = vmatpush2.bf16.msra.mxu0 0
      %1632 = vmatprep.subr.bf16.mxu0 0
      %1633 = vmatpush2.bf16.msra.mxu0 0
      %1634 = vmatprep.subr.bf16.mxu0 0
      %1635 = vmatpush2.bf16.msra.mxu0 0
      %1636 = vmatprep.subr.bf16.mxu0 0
      %1637 = vmatpush2.bf16.msra.mxu0 0
      %1638 = vmatprep.subr.bf16.mxu0 0
      %1639 = vmatpush2.bf16.msra.mxu0 0
      %1640 = vmatprep.subr.bf16.mxu0 0
      %1641 = vmatpush2.bf16.msra.mxu0 0
      %1642 = vmatprep.subr.bf16.mxu0 0
      %1643 = vmatpush2.bf16.msra.mxu0 0
      %1644 = vmatprep.subr.bf16.mxu0 0
      %1645 = vmatpush2.bf16.msra.mxu0 0
      %1646 = vmatprep.mubr.bf16.mxu0 0
      %1647 = vmatmul.mubr.bf16.gmra.mxu0 %v740
      %v1648 = vpop.f32.mrf.mxu0
      %v1649 = vadd.f32 %v1608, %v1648
      %v1650 = vpop.f32.mrf.mxu0
      %v1651 = vpop.f32.mrf.mxu0
      %v1652 = vadd.f32 %v1611, %v1651
      %v1653 = vpop.f32.mrf.mxu0
      %1654 = vdwg.mxu0
      %1655 = vmatprep.subr.bf16.mxu0 0
      %1656 = vmatpush1.bf16.msra.mxu0 0
      %1657 = vmatprep.subr.bf16.mxu0 0
      %1658 = vmatpush1.bf16.msra.mxu0 0
      %1659 = vmatprep.subr.bf16.mxu0 0
      %1660 = vmatpush1.bf16.msra.mxu0 0
      %1661 = vmatprep.subr.bf16.mxu0 0
      %1662 = vmatpush1.bf16.msra.mxu0 0
      %1663 = vmatprep.subr.bf16.mxu0 0
      %1664 = vmatpush1.bf16.msra.mxu0 0
      %1665 = vmatprep.subr.bf16.mxu0 0
      %1666 = vmatpush1.bf16.msra.mxu0 0
      %1667 = vmatprep.subr.bf16.mxu0 0
      %1668 = vmatpush1.bf16.msra.mxu0 0
      %1669 = vmatprep.subr.bf16.mxu0 0
      %1670 = vmatpush1.bf16.msra.mxu0 %v1567
      %1671 = vmatprep.subr.bf16.mxu0 0
      %1672 = vmatpush2.bf16.msra.mxu0 0
      %1673 = vmatprep.subr.bf16.mxu0 0
      %1674 = vmatpush2.bf16.msra.mxu0 0
      %1675 = vmatprep.subr.bf16.mxu0 0
      %1676 = vmatpush2.bf16.msra.mxu0 0
      %1677 = vmatprep.subr.bf16.mxu0 0
      %1678 = vmatpush2.bf16.msra.mxu0 0
      %1679 = vmatprep.subr.bf16.mxu0 0
      %1680 = vmatpush2.bf16.msra.mxu0 0
      %1681 = vmatprep.subr.bf16.mxu0 0
      %1682 = vmatpush2.bf16.msra.mxu0 0
      %1683 = vmatprep.subr.bf16.mxu0 0
      %1684 = vmatpush2.bf16.msra.mxu0 0
      %1685 = vmatprep.subr.bf16.mxu0 0
      %1686 = vmatpush2.bf16.msra.mxu0 0
      %1687 = vmatprep.mubr.bf16.mxu0 0
      %1688 = vmatmul.mubr.bf16.gmra.mxu0 %v825
      %v1689 = vpop.f32.mrf.mxu0
      %v1690 = vadd.f32 0.0, %v1689
      %v1691 = vpop.f32.mrf.mxu0
      %v1692 = vpop.f32.mrf.mxu0
      %v1693 = vadd.f32 0.0, %v1692
      %v1694 = vpop.f32.mrf.mxu0
      %1695 = vdwg.mxu0
      %v1696 = vadd.f32 %v1649, %v1690
      %v1697 = vadd.f32 %v1652, %v1693
      %v1698 = vpack.c.bf16 %v723, %v722
      %v1699 = vunpack.c.l.bf16 %v1698
      %v1700 = vunpack.c.h.bf16 %v1698
      %v1701 = vsub.f32 %v722, %v1699
      %v1702 = vsub.f32 %v723, %v1700
      %v1703 = vpack.c.bf16 %v1702, %v1701
      %1704 = vmatprep.subr.bf16.mxu0 0
      %1705 = vmatpush1.bf16.msra.mxu0 0
      %1706 = vmatprep.subr.bf16.mxu0 0
      %1707 = vmatpush1.bf16.msra.mxu0 0
      %1708 = vmatprep.subr.bf16.mxu0 0
      %1709 = vmatpush1.bf16.msra.mxu0 0
      %1710 = vmatprep.subr.bf16.mxu0 0
      %1711 = vmatpush1.bf16.msra.mxu0 0
      %1712 = vmatprep.subr.bf16.mxu0 0
      %1713 = vmatpush1.bf16.msra.mxu0 0
      %1714 = vmatprep.subr.bf16.mxu0 0
      %1715 = vmatpush1.bf16.msra.mxu0 0
      %1716 = vmatprep.subr.bf16.mxu0 0
      %1717 = vmatpush1.bf16.msra.mxu0 0
      %1718 = vmatprep.subr.bf16.mxu0 0
      %1719 = vmatpush1.bf16.msra.mxu0 %v1703
      %1720 = vmatprep.subr.bf16.mxu0 0
      %1721 = vmatpush2.bf16.msra.mxu0 0
      %1722 = vmatprep.subr.bf16.mxu0 0
      %1723 = vmatpush2.bf16.msra.mxu0 0
      %1724 = vmatprep.subr.bf16.mxu0 0
      %1725 = vmatpush2.bf16.msra.mxu0 0
      %1726 = vmatprep.subr.bf16.mxu0 0
      %1727 = vmatpush2.bf16.msra.mxu0 0
      %1728 = vmatprep.subr.bf16.mxu0 0
      %1729 = vmatpush2.bf16.msra.mxu0 0
      %1730 = vmatprep.subr.bf16.mxu0 0
      %1731 = vmatpush2.bf16.msra.mxu0 0
      %1732 = vmatprep.subr.bf16.mxu0 0
      %1733 = vmatpush2.bf16.msra.mxu0 0
      %1734 = vmatprep.subr.bf16.mxu0 0
      %1735 = vmatpush2.bf16.msra.mxu0 0
      %1736 = vmatprep.mubr.bf16.mxu0 0
      %1737 = vmatmul.mubr.bf16.gmra.mxu0 %v883
      %v1738 = vpop.f32.mrf.mxu0
      %v1739 = vadd.f32 0.0, %v1738
      %v1740 = vpop.f32.mrf.mxu0
      %v1741 = vpop.f32.mrf.mxu0
      %v1742 = vadd.f32 0.0, %v1741
      %v1743 = vpop.f32.mrf.mxu0
      %1744 = vdwg.mxu0
      %1745 = vmatprep.subr.bf16.mxu0 0
      %1746 = vmatpush1.bf16.msra.mxu0 0
      %1747 = vmatprep.subr.bf16.mxu0 0
      %1748 = vmatpush1.bf16.msra.mxu0 0
      %1749 = vmatprep.subr.bf16.mxu0 0
      %1750 = vmatpush1.bf16.msra.mxu0 0
      %1751 = vmatprep.subr.bf16.mxu0 0
      %1752 = vmatpush1.bf16.msra.mxu0 0
      %1753 = vmatprep.subr.bf16.mxu0 0
      %1754 = vmatpush1.bf16.msra.mxu0 0
      %1755 = vmatprep.subr.bf16.mxu0 0
      %1756 = vmatpush1.bf16.msra.mxu0 0
      %1757 = vmatprep.subr.bf16.mxu0 0
      %1758 = vmatpush1.bf16.msra.mxu0 0
      %1759 = vmatprep.subr.bf16.mxu0 0
      %1760 = vmatpush1.bf16.msra.mxu0 %v1698
      %1761 = vmatprep.subr.bf16.mxu0 0
      %1762 = vmatpush2.bf16.msra.mxu0 0
      %1763 = vmatprep.subr.bf16.mxu0 0
      %1764 = vmatpush2.bf16.msra.mxu0 0
      %1765 = vmatprep.subr.bf16.mxu0 0
      %1766 = vmatpush2.bf16.msra.mxu0 0
      %1767 = vmatprep.subr.bf16.mxu0 0
      %1768 = vmatpush2.bf16.msra.mxu0 0
      %1769 = vmatprep.subr.bf16.mxu0 0
      %1770 = vmatpush2.bf16.msra.mxu0 0
      %1771 = vmatprep.subr.bf16.mxu0 0
      %1772 = vmatpush2.bf16.msra.mxu0 0
      %1773 = vmatprep.subr.bf16.mxu0 0
      %1774 = vmatpush2.bf16.msra.mxu0 0
      %1775 = vmatprep.subr.bf16.mxu0 0
      %1776 = vmatpush2.bf16.msra.mxu0 0
      %1777 = vmatprep.mubr.bf16.mxu0 0
      %1778 = vmatmul.mubr.bf16.gmra.mxu0 %v883
      %v1779 = vpop.f32.mrf.mxu0
      %v1780 = vadd.f32 %v1739, %v1779
      %v1781 = vpop.f32.mrf.mxu0
      %v1782 = vpop.f32.mrf.mxu0
      %v1783 = vadd.f32 %v1742, %v1782
      %v1784 = vpop.f32.mrf.mxu0
      %1785 = vdwg.mxu0
      %1786 = vmatprep.subr.bf16.mxu0 0
      %1787 = vmatpush1.bf16.msra.mxu0 0
      %1788 = vmatprep.subr.bf16.mxu0 0
      %1789 = vmatpush1.bf16.msra.mxu0 0
      %1790 = vmatprep.subr.bf16.mxu0 0
      %1791 = vmatpush1.bf16.msra.mxu0 0
      %1792 = vmatprep.subr.bf16.mxu0 0
      %1793 = vmatpush1.bf16.msra.mxu0 0
      %1794 = vmatprep.subr.bf16.mxu0 0
      %1795 = vmatpush1.bf16.msra.mxu0 0
      %1796 = vmatprep.subr.bf16.mxu0 0
      %1797 = vmatpush1.bf16.msra.mxu0 0
      %1798 = vmatprep.subr.bf16.mxu0 0
      %1799 = vmatpush1.bf16.msra.mxu0 0
      %1800 = vmatprep.subr.bf16.mxu0 0
      %1801 = vmatpush1.bf16.msra.mxu0 %v1698
      %1802 = vmatprep.subr.bf16.mxu0 0
      %1803 = vmatpush2.bf16.msra.mxu0 0
      %1804 = vmatprep.subr.bf16.mxu0 0
      %1805 = vmatpush2.bf16.msra.mxu0 0
      %1806 = vmatprep.subr.bf16.mxu0 0
      %1807 = vmatpush2.bf16.msra.mxu0 0
      %1808 = vmatprep.subr.bf16.mxu0 0
      %1809 = vmatpush2.bf16.msra.mxu0 0
      %1810 = vmatprep.subr.bf16.mxu0 0
      %1811 = vmatpush2.bf16.msra.mxu0 0
      %1812 = vmatprep.subr.bf16.mxu0 0
      %1813 = vmatpush2.bf16.msra.mxu0 0
      %1814 = vmatprep.subr.bf16.mxu0 0
      %1815 = vmatpush2.bf16.msra.mxu0 0
      %1816 = vmatprep.subr.bf16.mxu0 0
      %1817 = vmatpush2.bf16.msra.mxu0 0
      %1818 = vmatprep.mubr.bf16.mxu0 0
      %1819 = vmatmul.mubr.bf16.gmra.mxu0 %v968
      %v1820 = vpop.f32.mrf.mxu0
      %v1821 = vadd.f32 0.0, %v1820
      %v1822 = vpop.f32.mrf.mxu0
      %v1823 = vpop.f32.mrf.mxu0
      %v1824 = vadd.f32 0.0, %v1823
      %v1825 = vpop.f32.mrf.mxu0
      %1826 = vdwg.mxu0
      %v1827 = vadd.f32 %v1780, %v1821
      %v1828 = vadd.f32 %v1783, %v1824
      %v1829 = vadd.f32 %v698, %v722
      %v1830 = vadd.f32 %v699, %v723
      %v1831 = vpack.c.bf16 %v1830, %v1829
      %v1832 = vunpack.c.l.bf16 %v1831
      %v1833 = vunpack.c.h.bf16 %v1831
      %v1834 = vsub.f32 %v1829, %v1832
      %v1835 = vsub.f32 %v1830, %v1833
      %v1836 = vpack.c.bf16 %v1835, %v1834
      %1837 = vmatprep.subr.bf16.mxu0 0
      %1838 = vmatpush1.bf16.msra.mxu0 0
      %1839 = vmatprep.subr.bf16.mxu0 0
      %1840 = vmatpush1.bf16.msra.mxu0 0
      %1841 = vmatprep.subr.bf16.mxu0 0
      %1842 = vmatpush1.bf16.msra.mxu0 0
      %1843 = vmatprep.subr.bf16.mxu0 0
      %1844 = vmatpush1.bf16.msra.mxu0 0
      %1845 = vmatprep.subr.bf16.mxu0 0
      %1846 = vmatpush1.bf16.msra.mxu0 0
      %1847 = vmatprep.subr.bf16.mxu0 0
      %1848 = vmatpush1.bf16.msra.mxu0 0
      %1849 = vmatprep.subr.bf16.mxu0 0
      %1850 = vmatpush1.bf16.msra.mxu0 0
      %1851 = vmatprep.subr.bf16.mxu0 0
      %1852 = vmatpush1.bf16.msra.mxu0 %v1836
      %1853 = vmatprep.subr.bf16.mxu0 0
      %1854 = vmatpush2.bf16.msra.mxu0 0
      %1855 = vmatprep.subr.bf16.mxu0 0
      %1856 = vmatpush2.bf16.msra.mxu0 0
      %1857 = vmatprep.subr.bf16.mxu0 0
      %1858 = vmatpush2.bf16.msra.mxu0 0
      %1859 = vmatprep.subr.bf16.mxu0 0
      %1860 = vmatpush2.bf16.msra.mxu0 0
      %1861 = vmatprep.subr.bf16.mxu0 0
      %1862 = vmatpush2.bf16.msra.mxu0 0
      %1863 = vmatprep.subr.bf16.mxu0 0
      %1864 = vmatpush2.bf16.msra.mxu0 0
      %1865 = vmatprep.subr.bf16.mxu0 0
      %1866 = vmatpush2.bf16.msra.mxu0 0
      %1867 = vmatprep.subr.bf16.mxu0 0
      %1868 = vmatpush2.bf16.msra.mxu0 0
      %1869 = vmatprep.mubr.bf16.mxu0 0
      %1870 = vmatmul.mubr.bf16.gmra.mxu0 %v1030
      %v1871 = vpop.f32.mrf.mxu0
      %v1872 = vadd.f32 0.0, %v1871
      %v1873 = vpop.f32.mrf.mxu0
      %v1874 = vpop.f32.mrf.mxu0
      %v1875 = vadd.f32 0.0, %v1874
      %v1876 = vpop.f32.mrf.mxu0
      %1877 = vdwg.mxu0
      %1878 = vmatprep.subr.bf16.mxu0 0
      %1879 = vmatpush1.bf16.msra.mxu0 0
      %1880 = vmatprep.subr.bf16.mxu0 0
      %1881 = vmatpush1.bf16.msra.mxu0 0
      %1882 = vmatprep.subr.bf16.mxu0 0
      %1883 = vmatpush1.bf16.msra.mxu0 0
      %1884 = vmatprep.subr.bf16.mxu0 0
      %1885 = vmatpush1.bf16.msra.mxu0 0
      %1886 = vmatprep.subr.bf16.mxu0 0
      %1887 = vmatpush1.bf16.msra.mxu0 0
      %1888 = vmatprep.subr.bf16.mxu0 0
      %1889 = vmatpush1.bf16.msra.mxu0 0
      %1890 = vmatprep.subr.bf16.mxu0 0
      %1891 = vmatpush1.bf16.msra.mxu0 0
      %1892 = vmatprep.subr.bf16.mxu0 0
      %1893 = vmatpush1.bf16.msra.mxu0 %v1831
      %1894 = vmatprep.subr.bf16.mxu0 0
      %1895 = vmatpush2.bf16.msra.mxu0 0
      %1896 = vmatprep.subr.bf16.mxu0 0
      %1897 = vmatpush2.bf16.msra.mxu0 0
      %1898 = vmatprep.subr.bf16.mxu0 0
      %1899 = vmatpush2.bf16.msra.mxu0 0
      %1900 = vmatprep.subr.bf16.mxu0 0
      %1901 = vmatpush2.bf16.msra.mxu0 0
      %1902 = vmatprep.subr.bf16.mxu0 0
      %1903 = vmatpush2.bf16.msra.mxu0 0
      %1904 = vmatprep.subr.bf16.mxu0 0
      %1905 = vmatpush2.bf16.msra.mxu0 0
      %1906 = vmatprep.subr.bf16.mxu0 0
      %1907 = vmatpush2.bf16.msra.mxu0 0
      %1908 = vmatprep.subr.bf16.mxu0 0
      %1909 = vmatpush2.bf16.msra.mxu0 0
      %1910 = vmatprep.mubr.bf16.mxu0 0
      %1911 = vmatmul.mubr.bf16.gmra.mxu0 %v1030
      %v1912 = vpop.f32.mrf.mxu0
      %v1913 = vadd.f32 %v1872, %v1912
      %v1914 = vpop.f32.mrf.mxu0
      %v1915 = vpop.f32.mrf.mxu0
      %v1916 = vadd.f32 %v1875, %v1915
      %v1917 = vpop.f32.mrf.mxu0
      %1918 = vdwg.mxu0
      %1919 = vmatprep.subr.bf16.mxu0 0
      %1920 = vmatpush1.bf16.msra.mxu0 0
      %1921 = vmatprep.subr.bf16.mxu0 0
      %1922 = vmatpush1.bf16.msra.mxu0 0
      %1923 = vmatprep.subr.bf16.mxu0 0
      %1924 = vmatpush1.bf16.msra.mxu0 0
      %1925 = vmatprep.subr.bf16.mxu0 0
      %1926 = vmatpush1.bf16.msra.mxu0 0
      %1927 = vmatprep.subr.bf16.mxu0 0
      %1928 = vmatpush1.bf16.msra.mxu0 0
      %1929 = vmatprep.subr.bf16.mxu0 0
      %1930 = vmatpush1.bf16.msra.mxu0 0
      %1931 = vmatprep.subr.bf16.mxu0 0
      %1932 = vmatpush1.bf16.msra.mxu0 0
      %1933 = vmatprep.subr.bf16.mxu0 0
      %1934 = vmatpush1.bf16.msra.mxu0 %v1831
      %1935 = vmatprep.subr.bf16.mxu0 0
      %1936 = vmatpush2.bf16.msra.mxu0 0
      %1937 = vmatprep.subr.bf16.mxu0 0
      %1938 = vmatpush2.bf16.msra.mxu0 0
      %1939 = vmatprep.subr.bf16.mxu0 0
      %1940 = vmatpush2.bf16.msra.mxu0 0
      %1941 = vmatprep.subr.bf16.mxu0 0
      %1942 = vmatpush2.bf16.msra.mxu0 0
      %1943 = vmatprep.subr.bf16.mxu0 0
      %1944 = vmatpush2.bf16.msra.mxu0 0
      %1945 = vmatprep.subr.bf16.mxu0 0
      %1946 = vmatpush2.bf16.msra.mxu0 0
      %1947 = vmatprep.subr.bf16.mxu0 0
      %1948 = vmatpush2.bf16.msra.mxu0 0
      %1949 = vmatprep.subr.bf16.mxu0 0
      %1950 = vmatpush2.bf16.msra.mxu0 0
      %1951 = vmatprep.mubr.bf16.mxu0 0
      %1952 = vmatmul.mubr.bf16.gmra.mxu0 %v1115
      %v1953 = vpop.f32.mrf.mxu0
      %v1954 = vadd.f32 0.0, %v1953
      %v1955 = vpop.f32.mrf.mxu0
      %v1956 = vpop.f32.mrf.mxu0
      %v1957 = vadd.f32 0.0, %v1956
      %v1958 = vpop.f32.mrf.mxu0
      %1959 = vdwg.mxu0
      %v1960 = vadd.f32 %v1913, %v1954
      %v1961 = vadd.f32 %v1916, %v1957
      %v1962 = vsub.f32 %v1696, %v1827
      %v1963 = vsub.f32 %v1697, %v1828
      %v1964 = vsub.f32 %v1960, %v1696
      %v1965 = vsub.f32 %v1961, %v1697
      %v1966 = vsub.f32 %v1964, %v1827
      %v1967 = vsub.f32 %v1965, %v1828
      %v1968 = vpack.c.bf16 %v701, %v700
      %v1969 = vunpack.c.l.bf16 %v1968
      %v1970 = vunpack.c.h.bf16 %v1968
      %v1971 = vsub.f32 %v700, %v1969
      %v1972 = vsub.f32 %v701, %v1970
      %v1973 = vpack.c.bf16 %v1972, %v1971
      %1974 = vmatprep.subr.bf16.mxu0 0
      %1975 = vmatpush1.bf16.msra.mxu0 0
      %1976 = vmatprep.subr.bf16.mxu0 0
      %1977 = vmatpush1.bf16.msra.mxu0 0
      %1978 = vmatprep.subr.bf16.mxu0 0
      %1979 = vmatpush1.bf16.msra.mxu0 0
      %1980 = vmatprep.subr.bf16.mxu0 0
      %1981 = vmatpush1.bf16.msra.mxu0 0
      %1982 = vmatprep.subr.bf16.mxu0 0
      %1983 = vmatpush1.bf16.msra.mxu0 0
      %1984 = vmatprep.subr.bf16.mxu0 0
      %1985 = vmatpush1.bf16.msra.mxu0 0
      %1986 = vmatprep.subr.bf16.mxu0 0
      %1987 = vmatpush1.bf16.msra.mxu0 0
      %1988 = vmatprep.subr.bf16.mxu0 0
      %1989 = vmatpush1.bf16.msra.mxu0 %v1973
      %1990 = vmatprep.subr.bf16.mxu0 0
      %1991 = vmatpush2.bf16.msra.mxu0 0
      %1992 = vmatprep.subr.bf16.mxu0 0
      %1993 = vmatpush2.bf16.msra.mxu0 0
      %1994 = vmatprep.subr.bf16.mxu0 0
      %1995 = vmatpush2.bf16.msra.mxu0 0
      %1996 = vmatprep.subr.bf16.mxu0 0
      %1997 = vmatpush2.bf16.msra.mxu0 0
      %1998 = vmatprep.subr.bf16.mxu0 0
      %1999 = vmatpush2.bf16.msra.mxu0 0
      %2000 = vmatprep.subr.bf16.mxu0 0
      %2001 = vmatpush2.bf16.msra.mxu0 0
      %2002 = vmatprep.subr.bf16.mxu0 0
      %2003 = vmatpush2.bf16.msra.mxu0 0
      %2004 = vmatprep.subr.bf16.mxu0 0
      %2005 = vmatpush2.bf16.msra.mxu0 0
      %2006 = vmatprep.mubr.bf16.mxu0 0
      %2007 = vmatmul.mubr.bf16.gmra.mxu0 %v740
      %v2008 = vpop.f32.mrf.mxu0
      %v2009 = vadd.f32 0.0, %v2008
      %v2010 = vpop.f32.mrf.mxu0
      %v2011 = vpop.f32.mrf.mxu0
      %v2012 = vadd.f32 0.0, %v2011
      %v2013 = vpop.f32.mrf.mxu0
      %2014 = vdwg.mxu0
      %2015 = vmatprep.subr.bf16.mxu0 0
      %2016 = vmatpush1.bf16.msra.mxu0 0
      %2017 = vmatprep.subr.bf16.mxu0 0
      %2018 = vmatpush1.bf16.msra.mxu0 0
      %2019 = vmatprep.subr.bf16.mxu0 0
      %2020 = vmatpush1.bf16.msra.mxu0 0
      %2021 = vmatprep.subr.bf16.mxu0 0
      %2022 = vmatpush1.bf16.msra.mxu0 0
      %2023 = vmatprep.subr.bf16.mxu0 0
      %2024 = vmatpush1.bf16.msra.mxu0 0
      %2025 = vmatprep.subr.bf16.mxu0 0
      %2026 = vmatpush1.bf16.msra.mxu0 0
      %2027 = vmatprep.subr.bf16.mxu0 0
      %2028 = vmatpush1.bf16.msra.mxu0 0
      %2029 = vmatprep.subr.bf16.mxu0 0
      %2030 = vmatpush1.bf16.msra.mxu0 %v1968
      %2031 = vmatprep.subr.bf16.mxu0 0
      %2032 = vmatpush2.bf16.msra.mxu0 0
      %2033 = vmatprep.subr.bf16.mxu0 0
      %2034 = vmatpush2.bf16.msra.mxu0 0
      %2035 = vmatprep.subr.bf16.mxu0 0
      %2036 = vmatpush2.bf16.msra.mxu0 0
      %2037 = vmatprep.subr.bf16.mxu0 0
      %2038 = vmatpush2.bf16.msra.mxu0 0
      %2039 = vmatprep.subr.bf16.mxu0 0
      %2040 = vmatpush2.bf16.msra.mxu0 0
      %2041 = vmatprep.subr.bf16.mxu0 0
      %2042 = vmatpush2.bf16.msra.mxu0 0
      %2043 = vmatprep.subr.bf16.mxu0 0
      %2044 = vmatpush2.bf16.msra.mxu0 0
      %2045 = vmatprep.subr.bf16.mxu0 0
      %2046 = vmatpush2.bf16.msra.mxu0 0
      %2047 = vmatprep.mubr.bf16.mxu0 0
      %2048 = vmatmul.mubr.bf16.gmra.mxu0 %v740
      %v2049 = vpop.f32.mrf.mxu0
      %v2050 = vadd.f32 %v2009, %v2049
      %v2051 = vpop.f32.mrf.mxu0
      %v2052 = vpop.f32.mrf.mxu0
      %v2053 = vadd.f32 %v2012, %v2052
      %v2054 = vpop.f32.mrf.mxu0
      %2055 = vdwg.mxu0
      %2056 = vmatprep.subr.bf16.mxu0 0
      %2057 = vmatpush1.bf16.msra.mxu0 0
      %2058 = vmatprep.subr.bf16.mxu0 0
      %2059 = vmatpush1.bf16.msra.mxu0 0
      %2060 = vmatprep.subr.bf16.mxu0 0
      %2061 = vmatpush1.bf16.msra.mxu0 0
      %2062 = vmatprep.subr.bf16.mxu0 0
      %2063 = vmatpush1.bf16.msra.mxu0 0
      %2064 = vmatprep.subr.bf16.mxu0 0
      %2065 = vmatpush1.bf16.msra.mxu0 0
      %2066 = vmatprep.subr.bf16.mxu0 0
      %2067 = vmatpush1.bf16.msra.mxu0 0
      %2068 = vmatprep.subr.bf16.mxu0 0
      %2069 = vmatpush1.bf16.msra.mxu0 0
      %2070 = vmatprep.subr.bf16.mxu0 0
      %2071 = vmatpush1.bf16.msra.mxu0 %v1968
      %2072 = vmatprep.subr.bf16.mxu0 0
      %2073 = vmatpush2.bf16.msra.mxu0 0
      %2074 = vmatprep.subr.bf16.mxu0 0
      %2075 = vmatpush2.bf16.msra.mxu0 0
      %2076 = vmatprep.subr.bf16.mxu0 0
      %2077 = vmatpush2.bf16.msra.mxu0 0
      %2078 = vmatprep.subr.bf16.mxu0 0
      %2079 = vmatpush2.bf16.msra.mxu0 0
      %2080 = vmatprep.subr.bf16.mxu0 0
      %2081 = vmatpush2.bf16.msra.mxu0 0
      %2082 = vmatprep.subr.bf16.mxu0 0
      %2083 = vmatpush2.bf16.msra.mxu0 0
      %2084 = vmatprep.subr.bf16.mxu0 0
      %2085 = vmatpush2.bf16.msra.mxu0 0
      %2086 = vmatprep.subr.bf16.mxu0 0
      %2087 = vmatpush2.bf16.msra.mxu0 0
      %2088 = vmatprep.mubr.bf16.mxu0 0
      %2089 = vmatmul.mubr.bf16.gmra.mxu0 %v825
      %v2090 = vpop.f32.mrf.mxu0
      %v2091 = vadd.f32 0.0, %v2090
      %v2092 = vpop.f32.mrf.mxu0
      %v2093 = vpop.f32.mrf.mxu0
      %v2094 = vadd.f32 0.0, %v2093
      %v2095 = vpop.f32.mrf.mxu0
      %2096 = vdwg.mxu0
      %v2097 = vadd.f32 %v2050, %v2091
      %v2098 = vadd.f32 %v2053, %v2094
      %v2099 = vpack.c.bf16 %v725, %v724
      %v2100 = vunpack.c.l.bf16 %v2099
      %v2101 = vunpack.c.h.bf16 %v2099
      %v2102 = vsub.f32 %v724, %v2100
      %v2103 = vsub.f32 %v725, %v2101
      %v2104 = vpack.c.bf16 %v2103, %v2102
      %2105 = vmatprep.subr.bf16.mxu0 0
      %2106 = vmatpush1.bf16.msra.mxu0 0
      %2107 = vmatprep.subr.bf16.mxu0 0
      %2108 = vmatpush1.bf16.msra.mxu0 0
      %2109 = vmatprep.subr.bf16.mxu0 0
      %2110 = vmatpush1.bf16.msra.mxu0 0
      %2111 = vmatprep.subr.bf16.mxu0 0
      %2112 = vmatpush1.bf16.msra.mxu0 0
      %2113 = vmatprep.subr.bf16.mxu0 0
      %2114 = vmatpush1.bf16.msra.mxu0 0
      %2115 = vmatprep.subr.bf16.mxu0 0
      %2116 = vmatpush1.bf16.msra.mxu0 0
      %2117 = vmatprep.subr.bf16.mxu0 0
      %2118 = vmatpush1.bf16.msra.mxu0 0
      %2119 = vmatprep.subr.bf16.mxu0 0
      %2120 = vmatpush1.bf16.msra.mxu0 %v2104
      %2121 = vmatprep.subr.bf16.mxu0 0
      %2122 = vmatpush2.bf16.msra.mxu0 0
      %2123 = vmatprep.subr.bf16.mxu0 0
      %2124 = vmatpush2.bf16.msra.mxu0 0
      %2125 = vmatprep.subr.bf16.mxu0 0
      %2126 = vmatpush2.bf16.msra.mxu0 0
      %2127 = vmatprep.subr.bf16.mxu0 0
      %2128 = vmatpush2.bf16.msra.mxu0 0
      %2129 = vmatprep.subr.bf16.mxu0 0
      %2130 = vmatpush2.bf16.msra.mxu0 0
      %2131 = vmatprep.subr.bf16.mxu0 0
      %2132 = vmatpush2.bf16.msra.mxu0 0
      %2133 = vmatprep.subr.bf16.mxu0 0
      %2134 = vmatpush2.bf16.msra.mxu0 0
      %2135 = vmatprep.subr.bf16.mxu0 0
      %2136 = vmatpush2.bf16.msra.mxu0 0
      %2137 = vmatprep.mubr.bf16.mxu0 0
      %2138 = vmatmul.mubr.bf16.gmra.mxu0 %v883
      %v2139 = vpop.f32.mrf.mxu0
      %v2140 = vadd.f32 0.0, %v2139
      %v2141 = vpop.f32.mrf.mxu0
      %v2142 = vpop.f32.mrf.mxu0
      %v2143 = vadd.f32 0.0, %v2142
      %v2144 = vpop.f32.mrf.mxu0
      %2145 = vdwg.mxu0
      %2146 = vmatprep.subr.bf16.mxu0 0
      %2147 = vmatpush1.bf16.msra.mxu0 0
      %2148 = vmatprep.subr.bf16.mxu0 0
      %2149 = vmatpush1.bf16.msra.mxu0 0
      %2150 = vmatprep.subr.bf16.mxu0 0
      %2151 = vmatpush1.bf16.msra.mxu0 0
      %2152 = vmatprep.subr.bf16.mxu0 0
      %2153 = vmatpush1.bf16.msra.mxu0 0
      %2154 = vmatprep.subr.bf16.mxu0 0
      %2155 = vmatpush1.bf16.msra.mxu0 0
      %2156 = vmatprep.subr.bf16.mxu0 0
      %2157 = vmatpush1.bf16.msra.mxu0 0
      %2158 = vmatprep.subr.bf16.mxu0 0
      %2159 = vmatpush1.bf16.msra.mxu0 0
      %2160 = vmatprep.subr.bf16.mxu0 0
      %2161 = vmatpush1.bf16.msra.mxu0 %v2099
      %2162 = vmatprep.subr.bf16.mxu0 0
      %2163 = vmatpush2.bf16.msra.mxu0 0
      %2164 = vmatprep.subr.bf16.mxu0 0
      %2165 = vmatpush2.bf16.msra.mxu0 0
      %2166 = vmatprep.subr.bf16.mxu0 0
      %2167 = vmatpush2.bf16.msra.mxu0 0
      %2168 = vmatprep.subr.bf16.mxu0 0
      %2169 = vmatpush2.bf16.msra.mxu0 0
      %2170 = vmatprep.subr.bf16.mxu0 0
      %2171 = vmatpush2.bf16.msra.mxu0 0
      %2172 = vmatprep.subr.bf16.mxu0 0
      %2173 = vmatpush2.bf16.msra.mxu0 0
      %2174 = vmatprep.subr.bf16.mxu0 0
      %2175 = vmatpush2.bf16.msra.mxu0 0
      %2176 = vmatprep.subr.bf16.mxu0 0
      %2177 = vmatpush2.bf16.msra.mxu0 0
      %2178 = vmatprep.mubr.bf16.mxu0 0
      %2179 = vmatmul.mubr.bf16.gmra.mxu0 %v883
      %v2180 = vpop.f32.mrf.mxu0
      %v2181 = vadd.f32 %v2140, %v2180
      %v2182 = vpop.f32.mrf.mxu0
      %v2183 = vpop.f32.mrf.mxu0
      %v2184 = vadd.f32 %v2143, %v2183
      %v2185 = vpop.f32.mrf.mxu0
      %2186 = vdwg.mxu0
      %2187 = vmatprep.subr.bf16.mxu0 0
      %2188 = vmatpush1.bf16.msra.mxu0 0
      %2189 = vmatprep.subr.bf16.mxu0 0
      %2190 = vmatpush1.bf16.msra.mxu0 0
      %2191 = vmatprep.subr.bf16.mxu0 0
      %2192 = vmatpush1.bf16.msra.mxu0 0
      %2193 = vmatprep.subr.bf16.mxu0 0
      %2194 = vmatpush1.bf16.msra.mxu0 0
      %2195 = vmatprep.subr.bf16.mxu0 0
      %2196 = vmatpush1.bf16.msra.mxu0 0
      %2197 = vmatprep.subr.bf16.mxu0 0
      %2198 = vmatpush1.bf16.msra.mxu0 0
      %2199 = vmatprep.subr.bf16.mxu0 0
      %2200 = vmatpush1.bf16.msra.mxu0 0
      %2201 = vmatprep.subr.bf16.mxu0 0
      %2202 = vmatpush1.bf16.msra.mxu0 %v2099
      %2203 = vmatprep.subr.bf16.mxu0 0
      %2204 = vmatpush2.bf16.msra.mxu0 0
      %2205 = vmatprep.subr.bf16.mxu0 0
      %2206 = vmatpush2.bf16.msra.mxu0 0
      %2207 = vmatprep.subr.bf16.mxu0 0
      %2208 = vmatpush2.bf16.msra.mxu0 0
      %2209 = vmatprep.subr.bf16.mxu0 0
      %2210 = vmatpush2.bf16.msra.mxu0 0
      %2211 = vmatprep.subr.bf16.mxu0 0
      %2212 = vmatpush2.bf16.msra.mxu0 0
      %2213 = vmatprep.subr.bf16.mxu0 0
      %2214 = vmatpush2.bf16.msra.mxu0 0
      %2215 = vmatprep.subr.bf16.mxu0 0
      %2216 = vmatpush2.bf16.msra.mxu0 0
      %2217 = vmatprep.subr.bf16.mxu0 0
      %2218 = vmatpush2.bf16.msra.mxu0 0
      %2219 = vmatprep.mubr.bf16.mxu0 0
      %2220 = vmatmul.mubr.bf16.gmra.mxu0 %v968
      %v2221 = vpop.f32.mrf.mxu0
      %v2222 = vadd.f32 0.0, %v2221
      %v2223 = vpop.f32.mrf.mxu0
      %v2224 = vpop.f32.mrf.mxu0
      %v2225 = vadd.f32 0.0, %v2224
      %v2226 = vpop.f32.mrf.mxu0
      %2227 = vdwg.mxu0
      %v2228 = vadd.f32 %v2181, %v2222
      %v2229 = vadd.f32 %v2184, %v2225
      %v2230 = vadd.f32 %v700, %v724
      %v2231 = vadd.f32 %v701, %v725
      %v2232 = vpack.c.bf16 %v2231, %v2230
      %v2233 = vunpack.c.l.bf16 %v2232
      %v2234 = vunpack.c.h.bf16 %v2232
      %v2235 = vsub.f32 %v2230, %v2233
      %v2236 = vsub.f32 %v2231, %v2234
      %v2237 = vpack.c.bf16 %v2236, %v2235
      %2238 = vmatprep.subr.bf16.mxu0 0
      %2239 = vmatpush1.bf16.msra.mxu0 0
      %2240 = vmatprep.subr.bf16.mxu0 0
      %2241 = vmatpush1.bf16.msra.mxu0 0
      %2242 = vmatprep.subr.bf16.mxu0 0
      %2243 = vmatpush1.bf16.msra.mxu0 0
      %2244 = vmatprep.subr.bf16.mxu0 0
      %2245 = vmatpush1.bf16.msra.mxu0 0
      %2246 = vmatprep.subr.bf16.mxu0 0
      %2247 = vmatpush1.bf16.msra.mxu0 0
      %2248 = vmatprep.subr.bf16.mxu0 0
      %2249 = vmatpush1.bf16.msra.mxu0 0
      %2250 = vmatprep.subr.bf16.mxu0 0
      %2251 = vmatpush1.bf16.msra.mxu0 0
      %2252 = vmatprep.subr.bf16.mxu0 0
      %2253 = vmatpush1.bf16.msra.mxu0 %v2237
      %2254 = vmatprep.subr.bf16.mxu0 0
      %2255 = vmatpush2.bf16.msra.mxu0 0
      %2256 = vmatprep.subr.bf16.mxu0 0
      %2257 = vmatpush2.bf16.msra.mxu0 0
      %2258 = vmatprep.subr.bf16.mxu0 0
      %2259 = vmatpush2.bf16.msra.mxu0 0
      %2260 = vmatprep.subr.bf16.mxu0 0
      %2261 = vmatpush2.bf16.msra.mxu0 0
      %2262 = vmatprep.subr.bf16.mxu0 0
      %2263 = vmatpush2.bf16.msra.mxu0 0
      %2264 = vmatprep.subr.bf16.mxu0 0
      %2265 = vmatpush2.bf16.msra.mxu0 0
      %2266 = vmatprep.subr.bf16.mxu0 0
      %2267 = vmatpush2.bf16.msra.mxu0 0
      %2268 = vmatprep.subr.bf16.mxu0 0
      %2269 = vmatpush2.bf16.msra.mxu0 0
      %2270 = vmatprep.mubr.bf16.mxu0 0
      %2271 = vmatmul.mubr.bf16.gmra.mxu0 %v1030
      %v2272 = vpop.f32.mrf.mxu0
      %v2273 = vadd.f32 0.0, %v2272
      %v2274 = vpop.f32.mrf.mxu0
      %v2275 = vpop.f32.mrf.mxu0
      %v2276 = vadd.f32 0.0, %v2275
      %v2277 = vpop.f32.mrf.mxu0
      %2278 = vdwg.mxu0
      %2279 = vmatprep.subr.bf16.mxu0 0
      %2280 = vmatpush1.bf16.msra.mxu0 0
      %2281 = vmatprep.subr.bf16.mxu0 0
      %2282 = vmatpush1.bf16.msra.mxu0 0
      %2283 = vmatprep.subr.bf16.mxu0 0
      %2284 = vmatpush1.bf16.msra.mxu0 0
      %2285 = vmatprep.subr.bf16.mxu0 0
      %2286 = vmatpush1.bf16.msra.mxu0 0
      %2287 = vmatprep.subr.bf16.mxu0 0
      %2288 = vmatpush1.bf16.msra.mxu0 0
      %2289 = vmatprep.subr.bf16.mxu0 0
      %2290 = vmatpush1.bf16.msra.mxu0 0
      %2291 = vmatprep.subr.bf16.mxu0 0
      %2292 = vmatpush1.bf16.msra.mxu0 0
      %2293 = vmatprep.subr.bf16.mxu0 0
      %2294 = vmatpush1.bf16.msra.mxu0 %v2232
      %2295 = vmatprep.subr.bf16.mxu0 0
      %2296 = vmatpush2.bf16.msra.mxu0 0
      %2297 = vmatprep.subr.bf16.mxu0 0
      %2298 = vmatpush2.bf16.msra.mxu0 0
      %2299 = vmatprep.subr.bf16.mxu0 0
      %2300 = vmatpush2.bf16.msra.mxu0 0
      %2301 = vmatprep.subr.bf16.mxu0 0
      %2302 = vmatpush2.bf16.msra.mxu0 0
      %2303 = vmatprep.subr.bf16.mxu0 0
      %2304 = vmatpush2.bf16.msra.mxu0 0
      %2305 = vmatprep.subr.bf16.mxu0 0
      %2306 = vmatpush2.bf16.msra.mxu0 0
      %2307 = vmatprep.subr.bf16.mxu0 0
      %2308 = vmatpush2.bf16.msra.mxu0 0
      %2309 = vmatprep.subr.bf16.mxu0 0
      %2310 = vmatpush2.bf16.msra.mxu0 0
      %2311 = vmatprep.mubr.bf16.mxu0 0
      %2312 = vmatmul.mubr.bf16.gmra.mxu0 %v1030
      %v2313 = vpop.f32.mrf.mxu0
      %v2314 = vadd.f32 %v2273, %v2313
      %v2315 = vpop.f32.mrf.mxu0
      %v2316 = vpop.f32.mrf.mxu0
      %v2317 = vadd.f32 %v2276, %v2316
      %v2318 = vpop.f32.mrf.mxu0
      %2319 = vdwg.mxu0
      %2320 = vmatprep.subr.bf16.mxu0 0
      %2321 = vmatpush1.bf16.msra.mxu0 0
      %2322 = vmatprep.subr.bf16.mxu0 0
      %2323 = vmatpush1.bf16.msra.mxu0 0
      %2324 = vmatprep.subr.bf16.mxu0 0
      %2325 = vmatpush1.bf16.msra.mxu0 0
      %2326 = vmatprep.subr.bf16.mxu0 0
      %2327 = vmatpush1.bf16.msra.mxu0 0
      %2328 = vmatprep.subr.bf16.mxu0 0
      %2329 = vmatpush1.bf16.msra.mxu0 0
      %2330 = vmatprep.subr.bf16.mxu0 0
      %2331 = vmatpush1.bf16.msra.mxu0 0
      %2332 = vmatprep.subr.bf16.mxu0 0
      %2333 = vmatpush1.bf16.msra.mxu0 0
      %2334 = vmatprep.subr.bf16.mxu0 0
      %2335 = vmatpush1.bf16.msra.mxu0 %v2232
      %2336 = vmatprep.subr.bf16.mxu0 0
      %2337 = vmatpush2.bf16.msra.mxu0 0
      %2338 = vmatprep.subr.bf16.mxu0 0
      %2339 = vmatpush2.bf16.msra.mxu0 0
      %2340 = vmatprep.subr.bf16.mxu0 0
      %2341 = vmatpush2.bf16.msra.mxu0 0
      %2342 = vmatprep.subr.bf16.mxu0 0
      %2343 = vmatpush2.bf16.msra.mxu0 0
      %2344 = vmatprep.subr.bf16.mxu0 0
      %2345 = vmatpush2.bf16.msra.mxu0 0
      %2346 = vmatprep.subr.bf16.mxu0 0
      %2347 = vmatpush2.bf16.msra.mxu0 0
      %2348 = vmatprep.subr.bf16.mxu0 0
      %2349 = vmatpush2.bf16.msra.mxu0 0
      %2350 = vmatprep.subr.bf16.mxu0 0
      %2351 = vmatpush2.bf16.msra.mxu0 0
      %2352 = vmatprep.mubr.bf16.mxu0 0
      %2353 = vmatmul.mubr.bf16.gmra.mxu0 %v1115
      %v2354 = vpop.f32.mrf.mxu0
      %v2355 = vadd.f32 0.0, %v2354
      %v2356 = vpop.f32.mrf.mxu0
      %v2357 = vpop.f32.mrf.mxu0
      %v2358 = vadd.f32 0.0, %v2357
      %v2359 = vpop.f32.mrf.mxu0
      %2360 = vdwg.mxu0
      %v2361 = vadd.f32 %v2314, %v2355
      %v2362 = vadd.f32 %v2317, %v2358
      %v2363 = vsub.f32 %v2097, %v2228
      %v2364 = vsub.f32 %v2098, %v2229
      %v2365 = vsub.f32 %v2361, %v2097
      %v2366 = vsub.f32 %v2362, %v2098
      %v2367 = vsub.f32 %v2365, %v2228
      %v2368 = vsub.f32 %v2366, %v2229
      %v2369 = vpack.c.bf16 %v1161, %v1160
      %v2370 = vpack.c.bf16 %v1562, %v1561
      %v2371 = vpack.c.bf16 %v1963, %v1962
      %v2372 = vpack.c.bf16 %v2364, %v2363
      %v2373 = vunpack.c.l.bf16 %v2369
      %v2374 = vunpack.c.h.bf16 %v2369
      %v2375 = vunpack.c.l.bf16 %v2370
      %v2376 = vunpack.c.h.bf16 %v2370
      %v2377 = vunpack.c.l.bf16 %v2371
      %v2378 = vunpack.c.h.bf16 %v2371
      %v2379 = vunpack.c.l.bf16 %v2372
      %v2380 = vunpack.c.h.bf16 %v2372
      %v2381 = vsub.f32 %v1160, %v2373
      %v2382 = vsub.f32 %v1161, %v2374
      %v2383 = vsub.f32 %v1561, %v2375
      %v2384 = vsub.f32 %v1562, %v2376
      %v2385 = vsub.f32 %v1962, %v2377
      %v2386 = vsub.f32 %v1963, %v2378
      %v2387 = vsub.f32 %v2363, %v2379
      %v2388 = vsub.f32 %v2364, %v2380
      %v2389 = vpack.c.bf16 %v2382, %v2381
      %v2390 = vpack.c.bf16 %v2384, %v2383
      %v2391 = vpack.c.bf16 %v2386, %v2385
      %v2392 = vpack.c.bf16 %v2388, %v2387
      %v2393 = vpack.c.bf16 %v655, %v654
      %v2394 = vunpack.c.l.bf16 %v2393
      %v2395 = vunpack.c.h.bf16 %v2393
      %v2396 = vsub.f32 %v654, %v2394
      %v2397 = vsub.f32 %v655, %v2395
      %v2398 = vpack.c.bf16 %v2397, %v2396
      %v2400 = vsel %vm738, %v2369, 0
      %v2403 = vsel %vm738, %v2370, 0
      %v2406 = vsel %vm738, %v2371, 0
      %v2409 = vsel %vm738, %v2372, 0
      %2411 = vmatprep.subr.bf16.mxu0 0
      %2412 = vmatpush1.bf16.msra.mxu0 0
      %2413 = vmatprep.subr.bf16.mxu0 0
      %2414 = vmatpush1.bf16.msra.mxu0 0
      %2415 = vmatprep.subr.bf16.mxu0 0
      %2416 = vmatpush1.bf16.msra.mxu0 0
      %2417 = vmatprep.subr.bf16.mxu0 0
      %2418 = vmatpush1.bf16.msra.mxu0 0
      %2419 = vmatprep.subr.bf16.mxu0 0
      %2420 = vmatpush1.bf16.msra.mxu0 0
      %2421 = vmatprep.subr.bf16.mxu0 0
      %2422 = vmatpush1.bf16.msra.mxu0 0
      %2423 = vmatprep.subr.bf16.mxu0 0
      %2424 = vmatpush1.bf16.msra.mxu0 0
      %2425 = vmatprep.subr.bf16.mxu0 0
      %2426 = vmatpush1.bf16.msra.mxu0 %v2398
      %2427 = vmatprep.subr.bf16.mxu0 0
      %2428 = vmatpush2.bf16.msra.mxu0 0
      %2429 = vmatprep.subr.bf16.mxu0 0
      %2430 = vmatpush2.bf16.msra.mxu0 0
      %2431 = vmatprep.subr.bf16.mxu0 0
      %2432 = vmatpush2.bf16.msra.mxu0 0
      %2433 = vmatprep.subr.bf16.mxu0 0
      %2434 = vmatpush2.bf16.msra.mxu0 0
      %2435 = vmatprep.subr.bf16.mxu0 0
      %2436 = vmatpush2.bf16.msra.mxu0 0
      %2437 = vmatprep.subr.bf16.mxu0 0
      %2438 = vmatpush2.bf16.msra.mxu0 0
      %2439 = vmatprep.subr.bf16.mxu0 0
      %2440 = vmatpush2.bf16.msra.mxu0 0
      %2441 = vmatprep.subr.bf16.mxu0 0
      %2442 = vmatpush2.bf16.msra.mxu0 0
      %2443 = vmatprep.mubr.bf16.mxu0 0
      %2444 = vmatmul.mubr.bf16.gmra.mxu0 %v2400
      %v2445 = vpop.f32.mrf.mxu0
      %v2446 = vadd.f32 0.0, %v2445
      %v2447 = vpop.f32.mrf.mxu0
      %v2448 = vpop.f32.mrf.mxu0
      %v2449 = vadd.f32 0.0, %v2448
      %v2450 = vpop.f32.mrf.mxu0
      %2451 = vmatprep.mubr.bf16.mxu0 0
      %2452 = vmatmul.mubr.bf16.gmra.mxu0 %v2403
      %v2453 = vpop.f32.mrf.mxu0
      %v2454 = vadd.f32 0.0, %v2453
      %v2455 = vpop.f32.mrf.mxu0
      %v2456 = vpop.f32.mrf.mxu0
      %v2457 = vadd.f32 0.0, %v2456
      %v2458 = vpop.f32.mrf.mxu0
      %2459 = vmatprep.mubr.bf16.mxu0 0
      %2460 = vmatmul.mubr.bf16.gmra.mxu0 %v2406
      %v2461 = vpop.f32.mrf.mxu0
      %v2462 = vadd.f32 0.0, %v2461
      %v2463 = vpop.f32.mrf.mxu0
      %v2464 = vpop.f32.mrf.mxu0
      %v2465 = vadd.f32 0.0, %v2464
      %v2466 = vpop.f32.mrf.mxu0
      %2467 = vmatprep.mubr.bf16.mxu0 0
      %2468 = vmatmul.mubr.bf16.gmra.mxu0 %v2409
      %v2469 = vpop.f32.mrf.mxu0
      %v2470 = vadd.f32 0.0, %v2469
      %v2471 = vpop.f32.mrf.mxu0
      %v2472 = vpop.f32.mrf.mxu0
      %v2473 = vadd.f32 0.0, %v2472
      %v2474 = vpop.f32.mrf.mxu0
      %2475 = vdwg.mxu0
      %2476 = vmatprep.subr.bf16.mxu0 0
      %2477 = vmatpush1.bf16.msra.mxu0 0
      %2478 = vmatprep.subr.bf16.mxu0 0
      %2479 = vmatpush1.bf16.msra.mxu0 0
      %2480 = vmatprep.subr.bf16.mxu0 0
      %2481 = vmatpush1.bf16.msra.mxu0 0
      %2482 = vmatprep.subr.bf16.mxu0 0
      %2483 = vmatpush1.bf16.msra.mxu0 0
      %2484 = vmatprep.subr.bf16.mxu0 0
      %2485 = vmatpush1.bf16.msra.mxu0 0
      %2486 = vmatprep.subr.bf16.mxu0 0
      %2487 = vmatpush1.bf16.msra.mxu0 0
      %2488 = vmatprep.subr.bf16.mxu0 0
      %2489 = vmatpush1.bf16.msra.mxu0 0
      %2490 = vmatprep.subr.bf16.mxu0 0
      %2491 = vmatpush1.bf16.msra.mxu0 %v2393
      %2492 = vmatprep.subr.bf16.mxu0 0
      %2493 = vmatpush2.bf16.msra.mxu0 0
      %2494 = vmatprep.subr.bf16.mxu0 0
      %2495 = vmatpush2.bf16.msra.mxu0 0
      %2496 = vmatprep.subr.bf16.mxu0 0
      %2497 = vmatpush2.bf16.msra.mxu0 0
      %2498 = vmatprep.subr.bf16.mxu0 0
      %2499 = vmatpush2.bf16.msra.mxu0 0
      %2500 = vmatprep.subr.bf16.mxu0 0
      %2501 = vmatpush2.bf16.msra.mxu0 0
      %2502 = vmatprep.subr.bf16.mxu0 0
      %2503 = vmatpush2.bf16.msra.mxu0 0
      %2504 = vmatprep.subr.bf16.mxu0 0
      %2505 = vmatpush2.bf16.msra.mxu0 0
      %2506 = vmatprep.subr.bf16.mxu0 0
      %2507 = vmatpush2.bf16.msra.mxu0 0
      %2508 = vmatprep.mubr.bf16.mxu0 0
      %2509 = vmatmul.mubr.bf16.gmra.mxu0 %v2400
      %v2510 = vpop.f32.mrf.mxu0
      %v2511 = vadd.f32 %v2446, %v2510
      %v2512 = vpop.f32.mrf.mxu0
      %v2513 = vpop.f32.mrf.mxu0
      %v2514 = vadd.f32 %v2449, %v2513
      %v2515 = vpop.f32.mrf.mxu0
      %2516 = vmatprep.mubr.bf16.mxu0 0
      %2517 = vmatmul.mubr.bf16.gmra.mxu0 %v2403
      %v2518 = vpop.f32.mrf.mxu0
      %v2519 = vadd.f32 %v2454, %v2518
      %v2520 = vpop.f32.mrf.mxu0
      %v2521 = vpop.f32.mrf.mxu0
      %v2522 = vadd.f32 %v2457, %v2521
      %v2523 = vpop.f32.mrf.mxu0
      %2524 = vmatprep.mubr.bf16.mxu0 0
      %2525 = vmatmul.mubr.bf16.gmra.mxu0 %v2406
      %v2526 = vpop.f32.mrf.mxu0
      %v2527 = vadd.f32 %v2462, %v2526
      %v2528 = vpop.f32.mrf.mxu0
      %v2529 = vpop.f32.mrf.mxu0
      %v2530 = vadd.f32 %v2465, %v2529
      %v2531 = vpop.f32.mrf.mxu0
      %2532 = vmatprep.mubr.bf16.mxu0 0
      %2533 = vmatmul.mubr.bf16.gmra.mxu0 %v2409
      %v2534 = vpop.f32.mrf.mxu0
      %v2535 = vadd.f32 %v2470, %v2534
      %v2536 = vpop.f32.mrf.mxu0
      %v2537 = vpop.f32.mrf.mxu0
      %v2538 = vadd.f32 %v2473, %v2537
      %v2539 = vpop.f32.mrf.mxu0
      %2540 = vdwg.mxu0
      %v2542 = vsel %vm738, %v2389, 0
      %v2545 = vsel %vm738, %v2390, 0
      %v2548 = vsel %vm738, %v2391, 0
      %v2551 = vsel %vm738, %v2392, 0
      %2553 = vmatprep.subr.bf16.mxu0 0
      %2554 = vmatpush1.bf16.msra.mxu0 0
      %2555 = vmatprep.subr.bf16.mxu0 0
      %2556 = vmatpush1.bf16.msra.mxu0 0
      %2557 = vmatprep.subr.bf16.mxu0 0
      %2558 = vmatpush1.bf16.msra.mxu0 0
      %2559 = vmatprep.subr.bf16.mxu0 0
      %2560 = vmatpush1.bf16.msra.mxu0 0
      %2561 = vmatprep.subr.bf16.mxu0 0
      %2562 = vmatpush1.bf16.msra.mxu0 0
      %2563 = vmatprep.subr.bf16.mxu0 0
      %2564 = vmatpush1.bf16.msra.mxu0 0
      %2565 = vmatprep.subr.bf16.mxu0 0
      %2566 = vmatpush1.bf16.msra.mxu0 0
      %2567 = vmatprep.subr.bf16.mxu0 0
      %2568 = vmatpush1.bf16.msra.mxu0 %v2393
      %2569 = vmatprep.subr.bf16.mxu0 0
      %2570 = vmatpush2.bf16.msra.mxu0 0
      %2571 = vmatprep.subr.bf16.mxu0 0
      %2572 = vmatpush2.bf16.msra.mxu0 0
      %2573 = vmatprep.subr.bf16.mxu0 0
      %2574 = vmatpush2.bf16.msra.mxu0 0
      %2575 = vmatprep.subr.bf16.mxu0 0
      %2576 = vmatpush2.bf16.msra.mxu0 0
      %2577 = vmatprep.subr.bf16.mxu0 0
      %2578 = vmatpush2.bf16.msra.mxu0 0
      %2579 = vmatprep.subr.bf16.mxu0 0
      %2580 = vmatpush2.bf16.msra.mxu0 0
      %2581 = vmatprep.subr.bf16.mxu0 0
      %2582 = vmatpush2.bf16.msra.mxu0 0
      %2583 = vmatprep.subr.bf16.mxu0 0
      %2584 = vmatpush2.bf16.msra.mxu0 0
      %2585 = vmatprep.mubr.bf16.mxu0 0
      %2586 = vmatmul.mubr.bf16.gmra.mxu0 %v2542
      %v2587 = vpop.f32.mrf.mxu0
      %v2588 = vadd.f32 0.0, %v2587
      %v2589 = vpop.f32.mrf.mxu0
      %v2590 = vpop.f32.mrf.mxu0
      %v2591 = vadd.f32 0.0, %v2590
      %v2592 = vpop.f32.mrf.mxu0
      %2593 = vmatprep.mubr.bf16.mxu0 0
      %2594 = vmatmul.mubr.bf16.gmra.mxu0 %v2545
      %v2595 = vpop.f32.mrf.mxu0
      %v2596 = vadd.f32 0.0, %v2595
      %v2597 = vpop.f32.mrf.mxu0
      %v2598 = vpop.f32.mrf.mxu0
      %v2599 = vadd.f32 0.0, %v2598
      %v2600 = vpop.f32.mrf.mxu0
      %2601 = vmatprep.mubr.bf16.mxu0 0
      %2602 = vmatmul.mubr.bf16.gmra.mxu0 %v2548
      %v2603 = vpop.f32.mrf.mxu0
      %v2604 = vadd.f32 0.0, %v2603
      %v2605 = vpop.f32.mrf.mxu0
      %v2606 = vpop.f32.mrf.mxu0
      %v2607 = vadd.f32 0.0, %v2606
      %v2608 = vpop.f32.mrf.mxu0
      %2609 = vmatprep.mubr.bf16.mxu0 0
      %2610 = vmatmul.mubr.bf16.gmra.mxu0 %v2551
      %v2611 = vpop.f32.mrf.mxu0
      %v2612 = vadd.f32 0.0, %v2611
      %v2613 = vpop.f32.mrf.mxu0
      %v2614 = vpop.f32.mrf.mxu0
      %v2615 = vadd.f32 0.0, %v2614
      %v2616 = vpop.f32.mrf.mxu0
      %2617 = vdwg.mxu0
      %v2618 = vadd.f32 %v2511, %v2588
      %v2619 = vadd.f32 %v2514, %v2591
      %v2620 = vadd.f32 %v2519, %v2596
      %v2621 = vadd.f32 %v2522, %v2599
      %v2622 = vadd.f32 %v2527, %v2604
      %v2623 = vadd.f32 %v2530, %v2607
      %v2624 = vadd.f32 %v2535, %v2612
      %v2625 = vadd.f32 %v2538, %v2615
      %v2626 = vpack.c.bf16 %v1165, %v1164
      %v2627 = vpack.c.bf16 %v1566, %v1565
      %v2628 = vpack.c.bf16 %v1967, %v1966
      %v2629 = vpack.c.bf16 %v2368, %v2367
      %v2630 = vunpack.c.l.bf16 %v2626
      %v2631 = vunpack.c.h.bf16 %v2626
      %v2632 = vunpack.c.l.bf16 %v2627
      %v2633 = vunpack.c.h.bf16 %v2627
      %v2634 = vunpack.c.l.bf16 %v2628
      %v2635 = vunpack.c.h.bf16 %v2628
      %v2636 = vunpack.c.l.bf16 %v2629
      %v2637 = vunpack.c.h.bf16 %v2629
      %v2638 = vsub.f32 %v1164, %v2630
      %v2639 = vsub.f32 %v1165, %v2631
      %v2640 = vsub.f32 %v1565, %v2632
      %v2641 = vsub.f32 %v1566, %v2633
      %v2642 = vsub.f32 %v1966, %v2634
      %v2643 = vsub.f32 %v1967, %v2635
      %v2644 = vsub.f32 %v2367, %v2636
      %v2645 = vsub.f32 %v2368, %v2637
      %v2646 = vpack.c.bf16 %v2639, %v2638
      %v2647 = vpack.c.bf16 %v2641, %v2640
      %v2648 = vpack.c.bf16 %v2643, %v2642
      %v2649 = vpack.c.bf16 %v2645, %v2644
      %v2650 = vpack.c.bf16 %v657, %v656
      %v2651 = vunpack.c.l.bf16 %v2650
      %v2652 = vunpack.c.h.bf16 %v2650
      %v2653 = vsub.f32 %v656, %v2651
      %v2654 = vsub.f32 %v657, %v2652
      %v2655 = vpack.c.bf16 %v2654, %v2653
      %v2657 = vsel %vm738, %v2626, 0
      %v2660 = vsel %vm738, %v2627, 0
      %v2663 = vsel %vm738, %v2628, 0
      %v2666 = vsel %vm738, %v2629, 0
      %2668 = vmatprep.subr.bf16.mxu0 0
      %2669 = vmatpush1.bf16.msra.mxu0 0
      %2670 = vmatprep.subr.bf16.mxu0 0
      %2671 = vmatpush1.bf16.msra.mxu0 0
      %2672 = vmatprep.subr.bf16.mxu0 0
      %2673 = vmatpush1.bf16.msra.mxu0 0
      %2674 = vmatprep.subr.bf16.mxu0 0
      %2675 = vmatpush1.bf16.msra.mxu0 0
      %2676 = vmatprep.subr.bf16.mxu0 0
      %2677 = vmatpush1.bf16.msra.mxu0 0
      %2678 = vmatprep.subr.bf16.mxu0 0
      %2679 = vmatpush1.bf16.msra.mxu0 0
      %2680 = vmatprep.subr.bf16.mxu0 0
      %2681 = vmatpush1.bf16.msra.mxu0 0
      %2682 = vmatprep.subr.bf16.mxu0 0
      %2683 = vmatpush1.bf16.msra.mxu0 %v2655
      %2684 = vmatprep.subr.bf16.mxu0 0
      %2685 = vmatpush2.bf16.msra.mxu0 0
      %2686 = vmatprep.subr.bf16.mxu0 0
      %2687 = vmatpush2.bf16.msra.mxu0 0
      %2688 = vmatprep.subr.bf16.mxu0 0
      %2689 = vmatpush2.bf16.msra.mxu0 0
      %2690 = vmatprep.subr.bf16.mxu0 0
      %2691 = vmatpush2.bf16.msra.mxu0 0
      %2692 = vmatprep.subr.bf16.mxu0 0
      %2693 = vmatpush2.bf16.msra.mxu0 0
      %2694 = vmatprep.subr.bf16.mxu0 0
      %2695 = vmatpush2.bf16.msra.mxu0 0
      %2696 = vmatprep.subr.bf16.mxu0 0
      %2697 = vmatpush2.bf16.msra.mxu0 0
      %2698 = vmatprep.subr.bf16.mxu0 0
      %2699 = vmatpush2.bf16.msra.mxu0 0
      %2700 = vmatprep.mubr.bf16.mxu0 0
      %2701 = vmatmul.mubr.bf16.gmra.mxu0 %v2657
      %v2702 = vpop.f32.mrf.mxu0
      %v2703 = vadd.f32 0.0, %v2702
      %v2704 = vpop.f32.mrf.mxu0
      %v2705 = vpop.f32.mrf.mxu0
      %v2706 = vadd.f32 0.0, %v2705
      %v2707 = vpop.f32.mrf.mxu0
      %2708 = vmatprep.mubr.bf16.mxu0 0
      %2709 = vmatmul.mubr.bf16.gmra.mxu0 %v2660
      %v2710 = vpop.f32.mrf.mxu0
      %v2711 = vadd.f32 0.0, %v2710
      %v2712 = vpop.f32.mrf.mxu0
      %v2713 = vpop.f32.mrf.mxu0
      %v2714 = vadd.f32 0.0, %v2713
      %v2715 = vpop.f32.mrf.mxu0
      %2716 = vmatprep.mubr.bf16.mxu0 0
      %2717 = vmatmul.mubr.bf16.gmra.mxu0 %v2663
      %v2718 = vpop.f32.mrf.mxu0
      %v2719 = vadd.f32 0.0, %v2718
      %v2720 = vpop.f32.mrf.mxu0
      %v2721 = vpop.f32.mrf.mxu0
      %v2722 = vadd.f32 0.0, %v2721
      %v2723 = vpop.f32.mrf.mxu0
      %2724 = vmatprep.mubr.bf16.mxu0 0
      %2725 = vmatmul.mubr.bf16.gmra.mxu0 %v2666
      %v2726 = vpop.f32.mrf.mxu0
      %v2727 = vadd.f32 0.0, %v2726
      %v2728 = vpop.f32.mrf.mxu0
      %v2729 = vpop.f32.mrf.mxu0
      %v2730 = vadd.f32 0.0, %v2729
      %v2731 = vpop.f32.mrf.mxu0
      %2732 = vdwg.mxu0
      %2733 = vmatprep.subr.bf16.mxu0 0
      %2734 = vmatpush1.bf16.msra.mxu0 0
      %2735 = vmatprep.subr.bf16.mxu0 0
      %2736 = vmatpush1.bf16.msra.mxu0 0
      %2737 = vmatprep.subr.bf16.mxu0 0
      %2738 = vmatpush1.bf16.msra.mxu0 0
      %2739 = vmatprep.subr.bf16.mxu0 0
      %2740 = vmatpush1.bf16.msra.mxu0 0
      %2741 = vmatprep.subr.bf16.mxu0 0
      %2742 = vmatpush1.bf16.msra.mxu0 0
      %2743 = vmatprep.subr.bf16.mxu0 0
      %2744 = vmatpush1.bf16.msra.mxu0 0
      %2745 = vmatprep.subr.bf16.mxu0 0
      %2746 = vmatpush1.bf16.msra.mxu0 0
      %2747 = vmatprep.subr.bf16.mxu0 0
      %2748 = vmatpush1.bf16.msra.mxu0 %v2650
      %2749 = vmatprep.subr.bf16.mxu0 0
      %2750 = vmatpush2.bf16.msra.mxu0 0
      %2751 = vmatprep.subr.bf16.mxu0 0
      %2752 = vmatpush2.bf16.msra.mxu0 0
      %2753 = vmatprep.subr.bf16.mxu0 0
      %2754 = vmatpush2.bf16.msra.mxu0 0
      %2755 = vmatprep.subr.bf16.mxu0 0
      %2756 = vmatpush2.bf16.msra.mxu0 0
      %2757 = vmatprep.subr.bf16.mxu0 0
      %2758 = vmatpush2.bf16.msra.mxu0 0
      %2759 = vmatprep.subr.bf16.mxu0 0
      %2760 = vmatpush2.bf16.msra.mxu0 0
      %2761 = vmatprep.subr.bf16.mxu0 0
      %2762 = vmatpush2.bf16.msra.mxu0 0
      %2763 = vmatprep.subr.bf16.mxu0 0
      %2764 = vmatpush2.bf16.msra.mxu0 0
      %2765 = vmatprep.mubr.bf16.mxu0 0
      %2766 = vmatmul.mubr.bf16.gmra.mxu0 %v2657
      %v2767 = vpop.f32.mrf.mxu0
      %v2768 = vadd.f32 %v2703, %v2767
      %v2769 = vpop.f32.mrf.mxu0
      %v2770 = vpop.f32.mrf.mxu0
      %v2771 = vadd.f32 %v2706, %v2770
      %v2772 = vpop.f32.mrf.mxu0
      %2773 = vmatprep.mubr.bf16.mxu0 0
      %2774 = vmatmul.mubr.bf16.gmra.mxu0 %v2660
      %v2775 = vpop.f32.mrf.mxu0
      %v2776 = vadd.f32 %v2711, %v2775
      %v2777 = vpop.f32.mrf.mxu0
      %v2778 = vpop.f32.mrf.mxu0
      %v2779 = vadd.f32 %v2714, %v2778
      %v2780 = vpop.f32.mrf.mxu0
      %2781 = vmatprep.mubr.bf16.mxu0 0
      %2782 = vmatmul.mubr.bf16.gmra.mxu0 %v2663
      %v2783 = vpop.f32.mrf.mxu0
      %v2784 = vadd.f32 %v2719, %v2783
      %v2785 = vpop.f32.mrf.mxu0
      %v2786 = vpop.f32.mrf.mxu0
      %v2787 = vadd.f32 %v2722, %v2786
      %v2788 = vpop.f32.mrf.mxu0
      %2789 = vmatprep.mubr.bf16.mxu0 0
      %2790 = vmatmul.mubr.bf16.gmra.mxu0 %v2666
      %v2791 = vpop.f32.mrf.mxu0
      %v2792 = vadd.f32 %v2727, %v2791
      %v2793 = vpop.f32.mrf.mxu0
      %v2794 = vpop.f32.mrf.mxu0
      %v2795 = vadd.f32 %v2730, %v2794
      %v2796 = vpop.f32.mrf.mxu0
      %2797 = vdwg.mxu0
      %v2799 = vsel %vm738, %v2646, 0
      %v2802 = vsel %vm738, %v2647, 0
      %v2805 = vsel %vm738, %v2648, 0
      %v2808 = vsel %vm738, %v2649, 0
      %2810 = vmatprep.subr.bf16.mxu0 0
      %2811 = vmatpush1.bf16.msra.mxu0 0
      %2812 = vmatprep.subr.bf16.mxu0 0
      %2813 = vmatpush1.bf16.msra.mxu0 0
      %2814 = vmatprep.subr.bf16.mxu0 0
      %2815 = vmatpush1.bf16.msra.mxu0 0
      %2816 = vmatprep.subr.bf16.mxu0 0
      %2817 = vmatpush1.bf16.msra.mxu0 0
      %2818 = vmatprep.subr.bf16.mxu0 0
      %2819 = vmatpush1.bf16.msra.mxu0 0
      %2820 = vmatprep.subr.bf16.mxu0 0
      %2821 = vmatpush1.bf16.msra.mxu0 0
      %2822 = vmatprep.subr.bf16.mxu0 0
      %2823 = vmatpush1.bf16.msra.mxu0 0
      %2824 = vmatprep.subr.bf16.mxu0 0
      %2825 = vmatpush1.bf16.msra.mxu0 %v2650
      %2826 = vmatprep.subr.bf16.mxu0 0
      %2827 = vmatpush2.bf16.msra.mxu0 0
      %2828 = vmatprep.subr.bf16.mxu0 0
      %2829 = vmatpush2.bf16.msra.mxu0 0
      %2830 = vmatprep.subr.bf16.mxu0 0
      %2831 = vmatpush2.bf16.msra.mxu0 0
      %2832 = vmatprep.subr.bf16.mxu0 0
      %2833 = vmatpush2.bf16.msra.mxu0 0
      %2834 = vmatprep.subr.bf16.mxu0 0
      %2835 = vmatpush2.bf16.msra.mxu0 0
      %2836 = vmatprep.subr.bf16.mxu0 0
      %2837 = vmatpush2.bf16.msra.mxu0 0
      %2838 = vmatprep.subr.bf16.mxu0 0
      %2839 = vmatpush2.bf16.msra.mxu0 0
      %2840 = vmatprep.subr.bf16.mxu0 0
      %2841 = vmatpush2.bf16.msra.mxu0 0
      %2842 = vmatprep.mubr.bf16.mxu0 0
      %2843 = vmatmul.mubr.bf16.gmra.mxu0 %v2799
      %v2844 = vpop.f32.mrf.mxu0
      %v2845 = vadd.f32 0.0, %v2844
      %v2846 = vpop.f32.mrf.mxu0
      %v2847 = vpop.f32.mrf.mxu0
      %v2848 = vadd.f32 0.0, %v2847
      %v2849 = vpop.f32.mrf.mxu0
      %2850 = vmatprep.mubr.bf16.mxu0 0
      %2851 = vmatmul.mubr.bf16.gmra.mxu0 %v2802
      %v2852 = vpop.f32.mrf.mxu0
      %v2853 = vadd.f32 0.0, %v2852
      %v2854 = vpop.f32.mrf.mxu0
      %v2855 = vpop.f32.mrf.mxu0
      %v2856 = vadd.f32 0.0, %v2855
      %v2857 = vpop.f32.mrf.mxu0
      %2858 = vmatprep.mubr.bf16.mxu0 0
      %2859 = vmatmul.mubr.bf16.gmra.mxu0 %v2805
      %v2860 = vpop.f32.mrf.mxu0
      %v2861 = vadd.f32 0.0, %v2860
      %v2862 = vpop.f32.mrf.mxu0
      %v2863 = vpop.f32.mrf.mxu0
      %v2864 = vadd.f32 0.0, %v2863
      %v2865 = vpop.f32.mrf.mxu0
      %2866 = vmatprep.mubr.bf16.mxu0 0
      %2867 = vmatmul.mubr.bf16.gmra.mxu0 %v2808
      %v2868 = vpop.f32.mrf.mxu0
      %v2869 = vadd.f32 0.0, %v2868
      %v2870 = vpop.f32.mrf.mxu0
      %v2871 = vpop.f32.mrf.mxu0
      %v2872 = vadd.f32 0.0, %v2871
      %v2873 = vpop.f32.mrf.mxu0
      %2874 = vdwg.mxu0
      %v2875 = vadd.f32 %v2768, %v2845
      %v2876 = vadd.f32 %v2771, %v2848
      %v2877 = vadd.f32 %v2776, %v2853
      %v2878 = vadd.f32 %v2779, %v2856
      %v2879 = vadd.f32 %v2784, %v2861
      %v2880 = vadd.f32 %v2787, %v2864
      %v2881 = vadd.f32 %v2792, %v2869
      %v2882 = vadd.f32 %v2795, %v2872
      %v2883 = vadd.f32 %v1160, %v1164
      %v2884 = vadd.f32 %v1161, %v1165
      %v2885 = vadd.f32 %v1561, %v1565
      %v2886 = vadd.f32 %v1562, %v1566
      %v2887 = vadd.f32 %v1962, %v1966
      %v2888 = vadd.f32 %v1963, %v1967
      %v2889 = vadd.f32 %v2363, %v2367
      %v2890 = vadd.f32 %v2364, %v2368
      %v2891 = vadd.f32 %v654, %v656
      %v2892 = vadd.f32 %v655, %v657
      %v2893 = vpack.c.bf16 %v2884, %v2883
      %v2894 = vpack.c.bf16 %v2886, %v2885
      %v2895 = vpack.c.bf16 %v2888, %v2887
      %v2896 = vpack.c.bf16 %v2890, %v2889
      %v2897 = vunpack.c.l.bf16 %v2893
      %v2898 = vunpack.c.h.bf16 %v2893
      %v2899 = vunpack.c.l.bf16 %v2894
      %v2900 = vunpack.c.h.bf16 %v2894
      %v2901 = vunpack.c.l.bf16 %v2895
      %v2902 = vunpack.c.h.bf16 %v2895
      %v2903 = vunpack.c.l.bf16 %v2896
      %v2904 = vunpack.c.h.bf16 %v2896
      %v2905 = vsub.f32 %v2883, %v2897
      %v2906 = vsub.f32 %v2884, %v2898
      %v2907 = vsub.f32 %v2885, %v2899
      %v2908 = vsub.f32 %v2886, %v2900
      %v2909 = vsub.f32 %v2887, %v2901
      %v2910 = vsub.f32 %v2888, %v2902
      %v2911 = vsub.f32 %v2889, %v2903
      %v2912 = vsub.f32 %v2890, %v2904
      %v2913 = vpack.c.bf16 %v2906, %v2905
      %v2914 = vpack.c.bf16 %v2908, %v2907
      %v2915 = vpack.c.bf16 %v2910, %v2909
      %v2916 = vpack.c.bf16 %v2912, %v2911
      %v2917 = vpack.c.bf16 %v2892, %v2891
      %v2918 = vunpack.c.l.bf16 %v2917
      %v2919 = vunpack.c.h.bf16 %v2917
      %v2920 = vsub.f32 %v2891, %v2918
      %v2921 = vsub.f32 %v2892, %v2919
      %v2922 = vpack.c.bf16 %v2921, %v2920
      %v2924 = vsel %vm738, %v2893, 0
      %v2927 = vsel %vm738, %v2894, 0
      %v2930 = vsel %vm738, %v2895, 0
      %v2933 = vsel %vm738, %v2896, 0
      %2935 = vmatprep.subr.bf16.mxu0 0
      %2936 = vmatpush1.bf16.msra.mxu0 0
      %2937 = vmatprep.subr.bf16.mxu0 0
      %2938 = vmatpush1.bf16.msra.mxu0 0
      %2939 = vmatprep.subr.bf16.mxu0 0
      %2940 = vmatpush1.bf16.msra.mxu0 0
      %2941 = vmatprep.subr.bf16.mxu0 0
      %2942 = vmatpush1.bf16.msra.mxu0 0
      %2943 = vmatprep.subr.bf16.mxu0 0
      %2944 = vmatpush1.bf16.msra.mxu0 0
      %2945 = vmatprep.subr.bf16.mxu0 0
      %2946 = vmatpush1.bf16.msra.mxu0 0
      %2947 = vmatprep.subr.bf16.mxu0 0
      %2948 = vmatpush1.bf16.msra.mxu0 0
      %2949 = vmatprep.subr.bf16.mxu0 0
      %2950 = vmatpush1.bf16.msra.mxu0 %v2922
      %2951 = vmatprep.subr.bf16.mxu0 0
      %2952 = vmatpush2.bf16.msra.mxu0 0
      %2953 = vmatprep.subr.bf16.mxu0 0
      %2954 = vmatpush2.bf16.msra.mxu0 0
      %2955 = vmatprep.subr.bf16.mxu0 0
      %2956 = vmatpush2.bf16.msra.mxu0 0
      %2957 = vmatprep.subr.bf16.mxu0 0
      %2958 = vmatpush2.bf16.msra.mxu0 0
      %2959 = vmatprep.subr.bf16.mxu0 0
      %2960 = vmatpush2.bf16.msra.mxu0 0
      %2961 = vmatprep.subr.bf16.mxu0 0
      %2962 = vmatpush2.bf16.msra.mxu0 0
      %2963 = vmatprep.subr.bf16.mxu0 0
      %2964 = vmatpush2.bf16.msra.mxu0 0
      %2965 = vmatprep.subr.bf16.mxu0 0
      %2966 = vmatpush2.bf16.msra.mxu0 0
      %2967 = vmatprep.mubr.bf16.mxu0 0
      %2968 = vmatmul.mubr.bf16.gmra.mxu0 %v2924
      %v2969 = vpop.f32.mrf.mxu0
      %v2970 = vadd.f32 0.0, %v2969
      %v2971 = vpop.f32.mrf.mxu0
      %v2972 = vpop.f32.mrf.mxu0
      %v2973 = vadd.f32 0.0, %v2972
      %v2974 = vpop.f32.mrf.mxu0
      %2975 = vmatprep.mubr.bf16.mxu0 0
      %2976 = vmatmul.mubr.bf16.gmra.mxu0 %v2927
      %v2977 = vpop.f32.mrf.mxu0
      %v2978 = vadd.f32 0.0, %v2977
      %v2979 = vpop.f32.mrf.mxu0
      %v2980 = vpop.f32.mrf.mxu0
      %v2981 = vadd.f32 0.0, %v2980
      %v2982 = vpop.f32.mrf.mxu0
      %2983 = vmatprep.mubr.bf16.mxu0 0
      %2984 = vmatmul.mubr.bf16.gmra.mxu0 %v2930
      %v2985 = vpop.f32.mrf.mxu0
      %v2986 = vadd.f32 0.0, %v2985
      %v2987 = vpop.f32.mrf.mxu0
      %v2988 = vpop.f32.mrf.mxu0
      %v2989 = vadd.f32 0.0, %v2988
      %v2990 = vpop.f32.mrf.mxu0
      %2991 = vmatprep.mubr.bf16.mxu0 0
      %2992 = vmatmul.mubr.bf16.gmra.mxu0 %v2933
      %v2993 = vpop.f32.mrf.mxu0
      %v2994 = vadd.f32 0.0, %v2993
      %v2995 = vpop.f32.mrf.mxu0
      %v2996 = vpop.f32.mrf.mxu0
      %v2997 = vadd.f32 0.0, %v2996
      %v2998 = vpop.f32.mrf.mxu0
      %2999 = vdwg.mxu0
      %3000 = vmatprep.subr.bf16.mxu0 0
      %3001 = vmatpush1.bf16.msra.mxu0 0
      %3002 = vmatprep.subr.bf16.mxu0 0
      %3003 = vmatpush1.bf16.msra.mxu0 0
      %3004 = vmatprep.subr.bf16.mxu0 0
      %3005 = vmatpush1.bf16.msra.mxu0 0
      %3006 = vmatprep.subr.bf16.mxu0 0
      %3007 = vmatpush1.bf16.msra.mxu0 0
      %3008 = vmatprep.subr.bf16.mxu0 0
      %3009 = vmatpush1.bf16.msra.mxu0 0
      %3010 = vmatprep.subr.bf16.mxu0 0
      %3011 = vmatpush1.bf16.msra.mxu0 0
      %3012 = vmatprep.subr.bf16.mxu0 0
      %3013 = vmatpush1.bf16.msra.mxu0 0
      %3014 = vmatprep.subr.bf16.mxu0 0
      %3015 = vmatpush1.bf16.msra.mxu0 %v2917
      %3016 = vmatprep.subr.bf16.mxu0 0
      %3017 = vmatpush2.bf16.msra.mxu0 0
      %3018 = vmatprep.subr.bf16.mxu0 0
      %3019 = vmatpush2.bf16.msra.mxu0 0
      %3020 = vmatprep.subr.bf16.mxu0 0
      %3021 = vmatpush2.bf16.msra.mxu0 0
      %3022 = vmatprep.subr.bf16.mxu0 0
      %3023 = vmatpush2.bf16.msra.mxu0 0
      %3024 = vmatprep.subr.bf16.mxu0 0
      %3025 = vmatpush2.bf16.msra.mxu0 0
      %3026 = vmatprep.subr.bf16.mxu0 0
      %3027 = vmatpush2.bf16.msra.mxu0 0
      %3028 = vmatprep.subr.bf16.mxu0 0
      %3029 = vmatpush2.bf16.msra.mxu0 0
      %3030 = vmatprep.subr.bf16.mxu0 0
      %3031 = vmatpush2.bf16.msra.mxu0 0
      %3032 = vmatprep.mubr.bf16.mxu0 0
      %3033 = vmatmul.mubr.bf16.gmra.mxu0 %v2924
      %v3034 = vpop.f32.mrf.mxu0
      %v3035 = vadd.f32 %v2970, %v3034
      %v3036 = vpop.f32.mrf.mxu0
      %v3037 = vpop.f32.mrf.mxu0
      %v3038 = vadd.f32 %v2973, %v3037
      %v3039 = vpop.f32.mrf.mxu0
      %3040 = vmatprep.mubr.bf16.mxu0 0
      %3041 = vmatmul.mubr.bf16.gmra.mxu0 %v2927
      %v3042 = vpop.f32.mrf.mxu0
      %v3043 = vadd.f32 %v2978, %v3042
      %v3044 = vpop.f32.mrf.mxu0
      %v3045 = vpop.f32.mrf.mxu0
      %v3046 = vadd.f32 %v2981, %v3045
      %v3047 = vpop.f32.mrf.mxu0
      %3048 = vmatprep.mubr.bf16.mxu0 0
      %3049 = vmatmul.mubr.bf16.gmra.mxu0 %v2930
      %v3050 = vpop.f32.mrf.mxu0
      %v3051 = vadd.f32 %v2986, %v3050
      %v3052 = vpop.f32.mrf.mxu0
      %v3053 = vpop.f32.mrf.mxu0
      %v3054 = vadd.f32 %v2989, %v3053
      %v3055 = vpop.f32.mrf.mxu0
      %3056 = vmatprep.mubr.bf16.mxu0 0
      %3057 = vmatmul.mubr.bf16.gmra.mxu0 %v2933
      %v3058 = vpop.f32.mrf.mxu0
      %v3059 = vadd.f32 %v2994, %v3058
      %v3060 = vpop.f32.mrf.mxu0
      %v3061 = vpop.f32.mrf.mxu0
      %v3062 = vadd.f32 %v2997, %v3061
      %v3063 = vpop.f32.mrf.mxu0
      %3064 = vdwg.mxu0
      %v3066 = vsel %vm738, %v2913, 0
      %v3069 = vsel %vm738, %v2914, 0
      %v3072 = vsel %vm738, %v2915, 0
      %v3075 = vsel %vm738, %v2916, 0
      %3077 = vmatprep.subr.bf16.mxu0 0
      %3078 = vmatpush1.bf16.msra.mxu0 0
      %3079 = vmatprep.subr.bf16.mxu0 0
      %3080 = vmatpush1.bf16.msra.mxu0 0
      %3081 = vmatprep.subr.bf16.mxu0 0
      %3082 = vmatpush1.bf16.msra.mxu0 0
      %3083 = vmatprep.subr.bf16.mxu0 0
      %3084 = vmatpush1.bf16.msra.mxu0 0
      %3085 = vmatprep.subr.bf16.mxu0 0
      %3086 = vmatpush1.bf16.msra.mxu0 0
      %3087 = vmatprep.subr.bf16.mxu0 0
      %3088 = vmatpush1.bf16.msra.mxu0 0
      %3089 = vmatprep.subr.bf16.mxu0 0
      %3090 = vmatpush1.bf16.msra.mxu0 0
      %3091 = vmatprep.subr.bf16.mxu0 0
      %3092 = vmatpush1.bf16.msra.mxu0 %v2917
      %3093 = vmatprep.subr.bf16.mxu0 0
      %3094 = vmatpush2.bf16.msra.mxu0 0
      %3095 = vmatprep.subr.bf16.mxu0 0
      %3096 = vmatpush2.bf16.msra.mxu0 0
      %3097 = vmatprep.subr.bf16.mxu0 0
      %3098 = vmatpush2.bf16.msra.mxu0 0
      %3099 = vmatprep.subr.bf16.mxu0 0
      %3100 = vmatpush2.bf16.msra.mxu0 0
      %3101 = vmatprep.subr.bf16.mxu0 0
      %3102 = vmatpush2.bf16.msra.mxu0 0
      %3103 = vmatprep.subr.bf16.mxu0 0
      %3104 = vmatpush2.bf16.msra.mxu0 0
      %3105 = vmatprep.subr.bf16.mxu0 0
      %3106 = vmatpush2.bf16.msra.mxu0 0
      %3107 = vmatprep.subr.bf16.mxu0 0
      %3108 = vmatpush2.bf16.msra.mxu0 0
      %3109 = vmatprep.mubr.bf16.mxu0 0
      %3110 = vmatmul.mubr.bf16.gmra.mxu0 %v3066
      %v3111 = vpop.f32.mrf.mxu0
      %v3112 = vadd.f32 0.0, %v3111
      %v3113 = vpop.f32.mrf.mxu0
      %v3114 = vpop.f32.mrf.mxu0
      %v3115 = vadd.f32 0.0, %v3114
      %v3116 = vpop.f32.mrf.mxu0
      %3117 = vmatprep.mubr.bf16.mxu0 0
      %3118 = vmatmul.mubr.bf16.gmra.mxu0 %v3069
      %v3119 = vpop.f32.mrf.mxu0
      %v3120 = vadd.f32 0.0, %v3119
      %v3121 = vpop.f32.mrf.mxu0
      %v3122 = vpop.f32.mrf.mxu0
      %v3123 = vadd.f32 0.0, %v3122
      %v3124 = vpop.f32.mrf.mxu0
      %3125 = vmatprep.mubr.bf16.mxu0 0
      %3126 = vmatmul.mubr.bf16.gmra.mxu0 %v3072
      %v3127 = vpop.f32.mrf.mxu0
      %v3128 = vadd.f32 0.0, %v3127
      %v3129 = vpop.f32.mrf.mxu0
      %v3130 = vpop.f32.mrf.mxu0
      %v3131 = vadd.f32 0.0, %v3130
      %v3132 = vpop.f32.mrf.mxu0
      %3133 = vmatprep.mubr.bf16.mxu0 0
      %3134 = vmatmul.mubr.bf16.gmra.mxu0 %v3075
      %v3135 = vpop.f32.mrf.mxu0
      %v3136 = vadd.f32 0.0, %v3135
      %v3137 = vpop.f32.mrf.mxu0
      %v3138 = vpop.f32.mrf.mxu0
      %v3139 = vadd.f32 0.0, %v3138
      %v3140 = vpop.f32.mrf.mxu0
      %3141 = vdwg.mxu0
      %v3142 = vadd.f32 %v3035, %v3112
      %v3143 = vadd.f32 %v3038, %v3115
      %v3144 = vadd.f32 %v3043, %v3120
      %v3145 = vadd.f32 %v3046, %v3123
      %v3146 = vadd.f32 %v3051, %v3128
      %v3147 = vadd.f32 %v3054, %v3131
      %v3148 = vadd.f32 %v3059, %v3136
      %v3149 = vadd.f32 %v3062, %v3139
      %v3150 = vsub.f32 %v2618, %v2875
      %v3151 = vsub.f32 %v2619, %v2876
      %v3152 = vsub.f32 %v2620, %v2877
      %v3153 = vsub.f32 %v2621, %v2878
      %v3154 = vsub.f32 %v2622, %v2879
      %v3155 = vsub.f32 %v2623, %v2880
      %v3156 = vsub.f32 %v2624, %v2881
      %v3157 = vsub.f32 %v2625, %v2882
      %v3158 = vsub.f32 %v3142, %v2618
      %v3159 = vsub.f32 %v3143, %v2619
      %v3160 = vsub.f32 %v3144, %v2620
      %v3161 = vsub.f32 %v3145, %v2621
      %v3162 = vsub.f32 %v3146, %v2622
      %v3163 = vsub.f32 %v3147, %v2623
      %v3164 = vsub.f32 %v3148, %v2624
      %v3165 = vsub.f32 %v3149, %v2625
      %v3166 = vsub.f32 %v3158, %v2875
      %v3167 = vsub.f32 %v3159, %v2876
      %v3168 = vsub.f32 %v3160, %v2877
      %v3169 = vsub.f32 %v3161, %v2878
      %v3170 = vsub.f32 %v3162, %v2879
      %v3171 = vsub.f32 %v3163, %v2880
      %v3172 = vsub.f32 %v3164, %v2881
      %v3173 = vsub.f32 %v3165, %v2882
      %v3174 = vld [vmem:[%s602] sm:$0xf]
      %v3175 = vld [vmem:[%s602 + $0x4] sm:$0xf]
      %v3176 = vld [vmem:[%s602 + $0x8] sm:$0xf]
      %v3177 = vld [vmem:[%s602 + $0xc] sm:$0xf]
      %v3178 = vld [vmem:[%s602 + $0x10] sm:$0xf]
      %v3179 = vld [vmem:[%s602 + $0x14] sm:$0xf]
      %v3180 = vld [vmem:[%s602 + $0x18] sm:$0xf]
      %v3181 = vld [vmem:[%s602 + $0x1c] sm:$0xf]
      %v3182 = vunpack.c.l.bf16 %v3174
      %v3183 = vunpack.c.l.bf16 %v3175
      %v3184 = vunpack.c.l.bf16 %v3176
      %v3185 = vunpack.c.l.bf16 %v3177
      %v3186 = vunpack.c.l.bf16 %v3178
      %v3187 = vunpack.c.l.bf16 %v3179
      %v3188 = vunpack.c.l.bf16 %v3180
      %v3189 = vunpack.c.l.bf16 %v3181
      %v3190 = vld [vmem:[%s584] sm:$0xff]
      %v3191 = vld [vmem:[%s584 + $0x8] sm:$0xff]
      %v3192 = vld [vmem:[%s584 + $0x10] sm:$0xff]
      %v3193 = vld [vmem:[%s584 + $0x18] sm:$0xff]
      %v3194 = vld [vmem:[%s584 + $0x20] sm:$0xff]
      %v3195 = vld [vmem:[%s584 + $0x28] sm:$0xff]
      %v3196 = vld [vmem:[%s584 + $0x30] sm:$0xff]
      %v3197 = vld [vmem:[%s584 + $0x38] sm:$0xff]
      %v3198 = vld [vmem:[%s593] sm:$0xff]
      %v3199 = vld [vmem:[%s593 + $0x8] sm:$0xff]
      %v3200 = vld [vmem:[%s593 + $0x10] sm:$0xff]
      %v3201 = vld [vmem:[%s593 + $0x18] sm:$0xff]
      %v3202 = vld [vmem:[%s593 + $0x20] sm:$0xff]
      %v3203 = vld [vmem:[%s593 + $0x28] sm:$0xff]
      %v3204 = vld [vmem:[%s593 + $0x30] sm:$0xff]
      %v3205 = vld [vmem:[%s593 + $0x38] sm:$0xff]
      %v3206 = vadd.f32 %v3190, %v3150
      %v3207 = vadd.f32 %v3191, %v3151
      %v3208 = vadd.f32 %v3192, %v3152
      %v3209 = vadd.f32 %v3193, %v3153
      %v3210 = vadd.f32 %v3194, %v3154
      %v3211 = vadd.f32 %v3195, %v3155
      %v3212 = vadd.f32 %v3196, %v3156
      %v3213 = vadd.f32 %v3197, %v3157
      %v3214 = vmul.f32 %v3206, 0.5
      %v3215 = vmul.f32 %v3207, 0.5
      %v3216 = vmul.f32 %v3208, 0.5
      %v3217 = vmul.f32 %v3209, 0.5
      %v3218 = vmul.f32 %v3210, 0.5
      %v3219 = vmul.f32 %v3211, 0.5
      %v3220 = vmul.f32 %v3212, 0.5
      %v3221 = vmul.f32 %v3213, 0.5
      %v3222 = vsub.f32 %v3214, %v3150
      %v3223 = vsub.f32 %v3215, %v3151
      %v3224 = vsub.f32 %v3216, %v3152
      %v3225 = vsub.f32 %v3217, %v3153
      %v3226 = vsub.f32 %v3218, %v3154
      %v3227 = vsub.f32 %v3219, %v3155
      %v3228 = vsub.f32 %v3220, %v3156
      %v3229 = vsub.f32 %v3221, %v3157
      %v3230 = vmul.f32 %v3182, %v3222
      %v3231 = vmul.f32 %v3183, %v3223
      %v3232 = vmul.f32 %v3184, %v3224
      %v3233 = vmul.f32 %v3185, %v3225
      %v3234 = vmul.f32 %v3186, %v3226
      %v3235 = vmul.f32 %v3187, %v3227
      %v3236 = vmul.f32 %v3188, %v3228
      %v3237 = vmul.f32 %v3189, %v3229
      %v3238 = vadd.f32 %v3150, %v3230
      %v3239 = vadd.f32 %v3151, %v3231
      %v3240 = vadd.f32 %v3152, %v3232
      %v3241 = vadd.f32 %v3153, %v3233
      %v3242 = vadd.f32 %v3154, %v3234
      %v3243 = vadd.f32 %v3155, %v3235
      %v3244 = vadd.f32 %v3156, %v3236
      %v3245 = vadd.f32 %v3157, %v3237
      %v3246 = vadd.f32 %v3198, %v3166
      %v3247 = vadd.f32 %v3199, %v3167
      %v3248 = vadd.f32 %v3200, %v3168
      %v3249 = vadd.f32 %v3201, %v3169
      %v3250 = vadd.f32 %v3202, %v3170
      %v3251 = vadd.f32 %v3203, %v3171
      %v3252 = vadd.f32 %v3204, %v3172
      %v3253 = vadd.f32 %v3205, %v3173
      %v3254 = vmul.f32 %v3246, 0.5
      %v3255 = vmul.f32 %v3247, 0.5
      %v3256 = vmul.f32 %v3248, 0.5
      %v3257 = vmul.f32 %v3249, 0.5
      %v3258 = vmul.f32 %v3250, 0.5
      %v3259 = vmul.f32 %v3251, 0.5
      %v3260 = vmul.f32 %v3252, 0.5
      %v3261 = vmul.f32 %v3253, 0.5
      %v3262 = vsub.f32 %v3254, %v3166
      %v3263 = vsub.f32 %v3255, %v3167
      %v3264 = vsub.f32 %v3256, %v3168
      %v3265 = vsub.f32 %v3257, %v3169
      %v3266 = vsub.f32 %v3258, %v3170
      %v3267 = vsub.f32 %v3259, %v3171
      %v3268 = vsub.f32 %v3260, %v3172
      %v3269 = vsub.f32 %v3261, %v3173
      %v3270 = vmul.f32 %v3182, %v3262
      %v3271 = vmul.f32 %v3183, %v3263
      %v3272 = vmul.f32 %v3184, %v3264
      %v3273 = vmul.f32 %v3185, %v3265
      %v3274 = vmul.f32 %v3186, %v3266
      %v3275 = vmul.f32 %v3187, %v3267
      %v3276 = vmul.f32 %v3188, %v3268
      %v3277 = vmul.f32 %v3189, %v3269
      %v3278 = vadd.f32 %v3166, %v3270
      %v3279 = vadd.f32 %v3167, %v3271
      %v3280 = vadd.f32 %v3168, %v3272
      %v3281 = vadd.f32 %v3169, %v3273
      %v3282 = vadd.f32 %v3170, %v3274
      %v3283 = vadd.f32 %v3171, %v3275
      %v3284 = vadd.f32 %v3172, %v3276
      %v3285 = vadd.f32 %v3173, %v3277
      %v3286 = vpack.c.bf16 %v3239, %v3238
      %v3287 = vpack.c.bf16 %v3241, %v3240
      %v3288 = vpack.c.bf16 %v3243, %v3242
      %v3289 = vpack.c.bf16 %v3245, %v3244
      %v3290 = vunpack.c.l.bf16 %v3286
      %v3291 = vunpack.c.h.bf16 %v3286
      %v3292 = vunpack.c.l.bf16 %v3287
      %v3293 = vunpack.c.h.bf16 %v3287
      %v3294 = vunpack.c.l.bf16 %v3288
      %v3295 = vunpack.c.h.bf16 %v3288
      %v3296 = vunpack.c.l.bf16 %v3289
      %v3297 = vunpack.c.h.bf16 %v3289
      %v3298 = vsub.f32 %v3238, %v3290
      %v3299 = vsub.f32 %v3239, %v3291
      %v3300 = vsub.f32 %v3240, %v3292
      %v3301 = vsub.f32 %v3241, %v3293
      %v3302 = vsub.f32 %v3242, %v3294
      %v3303 = vsub.f32 %v3243, %v3295
      %v3304 = vsub.f32 %v3244, %v3296
      %v3305 = vsub.f32 %v3245, %v3297
      %v3306 = vpack.c.bf16 %v3299, %v3298
      %v3307 = vpack.c.bf16 %v3301, %v3300
      %v3308 = vpack.c.bf16 %v3303, %v3302
      %v3309 = vpack.c.bf16 %v3305, %v3304
      %v3311 = vsel %vm738, %v3286, 0
      %v3314 = vsel %vm738, %v3287, 0
      %v3317 = vsel %vm738, %v3288, 0
      %v3320 = vsel %vm738, %v3289, 0
      %3322 = vmatprep.subr.bf16.mxu0 0
      %3323 = vmatpush1.bf16.msra.mxu0 0
      %3324 = vmatprep.subr.bf16.mxu0 0
      %3325 = vmatpush1.bf16.msra.mxu0 0
      %3326 = vmatprep.subr.bf16.mxu0 0
      %3327 = vmatpush1.bf16.msra.mxu0 0
      %3328 = vmatprep.subr.bf16.mxu0 0
      %3329 = vmatpush1.bf16.msra.mxu0 0
      %3330 = vmatprep.subr.bf16.mxu0 0
      %3331 = vmatpush1.bf16.msra.mxu0 0
      %3332 = vmatprep.subr.bf16.mxu0 0
      %3333 = vmatpush1.bf16.msra.mxu0 0
      %3334 = vmatprep.subr.bf16.mxu0 0
      %3335 = vmatpush1.bf16.msra.mxu0 0
      %3336 = vmatprep.subr.bf16.mxu0 0
      %3337 = vmatpush1.bf16.msra.mxu0 %v2398
      %3338 = vmatprep.subr.bf16.mxu0 0
      %3339 = vmatpush2.bf16.msra.mxu0 0
      %3340 = vmatprep.subr.bf16.mxu0 0
      %3341 = vmatpush2.bf16.msra.mxu0 0
      %3342 = vmatprep.subr.bf16.mxu0 0
      %3343 = vmatpush2.bf16.msra.mxu0 0
      %3344 = vmatprep.subr.bf16.mxu0 0
      %3345 = vmatpush2.bf16.msra.mxu0 0
      %3346 = vmatprep.subr.bf16.mxu0 0
      %3347 = vmatpush2.bf16.msra.mxu0 0
      %3348 = vmatprep.subr.bf16.mxu0 0
      %3349 = vmatpush2.bf16.msra.mxu0 0
      %3350 = vmatprep.subr.bf16.mxu0 0
      %3351 = vmatpush2.bf16.msra.mxu0 0
      %3352 = vmatprep.subr.bf16.mxu0 0
      %3353 = vmatpush2.bf16.msra.mxu0 0
      %3354 = vmatprep.mubr.bf16.mxu0 0
      %3355 = vmatmul.mubr.bf16.gmra.mxu0 %v3311
      %v3356 = vpop.f32.mrf.mxu0
      %v3357 = vadd.f32 0.0, %v3356
      %v3358 = vpop.f32.mrf.mxu0
      %v3359 = vpop.f32.mrf.mxu0
      %v3360 = vadd.f32 0.0, %v3359
      %v3361 = vpop.f32.mrf.mxu0
      %3362 = vmatprep.mubr.bf16.mxu0 0
      %3363 = vmatmul.mubr.bf16.gmra.mxu0 %v3314
      %v3364 = vpop.f32.mrf.mxu0
      %v3365 = vadd.f32 0.0, %v3364
      %v3366 = vpop.f32.mrf.mxu0
      %v3367 = vpop.f32.mrf.mxu0
      %v3368 = vadd.f32 0.0, %v3367
      %v3369 = vpop.f32.mrf.mxu0
      %3370 = vmatprep.mubr.bf16.mxu0 0
      %3371 = vmatmul.mubr.bf16.gmra.mxu0 %v3317
      %v3372 = vpop.f32.mrf.mxu0
      %v3373 = vadd.f32 0.0, %v3372
      %v3374 = vpop.f32.mrf.mxu0
      %v3375 = vpop.f32.mrf.mxu0
      %v3376 = vadd.f32 0.0, %v3375
      %v3377 = vpop.f32.mrf.mxu0
      %3378 = vmatprep.mubr.bf16.mxu0 0
      %3379 = vmatmul.mubr.bf16.gmra.mxu0 %v3320
      %v3380 = vpop.f32.mrf.mxu0
      %v3381 = vadd.f32 0.0, %v3380
      %v3382 = vpop.f32.mrf.mxu0
      %v3383 = vpop.f32.mrf.mxu0
      %v3384 = vadd.f32 0.0, %v3383
      %v3385 = vpop.f32.mrf.mxu0
      %3386 = vdwg.mxu0
      %3387 = vmatprep.subr.bf16.mxu0 0
      %3388 = vmatpush1.bf16.msra.mxu0 0
      %3389 = vmatprep.subr.bf16.mxu0 0
      %3390 = vmatpush1.bf16.msra.mxu0 0
      %3391 = vmatprep.subr.bf16.mxu0 0
      %3392 = vmatpush1.bf16.msra.mxu0 0
      %3393 = vmatprep.subr.bf16.mxu0 0
      %3394 = vmatpush1.bf16.msra.mxu0 0
      %3395 = vmatprep.subr.bf16.mxu0 0
      %3396 = vmatpush1.bf16.msra.mxu0 0
      %3397 = vmatprep.subr.bf16.mxu0 0
      %3398 = vmatpush1.bf16.msra.mxu0 0
      %3399 = vmatprep.subr.bf16.mxu0 0
      %3400 = vmatpush1.bf16.msra.mxu0 0
      %3401 = vmatprep.subr.bf16.mxu0 0
      %3402 = vmatpush1.bf16.msra.mxu0 %v2393
      %3403 = vmatprep.subr.bf16.mxu0 0
      %3404 = vmatpush2.bf16.msra.mxu0 0
      %3405 = vmatprep.subr.bf16.mxu0 0
      %3406 = vmatpush2.bf16.msra.mxu0 0
      %3407 = vmatprep.subr.bf16.mxu0 0
      %3408 = vmatpush2.bf16.msra.mxu0 0
      %3409 = vmatprep.subr.bf16.mxu0 0
      %3410 = vmatpush2.bf16.msra.mxu0 0
      %3411 = vmatprep.subr.bf16.mxu0 0
      %3412 = vmatpush2.bf16.msra.mxu0 0
      %3413 = vmatprep.subr.bf16.mxu0 0
      %3414 = vmatpush2.bf16.msra.mxu0 0
      %3415 = vmatprep.subr.bf16.mxu0 0
      %3416 = vmatpush2.bf16.msra.mxu0 0
      %3417 = vmatprep.subr.bf16.mxu0 0
      %3418 = vmatpush2.bf16.msra.mxu0 0
      %3419 = vmatprep.mubr.bf16.mxu0 0
      %3420 = vmatmul.mubr.bf16.gmra.mxu0 %v3311
      %v3421 = vpop.f32.mrf.mxu0
      %v3422 = vadd.f32 %v3357, %v3421
      %v3423 = vpop.f32.mrf.mxu0
      %v3424 = vpop.f32.mrf.mxu0
      %v3425 = vadd.f32 %v3360, %v3424
      %v3426 = vpop.f32.mrf.mxu0
      %3427 = vmatprep.mubr.bf16.mxu0 0
      %3428 = vmatmul.mubr.bf16.gmra.mxu0 %v3314
      %v3429 = vpop.f32.mrf.mxu0
      %v3430 = vadd.f32 %v3365, %v3429
      %v3431 = vpop.f32.mrf.mxu0
      %v3432 = vpop.f32.mrf.mxu0
      %v3433 = vadd.f32 %v3368, %v3432
      %v3434 = vpop.f32.mrf.mxu0
      %3435 = vmatprep.mubr.bf16.mxu0 0
      %3436 = vmatmul.mubr.bf16.gmra.mxu0 %v3317
      %v3437 = vpop.f32.mrf.mxu0
      %v3438 = vadd.f32 %v3373, %v3437
      %v3439 = vpop.f32.mrf.mxu0
      %v3440 = vpop.f32.mrf.mxu0
      %v3441 = vadd.f32 %v3376, %v3440
      %v3442 = vpop.f32.mrf.mxu0
      %3443 = vmatprep.mubr.bf16.mxu0 0
      %3444 = vmatmul.mubr.bf16.gmra.mxu0 %v3320
      %v3445 = vpop.f32.mrf.mxu0
      %v3446 = vadd.f32 %v3381, %v3445
      %v3447 = vpop.f32.mrf.mxu0
      %v3448 = vpop.f32.mrf.mxu0
      %v3449 = vadd.f32 %v3384, %v3448
      %v3450 = vpop.f32.mrf.mxu0
      %3451 = vdwg.mxu0
      %v3453 = vsel %vm738, %v3306, 0
      %v3456 = vsel %vm738, %v3307, 0
      %v3459 = vsel %vm738, %v3308, 0
      %v3462 = vsel %vm738, %v3309, 0
      %3464 = vmatprep.subr.bf16.mxu0 0
      %3465 = vmatpush1.bf16.msra.mxu0 0
      %3466 = vmatprep.subr.bf16.mxu0 0
      %3467 = vmatpush1.bf16.msra.mxu0 0
      %3468 = vmatprep.subr.bf16.mxu0 0
      %3469 = vmatpush1.bf16.msra.mxu0 0
      %3470 = vmatprep.subr.bf16.mxu0 0
      %3471 = vmatpush1.bf16.msra.mxu0 0
      %3472 = vmatprep.subr.bf16.mxu0 0
      %3473 = vmatpush1.bf16.msra.mxu0 0
      %3474 = vmatprep.subr.bf16.mxu0 0
      %3475 = vmatpush1.bf16.msra.mxu0 0
      %3476 = vmatprep.subr.bf16.mxu0 0
      %3477 = vmatpush1.bf16.msra.mxu0 0
      %3478 = vmatprep.subr.bf16.mxu0 0
      %3479 = vmatpush1.bf16.msra.mxu0 %v2393
      %3480 = vmatprep.subr.bf16.mxu0 0
      %3481 = vmatpush2.bf16.msra.mxu0 0
      %3482 = vmatprep.subr.bf16.mxu0 0
      %3483 = vmatpush2.bf16.msra.mxu0 0
      %3484 = vmatprep.subr.bf16.mxu0 0
      %3485 = vmatpush2.bf16.msra.mxu0 0
      %3486 = vmatprep.subr.bf16.mxu0 0
      %3487 = vmatpush2.bf16.msra.mxu0 0
      %3488 = vmatprep.subr.bf16.mxu0 0
      %3489 = vmatpush2.bf16.msra.mxu0 0
      %3490 = vmatprep.subr.bf16.mxu0 0
      %3491 = vmatpush2.bf16.msra.mxu0 0
      %3492 = vmatprep.subr.bf16.mxu0 0
      %3493 = vmatpush2.bf16.msra.mxu0 0
      %3494 = vmatprep.subr.bf16.mxu0 0
      %3495 = vmatpush2.bf16.msra.mxu0 0
      %3496 = vmatprep.mubr.bf16.mxu0 0
      %3497 = vmatmul.mubr.bf16.gmra.mxu0 %v3453
      %v3498 = vpop.f32.mrf.mxu0
      %v3499 = vadd.f32 0.0, %v3498
      %v3500 = vpop.f32.mrf.mxu0
      %v3501 = vpop.f32.mrf.mxu0
      %v3502 = vadd.f32 0.0, %v3501
      %v3503 = vpop.f32.mrf.mxu0
      %3504 = vmatprep.mubr.bf16.mxu0 0
      %3505 = vmatmul.mubr.bf16.gmra.mxu0 %v3456
      %v3506 = vpop.f32.mrf.mxu0
      %v3507 = vadd.f32 0.0, %v3506
      %v3508 = vpop.f32.mrf.mxu0
      %v3509 = vpop.f32.mrf.mxu0
      %v3510 = vadd.f32 0.0, %v3509
      %v3511 = vpop.f32.mrf.mxu0
      %3512 = vmatprep.mubr.bf16.mxu0 0
      %3513 = vmatmul.mubr.bf16.gmra.mxu0 %v3459
      %v3514 = vpop.f32.mrf.mxu0
      %v3515 = vadd.f32 0.0, %v3514
      %v3516 = vpop.f32.mrf.mxu0
      %v3517 = vpop.f32.mrf.mxu0
      %v3518 = vadd.f32 0.0, %v3517
      %v3519 = vpop.f32.mrf.mxu0
      %3520 = vmatprep.mubr.bf16.mxu0 0
      %3521 = vmatmul.mubr.bf16.gmra.mxu0 %v3462
      %v3522 = vpop.f32.mrf.mxu0
      %v3523 = vadd.f32 0.0, %v3522
      %v3524 = vpop.f32.mrf.mxu0
      %v3525 = vpop.f32.mrf.mxu0
      %v3526 = vadd.f32 0.0, %v3525
      %v3527 = vpop.f32.mrf.mxu0
      %3528 = vdwg.mxu0
      %v3529 = vadd.f32 %v3422, %v3499
      %v3530 = vadd.f32 %v3425, %v3502
      %v3531 = vadd.f32 %v3430, %v3507
      %v3532 = vadd.f32 %v3433, %v3510
      %v3533 = vadd.f32 %v3438, %v3515
      %v3534 = vadd.f32 %v3441, %v3518
      %v3535 = vadd.f32 %v3446, %v3523
      %v3536 = vadd.f32 %v3449, %v3526
      %v3537 = vpack.c.bf16 %v3279, %v3278
      %v3538 = vpack.c.bf16 %v3281, %v3280
      %v3539 = vpack.c.bf16 %v3283, %v3282
      %v3540 = vpack.c.bf16 %v3285, %v3284
      %v3541 = vunpack.c.l.bf16 %v3537
      %v3542 = vunpack.c.h.bf16 %v3537
      %v3543 = vunpack.c.l.bf16 %v3538
      %v3544 = vunpack.c.h.bf16 %v3538
      %v3545 = vunpack.c.l.bf16 %v3539
      %v3546 = vunpack.c.h.bf16 %v3539
      %v3547 = vunpack.c.l.bf16 %v3540
      %v3548 = vunpack.c.h.bf16 %v3540
      %v3549 = vsub.f32 %v3278, %v3541
      %v3550 = vsub.f32 %v3279, %v3542
      %v3551 = vsub.f32 %v3280, %v3543
      %v3552 = vsub.f32 %v3281, %v3544
      %v3553 = vsub.f32 %v3282, %v3545
      %v3554 = vsub.f32 %v3283, %v3546
      %v3555 = vsub.f32 %v3284, %v3547
      %v3556 = vsub.f32 %v3285, %v3548
      %v3557 = vpack.c.bf16 %v3550, %v3549
      %v3558 = vpack.c.bf16 %v3552, %v3551
      %v3559 = vpack.c.bf16 %v3554, %v3553
      %v3560 = vpack.c.bf16 %v3556, %v3555
      %v3562 = vsel %vm738, %v3537, 0
      %v3565 = vsel %vm738, %v3538, 0
      %v3568 = vsel %vm738, %v3539, 0
      %v3571 = vsel %vm738, %v3540, 0
      %3573 = vmatprep.subr.bf16.mxu0 0
      %3574 = vmatpush1.bf16.msra.mxu0 0
      %3575 = vmatprep.subr.bf16.mxu0 0
      %3576 = vmatpush1.bf16.msra.mxu0 0
      %3577 = vmatprep.subr.bf16.mxu0 0
      %3578 = vmatpush1.bf16.msra.mxu0 0
      %3579 = vmatprep.subr.bf16.mxu0 0
      %3580 = vmatpush1.bf16.msra.mxu0 0
      %3581 = vmatprep.subr.bf16.mxu0 0
      %3582 = vmatpush1.bf16.msra.mxu0 0
      %3583 = vmatprep.subr.bf16.mxu0 0
      %3584 = vmatpush1.bf16.msra.mxu0 0
      %3585 = vmatprep.subr.bf16.mxu0 0
      %3586 = vmatpush1.bf16.msra.mxu0 0
      %3587 = vmatprep.subr.bf16.mxu0 0
      %3588 = vmatpush1.bf16.msra.mxu0 %v2655
      %3589 = vmatprep.subr.bf16.mxu0 0
      %3590 = vmatpush2.bf16.msra.mxu0 0
      %3591 = vmatprep.subr.bf16.mxu0 0
      %3592 = vmatpush2.bf16.msra.mxu0 0
      %3593 = vmatprep.subr.bf16.mxu0 0
      %3594 = vmatpush2.bf16.msra.mxu0 0
      %3595 = vmatprep.subr.bf16.mxu0 0
      %3596 = vmatpush2.bf16.msra.mxu0 0
      %3597 = vmatprep.subr.bf16.mxu0 0
      %3598 = vmatpush2.bf16.msra.mxu0 0
      %3599 = vmatprep.subr.bf16.mxu0 0
      %3600 = vmatpush2.bf16.msra.mxu0 0
      %3601 = vmatprep.subr.bf16.mxu0 0
      %3602 = vmatpush2.bf16.msra.mxu0 0
      %3603 = vmatprep.subr.bf16.mxu0 0
      %3604 = vmatpush2.bf16.msra.mxu0 0
      %3605 = vmatprep.mubr.bf16.mxu0 0
      %3606 = vmatmul.mubr.bf16.gmra.mxu0 %v3562
      %v3607 = vpop.f32.mrf.mxu0
      %v3608 = vadd.f32 0.0, %v3607
      %v3609 = vpop.f32.mrf.mxu0
      %v3610 = vpop.f32.mrf.mxu0
      %v3611 = vadd.f32 0.0, %v3610
      %v3612 = vpop.f32.mrf.mxu0
      %3613 = vmatprep.mubr.bf16.mxu0 0
      %3614 = vmatmul.mubr.bf16.gmra.mxu0 %v3565
      %v3615 = vpop.f32.mrf.mxu0
      %v3616 = vadd.f32 0.0, %v3615
      %v3617 = vpop.f32.mrf.mxu0
      %v3618 = vpop.f32.mrf.mxu0
      %v3619 = vadd.f32 0.0, %v3618
      %v3620 = vpop.f32.mrf.mxu0
      %3621 = vmatprep.mubr.bf16.mxu0 0
      %3622 = vmatmul.mubr.bf16.gmra.mxu0 %v3568
      %v3623 = vpop.f32.mrf.mxu0
      %v3624 = vadd.f32 0.0, %v3623
      %v3625 = vpop.f32.mrf.mxu0
      %v3626 = vpop.f32.mrf.mxu0
      %v3627 = vadd.f32 0.0, %v3626
      %v3628 = vpop.f32.mrf.mxu0
      %3629 = vmatprep.mubr.bf16.mxu0 0
      %3630 = vmatmul.mubr.bf16.gmra.mxu0 %v3571
      %v3631 = vpop.f32.mrf.mxu0
      %v3632 = vadd.f32 0.0, %v3631
      %v3633 = vpop.f32.mrf.mxu0
      %v3634 = vpop.f32.mrf.mxu0
      %v3635 = vadd.f32 0.0, %v3634
      %v3636 = vpop.f32.mrf.mxu0
      %3637 = vdwg.mxu0
      %3638 = vmatprep.subr.bf16.mxu0 0
      %3639 = vmatpush1.bf16.msra.mxu0 0
      %3640 = vmatprep.subr.bf16.mxu0 0
      %3641 = vmatpush1.bf16.msra.mxu0 0
      %3642 = vmatprep.subr.bf16.mxu0 0
      %3643 = vmatpush1.bf16.msra.mxu0 0
      %3644 = vmatprep.subr.bf16.mxu0 0
      %3645 = vmatpush1.bf16.msra.mxu0 0
      %3646 = vmatprep.subr.bf16.mxu0 0
      %3647 = vmatpush1.bf16.msra.mxu0 0
      %3648 = vmatprep.subr.bf16.mxu0 0
      %3649 = vmatpush1.bf16.msra.mxu0 0
      %3650 = vmatprep.subr.bf16.mxu0 0
      %3651 = vmatpush1.bf16.msra.mxu0 0
      %3652 = vmatprep.subr.bf16.mxu0 0
      %3653 = vmatpush1.bf16.msra.mxu0 %v2650
      %3654 = vmatprep.subr.bf16.mxu0 0
      %3655 = vmatpush2.bf16.msra.mxu0 0
      %3656 = vmatprep.subr.bf16.mxu0 0
      %3657 = vmatpush2.bf16.msra.mxu0 0
      %3658 = vmatprep.subr.bf16.mxu0 0
      %3659 = vmatpush2.bf16.msra.mxu0 0
      %3660 = vmatprep.subr.bf16.mxu0 0
      %3661 = vmatpush2.bf16.msra.mxu0 0
      %3662 = vmatprep.subr.bf16.mxu0 0
      %3663 = vmatpush2.bf16.msra.mxu0 0
      %3664 = vmatprep.subr.bf16.mxu0 0
      %3665 = vmatpush2.bf16.msra.mxu0 0
      %3666 = vmatprep.subr.bf16.mxu0 0
      %3667 = vmatpush2.bf16.msra.mxu0 0
      %3668 = vmatprep.subr.bf16.mxu0 0
      %3669 = vmatpush2.bf16.msra.mxu0 0
      %3670 = vmatprep.mubr.bf16.mxu0 0
      %3671 = vmatmul.mubr.bf16.gmra.mxu0 %v3562
      %v3672 = vpop.f32.mrf.mxu0
      %v3673 = vadd.f32 %v3608, %v3672
      %v3674 = vpop.f32.mrf.mxu0
      %v3675 = vpop.f32.mrf.mxu0
      %v3676 = vadd.f32 %v3611, %v3675
      %v3677 = vpop.f32.mrf.mxu0
      %3678 = vmatprep.mubr.bf16.mxu0 0
      %3679 = vmatmul.mubr.bf16.gmra.mxu0 %v3565
      %v3680 = vpop.f32.mrf.mxu0
      %v3681 = vadd.f32 %v3616, %v3680
      %v3682 = vpop.f32.mrf.mxu0
      %v3683 = vpop.f32.mrf.mxu0
      %v3684 = vadd.f32 %v3619, %v3683
      %v3685 = vpop.f32.mrf.mxu0
      %3686 = vmatprep.mubr.bf16.mxu0 0
      %3687 = vmatmul.mubr.bf16.gmra.mxu0 %v3568
      %v3688 = vpop.f32.mrf.mxu0
      %v3689 = vadd.f32 %v3624, %v3688
      %v3690 = vpop.f32.mrf.mxu0
      %v3691 = vpop.f32.mrf.mxu0
      %v3692 = vadd.f32 %v3627, %v3691
      %v3693 = vpop.f32.mrf.mxu0
      %3694 = vmatprep.mubr.bf16.mxu0 0
      %3695 = vmatmul.mubr.bf16.gmra.mxu0 %v3571
      %v3696 = vpop.f32.mrf.mxu0
      %v3697 = vadd.f32 %v3632, %v3696
      %v3698 = vpop.f32.mrf.mxu0
      %v3699 = vpop.f32.mrf.mxu0
      %v3700 = vadd.f32 %v3635, %v3699
      %v3701 = vpop.f32.mrf.mxu0
      %3702 = vdwg.mxu0
      %v3704 = vsel %vm738, %v3557, 0
      %v3707 = vsel %vm738, %v3558, 0
      %v3710 = vsel %vm738, %v3559, 0
      %v3713 = vsel %vm738, %v3560, 0
      %3715 = vmatprep.subr.bf16.mxu0 0
      %3716 = vmatpush1.bf16.msra.mxu0 0
      %3717 = vmatprep.subr.bf16.mxu0 0
      %3718 = vmatpush1.bf16.msra.mxu0 0
      %3719 = vmatprep.subr.bf16.mxu0 0
      %3720 = vmatpush1.bf16.msra.mxu0 0
      %3721 = vmatprep.subr.bf16.mxu0 0
      %3722 = vmatpush1.bf16.msra.mxu0 0
      %3723 = vmatprep.subr.bf16.mxu0 0
      %3724 = vmatpush1.bf16.msra.mxu0 0
      %3725 = vmatprep.subr.bf16.mxu0 0
      %3726 = vmatpush1.bf16.msra.mxu0 0
      %3727 = vmatprep.subr.bf16.mxu0 0
      %3728 = vmatpush1.bf16.msra.mxu0 0
      %3729 = vmatprep.subr.bf16.mxu0 0
      %3730 = vmatpush1.bf16.msra.mxu0 %v2650
      %3731 = vmatprep.subr.bf16.mxu0 0
      %3732 = vmatpush2.bf16.msra.mxu0 0
      %3733 = vmatprep.subr.bf16.mxu0 0
      %3734 = vmatpush2.bf16.msra.mxu0 0
      %3735 = vmatprep.subr.bf16.mxu0 0
      %3736 = vmatpush2.bf16.msra.mxu0 0
      %3737 = vmatprep.subr.bf16.mxu0 0
      %3738 = vmatpush2.bf16.msra.mxu0 0
      %3739 = vmatprep.subr.bf16.mxu0 0
      %3740 = vmatpush2.bf16.msra.mxu0 0
      %3741 = vmatprep.subr.bf16.mxu0 0
      %3742 = vmatpush2.bf16.msra.mxu0 0
      %3743 = vmatprep.subr.bf16.mxu0 0
      %3744 = vmatpush2.bf16.msra.mxu0 0
      %3745 = vmatprep.subr.bf16.mxu0 0
      %3746 = vmatpush2.bf16.msra.mxu0 0
      %3747 = vmatprep.mubr.bf16.mxu0 0
      %3748 = vmatmul.mubr.bf16.gmra.mxu0 %v3704
      %v3749 = vpop.f32.mrf.mxu0
      %v3750 = vadd.f32 0.0, %v3749
      %v3751 = vpop.f32.mrf.mxu0
      %v3752 = vpop.f32.mrf.mxu0
      %v3753 = vadd.f32 0.0, %v3752
      %v3754 = vpop.f32.mrf.mxu0
      %3755 = vmatprep.mubr.bf16.mxu0 0
      %3756 = vmatmul.mubr.bf16.gmra.mxu0 %v3707
      %v3757 = vpop.f32.mrf.mxu0
      %v3758 = vadd.f32 0.0, %v3757
      %v3759 = vpop.f32.mrf.mxu0
      %v3760 = vpop.f32.mrf.mxu0
      %v3761 = vadd.f32 0.0, %v3760
      %v3762 = vpop.f32.mrf.mxu0
      %3763 = vmatprep.mubr.bf16.mxu0 0
      %3764 = vmatmul.mubr.bf16.gmra.mxu0 %v3710
      %v3765 = vpop.f32.mrf.mxu0
      %v3766 = vadd.f32 0.0, %v3765
      %v3767 = vpop.f32.mrf.mxu0
      %v3768 = vpop.f32.mrf.mxu0
      %v3769 = vadd.f32 0.0, %v3768
      %v3770 = vpop.f32.mrf.mxu0
      %3771 = vmatprep.mubr.bf16.mxu0 0
      %3772 = vmatmul.mubr.bf16.gmra.mxu0 %v3713
      %v3773 = vpop.f32.mrf.mxu0
      %v3774 = vadd.f32 0.0, %v3773
      %v3775 = vpop.f32.mrf.mxu0
      %v3776 = vpop.f32.mrf.mxu0
      %v3777 = vadd.f32 0.0, %v3776
      %v3778 = vpop.f32.mrf.mxu0
      %3779 = vdwg.mxu0
      %v3780 = vadd.f32 %v3673, %v3750
      %v3781 = vadd.f32 %v3676, %v3753
      %v3782 = vadd.f32 %v3681, %v3758
      %v3783 = vadd.f32 %v3684, %v3761
      %v3784 = vadd.f32 %v3689, %v3766
      %v3785 = vadd.f32 %v3692, %v3769
      %v3786 = vadd.f32 %v3697, %v3774
      %v3787 = vadd.f32 %v3700, %v3777
      %v3788 = vadd.f32 %v3238, %v3278
      %v3789 = vadd.f32 %v3239, %v3279
      %v3790 = vadd.f32 %v3240, %v3280
      %v3791 = vadd.f32 %v3241, %v3281
      %v3792 = vadd.f32 %v3242, %v3282
      %v3793 = vadd.f32 %v3243, %v3283
      %v3794 = vadd.f32 %v3244, %v3284
      %v3795 = vadd.f32 %v3245, %v3285
      %v3796 = vsub.f32 %v654, %v656
      %v3797 = vsub.f32 %v655, %v657
      %v3798 = vpack.c.bf16 %v3789, %v3788
      %v3799 = vpack.c.bf16 %v3791, %v3790
      %v3800 = vpack.c.bf16 %v3793, %v3792
      %v3801 = vpack.c.bf16 %v3795, %v3794
      %v3802 = vunpack.c.l.bf16 %v3798
      %v3803 = vunpack.c.h.bf16 %v3798
      %v3804 = vunpack.c.l.bf16 %v3799
      %v3805 = vunpack.c.h.bf16 %v3799
      %v3806 = vunpack.c.l.bf16 %v3800
      %v3807 = vunpack.c.h.bf16 %v3800
      %v3808 = vunpack.c.l.bf16 %v3801
      %v3809 = vunpack.c.h.bf16 %v3801
      %v3810 = vsub.f32 %v3788, %v3802
      %v3811 = vsub.f32 %v3789, %v3803
      %v3812 = vsub.f32 %v3790, %v3804
      %v3813 = vsub.f32 %v3791, %v3805
      %v3814 = vsub.f32 %v3792, %v3806
      %v3815 = vsub.f32 %v3793, %v3807
      %v3816 = vsub.f32 %v3794, %v3808
      %v3817 = vsub.f32 %v3795, %v3809
      %v3818 = vpack.c.bf16 %v3811, %v3810
      %v3819 = vpack.c.bf16 %v3813, %v3812
      %v3820 = vpack.c.bf16 %v3815, %v3814
      %v3821 = vpack.c.bf16 %v3817, %v3816
      %v3822 = vpack.c.bf16 %v3797, %v3796
      %v3823 = vunpack.c.l.bf16 %v3822
      %v3824 = vunpack.c.h.bf16 %v3822
      %v3825 = vsub.f32 %v3796, %v3823
      %v3826 = vsub.f32 %v3797, %v3824
      %v3827 = vpack.c.bf16 %v3826, %v3825
      %v3829 = vsel %vm738, %v3798, 0
      %v3832 = vsel %vm738, %v3799, 0
      %v3835 = vsel %vm738, %v3800, 0
      %v3838 = vsel %vm738, %v3801, 0
      %3840 = vmatprep.subr.bf16.mxu0 0
      %3841 = vmatpush1.bf16.msra.mxu0 0
      %3842 = vmatprep.subr.bf16.mxu0 0
      %3843 = vmatpush1.bf16.msra.mxu0 0
      %3844 = vmatprep.subr.bf16.mxu0 0
      %3845 = vmatpush1.bf16.msra.mxu0 0
      %3846 = vmatprep.subr.bf16.mxu0 0
      %3847 = vmatpush1.bf16.msra.mxu0 0
      %3848 = vmatprep.subr.bf16.mxu0 0
      %3849 = vmatpush1.bf16.msra.mxu0 0
      %3850 = vmatprep.subr.bf16.mxu0 0
      %3851 = vmatpush1.bf16.msra.mxu0 0
      %3852 = vmatprep.subr.bf16.mxu0 0
      %3853 = vmatpush1.bf16.msra.mxu0 0
      %3854 = vmatprep.subr.bf16.mxu0 0
      %3855 = vmatpush1.bf16.msra.mxu0 %v3827
      %3856 = vmatprep.subr.bf16.mxu0 0
      %3857 = vmatpush2.bf16.msra.mxu0 0
      %3858 = vmatprep.subr.bf16.mxu0 0
      %3859 = vmatpush2.bf16.msra.mxu0 0
      %3860 = vmatprep.subr.bf16.mxu0 0
      %3861 = vmatpush2.bf16.msra.mxu0 0
      %3862 = vmatprep.subr.bf16.mxu0 0
      %3863 = vmatpush2.bf16.msra.mxu0 0
      %3864 = vmatprep.subr.bf16.mxu0 0
      %3865 = vmatpush2.bf16.msra.mxu0 0
      %3866 = vmatprep.subr.bf16.mxu0 0
      %3867 = vmatpush2.bf16.msra.mxu0 0
      %3868 = vmatprep.subr.bf16.mxu0 0
      %3869 = vmatpush2.bf16.msra.mxu0 0
      %3870 = vmatprep.subr.bf16.mxu0 0
      %3871 = vmatpush2.bf16.msra.mxu0 0
      %3872 = vmatprep.mubr.bf16.mxu0 0
      %3873 = vmatmul.mubr.bf16.gmra.mxu0 %v3829
      %v3874 = vpop.f32.mrf.mxu0
      %v3875 = vadd.f32 0.0, %v3874
      %v3876 = vpop.f32.mrf.mxu0
      %v3877 = vpop.f32.mrf.mxu0
      %v3878 = vadd.f32 0.0, %v3877
      %v3879 = vpop.f32.mrf.mxu0
      %3880 = vmatprep.mubr.bf16.mxu0 0
      %3881 = vmatmul.mubr.bf16.gmra.mxu0 %v3832
      %v3882 = vpop.f32.mrf.mxu0
      %v3883 = vadd.f32 0.0, %v3882
      %v3884 = vpop.f32.mrf.mxu0
      %v3885 = vpop.f32.mrf.mxu0
      %v3886 = vadd.f32 0.0, %v3885
      %v3887 = vpop.f32.mrf.mxu0
      %3888 = vmatprep.mubr.bf16.mxu0 0
      %3889 = vmatmul.mubr.bf16.gmra.mxu0 %v3835
      %v3890 = vpop.f32.mrf.mxu0
      %v3891 = vadd.f32 0.0, %v3890
      %v3892 = vpop.f32.mrf.mxu0
      %v3893 = vpop.f32.mrf.mxu0
      %v3894 = vadd.f32 0.0, %v3893
      %v3895 = vpop.f32.mrf.mxu0
      %3896 = vmatprep.mubr.bf16.mxu0 0
      %3897 = vmatmul.mubr.bf16.gmra.mxu0 %v3838
      %v3898 = vpop.f32.mrf.mxu0
      %v3899 = vadd.f32 0.0, %v3898
      %v3900 = vpop.f32.mrf.mxu0
      %v3901 = vpop.f32.mrf.mxu0
      %v3902 = vadd.f32 0.0, %v3901
      %v3903 = vpop.f32.mrf.mxu0
      %3904 = vdwg.mxu0
      %3905 = vmatprep.subr.bf16.mxu0 0
      %3906 = vmatpush1.bf16.msra.mxu0 0
      %3907 = vmatprep.subr.bf16.mxu0 0
      %3908 = vmatpush1.bf16.msra.mxu0 0
      %3909 = vmatprep.subr.bf16.mxu0 0
      %3910 = vmatpush1.bf16.msra.mxu0 0
      %3911 = vmatprep.subr.bf16.mxu0 0
      %3912 = vmatpush1.bf16.msra.mxu0 0
      %3913 = vmatprep.subr.bf16.mxu0 0
      %3914 = vmatpush1.bf16.msra.mxu0 0
      %3915 = vmatprep.subr.bf16.mxu0 0
      %3916 = vmatpush1.bf16.msra.mxu0 0
      %3917 = vmatprep.subr.bf16.mxu0 0
      %3918 = vmatpush1.bf16.msra.mxu0 0
      %3919 = vmatprep.subr.bf16.mxu0 0
      %3920 = vmatpush1.bf16.msra.mxu0 %v3822
      %3921 = vmatprep.subr.bf16.mxu0 0
      %3922 = vmatpush2.bf16.msra.mxu0 0
      %3923 = vmatprep.subr.bf16.mxu0 0
      %3924 = vmatpush2.bf16.msra.mxu0 0
      %3925 = vmatprep.subr.bf16.mxu0 0
      %3926 = vmatpush2.bf16.msra.mxu0 0
      %3927 = vmatprep.subr.bf16.mxu0 0
      %3928 = vmatpush2.bf16.msra.mxu0 0
      %3929 = vmatprep.subr.bf16.mxu0 0
      %3930 = vmatpush2.bf16.msra.mxu0 0
      %3931 = vmatprep.subr.bf16.mxu0 0
      %3932 = vmatpush2.bf16.msra.mxu0 0
      %3933 = vmatprep.subr.bf16.mxu0 0
      %3934 = vmatpush2.bf16.msra.mxu0 0
      %3935 = vmatprep.subr.bf16.mxu0 0
      %3936 = vmatpush2.bf16.msra.mxu0 0
      %3937 = vmatprep.mubr.bf16.mxu0 0
      %3938 = vmatmul.mubr.bf16.gmra.mxu0 %v3829
      %v3939 = vpop.f32.mrf.mxu0
      %v3940 = vadd.f32 %v3875, %v3939
      %v3941 = vpop.f32.mrf.mxu0
      %v3942 = vpop.f32.mrf.mxu0
      %v3943 = vadd.f32 %v3878, %v3942
      %v3944 = vpop.f32.mrf.mxu0
      %3945 = vmatprep.mubr.bf16.mxu0 0
      %3946 = vmatmul.mubr.bf16.gmra.mxu0 %v3832
      %v3947 = vpop.f32.mrf.mxu0
      %v3948 = vadd.f32 %v3883, %v3947
      %v3949 = vpop.f32.mrf.mxu0
      %v3950 = vpop.f32.mrf.mxu0
      %v3951 = vadd.f32 %v3886, %v3950
      %v3952 = vpop.f32.mrf.mxu0
      %3953 = vmatprep.mubr.bf16.mxu0 0
      %3954 = vmatmul.mubr.bf16.gmra.mxu0 %v3835
      %v3955 = vpop.f32.mrf.mxu0
      %v3956 = vadd.f32 %v3891, %v3955
      %v3957 = vpop.f32.mrf.mxu0
      %v3958 = vpop.f32.mrf.mxu0
      %v3959 = vadd.f32 %v3894, %v3958
      %v3960 = vpop.f32.mrf.mxu0
      %3961 = vmatprep.mubr.bf16.mxu0 0
      %3962 = vmatmul.mubr.bf16.gmra.mxu0 %v3838
      %v3963 = vpop.f32.mrf.mxu0
      %v3964 = vadd.f32 %v3899, %v3963
      %v3965 = vpop.f32.mrf.mxu0
      %v3966 = vpop.f32.mrf.mxu0
      %v3967 = vadd.f32 %v3902, %v3966
      %v3968 = vpop.f32.mrf.mxu0
      %3969 = vdwg.mxu0
      %v3971 = vsel %vm738, %v3818, 0
      %v3974 = vsel %vm738, %v3819, 0
      %v3977 = vsel %vm738, %v3820, 0
      %v3980 = vsel %vm738, %v3821, 0
      %3982 = vmatprep.subr.bf16.mxu0 0
      %3983 = vmatpush1.bf16.msra.mxu0 0
      %3984 = vmatprep.subr.bf16.mxu0 0
      %3985 = vmatpush1.bf16.msra.mxu0 0
      %3986 = vmatprep.subr.bf16.mxu0 0
      %3987 = vmatpush1.bf16.msra.mxu0 0
      %3988 = vmatprep.subr.bf16.mxu0 0
      %3989 = vmatpush1.bf16.msra.mxu0 0
      %3990 = vmatprep.subr.bf16.mxu0 0
      %3991 = vmatpush1.bf16.msra.mxu0 0
      %3992 = vmatprep.subr.bf16.mxu0 0
      %3993 = vmatpush1.bf16.msra.mxu0 0
      %3994 = vmatprep.subr.bf16.mxu0 0
      %3995 = vmatpush1.bf16.msra.mxu0 0
      %3996 = vmatprep.subr.bf16.mxu0 0
      %3997 = vmatpush1.bf16.msra.mxu0 %v3822
      %3998 = vmatprep.subr.bf16.mxu0 0
      %3999 = vmatpush2.bf16.msra.mxu0 0
      %4000 = vmatprep.subr.bf16.mxu0 0
      %4001 = vmatpush2.bf16.msra.mxu0 0
      %4002 = vmatprep.subr.bf16.mxu0 0
      %4003 = vmatpush2.bf16.msra.mxu0 0
      %4004 = vmatprep.subr.bf16.mxu0 0
      %4005 = vmatpush2.bf16.msra.mxu0 0
      %4006 = vmatprep.subr.bf16.mxu0 0
      %4007 = vmatpush2.bf16.msra.mxu0 0
      %4008 = vmatprep.subr.bf16.mxu0 0
      %4009 = vmatpush2.bf16.msra.mxu0 0
      %4010 = vmatprep.subr.bf16.mxu0 0
      %4011 = vmatpush2.bf16.msra.mxu0 0
      %4012 = vmatprep.subr.bf16.mxu0 0
      %4013 = vmatpush2.bf16.msra.mxu0 0
      %4014 = vmatprep.mubr.bf16.mxu0 0
      %4015 = vmatmul.mubr.bf16.gmra.mxu0 %v3971
      %v4016 = vpop.f32.mrf.mxu0
      %v4017 = vadd.f32 0.0, %v4016
      %v4018 = vpop.f32.mrf.mxu0
      %v4019 = vpop.f32.mrf.mxu0
      %v4020 = vadd.f32 0.0, %v4019
      %v4021 = vpop.f32.mrf.mxu0
      %4022 = vmatprep.mubr.bf16.mxu0 0
      %4023 = vmatmul.mubr.bf16.gmra.mxu0 %v3974
      %v4024 = vpop.f32.mrf.mxu0
      %v4025 = vadd.f32 0.0, %v4024
      %v4026 = vpop.f32.mrf.mxu0
      %v4027 = vpop.f32.mrf.mxu0
      %v4028 = vadd.f32 0.0, %v4027
      %v4029 = vpop.f32.mrf.mxu0
      %4030 = vmatprep.mubr.bf16.mxu0 0
      %4031 = vmatmul.mubr.bf16.gmra.mxu0 %v3977
      %v4032 = vpop.f32.mrf.mxu0
      %v4033 = vadd.f32 0.0, %v4032
      %v4034 = vpop.f32.mrf.mxu0
      %v4035 = vpop.f32.mrf.mxu0
      %v4036 = vadd.f32 0.0, %v4035
      %v4037 = vpop.f32.mrf.mxu0
      %4038 = vmatprep.mubr.bf16.mxu0 0
      %4039 = vmatmul.mubr.bf16.gmra.mxu0 %v3980
      %v4040 = vpop.f32.mrf.mxu0
      %v4041 = vadd.f32 0.0, %v4040
      %v4042 = vpop.f32.mrf.mxu0
      %v4043 = vpop.f32.mrf.mxu0
      %v4044 = vadd.f32 0.0, %v4043
      %v4045 = vpop.f32.mrf.mxu0
      %4046 = vdwg.mxu0
      %v4047 = vadd.f32 %v3940, %v4017
      %v4048 = vadd.f32 %v3943, %v4020
      %v4049 = vadd.f32 %v3948, %v4025
      %v4050 = vadd.f32 %v3951, %v4028
      %v4051 = vadd.f32 %v3956, %v4033
      %v4052 = vadd.f32 %v3959, %v4036
      %v4053 = vadd.f32 %v3964, %v4041
      %v4054 = vadd.f32 %v3967, %v4044
      %v4055 = vadd.f32 %v3529, %v3780
      %v4056 = vadd.f32 %v3530, %v3781
      %v4057 = vadd.f32 %v3531, %v3782
      %v4058 = vadd.f32 %v3532, %v3783
      %v4059 = vadd.f32 %v3533, %v3784
      %v4060 = vadd.f32 %v3534, %v3785
      %v4061 = vadd.f32 %v3535, %v3786
      %v4062 = vadd.f32 %v3536, %v3787
      %v4063 = vsub.f32 %v4047, %v3529
      %v4064 = vsub.f32 %v4048, %v3530
      %v4065 = vsub.f32 %v4049, %v3531
      %v4066 = vsub.f32 %v4050, %v3532
      %v4067 = vsub.f32 %v4051, %v3533
      %v4068 = vsub.f32 %v4052, %v3534
      %v4069 = vsub.f32 %v4053, %v3535
      %v4070 = vsub.f32 %v4054, %v3536
      %v4071 = vadd.f32 %v4063, %v3780
      %v4072 = vadd.f32 %v4064, %v3781
      %v4073 = vadd.f32 %v4065, %v3782
      %v4074 = vadd.f32 %v4066, %v3783
      %v4075 = vadd.f32 %v4067, %v3784
      %v4076 = vadd.f32 %v4068, %v3785
      %v4077 = vadd.f32 %v4069, %v3786
      %v4078 = vadd.f32 %v4070, %v3787
      %v4079 = vpack.c.bf16 %v4056, %v4055
      %v4080 = vunpack.c.l.bf16 %v4079
      %v4081 = vunpack.c.h.bf16 %v4079
      %v4082 = vsub.f32 %v4055, %v4080
      %v4083 = vsub.f32 %v4056, %v4081
      %v4084 = vpack.c.bf16 %v4083, %v4082
      %4085 = vmatprep.subr.bf16.mxu0 0
      %4086 = vmatpush1.bf16.msra.mxu0 0
      %4087 = vmatprep.subr.bf16.mxu0 0
      %4088 = vmatpush1.bf16.msra.mxu0 0
      %4089 = vmatprep.subr.bf16.mxu0 0
      %4090 = vmatpush1.bf16.msra.mxu0 0
      %4091 = vmatprep.subr.bf16.mxu0 0
      %4092 = vmatpush1.bf16.msra.mxu0 0
      %4093 = vmatprep.subr.bf16.mxu0 0
      %4094 = vmatpush1.bf16.msra.mxu0 0
      %4095 = vmatprep.subr.bf16.mxu0 0
      %4096 = vmatpush1.bf16.msra.mxu0 0
      %4097 = vmatprep.subr.bf16.mxu0 0
      %4098 = vmatpush1.bf16.msra.mxu0 0
      %4099 = vmatprep.subr.bf16.mxu0 0
      %4100 = vmatpush1.bf16.msra.mxu0 %v4084
      %4101 = vmatprep.subr.bf16.mxu0 0
      %4102 = vmatpush2.bf16.msra.mxu0 0
      %4103 = vmatprep.subr.bf16.mxu0 0
      %4104 = vmatpush2.bf16.msra.mxu0 0
      %4105 = vmatprep.subr.bf16.mxu0 0
      %4106 = vmatpush2.bf16.msra.mxu0 0
      %4107 = vmatprep.subr.bf16.mxu0 0
      %4108 = vmatpush2.bf16.msra.mxu0 0
      %4109 = vmatprep.subr.bf16.mxu0 0
      %4110 = vmatpush2.bf16.msra.mxu0 0
      %4111 = vmatprep.subr.bf16.mxu0 0
      %4112 = vmatpush2.bf16.msra.mxu0 0
      %4113 = vmatprep.subr.bf16.mxu0 0
      %4114 = vmatpush2.bf16.msra.mxu0 0
      %4115 = vmatprep.subr.bf16.mxu0 0
      %4116 = vmatpush2.bf16.msra.mxu0 0
      %4117 = vmatprep.mubr.bf16.mxu0 0
      %4118 = vmatmul.mubr.bf16.gmra.mxu0 %v740
      %v4119 = vpop.f32.mrf.mxu0
      %v4120 = vadd.f32 0.0, %v4119
      %v4121 = vpop.f32.mrf.mxu0
      %v4122 = vpop.f32.mrf.mxu0
      %v4123 = vadd.f32 0.0, %v4122
      %v4124 = vpop.f32.mrf.mxu0
      %4125 = vdwg.mxu0
      %4126 = vmatprep.subr.bf16.mxu0 0
      %4127 = vmatpush1.bf16.msra.mxu0 0
      %4128 = vmatprep.subr.bf16.mxu0 0
      %4129 = vmatpush1.bf16.msra.mxu0 0
      %4130 = vmatprep.subr.bf16.mxu0 0
      %4131 = vmatpush1.bf16.msra.mxu0 0
      %4132 = vmatprep.subr.bf16.mxu0 0
      %4133 = vmatpush1.bf16.msra.mxu0 0
      %4134 = vmatprep.subr.bf16.mxu0 0
      %4135 = vmatpush1.bf16.msra.mxu0 0
      %4136 = vmatprep.subr.bf16.mxu0 0
      %4137 = vmatpush1.bf16.msra.mxu0 0
      %4138 = vmatprep.subr.bf16.mxu0 0
      %4139 = vmatpush1.bf16.msra.mxu0 0
      %4140 = vmatprep.subr.bf16.mxu0 0
      %4141 = vmatpush1.bf16.msra.mxu0 %v4079
      %4142 = vmatprep.subr.bf16.mxu0 0
      %4143 = vmatpush2.bf16.msra.mxu0 0
      %4144 = vmatprep.subr.bf16.mxu0 0
      %4145 = vmatpush2.bf16.msra.mxu0 0
      %4146 = vmatprep.subr.bf16.mxu0 0
      %4147 = vmatpush2.bf16.msra.mxu0 0
      %4148 = vmatprep.subr.bf16.mxu0 0
      %4149 = vmatpush2.bf16.msra.mxu0 0
      %4150 = vmatprep.subr.bf16.mxu0 0
      %4151 = vmatpush2.bf16.msra.mxu0 0
      %4152 = vmatprep.subr.bf16.mxu0 0
      %4153 = vmatpush2.bf16.msra.mxu0 0
      %4154 = vmatprep.subr.bf16.mxu0 0
      %4155 = vmatpush2.bf16.msra.mxu0 0
      %4156 = vmatprep.subr.bf16.mxu0 0
      %4157 = vmatpush2.bf16.msra.mxu0 0
      %4158 = vmatprep.mubr.bf16.mxu0 0
      %4159 = vmatmul.mubr.bf16.gmra.mxu0 %v740
      %v4160 = vpop.f32.mrf.mxu0
      %v4161 = vadd.f32 %v4120, %v4160
      %v4162 = vpop.f32.mrf.mxu0
      %v4163 = vpop.f32.mrf.mxu0
      %v4164 = vadd.f32 %v4123, %v4163
      %v4165 = vpop.f32.mrf.mxu0
      %4166 = vdwg.mxu0
      %4167 = vmatprep.subr.bf16.mxu0 0
      %4168 = vmatpush1.bf16.msra.mxu0 0
      %4169 = vmatprep.subr.bf16.mxu0 0
      %4170 = vmatpush1.bf16.msra.mxu0 0
      %4171 = vmatprep.subr.bf16.mxu0 0
      %4172 = vmatpush1.bf16.msra.mxu0 0
      %4173 = vmatprep.subr.bf16.mxu0 0
      %4174 = vmatpush1.bf16.msra.mxu0 0
      %4175 = vmatprep.subr.bf16.mxu0 0
      %4176 = vmatpush1.bf16.msra.mxu0 0
      %4177 = vmatprep.subr.bf16.mxu0 0
      %4178 = vmatpush1.bf16.msra.mxu0 0
      %4179 = vmatprep.subr.bf16.mxu0 0
      %4180 = vmatpush1.bf16.msra.mxu0 0
      %4181 = vmatprep.subr.bf16.mxu0 0
      %4182 = vmatpush1.bf16.msra.mxu0 %v4079
      %4183 = vmatprep.subr.bf16.mxu0 0
      %4184 = vmatpush2.bf16.msra.mxu0 0
      %4185 = vmatprep.subr.bf16.mxu0 0
      %4186 = vmatpush2.bf16.msra.mxu0 0
      %4187 = vmatprep.subr.bf16.mxu0 0
      %4188 = vmatpush2.bf16.msra.mxu0 0
      %4189 = vmatprep.subr.bf16.mxu0 0
      %4190 = vmatpush2.bf16.msra.mxu0 0
      %4191 = vmatprep.subr.bf16.mxu0 0
      %4192 = vmatpush2.bf16.msra.mxu0 0
      %4193 = vmatprep.subr.bf16.mxu0 0
      %4194 = vmatpush2.bf16.msra.mxu0 0
      %4195 = vmatprep.subr.bf16.mxu0 0
      %4196 = vmatpush2.bf16.msra.mxu0 0
      %4197 = vmatprep.subr.bf16.mxu0 0
      %4198 = vmatpush2.bf16.msra.mxu0 0
      %4199 = vmatprep.mubr.bf16.mxu0 0
      %4200 = vmatmul.mubr.bf16.gmra.mxu0 %v825
      %v4201 = vpop.f32.mrf.mxu0
      %v4202 = vadd.f32 0.0, %v4201
      %v4203 = vpop.f32.mrf.mxu0
      %v4204 = vpop.f32.mrf.mxu0
      %v4205 = vadd.f32 0.0, %v4204
      %v4206 = vpop.f32.mrf.mxu0
      %4207 = vdwg.mxu0
      %v4208 = vadd.f32 %v4161, %v4202
      %v4209 = vadd.f32 %v4164, %v4205
      %v4210 = vpack.c.bf16 %v4072, %v4071
      %v4211 = vunpack.c.l.bf16 %v4210
      %v4212 = vunpack.c.h.bf16 %v4210
      %v4213 = vsub.f32 %v4071, %v4211
      %v4214 = vsub.f32 %v4072, %v4212
      %v4215 = vpack.c.bf16 %v4214, %v4213
      %4216 = vmatprep.subr.bf16.mxu0 0
      %4217 = vmatpush1.bf16.msra.mxu0 0
      %4218 = vmatprep.subr.bf16.mxu0 0
      %4219 = vmatpush1.bf16.msra.mxu0 0
      %4220 = vmatprep.subr.bf16.mxu0 0
      %4221 = vmatpush1.bf16.msra.mxu0 0
      %4222 = vmatprep.subr.bf16.mxu0 0
      %4223 = vmatpush1.bf16.msra.mxu0 0
      %4224 = vmatprep.subr.bf16.mxu0 0
      %4225 = vmatpush1.bf16.msra.mxu0 0
      %4226 = vmatprep.subr.bf16.mxu0 0
      %4227 = vmatpush1.bf16.msra.mxu0 0
      %4228 = vmatprep.subr.bf16.mxu0 0
      %4229 = vmatpush1.bf16.msra.mxu0 0
      %4230 = vmatprep.subr.bf16.mxu0 0
      %4231 = vmatpush1.bf16.msra.mxu0 %v4215
      %4232 = vmatprep.subr.bf16.mxu0 0
      %4233 = vmatpush2.bf16.msra.mxu0 0
      %4234 = vmatprep.subr.bf16.mxu0 0
      %4235 = vmatpush2.bf16.msra.mxu0 0
      %4236 = vmatprep.subr.bf16.mxu0 0
      %4237 = vmatpush2.bf16.msra.mxu0 0
      %4238 = vmatprep.subr.bf16.mxu0 0
      %4239 = vmatpush2.bf16.msra.mxu0 0
      %4240 = vmatprep.subr.bf16.mxu0 0
      %4241 = vmatpush2.bf16.msra.mxu0 0
      %4242 = vmatprep.subr.bf16.mxu0 0
      %4243 = vmatpush2.bf16.msra.mxu0 0
      %4244 = vmatprep.subr.bf16.mxu0 0
      %4245 = vmatpush2.bf16.msra.mxu0 0
      %4246 = vmatprep.subr.bf16.mxu0 0
      %4247 = vmatpush2.bf16.msra.mxu0 0
      %4248 = vmatprep.mubr.bf16.mxu0 0
      %4249 = vmatmul.mubr.bf16.gmra.mxu0 %v883
      %v4250 = vpop.f32.mrf.mxu0
      %v4251 = vadd.f32 0.0, %v4250
      %v4252 = vpop.f32.mrf.mxu0
      %v4253 = vpop.f32.mrf.mxu0
      %v4254 = vadd.f32 0.0, %v4253
      %v4255 = vpop.f32.mrf.mxu0
      %4256 = vdwg.mxu0
      %4257 = vmatprep.subr.bf16.mxu0 0
      %4258 = vmatpush1.bf16.msra.mxu0 0
      %4259 = vmatprep.subr.bf16.mxu0 0
      %4260 = vmatpush1.bf16.msra.mxu0 0
      %4261 = vmatprep.subr.bf16.mxu0 0
      %4262 = vmatpush1.bf16.msra.mxu0 0
      %4263 = vmatprep.subr.bf16.mxu0 0
      %4264 = vmatpush1.bf16.msra.mxu0 0
      %4265 = vmatprep.subr.bf16.mxu0 0
      %4266 = vmatpush1.bf16.msra.mxu0 0
      %4267 = vmatprep.subr.bf16.mxu0 0
      %4268 = vmatpush1.bf16.msra.mxu0 0
      %4269 = vmatprep.subr.bf16.mxu0 0
      %4270 = vmatpush1.bf16.msra.mxu0 0
      %4271 = vmatprep.subr.bf16.mxu0 0
      %4272 = vmatpush1.bf16.msra.mxu0 %v4210
      %4273 = vmatprep.subr.bf16.mxu0 0
      %4274 = vmatpush2.bf16.msra.mxu0 0
      %4275 = vmatprep.subr.bf16.mxu0 0
      %4276 = vmatpush2.bf16.msra.mxu0 0
      %4277 = vmatprep.subr.bf16.mxu0 0
      %4278 = vmatpush2.bf16.msra.mxu0 0
      %4279 = vmatprep.subr.bf16.mxu0 0
      %4280 = vmatpush2.bf16.msra.mxu0 0
      %4281 = vmatprep.subr.bf16.mxu0 0
      %4282 = vmatpush2.bf16.msra.mxu0 0
      %4283 = vmatprep.subr.bf16.mxu0 0
      %4284 = vmatpush2.bf16.msra.mxu0 0
      %4285 = vmatprep.subr.bf16.mxu0 0
      %4286 = vmatpush2.bf16.msra.mxu0 0
      %4287 = vmatprep.subr.bf16.mxu0 0
      %4288 = vmatpush2.bf16.msra.mxu0 0
      %4289 = vmatprep.mubr.bf16.mxu0 0
      %4290 = vmatmul.mubr.bf16.gmra.mxu0 %v883
      %v4291 = vpop.f32.mrf.mxu0
      %v4292 = vadd.f32 %v4251, %v4291
      %v4293 = vpop.f32.mrf.mxu0
      %v4294 = vpop.f32.mrf.mxu0
      %v4295 = vadd.f32 %v4254, %v4294
      %v4296 = vpop.f32.mrf.mxu0
      %4297 = vdwg.mxu0
      %4298 = vmatprep.subr.bf16.mxu0 0
      %4299 = vmatpush1.bf16.msra.mxu0 0
      %4300 = vmatprep.subr.bf16.mxu0 0
      %4301 = vmatpush1.bf16.msra.mxu0 0
      %4302 = vmatprep.subr.bf16.mxu0 0
      %4303 = vmatpush1.bf16.msra.mxu0 0
      %4304 = vmatprep.subr.bf16.mxu0 0
      %4305 = vmatpush1.bf16.msra.mxu0 0
      %4306 = vmatprep.subr.bf16.mxu0 0
      %4307 = vmatpush1.bf16.msra.mxu0 0
      %4308 = vmatprep.subr.bf16.mxu0 0
      %4309 = vmatpush1.bf16.msra.mxu0 0
      %4310 = vmatprep.subr.bf16.mxu0 0
      %4311 = vmatpush1.bf16.msra.mxu0 0
      %4312 = vmatprep.subr.bf16.mxu0 0
      %4313 = vmatpush1.bf16.msra.mxu0 %v4210
      %4314 = vmatprep.subr.bf16.mxu0 0
      %4315 = vmatpush2.bf16.msra.mxu0 0
      %4316 = vmatprep.subr.bf16.mxu0 0
      %4317 = vmatpush2.bf16.msra.mxu0 0
      %4318 = vmatprep.subr.bf16.mxu0 0
      %4319 = vmatpush2.bf16.msra.mxu0 0
      %4320 = vmatprep.subr.bf16.mxu0 0
      %4321 = vmatpush2.bf16.msra.mxu0 0
      %4322 = vmatprep.subr.bf16.mxu0 0
      %4323 = vmatpush2.bf16.msra.mxu0 0
      %4324 = vmatprep.subr.bf16.mxu0 0
      %4325 = vmatpush2.bf16.msra.mxu0 0
      %4326 = vmatprep.subr.bf16.mxu0 0
      %4327 = vmatpush2.bf16.msra.mxu0 0
      %4328 = vmatprep.subr.bf16.mxu0 0
      %4329 = vmatpush2.bf16.msra.mxu0 0
      %4330 = vmatprep.mubr.bf16.mxu0 0
      %4331 = vmatmul.mubr.bf16.gmra.mxu0 %v968
      %v4332 = vpop.f32.mrf.mxu0
      %v4333 = vadd.f32 0.0, %v4332
      %v4334 = vpop.f32.mrf.mxu0
      %v4335 = vpop.f32.mrf.mxu0
      %v4336 = vadd.f32 0.0, %v4335
      %v4337 = vpop.f32.mrf.mxu0
      %4338 = vdwg.mxu0
      %v4339 = vadd.f32 %v4292, %v4333
      %v4340 = vadd.f32 %v4295, %v4336
      %v4341 = vsub.f32 %v650, %v652
      %v4342 = vsub.f32 %v651, %v653
      %v4343 = vadd.f32 %v4055, %v4071
      %v4344 = vadd.f32 %v4056, %v4072
      %v4345 = vpack.c.bf16 %v4342, %v4341
      %v4346 = vunpack.c.l.bf16 %v4345
      %v4347 = vunpack.c.h.bf16 %v4345
      %v4348 = vsub.f32 %v4341, %v4346
      %v4349 = vsub.f32 %v4342, %v4347
      %v4350 = vpack.c.bf16 %v4349, %v4348
      %v4351 = vpack.c.bf16 %v4344, %v4343
      %v4352 = vunpack.c.l.bf16 %v4351
      %v4353 = vunpack.c.h.bf16 %v4351
      %v4354 = vsub.f32 %v4343, %v4352
      %v4355 = vsub.f32 %v4344, %v4353
      %v4356 = vpack.c.bf16 %v4355, %v4354
      %v4358 = vsel %vm738, %v4345, 0
      %4360 = vmatprep.subr.bf16.mxu0 0
      %4361 = vmatpush1.bf16.msra.mxu0 0
      %4362 = vmatprep.subr.bf16.mxu0 0
      %4363 = vmatpush1.bf16.msra.mxu0 0
      %4364 = vmatprep.subr.bf16.mxu0 0
      %4365 = vmatpush1.bf16.msra.mxu0 0
      %4366 = vmatprep.subr.bf16.mxu0 0
      %4367 = vmatpush1.bf16.msra.mxu0 0
      %4368 = vmatprep.subr.bf16.mxu0 0
      %4369 = vmatpush1.bf16.msra.mxu0 0
      %4370 = vmatprep.subr.bf16.mxu0 0
      %4371 = vmatpush1.bf16.msra.mxu0 0
      %4372 = vmatprep.subr.bf16.mxu0 0
      %4373 = vmatpush1.bf16.msra.mxu0 0
      %4374 = vmatprep.subr.bf16.mxu0 0
      %4375 = vmatpush1.bf16.msra.mxu0 %v4356
      %4376 = vmatprep.subr.bf16.mxu0 0
      %4377 = vmatpush2.bf16.msra.mxu0 0
      %4378 = vmatprep.subr.bf16.mxu0 0
      %4379 = vmatpush2.bf16.msra.mxu0 0
      %4380 = vmatprep.subr.bf16.mxu0 0
      %4381 = vmatpush2.bf16.msra.mxu0 0
      %4382 = vmatprep.subr.bf16.mxu0 0
      %4383 = vmatpush2.bf16.msra.mxu0 0
      %4384 = vmatprep.subr.bf16.mxu0 0
      %4385 = vmatpush2.bf16.msra.mxu0 0
      %4386 = vmatprep.subr.bf16.mxu0 0
      %4387 = vmatpush2.bf16.msra.mxu0 0
      %4388 = vmatprep.subr.bf16.mxu0 0
      %4389 = vmatpush2.bf16.msra.mxu0 0
      %4390 = vmatprep.subr.bf16.mxu0 0
      %4391 = vmatpush2.bf16.msra.mxu0 0
      %4392 = vmatprep.mubr.bf16.mxu0 0
      %4393 = vmatmul.mubr.bf16.gmra.mxu0 %v4358
      %v4394 = vpop.f32.mrf.mxu0
      %v4395 = vadd.f32 0.0, %v4394
      %v4396 = vpop.f32.mrf.mxu0
      %v4397 = vpop.f32.mrf.mxu0
      %v4398 = vadd.f32 0.0, %v4397
      %v4399 = vpop.f32.mrf.mxu0
      %4400 = vdwg.mxu0
      %4401 = vmatprep.subr.bf16.mxu0 0
      %4402 = vmatpush1.bf16.msra.mxu0 0
      %4403 = vmatprep.subr.bf16.mxu0 0
      %4404 = vmatpush1.bf16.msra.mxu0 0
      %4405 = vmatprep.subr.bf16.mxu0 0
      %4406 = vmatpush1.bf16.msra.mxu0 0
      %4407 = vmatprep.subr.bf16.mxu0 0
      %4408 = vmatpush1.bf16.msra.mxu0 0
      %4409 = vmatprep.subr.bf16.mxu0 0
      %4410 = vmatpush1.bf16.msra.mxu0 0
      %4411 = vmatprep.subr.bf16.mxu0 0
      %4412 = vmatpush1.bf16.msra.mxu0 0
      %4413 = vmatprep.subr.bf16.mxu0 0
      %4414 = vmatpush1.bf16.msra.mxu0 0
      %4415 = vmatprep.subr.bf16.mxu0 0
      %4416 = vmatpush1.bf16.msra.mxu0 %v4351
      %4417 = vmatprep.subr.bf16.mxu0 0
      %4418 = vmatpush2.bf16.msra.mxu0 0
      %4419 = vmatprep.subr.bf16.mxu0 0
      %4420 = vmatpush2.bf16.msra.mxu0 0
      %4421 = vmatprep.subr.bf16.mxu0 0
      %4422 = vmatpush2.bf16.msra.mxu0 0
      %4423 = vmatprep.subr.bf16.mxu0 0
      %4424 = vmatpush2.bf16.msra.mxu0 0
      %4425 = vmatprep.subr.bf16.mxu0 0
      %4426 = vmatpush2.bf16.msra.mxu0 0
      %4427 = vmatprep.subr.bf16.mxu0 0
      %4428 = vmatpush2.bf16.msra.mxu0 0
      %4429 = vmatprep.subr.bf16.mxu0 0
      %4430 = vmatpush2.bf16.msra.mxu0 0
      %4431 = vmatprep.subr.bf16.mxu0 0
      %4432 = vmatpush2.bf16.msra.mxu0 0
      %4433 = vmatprep.mubr.bf16.mxu0 0
      %4434 = vmatmul.mubr.bf16.gmra.mxu0 %v4358
      %v4435 = vpop.f32.mrf.mxu0
      %v4436 = vadd.f32 %v4395, %v4435
      %v4437 = vpop.f32.mrf.mxu0
      %v4438 = vpop.f32.mrf.mxu0
      %v4439 = vadd.f32 %v4398, %v4438
      %v4440 = vpop.f32.mrf.mxu0
      %4441 = vdwg.mxu0
      %v4443 = vsel %vm738, %v4350, 0
      %4445 = vmatprep.subr.bf16.mxu0 0
      %4446 = vmatpush1.bf16.msra.mxu0 0
      %4447 = vmatprep.subr.bf16.mxu0 0
      %4448 = vmatpush1.bf16.msra.mxu0 0
      %4449 = vmatprep.subr.bf16.mxu0 0
      %4450 = vmatpush1.bf16.msra.mxu0 0
      %4451 = vmatprep.subr.bf16.mxu0 0
      %4452 = vmatpush1.bf16.msra.mxu0 0
      %4453 = vmatprep.subr.bf16.mxu0 0
      %4454 = vmatpush1.bf16.msra.mxu0 0
      %4455 = vmatprep.subr.bf16.mxu0 0
      %4456 = vmatpush1.bf16.msra.mxu0 0
      %4457 = vmatprep.subr.bf16.mxu0 0
      %4458 = vmatpush1.bf16.msra.mxu0 0
      %4459 = vmatprep.subr.bf16.mxu0 0
      %4460 = vmatpush1.bf16.msra.mxu0 %v4351
      %4461 = vmatprep.subr.bf16.mxu0 0
      %4462 = vmatpush2.bf16.msra.mxu0 0
      %4463 = vmatprep.subr.bf16.mxu0 0
      %4464 = vmatpush2.bf16.msra.mxu0 0
      %4465 = vmatprep.subr.bf16.mxu0 0
      %4466 = vmatpush2.bf16.msra.mxu0 0
      %4467 = vmatprep.subr.bf16.mxu0 0
      %4468 = vmatpush2.bf16.msra.mxu0 0
      %4469 = vmatprep.subr.bf16.mxu0 0
      %4470 = vmatpush2.bf16.msra.mxu0 0
      %4471 = vmatprep.subr.bf16.mxu0 0
      %4472 = vmatpush2.bf16.msra.mxu0 0
      %4473 = vmatprep.subr.bf16.mxu0 0
      %4474 = vmatpush2.bf16.msra.mxu0 0
      %4475 = vmatprep.subr.bf16.mxu0 0
      %4476 = vmatpush2.bf16.msra.mxu0 0
      %4477 = vmatprep.mubr.bf16.mxu0 0
      %4478 = vmatmul.mubr.bf16.gmra.mxu0 %v4443
      %v4479 = vpop.f32.mrf.mxu0
      %v4480 = vadd.f32 0.0, %v4479
      %v4481 = vpop.f32.mrf.mxu0
      %v4482 = vpop.f32.mrf.mxu0
      %v4483 = vadd.f32 0.0, %v4482
      %v4484 = vpop.f32.mrf.mxu0
      %4485 = vdwg.mxu0
      %v4486 = vadd.f32 %v4436, %v4480
      %v4487 = vadd.f32 %v4439, %v4483
      %v4488 = vadd.f32 %v4208, %v4339
      %v4489 = vadd.f32 %v4209, %v4340
      %v4490 = vsub.f32 %v4486, %v4208
      %v4491 = vsub.f32 %v4487, %v4209
      %v4492 = vadd.f32 %v4490, %v4339
      %v4493 = vadd.f32 %v4491, %v4340
      %4494 = vst.msk [vmem:[%s639] sm:$0xff] %vm738, %v4488
      %4495 = vst.msk [vmem:[%s639 + $0x8] sm:$0xff] %vm738, %v4489
      %4496 = vst.msk [vmem:[%s648] sm:$0xff] %vm738, %v4492
      %4497 = vst.msk [vmem:[%s648 + $0x8] sm:$0xff] %vm738, %v4493
      %v4498 = vpack.c.bf16 %v4058, %v4057
      %v4499 = vunpack.c.l.bf16 %v4498
      %v4500 = vunpack.c.h.bf16 %v4498
      %v4501 = vsub.f32 %v4057, %v4499
      %v4502 = vsub.f32 %v4058, %v4500
      %v4503 = vpack.c.bf16 %v4502, %v4501
      %4504 = vmatprep.subr.bf16.mxu0 0
      %4505 = vmatpush1.bf16.msra.mxu0 0
      %4506 = vmatprep.subr.bf16.mxu0 0
      %4507 = vmatpush1.bf16.msra.mxu0 0
      %4508 = vmatprep.subr.bf16.mxu0 0
      %4509 = vmatpush1.bf16.msra.mxu0 0
      %4510 = vmatprep.subr.bf16.mxu0 0
      %4511 = vmatpush1.bf16.msra.mxu0 0
      %4512 = vmatprep.subr.bf16.mxu0 0
      %4513 = vmatpush1.bf16.msra.mxu0 0
      %4514 = vmatprep.subr.bf16.mxu0 0
      %4515 = vmatpush1.bf16.msra.mxu0 0
      %4516 = vmatprep.subr.bf16.mxu0 0
      %4517 = vmatpush1.bf16.msra.mxu0 0
      %4518 = vmatprep.subr.bf16.mxu0 0
      %4519 = vmatpush1.bf16.msra.mxu0 %v4503
      %4520 = vmatprep.subr.bf16.mxu0 0
      %4521 = vmatpush2.bf16.msra.mxu0 0
      %4522 = vmatprep.subr.bf16.mxu0 0
      %4523 = vmatpush2.bf16.msra.mxu0 0
      %4524 = vmatprep.subr.bf16.mxu0 0
      %4525 = vmatpush2.bf16.msra.mxu0 0
      %4526 = vmatprep.subr.bf16.mxu0 0
      %4527 = vmatpush2.bf16.msra.mxu0 0
      %4528 = vmatprep.subr.bf16.mxu0 0
      %4529 = vmatpush2.bf16.msra.mxu0 0
      %4530 = vmatprep.subr.bf16.mxu0 0
      %4531 = vmatpush2.bf16.msra.mxu0 0
      %4532 = vmatprep.subr.bf16.mxu0 0
      %4533 = vmatpush2.bf16.msra.mxu0 0
      %4534 = vmatprep.subr.bf16.mxu0 0
      %4535 = vmatpush2.bf16.msra.mxu0 0
      %4536 = vmatprep.mubr.bf16.mxu0 0
      %4537 = vmatmul.mubr.bf16.gmra.mxu0 %v740
      %v4538 = vpop.f32.mrf.mxu0
      %v4539 = vadd.f32 0.0, %v4538
      %v4540 = vpop.f32.mrf.mxu0
      %v4541 = vpop.f32.mrf.mxu0
      %v4542 = vadd.f32 0.0, %v4541
      %v4543 = vpop.f32.mrf.mxu0
      %4544 = vdwg.mxu0
      %4545 = vmatprep.subr.bf16.mxu0 0
      %4546 = vmatpush1.bf16.msra.mxu0 0
      %4547 = vmatprep.subr.bf16.mxu0 0
      %4548 = vmatpush1.bf16.msra.mxu0 0
      %4549 = vmatprep.subr.bf16.mxu0 0
      %4550 = vmatpush1.bf16.msra.mxu0 0
      %4551 = vmatprep.subr.bf16.mxu0 0
      %4552 = vmatpush1.bf16.msra.mxu0 0
      %4553 = vmatprep.subr.bf16.mxu0 0
      %4554 = vmatpush1.bf16.msra.mxu0 0
      %4555 = vmatprep.subr.bf16.mxu0 0
      %4556 = vmatpush1.bf16.msra.mxu0 0
      %4557 = vmatprep.subr.bf16.mxu0 0
      %4558 = vmatpush1.bf16.msra.mxu0 0
      %4559 = vmatprep.subr.bf16.mxu0 0
      %4560 = vmatpush1.bf16.msra.mxu0 %v4498
      %4561 = vmatprep.subr.bf16.mxu0 0
      %4562 = vmatpush2.bf16.msra.mxu0 0
      %4563 = vmatprep.subr.bf16.mxu0 0
      %4564 = vmatpush2.bf16.msra.mxu0 0
      %4565 = vmatprep.subr.bf16.mxu0 0
      %4566 = vmatpush2.bf16.msra.mxu0 0
      %4567 = vmatprep.subr.bf16.mxu0 0
      %4568 = vmatpush2.bf16.msra.mxu0 0
      %4569 = vmatprep.subr.bf16.mxu0 0
      %4570 = vmatpush2.bf16.msra.mxu0 0
      %4571 = vmatprep.subr.bf16.mxu0 0
      %4572 = vmatpush2.bf16.msra.mxu0 0
      %4573 = vmatprep.subr.bf16.mxu0 0
      %4574 = vmatpush2.bf16.msra.mxu0 0
      %4575 = vmatprep.subr.bf16.mxu0 0
      %4576 = vmatpush2.bf16.msra.mxu0 0
      %4577 = vmatprep.mubr.bf16.mxu0 0
      %4578 = vmatmul.mubr.bf16.gmra.mxu0 %v740
      %v4579 = vpop.f32.mrf.mxu0
      %v4580 = vadd.f32 %v4539, %v4579
      %v4581 = vpop.f32.mrf.mxu0
      %v4582 = vpop.f32.mrf.mxu0
      %v4583 = vadd.f32 %v4542, %v4582
      %v4584 = vpop.f32.mrf.mxu0
      %4585 = vdwg.mxu0
      %4586 = vmatprep.subr.bf16.mxu0 0
      %4587 = vmatpush1.bf16.msra.mxu0 0
      %4588 = vmatprep.subr.bf16.mxu0 0
      %4589 = vmatpush1.bf16.msra.mxu0 0
      %4590 = vmatprep.subr.bf16.mxu0 0
      %4591 = vmatpush1.bf16.msra.mxu0 0
      %4592 = vmatprep.subr.bf16.mxu0 0
      %4593 = vmatpush1.bf16.msra.mxu0 0
      %4594 = vmatprep.subr.bf16.mxu0 0
      %4595 = vmatpush1.bf16.msra.mxu0 0
      %4596 = vmatprep.subr.bf16.mxu0 0
      %4597 = vmatpush1.bf16.msra.mxu0 0
      %4598 = vmatprep.subr.bf16.mxu0 0
      %4599 = vmatpush1.bf16.msra.mxu0 0
      %4600 = vmatprep.subr.bf16.mxu0 0
      %4601 = vmatpush1.bf16.msra.mxu0 %v4498
      %4602 = vmatprep.subr.bf16.mxu0 0
      %4603 = vmatpush2.bf16.msra.mxu0 0
      %4604 = vmatprep.subr.bf16.mxu0 0
      %4605 = vmatpush2.bf16.msra.mxu0 0
      %4606 = vmatprep.subr.bf16.mxu0 0
      %4607 = vmatpush2.bf16.msra.mxu0 0
      %4608 = vmatprep.subr.bf16.mxu0 0
      %4609 = vmatpush2.bf16.msra.mxu0 0
      %4610 = vmatprep.subr.bf16.mxu0 0
      %4611 = vmatpush2.bf16.msra.mxu0 0
      %4612 = vmatprep.subr.bf16.mxu0 0
      %4613 = vmatpush2.bf16.msra.mxu0 0
      %4614 = vmatprep.subr.bf16.mxu0 0
      %4615 = vmatpush2.bf16.msra.mxu0 0
      %4616 = vmatprep.subr.bf16.mxu0 0
      %4617 = vmatpush2.bf16.msra.mxu0 0
      %4618 = vmatprep.mubr.bf16.mxu0 0
      %4619 = vmatmul.mubr.bf16.gmra.mxu0 %v825
      %v4620 = vpop.f32.mrf.mxu0
      %v4621 = vadd.f32 0.0, %v4620
      %v4622 = vpop.f32.mrf.mxu0
      %v4623 = vpop.f32.mrf.mxu0
      %v4624 = vadd.f32 0.0, %v4623
      %v4625 = vpop.f32.mrf.mxu0
      %4626 = vdwg.mxu0
      %v4627 = vadd.f32 %v4580, %v4621
      %v4628 = vadd.f32 %v4583, %v4624
      %v4629 = vpack.c.bf16 %v4074, %v4073
      %v4630 = vunpack.c.l.bf16 %v4629
      %v4631 = vunpack.c.h.bf16 %v4629
      %v4632 = vsub.f32 %v4073, %v4630
      %v4633 = vsub.f32 %v4074, %v4631
      %v4634 = vpack.c.bf16 %v4633, %v4632
      %4635 = vmatprep.subr.bf16.mxu0 0
      %4636 = vmatpush1.bf16.msra.mxu0 0
      %4637 = vmatprep.subr.bf16.mxu0 0
      %4638 = vmatpush1.bf16.msra.mxu0 0
      %4639 = vmatprep.subr.bf16.mxu0 0
      %4640 = vmatpush1.bf16.msra.mxu0 0
      %4641 = vmatprep.subr.bf16.mxu0 0
      %4642 = vmatpush1.bf16.msra.mxu0 0
      %4643 = vmatprep.subr.bf16.mxu0 0
      %4644 = vmatpush1.bf16.msra.mxu0 0
      %4645 = vmatprep.subr.bf16.mxu0 0
      %4646 = vmatpush1.bf16.msra.mxu0 0
      %4647 = vmatprep.subr.bf16.mxu0 0
      %4648 = vmatpush1.bf16.msra.mxu0 0
      %4649 = vmatprep.subr.bf16.mxu0 0
      %4650 = vmatpush1.bf16.msra.mxu0 %v4634
      %4651 = vmatprep.subr.bf16.mxu0 0
      %4652 = vmatpush2.bf16.msra.mxu0 0
      %4653 = vmatprep.subr.bf16.mxu0 0
      %4654 = vmatpush2.bf16.msra.mxu0 0
      %4655 = vmatprep.subr.bf16.mxu0 0
      %4656 = vmatpush2.bf16.msra.mxu0 0
      %4657 = vmatprep.subr.bf16.mxu0 0
      %4658 = vmatpush2.bf16.msra.mxu0 0
      %4659 = vmatprep.subr.bf16.mxu0 0
      %4660 = vmatpush2.bf16.msra.mxu0 0
      %4661 = vmatprep.subr.bf16.mxu0 0
      %4662 = vmatpush2.bf16.msra.mxu0 0
      %4663 = vmatprep.subr.bf16.mxu0 0
      %4664 = vmatpush2.bf16.msra.mxu0 0
      %4665 = vmatprep.subr.bf16.mxu0 0
      %4666 = vmatpush2.bf16.msra.mxu0 0
      %4667 = vmatprep.mubr.bf16.mxu0 0
      %4668 = vmatmul.mubr.bf16.gmra.mxu0 %v883
      %v4669 = vpop.f32.mrf.mxu0
      %v4670 = vadd.f32 0.0, %v4669
      %v4671 = vpop.f32.mrf.mxu0
      %v4672 = vpop.f32.mrf.mxu0
      %v4673 = vadd.f32 0.0, %v4672
      %v4674 = vpop.f32.mrf.mxu0
      %4675 = vdwg.mxu0
      %4676 = vmatprep.subr.bf16.mxu0 0
      %4677 = vmatpush1.bf16.msra.mxu0 0
      %4678 = vmatprep.subr.bf16.mxu0 0
      %4679 = vmatpush1.bf16.msra.mxu0 0
      %4680 = vmatprep.subr.bf16.mxu0 0
      %4681 = vmatpush1.bf16.msra.mxu0 0
      %4682 = vmatprep.subr.bf16.mxu0 0
      %4683 = vmatpush1.bf16.msra.mxu0 0
      %4684 = vmatprep.subr.bf16.mxu0 0
      %4685 = vmatpush1.bf16.msra.mxu0 0
      %4686 = vmatprep.subr.bf16.mxu0 0
      %4687 = vmatpush1.bf16.msra.mxu0 0
      %4688 = vmatprep.subr.bf16.mxu0 0
      %4689 = vmatpush1.bf16.msra.mxu0 0
      %4690 = vmatprep.subr.bf16.mxu0 0
      %4691 = vmatpush1.bf16.msra.mxu0 %v4629
      %4692 = vmatprep.subr.bf16.mxu0 0
      %4693 = vmatpush2.bf16.msra.mxu0 0
      %4694 = vmatprep.subr.bf16.mxu0 0
      %4695 = vmatpush2.bf16.msra.mxu0 0
      %4696 = vmatprep.subr.bf16.mxu0 0
      %4697 = vmatpush2.bf16.msra.mxu0 0
      %4698 = vmatprep.subr.bf16.mxu0 0
      %4699 = vmatpush2.bf16.msra.mxu0 0
      %4700 = vmatprep.subr.bf16.mxu0 0
      %4701 = vmatpush2.bf16.msra.mxu0 0
      %4702 = vmatprep.subr.bf16.mxu0 0
      %4703 = vmatpush2.bf16.msra.mxu0 0
      %4704 = vmatprep.subr.bf16.mxu0 0
      %4705 = vmatpush2.bf16.msra.mxu0 0
      %4706 = vmatprep.subr.bf16.mxu0 0
      %4707 = vmatpush2.bf16.msra.mxu0 0
      %4708 = vmatprep.mubr.bf16.mxu0 0
      %4709 = vmatmul.mubr.bf16.gmra.mxu0 %v883
      %v4710 = vpop.f32.mrf.mxu0
      %v4711 = vadd.f32 %v4670, %v4710
      %v4712 = vpop.f32.mrf.mxu0
      %v4713 = vpop.f32.mrf.mxu0
      %v4714 = vadd.f32 %v4673, %v4713
      %v4715 = vpop.f32.mrf.mxu0
      %4716 = vdwg.mxu0
      %4717 = vmatprep.subr.bf16.mxu0 0
      %4718 = vmatpush1.bf16.msra.mxu0 0
      %4719 = vmatprep.subr.bf16.mxu0 0
      %4720 = vmatpush1.bf16.msra.mxu0 0
      %4721 = vmatprep.subr.bf16.mxu0 0
      %4722 = vmatpush1.bf16.msra.mxu0 0
      %4723 = vmatprep.subr.bf16.mxu0 0
      %4724 = vmatpush1.bf16.msra.mxu0 0
      %4725 = vmatprep.subr.bf16.mxu0 0
      %4726 = vmatpush1.bf16.msra.mxu0 0
      %4727 = vmatprep.subr.bf16.mxu0 0
      %4728 = vmatpush1.bf16.msra.mxu0 0
      %4729 = vmatprep.subr.bf16.mxu0 0
      %4730 = vmatpush1.bf16.msra.mxu0 0
      %4731 = vmatprep.subr.bf16.mxu0 0
      %4732 = vmatpush1.bf16.msra.mxu0 %v4629
      %4733 = vmatprep.subr.bf16.mxu0 0
      %4734 = vmatpush2.bf16.msra.mxu0 0
      %4735 = vmatprep.subr.bf16.mxu0 0
      %4736 = vmatpush2.bf16.msra.mxu0 0
      %4737 = vmatprep.subr.bf16.mxu0 0
      %4738 = vmatpush2.bf16.msra.mxu0 0
      %4739 = vmatprep.subr.bf16.mxu0 0
      %4740 = vmatpush2.bf16.msra.mxu0 0
      %4741 = vmatprep.subr.bf16.mxu0 0
      %4742 = vmatpush2.bf16.msra.mxu0 0
      %4743 = vmatprep.subr.bf16.mxu0 0
      %4744 = vmatpush2.bf16.msra.mxu0 0
      %4745 = vmatprep.subr.bf16.mxu0 0
      %4746 = vmatpush2.bf16.msra.mxu0 0
      %4747 = vmatprep.subr.bf16.mxu0 0
      %4748 = vmatpush2.bf16.msra.mxu0 0
      %4749 = vmatprep.mubr.bf16.mxu0 0
      %4750 = vmatmul.mubr.bf16.gmra.mxu0 %v968
      %v4751 = vpop.f32.mrf.mxu0
      %v4752 = vadd.f32 0.0, %v4751
      %v4753 = vpop.f32.mrf.mxu0
      %v4754 = vpop.f32.mrf.mxu0
      %v4755 = vadd.f32 0.0, %v4754
      %v4756 = vpop.f32.mrf.mxu0
      %4757 = vdwg.mxu0
      %v4758 = vadd.f32 %v4711, %v4752
      %v4759 = vadd.f32 %v4714, %v4755
      %v4760 = vadd.f32 %v4057, %v4073
      %v4761 = vadd.f32 %v4058, %v4074
      %v4762 = vpack.c.bf16 %v4761, %v4760
      %v4763 = vunpack.c.l.bf16 %v4762
      %v4764 = vunpack.c.h.bf16 %v4762
      %v4765 = vsub.f32 %v4760, %v4763
      %v4766 = vsub.f32 %v4761, %v4764
      %v4767 = vpack.c.bf16 %v4766, %v4765
      %4768 = vmatprep.subr.bf16.mxu0 0
      %4769 = vmatpush1.bf16.msra.mxu0 0
      %4770 = vmatprep.subr.bf16.mxu0 0
      %4771 = vmatpush1.bf16.msra.mxu0 0
      %4772 = vmatprep.subr.bf16.mxu0 0
      %4773 = vmatpush1.bf16.msra.mxu0 0
      %4774 = vmatprep.subr.bf16.mxu0 0
      %4775 = vmatpush1.bf16.msra.mxu0 0
      %4776 = vmatprep.subr.bf16.mxu0 0
      %4777 = vmatpush1.bf16.msra.mxu0 0
      %4778 = vmatprep.subr.bf16.mxu0 0
      %4779 = vmatpush1.bf16.msra.mxu0 0
      %4780 = vmatprep.subr.bf16.mxu0 0
      %4781 = vmatpush1.bf16.msra.mxu0 0
      %4782 = vmatprep.subr.bf16.mxu0 0
      %4783 = vmatpush1.bf16.msra.mxu0 %v4767
      %4784 = vmatprep.subr.bf16.mxu0 0
      %4785 = vmatpush2.bf16.msra.mxu0 0
      %4786 = vmatprep.subr.bf16.mxu0 0
      %4787 = vmatpush2.bf16.msra.mxu0 0
      %4788 = vmatprep.subr.bf16.mxu0 0
      %4789 = vmatpush2.bf16.msra.mxu0 0
      %4790 = vmatprep.subr.bf16.mxu0 0
      %4791 = vmatpush2.bf16.msra.mxu0 0
      %4792 = vmatprep.subr.bf16.mxu0 0
      %4793 = vmatpush2.bf16.msra.mxu0 0
      %4794 = vmatprep.subr.bf16.mxu0 0
      %4795 = vmatpush2.bf16.msra.mxu0 0
      %4796 = vmatprep.subr.bf16.mxu0 0
      %4797 = vmatpush2.bf16.msra.mxu0 0
      %4798 = vmatprep.subr.bf16.mxu0 0
      %4799 = vmatpush2.bf16.msra.mxu0 0
      %4800 = vmatprep.mubr.bf16.mxu0 0
      %4801 = vmatmul.mubr.bf16.gmra.mxu0 %v4358
      %v4802 = vpop.f32.mrf.mxu0
      %v4803 = vadd.f32 0.0, %v4802
      %v4804 = vpop.f32.mrf.mxu0
      %v4805 = vpop.f32.mrf.mxu0
      %v4806 = vadd.f32 0.0, %v4805
      %v4807 = vpop.f32.mrf.mxu0
      %4808 = vdwg.mxu0
      %4809 = vmatprep.subr.bf16.mxu0 0
      %4810 = vmatpush1.bf16.msra.mxu0 0
      %4811 = vmatprep.subr.bf16.mxu0 0
      %4812 = vmatpush1.bf16.msra.mxu0 0
      %4813 = vmatprep.subr.bf16.mxu0 0
      %4814 = vmatpush1.bf16.msra.mxu0 0
      %4815 = vmatprep.subr.bf16.mxu0 0
      %4816 = vmatpush1.bf16.msra.mxu0 0
      %4817 = vmatprep.subr.bf16.mxu0 0
      %4818 = vmatpush1.bf16.msra.mxu0 0
      %4819 = vmatprep.subr.bf16.mxu0 0
      %4820 = vmatpush1.bf16.msra.mxu0 0
      %4821 = vmatprep.subr.bf16.mxu0 0
      %4822 = vmatpush1.bf16.msra.mxu0 0
      %4823 = vmatprep.subr.bf16.mxu0 0
      %4824 = vmatpush1.bf16.msra.mxu0 %v4762
      %4825 = vmatprep.subr.bf16.mxu0 0
      %4826 = vmatpush2.bf16.msra.mxu0 0
      %4827 = vmatprep.subr.bf16.mxu0 0
      %4828 = vmatpush2.bf16.msra.mxu0 0
      %4829 = vmatprep.subr.bf16.mxu0 0
      %4830 = vmatpush2.bf16.msra.mxu0 0
      %4831 = vmatprep.subr.bf16.mxu0 0
      %4832 = vmatpush2.bf16.msra.mxu0 0
      %4833 = vmatprep.subr.bf16.mxu0 0
      %4834 = vmatpush2.bf16.msra.mxu0 0
      %4835 = vmatprep.subr.bf16.mxu0 0
      %4836 = vmatpush2.bf16.msra.mxu0 0
      %4837 = vmatprep.subr.bf16.mxu0 0
      %4838 = vmatpush2.bf16.msra.mxu0 0
      %4839 = vmatprep.subr.bf16.mxu0 0
      %4840 = vmatpush2.bf16.msra.mxu0 0
      %4841 = vmatprep.mubr.bf16.mxu0 0
      %4842 = vmatmul.mubr.bf16.gmra.mxu0 %v4358
      %v4843 = vpop.f32.mrf.mxu0
      %v4844 = vadd.f32 %v4803, %v4843
      %v4845 = vpop.f32.mrf.mxu0
      %v4846 = vpop.f32.mrf.mxu0
      %v4847 = vadd.f32 %v4806, %v4846
      %v4848 = vpop.f32.mrf.mxu0
      %4849 = vdwg.mxu0
      %4850 = vmatprep.subr.bf16.mxu0 0
      %4851 = vmatpush1.bf16.msra.mxu0 0
      %4852 = vmatprep.subr.bf16.mxu0 0
      %4853 = vmatpush1.bf16.msra.mxu0 0
      %4854 = vmatprep.subr.bf16.mxu0 0
      %4855 = vmatpush1.bf16.msra.mxu0 0
      %4856 = vmatprep.subr.bf16.mxu0 0
      %4857 = vmatpush1.bf16.msra.mxu0 0
      %4858 = vmatprep.subr.bf16.mxu0 0
      %4859 = vmatpush1.bf16.msra.mxu0 0
      %4860 = vmatprep.subr.bf16.mxu0 0
      %4861 = vmatpush1.bf16.msra.mxu0 0
      %4862 = vmatprep.subr.bf16.mxu0 0
      %4863 = vmatpush1.bf16.msra.mxu0 0
      %4864 = vmatprep.subr.bf16.mxu0 0
      %4865 = vmatpush1.bf16.msra.mxu0 %v4762
      %4866 = vmatprep.subr.bf16.mxu0 0
      %4867 = vmatpush2.bf16.msra.mxu0 0
      %4868 = vmatprep.subr.bf16.mxu0 0
      %4869 = vmatpush2.bf16.msra.mxu0 0
      %4870 = vmatprep.subr.bf16.mxu0 0
      %4871 = vmatpush2.bf16.msra.mxu0 0
      %4872 = vmatprep.subr.bf16.mxu0 0
      %4873 = vmatpush2.bf16.msra.mxu0 0
      %4874 = vmatprep.subr.bf16.mxu0 0
      %4875 = vmatpush2.bf16.msra.mxu0 0
      %4876 = vmatprep.subr.bf16.mxu0 0
      %4877 = vmatpush2.bf16.msra.mxu0 0
      %4878 = vmatprep.subr.bf16.mxu0 0
      %4879 = vmatpush2.bf16.msra.mxu0 0
      %4880 = vmatprep.subr.bf16.mxu0 0
      %4881 = vmatpush2.bf16.msra.mxu0 0
      %4882 = vmatprep.mubr.bf16.mxu0 0
      %4883 = vmatmul.mubr.bf16.gmra.mxu0 %v4443
      %v4884 = vpop.f32.mrf.mxu0
      %v4885 = vadd.f32 0.0, %v4884
      %v4886 = vpop.f32.mrf.mxu0
      %v4887 = vpop.f32.mrf.mxu0
      %v4888 = vadd.f32 0.0, %v4887
      %v4889 = vpop.f32.mrf.mxu0
      %4890 = vdwg.mxu0
      %v4891 = vadd.f32 %v4844, %v4885
      %v4892 = vadd.f32 %v4847, %v4888
      %v4893 = vadd.f32 %v4627, %v4758
      %v4894 = vadd.f32 %v4628, %v4759
      %v4895 = vsub.f32 %v4891, %v4627
      %v4896 = vsub.f32 %v4892, %v4628
      %v4897 = vadd.f32 %v4895, %v4758
      %v4898 = vadd.f32 %v4896, %v4759
      %4899 = vst.msk [vmem:[%s639 + $0x10] sm:$0xff] %vm738, %v4893
      %4900 = vst.msk [vmem:[%s639 + $0x18] sm:$0xff] %vm738, %v4894
      %4901 = vst.msk [vmem:[%s648 + $0x10] sm:$0xff] %vm738, %v4897
      %4902 = vst.msk [vmem:[%s648 + $0x18] sm:$0xff] %vm738, %v4898
      %v4903 = vpack.c.bf16 %v4060, %v4059
      %v4904 = vunpack.c.l.bf16 %v4903
      %v4905 = vunpack.c.h.bf16 %v4903
      %v4906 = vsub.f32 %v4059, %v4904
      %v4907 = vsub.f32 %v4060, %v4905
      %v4908 = vpack.c.bf16 %v4907, %v4906
      %4909 = vmatprep.subr.bf16.mxu0 0
      %4910 = vmatpush1.bf16.msra.mxu0 0
      %4911 = vmatprep.subr.bf16.mxu0 0
      %4912 = vmatpush1.bf16.msra.mxu0 0
      %4913 = vmatprep.subr.bf16.mxu0 0
      %4914 = vmatpush1.bf16.msra.mxu0 0
      %4915 = vmatprep.subr.bf16.mxu0 0
      %4916 = vmatpush1.bf16.msra.mxu0 0
      %4917 = vmatprep.subr.bf16.mxu0 0
      %4918 = vmatpush1.bf16.msra.mxu0 0
      %4919 = vmatprep.subr.bf16.mxu0 0
      %4920 = vmatpush1.bf16.msra.mxu0 0
      %4921 = vmatprep.subr.bf16.mxu0 0
      %4922 = vmatpush1.bf16.msra.mxu0 0
      %4923 = vmatprep.subr.bf16.mxu0 0
      %4924 = vmatpush1.bf16.msra.mxu0 %v4908
      %4925 = vmatprep.subr.bf16.mxu0 0
      %4926 = vmatpush2.bf16.msra.mxu0 0
      %4927 = vmatprep.subr.bf16.mxu0 0
      %4928 = vmatpush2.bf16.msra.mxu0 0
      %4929 = vmatprep.subr.bf16.mxu0 0
      %4930 = vmatpush2.bf16.msra.mxu0 0
      %4931 = vmatprep.subr.bf16.mxu0 0
      %4932 = vmatpush2.bf16.msra.mxu0 0
      %4933 = vmatprep.subr.bf16.mxu0 0
      %4934 = vmatpush2.bf16.msra.mxu0 0
      %4935 = vmatprep.subr.bf16.mxu0 0
      %4936 = vmatpush2.bf16.msra.mxu0 0
      %4937 = vmatprep.subr.bf16.mxu0 0
      %4938 = vmatpush2.bf16.msra.mxu0 0
      %4939 = vmatprep.subr.bf16.mxu0 0
      %4940 = vmatpush2.bf16.msra.mxu0 0
      %4941 = vmatprep.mubr.bf16.mxu0 0
      %4942 = vmatmul.mubr.bf16.gmra.mxu0 %v740
      %v4943 = vpop.f32.mrf.mxu0
      %v4944 = vadd.f32 0.0, %v4943
      %v4945 = vpop.f32.mrf.mxu0
      %v4946 = vpop.f32.mrf.mxu0
      %v4947 = vadd.f32 0.0, %v4946
      %v4948 = vpop.f32.mrf.mxu0
      %4949 = vdwg.mxu0
      %4950 = vmatprep.subr.bf16.mxu0 0
      %4951 = vmatpush1.bf16.msra.mxu0 0
      %4952 = vmatprep.subr.bf16.mxu0 0
      %4953 = vmatpush1.bf16.msra.mxu0 0
      %4954 = vmatprep.subr.bf16.mxu0 0
      %4955 = vmatpush1.bf16.msra.mxu0 0
      %4956 = vmatprep.subr.bf16.mxu0 0
      %4957 = vmatpush1.bf16.msra.mxu0 0
      %4958 = vmatprep.subr.bf16.mxu0 0
      %4959 = vmatpush1.bf16.msra.mxu0 0
      %4960 = vmatprep.subr.bf16.mxu0 0
      %4961 = vmatpush1.bf16.msra.mxu0 0
      %4962 = vmatprep.subr.bf16.mxu0 0
      %4963 = vmatpush1.bf16.msra.mxu0 0
      %4964 = vmatprep.subr.bf16.mxu0 0
      %4965 = vmatpush1.bf16.msra.mxu0 %v4903
      %4966 = vmatprep.subr.bf16.mxu0 0
      %4967 = vmatpush2.bf16.msra.mxu0 0
      %4968 = vmatprep.subr.bf16.mxu0 0
      %4969 = vmatpush2.bf16.msra.mxu0 0
      %4970 = vmatprep.subr.bf16.mxu0 0
      %4971 = vmatpush2.bf16.msra.mxu0 0
      %4972 = vmatprep.subr.bf16.mxu0 0
      %4973 = vmatpush2.bf16.msra.mxu0 0
      %4974 = vmatprep.subr.bf16.mxu0 0
      %4975 = vmatpush2.bf16.msra.mxu0 0
      %4976 = vmatprep.subr.bf16.mxu0 0
      %4977 = vmatpush2.bf16.msra.mxu0 0
      %4978 = vmatprep.subr.bf16.mxu0 0
      %4979 = vmatpush2.bf16.msra.mxu0 0
      %4980 = vmatprep.subr.bf16.mxu0 0
      %4981 = vmatpush2.bf16.msra.mxu0 0
      %4982 = vmatprep.mubr.bf16.mxu0 0
      %4983 = vmatmul.mubr.bf16.gmra.mxu0 %v740
      %v4984 = vpop.f32.mrf.mxu0
      %v4985 = vadd.f32 %v4944, %v4984
      %v4986 = vpop.f32.mrf.mxu0
      %v4987 = vpop.f32.mrf.mxu0
      %v4988 = vadd.f32 %v4947, %v4987
      %v4989 = vpop.f32.mrf.mxu0
      %4990 = vdwg.mxu0
      %4991 = vmatprep.subr.bf16.mxu0 0
      %4992 = vmatpush1.bf16.msra.mxu0 0
      %4993 = vmatprep.subr.bf16.mxu0 0
      %4994 = vmatpush1.bf16.msra.mxu0 0
      %4995 = vmatprep.subr.bf16.mxu0 0
      %4996 = vmatpush1.bf16.msra.mxu0 0
      %4997 = vmatprep.subr.bf16.mxu0 0
      %4998 = vmatpush1.bf16.msra.mxu0 0
      %4999 = vmatprep.subr.bf16.mxu0 0
      %5000 = vmatpush1.bf16.msra.mxu0 0
      %5001 = vmatprep.subr.bf16.mxu0 0
      %5002 = vmatpush1.bf16.msra.mxu0 0
      %5003 = vmatprep.subr.bf16.mxu0 0
      %5004 = vmatpush1.bf16.msra.mxu0 0
      %5005 = vmatprep.subr.bf16.mxu0 0
      %5006 = vmatpush1.bf16.msra.mxu0 %v4903
      %5007 = vmatprep.subr.bf16.mxu0 0
      %5008 = vmatpush2.bf16.msra.mxu0 0
      %5009 = vmatprep.subr.bf16.mxu0 0
      %5010 = vmatpush2.bf16.msra.mxu0 0
      %5011 = vmatprep.subr.bf16.mxu0 0
      %5012 = vmatpush2.bf16.msra.mxu0 0
      %5013 = vmatprep.subr.bf16.mxu0 0
      %5014 = vmatpush2.bf16.msra.mxu0 0
      %5015 = vmatprep.subr.bf16.mxu0 0
      %5016 = vmatpush2.bf16.msra.mxu0 0
      %5017 = vmatprep.subr.bf16.mxu0 0
      %5018 = vmatpush2.bf16.msra.mxu0 0
      %5019 = vmatprep.subr.bf16.mxu0 0
      %5020 = vmatpush2.bf16.msra.mxu0 0
      %5021 = vmatprep.subr.bf16.mxu0 0
      %5022 = vmatpush2.bf16.msra.mxu0 0
      %5023 = vmatprep.mubr.bf16.mxu0 0
      %5024 = vmatmul.mubr.bf16.gmra.mxu0 %v825
      %v5025 = vpop.f32.mrf.mxu0
      %v5026 = vadd.f32 0.0, %v5025
      %v5027 = vpop.f32.mrf.mxu0
      %v5028 = vpop.f32.mrf.mxu0
      %v5029 = vadd.f32 0.0, %v5028
      %v5030 = vpop.f32.mrf.mxu0
      %5031 = vdwg.mxu0
      %v5032 = vadd.f32 %v4985, %v5026
      %v5033 = vadd.f32 %v4988, %v5029
      %v5034 = vpack.c.bf16 %v4076, %v4075
      %v5035 = vunpack.c.l.bf16 %v5034
      %v5036 = vunpack.c.h.bf16 %v5034
      %v5037 = vsub.f32 %v4075, %v5035
      %v5038 = vsub.f32 %v4076, %v5036
      %v5039 = vpack.c.bf16 %v5038, %v5037
      %5040 = vmatprep.subr.bf16.mxu0 0
      %5041 = vmatpush1.bf16.msra.mxu0 0
      %5042 = vmatprep.subr.bf16.mxu0 0
      %5043 = vmatpush1.bf16.msra.mxu0 0
      %5044 = vmatprep.subr.bf16.mxu0 0
      %5045 = vmatpush1.bf16.msra.mxu0 0
      %5046 = vmatprep.subr.bf16.mxu0 0
      %5047 = vmatpush1.bf16.msra.mxu0 0
      %5048 = vmatprep.subr.bf16.mxu0 0
      %5049 = vmatpush1.bf16.msra.mxu0 0
      %5050 = vmatprep.subr.bf16.mxu0 0
      %5051 = vmatpush1.bf16.msra.mxu0 0
      %5052 = vmatprep.subr.bf16.mxu0 0
      %5053 = vmatpush1.bf16.msra.mxu0 0
      %5054 = vmatprep.subr.bf16.mxu0 0
      %5055 = vmatpush1.bf16.msra.mxu0 %v5039
      %5056 = vmatprep.subr.bf16.mxu0 0
      %5057 = vmatpush2.bf16.msra.mxu0 0
      %5058 = vmatprep.subr.bf16.mxu0 0
      %5059 = vmatpush2.bf16.msra.mxu0 0
      %5060 = vmatprep.subr.bf16.mxu0 0
      %5061 = vmatpush2.bf16.msra.mxu0 0
      %5062 = vmatprep.subr.bf16.mxu0 0
      %5063 = vmatpush2.bf16.msra.mxu0 0
      %5064 = vmatprep.subr.bf16.mxu0 0
      %5065 = vmatpush2.bf16.msra.mxu0 0
      %5066 = vmatprep.subr.bf16.mxu0 0
      %5067 = vmatpush2.bf16.msra.mxu0 0
      %5068 = vmatprep.subr.bf16.mxu0 0
      %5069 = vmatpush2.bf16.msra.mxu0 0
      %5070 = vmatprep.subr.bf16.mxu0 0
      %5071 = vmatpush2.bf16.msra.mxu0 0
      %5072 = vmatprep.mubr.bf16.mxu0 0
      %5073 = vmatmul.mubr.bf16.gmra.mxu0 %v883
      %v5074 = vpop.f32.mrf.mxu0
      %v5075 = vadd.f32 0.0, %v5074
      %v5076 = vpop.f32.mrf.mxu0
      %v5077 = vpop.f32.mrf.mxu0
      %v5078 = vadd.f32 0.0, %v5077
      %v5079 = vpop.f32.mrf.mxu0
      %5080 = vdwg.mxu0
      %5081 = vmatprep.subr.bf16.mxu0 0
      %5082 = vmatpush1.bf16.msra.mxu0 0
      %5083 = vmatprep.subr.bf16.mxu0 0
      %5084 = vmatpush1.bf16.msra.mxu0 0
      %5085 = vmatprep.subr.bf16.mxu0 0
      %5086 = vmatpush1.bf16.msra.mxu0 0
      %5087 = vmatprep.subr.bf16.mxu0 0
      %5088 = vmatpush1.bf16.msra.mxu0 0
      %5089 = vmatprep.subr.bf16.mxu0 0
      %5090 = vmatpush1.bf16.msra.mxu0 0
      %5091 = vmatprep.subr.bf16.mxu0 0
      %5092 = vmatpush1.bf16.msra.mxu0 0
      %5093 = vmatprep.subr.bf16.mxu0 0
      %5094 = vmatpush1.bf16.msra.mxu0 0
      %5095 = vmatprep.subr.bf16.mxu0 0
      %5096 = vmatpush1.bf16.msra.mxu0 %v5034
      %5097 = vmatprep.subr.bf16.mxu0 0
      %5098 = vmatpush2.bf16.msra.mxu0 0
      %5099 = vmatprep.subr.bf16.mxu0 0
      %5100 = vmatpush2.bf16.msra.mxu0 0
      %5101 = vmatprep.subr.bf16.mxu0 0
      %5102 = vmatpush2.bf16.msra.mxu0 0
      %5103 = vmatprep.subr.bf16.mxu0 0
      %5104 = vmatpush2.bf16.msra.mxu0 0
      %5105 = vmatprep.subr.bf16.mxu0 0
      %5106 = vmatpush2.bf16.msra.mxu0 0
      %5107 = vmatprep.subr.bf16.mxu0 0
      %5108 = vmatpush2.bf16.msra.mxu0 0
      %5109 = vmatprep.subr.bf16.mxu0 0
      %5110 = vmatpush2.bf16.msra.mxu0 0
      %5111 = vmatprep.subr.bf16.mxu0 0
      %5112 = vmatpush2.bf16.msra.mxu0 0
      %5113 = vmatprep.mubr.bf16.mxu0 0
      %5114 = vmatmul.mubr.bf16.gmra.mxu0 %v883
      %v5115 = vpop.f32.mrf.mxu0
      %v5116 = vadd.f32 %v5075, %v5115
      %v5117 = vpop.f32.mrf.mxu0
      %v5118 = vpop.f32.mrf.mxu0
      %v5119 = vadd.f32 %v5078, %v5118
      %v5120 = vpop.f32.mrf.mxu0
      %5121 = vdwg.mxu0
      %5122 = vmatprep.subr.bf16.mxu0 0
      %5123 = vmatpush1.bf16.msra.mxu0 0
      %5124 = vmatprep.subr.bf16.mxu0 0
      %5125 = vmatpush1.bf16.msra.mxu0 0
      %5126 = vmatprep.subr.bf16.mxu0 0
      %5127 = vmatpush1.bf16.msra.mxu0 0
      %5128 = vmatprep.subr.bf16.mxu0 0
      %5129 = vmatpush1.bf16.msra.mxu0 0
      %5130 = vmatprep.subr.bf16.mxu0 0
      %5131 = vmatpush1.bf16.msra.mxu0 0
      %5132 = vmatprep.subr.bf16.mxu0 0
      %5133 = vmatpush1.bf16.msra.mxu0 0
      %5134 = vmatprep.subr.bf16.mxu0 0
      %5135 = vmatpush1.bf16.msra.mxu0 0
      %5136 = vmatprep.subr.bf16.mxu0 0
      %5137 = vmatpush1.bf16.msra.mxu0 %v5034
      %5138 = vmatprep.subr.bf16.mxu0 0
      %5139 = vmatpush2.bf16.msra.mxu0 0
      %5140 = vmatprep.subr.bf16.mxu0 0
      %5141 = vmatpush2.bf16.msra.mxu0 0
      %5142 = vmatprep.subr.bf16.mxu0 0
      %5143 = vmatpush2.bf16.msra.mxu0 0
      %5144 = vmatprep.subr.bf16.mxu0 0
      %5145 = vmatpush2.bf16.msra.mxu0 0
      %5146 = vmatprep.subr.bf16.mxu0 0
      %5147 = vmatpush2.bf16.msra.mxu0 0
      %5148 = vmatprep.subr.bf16.mxu0 0
      %5149 = vmatpush2.bf16.msra.mxu0 0
      %5150 = vmatprep.subr.bf16.mxu0 0
      %5151 = vmatpush2.bf16.msra.mxu0 0
      %5152 = vmatprep.subr.bf16.mxu0 0
      %5153 = vmatpush2.bf16.msra.mxu0 0
      %5154 = vmatprep.mubr.bf16.mxu0 0
      %5155 = vmatmul.mubr.bf16.gmra.mxu0 %v968
      %v5156 = vpop.f32.mrf.mxu0
      %v5157 = vadd.f32 0.0, %v5156
      %v5158 = vpop.f32.mrf.mxu0
      %v5159 = vpop.f32.mrf.mxu0
      %v5160 = vadd.f32 0.0, %v5159
      %v5161 = vpop.f32.mrf.mxu0
      %5162 = vdwg.mxu0
      %v5163 = vadd.f32 %v5116, %v5157
      %v5164 = vadd.f32 %v5119, %v5160
      %v5165 = vadd.f32 %v4059, %v4075
      %v5166 = vadd.f32 %v4060, %v4076
      %v5167 = vpack.c.bf16 %v5166, %v5165
      %v5168 = vunpack.c.l.bf16 %v5167
      %v5169 = vunpack.c.h.bf16 %v5167
      %v5170 = vsub.f32 %v5165, %v5168
      %v5171 = vsub.f32 %v5166, %v5169
      %v5172 = vpack.c.bf16 %v5171, %v5170
      %5173 = vmatprep.subr.bf16.mxu0 0
      %5174 = vmatpush1.bf16.msra.mxu0 0
      %5175 = vmatprep.subr.bf16.mxu0 0
      %5176 = vmatpush1.bf16.msra.mxu0 0
      %5177 = vmatprep.subr.bf16.mxu0 0
      %5178 = vmatpush1.bf16.msra.mxu0 0
      %5179 = vmatprep.subr.bf16.mxu0 0
      %5180 = vmatpush1.bf16.msra.mxu0 0
      %5181 = vmatprep.subr.bf16.mxu0 0
      %5182 = vmatpush1.bf16.msra.mxu0 0
      %5183 = vmatprep.subr.bf16.mxu0 0
      %5184 = vmatpush1.bf16.msra.mxu0 0
      %5185 = vmatprep.subr.bf16.mxu0 0
      %5186 = vmatpush1.bf16.msra.mxu0 0
      %5187 = vmatprep.subr.bf16.mxu0 0
      %5188 = vmatpush1.bf16.msra.mxu0 %v5172
      %5189 = vmatprep.subr.bf16.mxu0 0
      %5190 = vmatpush2.bf16.msra.mxu0 0
      %5191 = vmatprep.subr.bf16.mxu0 0
      %5192 = vmatpush2.bf16.msra.mxu0 0
      %5193 = vmatprep.subr.bf16.mxu0 0
      %5194 = vmatpush2.bf16.msra.mxu0 0
      %5195 = vmatprep.subr.bf16.mxu0 0
      %5196 = vmatpush2.bf16.msra.mxu0 0
      %5197 = vmatprep.subr.bf16.mxu0 0
      %5198 = vmatpush2.bf16.msra.mxu0 0
      %5199 = vmatprep.subr.bf16.mxu0 0
      %5200 = vmatpush2.bf16.msra.mxu0 0
      %5201 = vmatprep.subr.bf16.mxu0 0
      %5202 = vmatpush2.bf16.msra.mxu0 0
      %5203 = vmatprep.subr.bf16.mxu0 0
      %5204 = vmatpush2.bf16.msra.mxu0 0
      %5205 = vmatprep.mubr.bf16.mxu0 0
      %5206 = vmatmul.mubr.bf16.gmra.mxu0 %v4358
      %v5207 = vpop.f32.mrf.mxu0
      %v5208 = vadd.f32 0.0, %v5207
      %v5209 = vpop.f32.mrf.mxu0
      %v5210 = vpop.f32.mrf.mxu0
      %v5211 = vadd.f32 0.0, %v5210
      %v5212 = vpop.f32.mrf.mxu0
      %5213 = vdwg.mxu0
      %5214 = vmatprep.subr.bf16.mxu0 0
      %5215 = vmatpush1.bf16.msra.mxu0 0
      %5216 = vmatprep.subr.bf16.mxu0 0
      %5217 = vmatpush1.bf16.msra.mxu0 0
      %5218 = vmatprep.subr.bf16.mxu0 0
      %5219 = vmatpush1.bf16.msra.mxu0 0
      %5220 = vmatprep.subr.bf16.mxu0 0
      %5221 = vmatpush1.bf16.msra.mxu0 0
      %5222 = vmatprep.subr.bf16.mxu0 0
      %5223 = vmatpush1.bf16.msra.mxu0 0
      %5224 = vmatprep.subr.bf16.mxu0 0
      %5225 = vmatpush1.bf16.msra.mxu0 0
      %5226 = vmatprep.subr.bf16.mxu0 0
      %5227 = vmatpush1.bf16.msra.mxu0 0
      %5228 = vmatprep.subr.bf16.mxu0 0
      %5229 = vmatpush1.bf16.msra.mxu0 %v5167
      %5230 = vmatprep.subr.bf16.mxu0 0
      %5231 = vmatpush2.bf16.msra.mxu0 0
      %5232 = vmatprep.subr.bf16.mxu0 0
      %5233 = vmatpush2.bf16.msra.mxu0 0
      %5234 = vmatprep.subr.bf16.mxu0 0
      %5235 = vmatpush2.bf16.msra.mxu0 0
      %5236 = vmatprep.subr.bf16.mxu0 0
      %5237 = vmatpush2.bf16.msra.mxu0 0
      %5238 = vmatprep.subr.bf16.mxu0 0
      %5239 = vmatpush2.bf16.msra.mxu0 0
      %5240 = vmatprep.subr.bf16.mxu0 0
      %5241 = vmatpush2.bf16.msra.mxu0 0
      %5242 = vmatprep.subr.bf16.mxu0 0
      %5243 = vmatpush2.bf16.msra.mxu0 0
      %5244 = vmatprep.subr.bf16.mxu0 0
      %5245 = vmatpush2.bf16.msra.mxu0 0
      %5246 = vmatprep.mubr.bf16.mxu0 0
      %5247 = vmatmul.mubr.bf16.gmra.mxu0 %v4358
      %v5248 = vpop.f32.mrf.mxu0
      %v5249 = vadd.f32 %v5208, %v5248
      %v5250 = vpop.f32.mrf.mxu0
      %v5251 = vpop.f32.mrf.mxu0
      %v5252 = vadd.f32 %v5211, %v5251
      %v5253 = vpop.f32.mrf.mxu0
      %5254 = vdwg.mxu0
      %5255 = vmatprep.subr.bf16.mxu0 0
      %5256 = vmatpush1.bf16.msra.mxu0 0
      %5257 = vmatprep.subr.bf16.mxu0 0
      %5258 = vmatpush1.bf16.msra.mxu0 0
      %5259 = vmatprep.subr.bf16.mxu0 0
      %5260 = vmatpush1.bf16.msra.mxu0 0
      %5261 = vmatprep.subr.bf16.mxu0 0
      %5262 = vmatpush1.bf16.msra.mxu0 0
      %5263 = vmatprep.subr.bf16.mxu0 0
      %5264 = vmatpush1.bf16.msra.mxu0 0
      %5265 = vmatprep.subr.bf16.mxu0 0
      %5266 = vmatpush1.bf16.msra.mxu0 0
      %5267 = vmatprep.subr.bf16.mxu0 0
      %5268 = vmatpush1.bf16.msra.mxu0 0
      %5269 = vmatprep.subr.bf16.mxu0 0
      %5270 = vmatpush1.bf16.msra.mxu0 %v5167
      %5271 = vmatprep.subr.bf16.mxu0 0
      %5272 = vmatpush2.bf16.msra.mxu0 0
      %5273 = vmatprep.subr.bf16.mxu0 0
      %5274 = vmatpush2.bf16.msra.mxu0 0
      %5275 = vmatprep.subr.bf16.mxu0 0
      %5276 = vmatpush2.bf16.msra.mxu0 0
      %5277 = vmatprep.subr.bf16.mxu0 0
      %5278 = vmatpush2.bf16.msra.mxu0 0
      %5279 = vmatprep.subr.bf16.mxu0 0
      %5280 = vmatpush2.bf16.msra.mxu0 0
      %5281 = vmatprep.subr.bf16.mxu0 0
      %5282 = vmatpush2.bf16.msra.mxu0 0
      %5283 = vmatprep.subr.bf16.mxu0 0
      %5284 = vmatpush2.bf16.msra.mxu0 0
      %5285 = vmatprep.subr.bf16.mxu0 0
      %5286 = vmatpush2.bf16.msra.mxu0 0
      %5287 = vmatprep.mubr.bf16.mxu0 0
      %5288 = vmatmul.mubr.bf16.gmra.mxu0 %v4443
      %v5289 = vpop.f32.mrf.mxu0
      %v5290 = vadd.f32 0.0, %v5289
      %v5291 = vpop.f32.mrf.mxu0
      %v5292 = vpop.f32.mrf.mxu0
      %v5293 = vadd.f32 0.0, %v5292
      %v5294 = vpop.f32.mrf.mxu0
      %5295 = vdwg.mxu0
      %v5296 = vadd.f32 %v5249, %v5290
      %v5297 = vadd.f32 %v5252, %v5293
      %v5298 = vadd.f32 %v5032, %v5163
      %v5299 = vadd.f32 %v5033, %v5164
      %v5300 = vsub.f32 %v5296, %v5032
      %v5301 = vsub.f32 %v5297, %v5033
      %v5302 = vadd.f32 %v5300, %v5163
      %v5303 = vadd.f32 %v5301, %v5164
      %5304 = vst.msk [vmem:[%s639 + $0x20] sm:$0xff] %vm738, %v5298
      %5305 = vst.msk [vmem:[%s639 + $0x28] sm:$0xff] %vm738, %v5299
      %5306 = vst.msk [vmem:[%s648 + $0x20] sm:$0xff] %vm738, %v5302
      %5307 = vst.msk [vmem:[%s648 + $0x28] sm:$0xff] %vm738, %v5303
      %v5308 = vpack.c.bf16 %v4062, %v4061
      %v5309 = vunpack.c.l.bf16 %v5308
      %v5310 = vunpack.c.h.bf16 %v5308
      %v5311 = vsub.f32 %v4061, %v5309
      %v5312 = vsub.f32 %v4062, %v5310
      %v5313 = vpack.c.bf16 %v5312, %v5311
      %5314 = vmatprep.subr.bf16.mxu0 0
      %5315 = vmatpush1.bf16.msra.mxu0 0
      %5316 = vmatprep.subr.bf16.mxu0 0
      %5317 = vmatpush1.bf16.msra.mxu0 0
      %5318 = vmatprep.subr.bf16.mxu0 0
      %5319 = vmatpush1.bf16.msra.mxu0 0
      %5320 = vmatprep.subr.bf16.mxu0 0
      %5321 = vmatpush1.bf16.msra.mxu0 0
      %5322 = vmatprep.subr.bf16.mxu0 0
      %5323 = vmatpush1.bf16.msra.mxu0 0
      %5324 = vmatprep.subr.bf16.mxu0 0
      %5325 = vmatpush1.bf16.msra.mxu0 0
      %5326 = vmatprep.subr.bf16.mxu0 0
      %5327 = vmatpush1.bf16.msra.mxu0 0
      %5328 = vmatprep.subr.bf16.mxu0 0
      %5329 = vmatpush1.bf16.msra.mxu0 %v5313
      %5330 = vmatprep.subr.bf16.mxu0 0
      %5331 = vmatpush2.bf16.msra.mxu0 0
      %5332 = vmatprep.subr.bf16.mxu0 0
      %5333 = vmatpush2.bf16.msra.mxu0 0
      %5334 = vmatprep.subr.bf16.mxu0 0
      %5335 = vmatpush2.bf16.msra.mxu0 0
      %5336 = vmatprep.subr.bf16.mxu0 0
      %5337 = vmatpush2.bf16.msra.mxu0 0
      %5338 = vmatprep.subr.bf16.mxu0 0
      %5339 = vmatpush2.bf16.msra.mxu0 0
      %5340 = vmatprep.subr.bf16.mxu0 0
      %5341 = vmatpush2.bf16.msra.mxu0 0
      %5342 = vmatprep.subr.bf16.mxu0 0
      %5343 = vmatpush2.bf16.msra.mxu0 0
      %5344 = vmatprep.subr.bf16.mxu0 0
      %5345 = vmatpush2.bf16.msra.mxu0 0
      %5346 = vmatprep.mubr.bf16.mxu0 0
      %5347 = vmatmul.mubr.bf16.gmra.mxu0 %v740
      %v5348 = vpop.f32.mrf.mxu0
      %v5349 = vadd.f32 0.0, %v5348
      %v5350 = vpop.f32.mrf.mxu0
      %v5351 = vpop.f32.mrf.mxu0
      %v5352 = vadd.f32 0.0, %v5351
      %v5353 = vpop.f32.mrf.mxu0
      %5354 = vdwg.mxu0
      %5355 = vmatprep.subr.bf16.mxu0 0
      %5356 = vmatpush1.bf16.msra.mxu0 0
      %5357 = vmatprep.subr.bf16.mxu0 0
      %5358 = vmatpush1.bf16.msra.mxu0 0
      %5359 = vmatprep.subr.bf16.mxu0 0
      %5360 = vmatpush1.bf16.msra.mxu0 0
      %5361 = vmatprep.subr.bf16.mxu0 0
      %5362 = vmatpush1.bf16.msra.mxu0 0
      %5363 = vmatprep.subr.bf16.mxu0 0
      %5364 = vmatpush1.bf16.msra.mxu0 0
      %5365 = vmatprep.subr.bf16.mxu0 0
      %5366 = vmatpush1.bf16.msra.mxu0 0
      %5367 = vmatprep.subr.bf16.mxu0 0
      %5368 = vmatpush1.bf16.msra.mxu0 0
      %5369 = vmatprep.subr.bf16.mxu0 0
      %5370 = vmatpush1.bf16.msra.mxu0 %v5308
      %5371 = vmatprep.subr.bf16.mxu0 0
      %5372 = vmatpush2.bf16.msra.mxu0 0
      %5373 = vmatprep.subr.bf16.mxu0 0
      %5374 = vmatpush2.bf16.msra.mxu0 0
      %5375 = vmatprep.subr.bf16.mxu0 0
      %5376 = vmatpush2.bf16.msra.mxu0 0
      %5377 = vmatprep.subr.bf16.mxu0 0
      %5378 = vmatpush2.bf16.msra.mxu0 0
      %5379 = vmatprep.subr.bf16.mxu0 0
      %5380 = vmatpush2.bf16.msra.mxu0 0
      %5381 = vmatprep.subr.bf16.mxu0 0
      %5382 = vmatpush2.bf16.msra.mxu0 0
      %5383 = vmatprep.subr.bf16.mxu0 0
      %5384 = vmatpush2.bf16.msra.mxu0 0
      %5385 = vmatprep.subr.bf16.mxu0 0
      %5386 = vmatpush2.bf16.msra.mxu0 0
      %5387 = vmatprep.mubr.bf16.mxu0 0
      %5388 = vmatmul.mubr.bf16.gmra.mxu0 %v740
      %v5389 = vpop.f32.mrf.mxu0
      %v5390 = vadd.f32 %v5349, %v5389
      %v5391 = vpop.f32.mrf.mxu0
      %v5392 = vpop.f32.mrf.mxu0
      %v5393 = vadd.f32 %v5352, %v5392
      %v5394 = vpop.f32.mrf.mxu0
      %5395 = vdwg.mxu0
      %5396 = vmatprep.subr.bf16.mxu0 0
      %5397 = vmatpush1.bf16.msra.mxu0 0
      %5398 = vmatprep.subr.bf16.mxu0 0
      %5399 = vmatpush1.bf16.msra.mxu0 0
      %5400 = vmatprep.subr.bf16.mxu0 0
      %5401 = vmatpush1.bf16.msra.mxu0 0
      %5402 = vmatprep.subr.bf16.mxu0 0
      %5403 = vmatpush1.bf16.msra.mxu0 0
      %5404 = vmatprep.subr.bf16.mxu0 0
      %5405 = vmatpush1.bf16.msra.mxu0 0
      %5406 = vmatprep.subr.bf16.mxu0 0
      %5407 = vmatpush1.bf16.msra.mxu0 0
      %5408 = vmatprep.subr.bf16.mxu0 0
      %5409 = vmatpush1.bf16.msra.mxu0 0
      %5410 = vmatprep.subr.bf16.mxu0 0
      %5411 = vmatpush1.bf16.msra.mxu0 %v5308
      %5412 = vmatprep.subr.bf16.mxu0 0
      %5413 = vmatpush2.bf16.msra.mxu0 0
      %5414 = vmatprep.subr.bf16.mxu0 0
      %5415 = vmatpush2.bf16.msra.mxu0 0
      %5416 = vmatprep.subr.bf16.mxu0 0
      %5417 = vmatpush2.bf16.msra.mxu0 0
      %5418 = vmatprep.subr.bf16.mxu0 0
      %5419 = vmatpush2.bf16.msra.mxu0 0
      %5420 = vmatprep.subr.bf16.mxu0 0
      %5421 = vmatpush2.bf16.msra.mxu0 0
      %5422 = vmatprep.subr.bf16.mxu0 0
      %5423 = vmatpush2.bf16.msra.mxu0 0
      %5424 = vmatprep.subr.bf16.mxu0 0
      %5425 = vmatpush2.bf16.msra.mxu0 0
      %5426 = vmatprep.subr.bf16.mxu0 0
      %5427 = vmatpush2.bf16.msra.mxu0 0
      %5428 = vmatprep.mubr.bf16.mxu0 0
      %5429 = vmatmul.mubr.bf16.gmra.mxu0 %v825
      %v5430 = vpop.f32.mrf.mxu0
      %v5431 = vadd.f32 0.0, %v5430
      %v5432 = vpop.f32.mrf.mxu0
      %v5433 = vpop.f32.mrf.mxu0
      %v5434 = vadd.f32 0.0, %v5433
      %v5435 = vpop.f32.mrf.mxu0
      %5436 = vdwg.mxu0
      %v5437 = vadd.f32 %v5390, %v5431
      %v5438 = vadd.f32 %v5393, %v5434
      %v5439 = vpack.c.bf16 %v4078, %v4077
      %v5440 = vunpack.c.l.bf16 %v5439
      %v5441 = vunpack.c.h.bf16 %v5439
      %v5442 = vsub.f32 %v4077, %v5440
      %v5443 = vsub.f32 %v4078, %v5441
      %v5444 = vpack.c.bf16 %v5443, %v5442
      %5445 = vmatprep.subr.bf16.mxu0 0
      %5446 = vmatpush1.bf16.msra.mxu0 0
      %5447 = vmatprep.subr.bf16.mxu0 0
      %5448 = vmatpush1.bf16.msra.mxu0 0
      %5449 = vmatprep.subr.bf16.mxu0 0
      %5450 = vmatpush1.bf16.msra.mxu0 0
      %5451 = vmatprep.subr.bf16.mxu0 0
      %5452 = vmatpush1.bf16.msra.mxu0 0
      %5453 = vmatprep.subr.bf16.mxu0 0
      %5454 = vmatpush1.bf16.msra.mxu0 0
      %5455 = vmatprep.subr.bf16.mxu0 0
      %5456 = vmatpush1.bf16.msra.mxu0 0
      %5457 = vmatprep.subr.bf16.mxu0 0
      %5458 = vmatpush1.bf16.msra.mxu0 0
      %5459 = vmatprep.subr.bf16.mxu0 0
      %5460 = vmatpush1.bf16.msra.mxu0 %v5444
      %5461 = vmatprep.subr.bf16.mxu0 0
      %5462 = vmatpush2.bf16.msra.mxu0 0
      %5463 = vmatprep.subr.bf16.mxu0 0
      %5464 = vmatpush2.bf16.msra.mxu0 0
      %5465 = vmatprep.subr.bf16.mxu0 0
      %5466 = vmatpush2.bf16.msra.mxu0 0
      %5467 = vmatprep.subr.bf16.mxu0 0
      %5468 = vmatpush2.bf16.msra.mxu0 0
      %5469 = vmatprep.subr.bf16.mxu0 0
      %5470 = vmatpush2.bf16.msra.mxu0 0
      %5471 = vmatprep.subr.bf16.mxu0 0
      %5472 = vmatpush2.bf16.msra.mxu0 0
      %5473 = vmatprep.subr.bf16.mxu0 0
      %5474 = vmatpush2.bf16.msra.mxu0 0
      %5475 = vmatprep.subr.bf16.mxu0 0
      %5476 = vmatpush2.bf16.msra.mxu0 0
      %5477 = vmatprep.mubr.bf16.mxu0 0
      %5478 = vmatmul.mubr.bf16.gmra.mxu0 %v883
      %v5479 = vpop.f32.mrf.mxu0
      %v5480 = vadd.f32 0.0, %v5479
      %v5481 = vpop.f32.mrf.mxu0
      %v5482 = vpop.f32.mrf.mxu0
      %v5483 = vadd.f32 0.0, %v5482
      %v5484 = vpop.f32.mrf.mxu0
      %5485 = vdwg.mxu0
      %5486 = vmatprep.subr.bf16.mxu0 0
      %5487 = vmatpush1.bf16.msra.mxu0 0
      %5488 = vmatprep.subr.bf16.mxu0 0
      %5489 = vmatpush1.bf16.msra.mxu0 0
      %5490 = vmatprep.subr.bf16.mxu0 0
      %5491 = vmatpush1.bf16.msra.mxu0 0
      %5492 = vmatprep.subr.bf16.mxu0 0
      %5493 = vmatpush1.bf16.msra.mxu0 0
      %5494 = vmatprep.subr.bf16.mxu0 0
      %5495 = vmatpush1.bf16.msra.mxu0 0
      %5496 = vmatprep.subr.bf16.mxu0 0
      %5497 = vmatpush1.bf16.msra.mxu0 0
      %5498 = vmatprep.subr.bf16.mxu0 0
      %5499 = vmatpush1.bf16.msra.mxu0 0
      %5500 = vmatprep.subr.bf16.mxu0 0
      %5501 = vmatpush1.bf16.msra.mxu0 %v5439
      %5502 = vmatprep.subr.bf16.mxu0 0
      %5503 = vmatpush2.bf16.msra.mxu0 0
      %5504 = vmatprep.subr.bf16.mxu0 0
      %5505 = vmatpush2.bf16.msra.mxu0 0
      %5506 = vmatprep.subr.bf16.mxu0 0
      %5507 = vmatpush2.bf16.msra.mxu0 0
      %5508 = vmatprep.subr.bf16.mxu0 0
      %5509 = vmatpush2.bf16.msra.mxu0 0
      %5510 = vmatprep.subr.bf16.mxu0 0
      %5511 = vmatpush2.bf16.msra.mxu0 0
      %5512 = vmatprep.subr.bf16.mxu0 0
      %5513 = vmatpush2.bf16.msra.mxu0 0
      %5514 = vmatprep.subr.bf16.mxu0 0
      %5515 = vmatpush2.bf16.msra.mxu0 0
      %5516 = vmatprep.subr.bf16.mxu0 0
      %5517 = vmatpush2.bf16.msra.mxu0 0
      %5518 = vmatprep.mubr.bf16.mxu0 0
      %5519 = vmatmul.mubr.bf16.gmra.mxu0 %v883
      %v5520 = vpop.f32.mrf.mxu0
      %v5521 = vadd.f32 %v5480, %v5520
      %v5522 = vpop.f32.mrf.mxu0
      %v5523 = vpop.f32.mrf.mxu0
      %v5524 = vadd.f32 %v5483, %v5523
      %v5525 = vpop.f32.mrf.mxu0
      %5526 = vdwg.mxu0
      %5527 = vmatprep.subr.bf16.mxu0 0
      %5528 = vmatpush1.bf16.msra.mxu0 0
      %5529 = vmatprep.subr.bf16.mxu0 0
      %5530 = vmatpush1.bf16.msra.mxu0 0
      %5531 = vmatprep.subr.bf16.mxu0 0
      %5532 = vmatpush1.bf16.msra.mxu0 0
      %5533 = vmatprep.subr.bf16.mxu0 0
      %5534 = vmatpush1.bf16.msra.mxu0 0
      %5535 = vmatprep.subr.bf16.mxu0 0
      %5536 = vmatpush1.bf16.msra.mxu0 0
      %5537 = vmatprep.subr.bf16.mxu0 0
      %5538 = vmatpush1.bf16.msra.mxu0 0
      %5539 = vmatprep.subr.bf16.mxu0 0
      %5540 = vmatpush1.bf16.msra.mxu0 0
      %5541 = vmatprep.subr.bf16.mxu0 0
      %5542 = vmatpush1.bf16.msra.mxu0 %v5439
      %5543 = vmatprep.subr.bf16.mxu0 0
      %5544 = vmatpush2.bf16.msra.mxu0 0
      %5545 = vmatprep.subr.bf16.mxu0 0
      %5546 = vmatpush2.bf16.msra.mxu0 0
      %5547 = vmatprep.subr.bf16.mxu0 0
      %5548 = vmatpush2.bf16.msra.mxu0 0
      %5549 = vmatprep.subr.bf16.mxu0 0
      %5550 = vmatpush2.bf16.msra.mxu0 0
      %5551 = vmatprep.subr.bf16.mxu0 0
      %5552 = vmatpush2.bf16.msra.mxu0 0
      %5553 = vmatprep.subr.bf16.mxu0 0
      %5554 = vmatpush2.bf16.msra.mxu0 0
      %5555 = vmatprep.subr.bf16.mxu0 0
      %5556 = vmatpush2.bf16.msra.mxu0 0
      %5557 = vmatprep.subr.bf16.mxu0 0
      %5558 = vmatpush2.bf16.msra.mxu0 0
      %5559 = vmatprep.mubr.bf16.mxu0 0
      %5560 = vmatmul.mubr.bf16.gmra.mxu0 %v968
      %v5561 = vpop.f32.mrf.mxu0
      %v5562 = vadd.f32 0.0, %v5561
      %v5563 = vpop.f32.mrf.mxu0
      %v5564 = vpop.f32.mrf.mxu0
      %v5565 = vadd.f32 0.0, %v5564
      %v5566 = vpop.f32.mrf.mxu0
      %5567 = vdwg.mxu0
      %v5568 = vadd.f32 %v5521, %v5562
      %v5569 = vadd.f32 %v5524, %v5565
      %v5570 = vadd.f32 %v4061, %v4077
      %v5571 = vadd.f32 %v4062, %v4078
      %v5572 = vpack.c.bf16 %v5571, %v5570
      %v5573 = vunpack.c.l.bf16 %v5572
      %v5574 = vunpack.c.h.bf16 %v5572
      %v5575 = vsub.f32 %v5570, %v5573
      %v5576 = vsub.f32 %v5571, %v5574
      %v5577 = vpack.c.bf16 %v5576, %v5575
      %5578 = vmatprep.subr.bf16.mxu0 0
      %5579 = vmatpush1.bf16.msra.mxu0 0
      %5580 = vmatprep.subr.bf16.mxu0 0
      %5581 = vmatpush1.bf16.msra.mxu0 0
      %5582 = vmatprep.subr.bf16.mxu0 0
      %5583 = vmatpush1.bf16.msra.mxu0 0
      %5584 = vmatprep.subr.bf16.mxu0 0
      %5585 = vmatpush1.bf16.msra.mxu0 0
      %5586 = vmatprep.subr.bf16.mxu0 0
      %5587 = vmatpush1.bf16.msra.mxu0 0
      %5588 = vmatprep.subr.bf16.mxu0 0
      %5589 = vmatpush1.bf16.msra.mxu0 0
      %5590 = vmatprep.subr.bf16.mxu0 0
      %5591 = vmatpush1.bf16.msra.mxu0 0
      %5592 = vmatprep.subr.bf16.mxu0 0
      %5593 = vmatpush1.bf16.msra.mxu0 %v5577
      %5594 = vmatprep.subr.bf16.mxu0 0
      %5595 = vmatpush2.bf16.msra.mxu0 0
      %5596 = vmatprep.subr.bf16.mxu0 0
      %5597 = vmatpush2.bf16.msra.mxu0 0
      %5598 = vmatprep.subr.bf16.mxu0 0
      %5599 = vmatpush2.bf16.msra.mxu0 0
      %5600 = vmatprep.subr.bf16.mxu0 0
      %5601 = vmatpush2.bf16.msra.mxu0 0
      %5602 = vmatprep.subr.bf16.mxu0 0
      %5603 = vmatpush2.bf16.msra.mxu0 0
      %5604 = vmatprep.subr.bf16.mxu0 0
      %5605 = vmatpush2.bf16.msra.mxu0 0
      %5606 = vmatprep.subr.bf16.mxu0 0
      %5607 = vmatpush2.bf16.msra.mxu0 0
      %5608 = vmatprep.subr.bf16.mxu0 0
      %5609 = vmatpush2.bf16.msra.mxu0 0
      %5610 = vmatprep.mubr.bf16.mxu0 0
      %5611 = vmatmul.mubr.bf16.gmra.mxu0 %v4358
      %v5612 = vpop.f32.mrf.mxu0
      %v5613 = vadd.f32 0.0, %v5612
      %v5614 = vpop.f32.mrf.mxu0
      %v5615 = vpop.f32.mrf.mxu0
      %v5616 = vadd.f32 0.0, %v5615
      %v5617 = vpop.f32.mrf.mxu0
      %5618 = vdwg.mxu0
      %5619 = vmatprep.subr.bf16.mxu0 0
      %5620 = vmatpush1.bf16.msra.mxu0 0
      %5621 = vmatprep.subr.bf16.mxu0 0
      %5622 = vmatpush1.bf16.msra.mxu0 0
      %5623 = vmatprep.subr.bf16.mxu0 0
      %5624 = vmatpush1.bf16.msra.mxu0 0
      %5625 = vmatprep.subr.bf16.mxu0 0
      %5626 = vmatpush1.bf16.msra.mxu0 0
      %5627 = vmatprep.subr.bf16.mxu0 0
      %5628 = vmatpush1.bf16.msra.mxu0 0
      %5629 = vmatprep.subr.bf16.mxu0 0
      %5630 = vmatpush1.bf16.msra.mxu0 0
      %5631 = vmatprep.subr.bf16.mxu0 0
      %5632 = vmatpush1.bf16.msra.mxu0 0
      %5633 = vmatprep.subr.bf16.mxu0 0
      %5634 = vmatpush1.bf16.msra.mxu0 %v5572
      %5635 = vmatprep.subr.bf16.mxu0 0
      %5636 = vmatpush2.bf16.msra.mxu0 0
      %5637 = vmatprep.subr.bf16.mxu0 0
      %5638 = vmatpush2.bf16.msra.mxu0 0
      %5639 = vmatprep.subr.bf16.mxu0 0
      %5640 = vmatpush2.bf16.msra.mxu0 0
      %5641 = vmatprep.subr.bf16.mxu0 0
      %5642 = vmatpush2.bf16.msra.mxu0 0
      %5643 = vmatprep.subr.bf16.mxu0 0
      %5644 = vmatpush2.bf16.msra.mxu0 0
      %5645 = vmatprep.subr.bf16.mxu0 0
      %5646 = vmatpush2.bf16.msra.mxu0 0
      %5647 = vmatprep.subr.bf16.mxu0 0
      %5648 = vmatpush2.bf16.msra.mxu0 0
      %5649 = vmatprep.subr.bf16.mxu0 0
      %5650 = vmatpush2.bf16.msra.mxu0 0
      %5651 = vmatprep.mubr.bf16.mxu0 0
      %5652 = vmatmul.mubr.bf16.gmra.mxu0 %v4358
      %v5653 = vpop.f32.mrf.mxu0
      %v5654 = vadd.f32 %v5613, %v5653
      %v5655 = vpop.f32.mrf.mxu0
      %v5656 = vpop.f32.mrf.mxu0
      %v5657 = vadd.f32 %v5616, %v5656
      %v5658 = vpop.f32.mrf.mxu0
      %5659 = vdwg.mxu0
      %5660 = vmatprep.subr.bf16.mxu0 0
      %5661 = vmatpush1.bf16.msra.mxu0 0
      %5662 = vmatprep.subr.bf16.mxu0 0
      %5663 = vmatpush1.bf16.msra.mxu0 0
      %5664 = vmatprep.subr.bf16.mxu0 0
      %5665 = vmatpush1.bf16.msra.mxu0 0
      %5666 = vmatprep.subr.bf16.mxu0 0
      %5667 = vmatpush1.bf16.msra.mxu0 0
      %5668 = vmatprep.subr.bf16.mxu0 0
      %5669 = vmatpush1.bf16.msra.mxu0 0
      %5670 = vmatprep.subr.bf16.mxu0 0
      %5671 = vmatpush1.bf16.msra.mxu0 0
      %5672 = vmatprep.subr.bf16.mxu0 0
      %5673 = vmatpush1.bf16.msra.mxu0 0
      %5674 = vmatprep.subr.bf16.mxu0 0
      %5675 = vmatpush1.bf16.msra.mxu0 %v5572
      %5676 = vmatprep.subr.bf16.mxu0 0
      %5677 = vmatpush2.bf16.msra.mxu0 0
      %5678 = vmatprep.subr.bf16.mxu0 0
      %5679 = vmatpush2.bf16.msra.mxu0 0
      %5680 = vmatprep.subr.bf16.mxu0 0
      %5681 = vmatpush2.bf16.msra.mxu0 0
      %5682 = vmatprep.subr.bf16.mxu0 0
      %5683 = vmatpush2.bf16.msra.mxu0 0
      %5684 = vmatprep.subr.bf16.mxu0 0
      %5685 = vmatpush2.bf16.msra.mxu0 0
      %5686 = vmatprep.subr.bf16.mxu0 0
      %5687 = vmatpush2.bf16.msra.mxu0 0
      %5688 = vmatprep.subr.bf16.mxu0 0
      %5689 = vmatpush2.bf16.msra.mxu0 0
      %5690 = vmatprep.subr.bf16.mxu0 0
      %5691 = vmatpush2.bf16.msra.mxu0 0
      %5692 = vmatprep.mubr.bf16.mxu0 0
      %5693 = vmatmul.mubr.bf16.gmra.mxu0 %v4443
      %v5694 = vpop.f32.mrf.mxu0
      %v5695 = vadd.f32 0.0, %v5694
      %v5696 = vpop.f32.mrf.mxu0
      %v5697 = vpop.f32.mrf.mxu0
      %v5698 = vadd.f32 0.0, %v5697
      %v5699 = vpop.f32.mrf.mxu0
      %5700 = vdwg.mxu0
      %v5701 = vadd.f32 %v5654, %v5695
      %v5702 = vadd.f32 %v5657, %v5698
      %v5703 = vadd.f32 %v5437, %v5568
      %v5704 = vadd.f32 %v5438, %v5569
      %v5705 = vsub.f32 %v5701, %v5437
      %v5706 = vsub.f32 %v5702, %v5438
      %v5707 = vadd.f32 %v5705, %v5568
      %v5708 = vadd.f32 %v5706, %v5569
      %5709 = vst.msk [vmem:[%s639 + $0x30] sm:$0xff] %vm738, %v5703
      %5710 = vst.msk [vmem:[%s639 + $0x38] sm:$0xff] %vm738, %v5704
      %5711 = vst.msk [vmem:[%s648 + $0x30] sm:$0xff] %vm738, %v5707
      %5712 = vst.msk [vmem:[%s648 + $0x38] sm:$0xff] %vm738, %v5708
      %p5713 = scmp.lt.s32.totalorder %s28, 1
      %s5714 = scalar_select %p5713, %s28, 1
      %p5715 = scmp.lt.s32.totalorder %s29, 0
      %s5716 = scalar_select %p5715, %s29, 0
      %s5717 = smul.addr %s5716, 8
      %s5718 = smul.addr %s5714, 8
      %s5719 = sadd.s32 %s5717, %s5718
      %s5720 = smul.addr %s5719, 8
      %s5721 = scalar_lea.vmem %s11, %s5720
      %p5722 = scmp.lt.s32.totalorder %s28, 1
      %s5723 = scalar_select %p5722, %s28, 1
      %p5724 = scmp.lt.s32.totalorder %s29, 0
      %s5725 = scalar_select %p5724, %s29, 0
      %s5726 = smul.addr %s5725, 8
      %s5727 = smul.addr %s5723, 8
      %s5728 = sadd.s32 %s5726, %s5727
      %s5729 = smul.addr %s5728, 8
      %s5730 = scalar_lea.vmem %s12, %s5729
      // Predicated region
      $region65: #{tpu_custom_call.1} parent=63 // pred_check
        %p5731 = pneg %p332
      $region66: #{tpu_custom_call.1} parent=63 // pred_check_branch
        %5733 = sbr.rel (%p5731) target = $region68
      $region67: #{tpu_custom_call.1} parent=63 // pred_region
        _
      $region68: #{tpu_custom_call.1} parent=63 // pred_fallthru
        _
      // Predicated region
      $region69: #{tpu_custom_call.1} parent=63 // pred_check
        %p5734 = pneg %p360
      $region70: #{tpu_custom_call.1} parent=63 // pred_check_branch
        %5736 = sbr.rel (%p5734) target = $region72
      $region71: #{tpu_custom_call.1} parent=63 // pred_region
        _
      $region72: #{tpu_custom_call.1} parent=63 // pred_fallthru
        _
    $region64: #{tpu_custom_call.1} parent=5 // pred_fallthru
      _
    %p5737 = scmp.le.s32.totalorder 2, %s19
    // Predicated region
    $region73: #{tpu_custom_call.1} parent=5 // pred_check
      %p5738 = pneg %p5737
    $region74: #{tpu_custom_call.1} parent=5 // pred_check_branch
      %5740 = sbr.rel (%p5738) target = $region76
    $region75: #{tpu_custom_call.1} parent=5 // pred_region
      %s5741 = ssub.s32 %s19, 2
      // Predicated region
      $region77: #{tpu_custom_call.1} parent=75 // pred_check
        %p5742 = pneg %p338
      $region78: #{tpu_custom_call.1} parent=75 // pred_check_branch
        %5744 = sbr.rel (%p5742) target = $region80
      $region79: #{tpu_custom_call.1} parent=75 // pred_region
        %p5745 = scmp.lt.s32.totalorder %s30, 1
        %s5746 = scalar_select %p5745, %s30, 1
        %p5747 = scmp.lt.s32.totalorder %s31, 0
        %s5748 = scalar_select %p5747, %s31, 0
        %s5749 = smul.addr %s5748, 8
        %s5750 = smul.addr %s5746, 8
        %s5751 = sadd.s32 %s5749, %s5750
        %s5752 = smul.addr %s5751, 8
        %s5753 = scalar_lea.vmem %s11, %s5752
      $region80: #{tpu_custom_call.1} parent=75 // pred_fallthru
        _
      // Predicated region
      $region81: #{tpu_custom_call.1} parent=75 // pred_check
        %p5754 = pneg %p366
      $region82: #{tpu_custom_call.1} parent=75 // pred_check_branch
        %5756 = sbr.rel (%p5754) target = $region84
      $region83: #{tpu_custom_call.1} parent=75 // pred_region
        %p5757 = scmp.lt.s32.totalorder %s30, 1
        %s5758 = scalar_select %p5757, %s30, 1
        %p5759 = scmp.lt.s32.totalorder %s31, 0
        %s5760 = scalar_select %p5759, %s31, 0
        %s5761 = smul.addr %s5760, 8
        %s5762 = smul.addr %s5758, 8
        %s5763 = sadd.s32 %s5761, %s5762
        %s5764 = smul.addr %s5763, 8
        %s5765 = scalar_lea.vmem %s12, %s5764
      $region84: #{tpu_custom_call.1} parent=75 // pred_fallthru
        _
    $region76: #{tpu_custom_call.1} parent=5 // pred_fallthru
      _
  $region6: #{tpu_custom_call.1} parent=0 // loop_footer
    %s23 = sadd.s32 1, %s19
  $region7: #{tpu_custom_call.1} parent=0 // loop_footer_branch
    %18 = sbr.rel target = $region3
  $region8: #{tpu_custom_call.1} parent=0 // loop_exit
    _

</llo_original>
